<compile_context>
chip_gen: v7x
topology: tpu7x:2x2x1
jax: 0.10.0
libtpu: 0.0.40
codegen_flags: <defaults>
</compile_context>

<pallas_src>
import functools

import jax
import jax.numpy as jnp
from jax.experimental import pallas as pl
from jax.experimental.pallas import tpu as pltpu

H, W, WP = 28, 28, 32          # image rows, cols, padded cols (sublane aligned)
CIN, COUT = 64, 128            # contraction channels per group, output channels
KF = 3 * CIN                   # 192 features per (l, k) group (width offset x chan)
HP = H + 2                     # 30 image rows incl. one zero pad row top/bottom
M = H * WP                     # 896 output rows (= 7 * 128)
MP = HP * WP                   # 960 scratch rows


# ------------------------------ Pallas kernel ------------------------------ #
def _make_kernel(shift):
    # Channel halves feeding the un-rolled (A) and rolled (B) terms of the
    # 56-wide roll + pair-sum:  shift=+1 -> (low, high),  shift=-1 -> (high, low).
    c_a, c_b = (0, CIN) if shift == 1 else (CIN, 0)

    def kernel(a_ref, w_ref, o_ref, b2_ref):
        # a_ref : (28, 32, 128) f32  rolled NHWC, zero cols at wp=0 and wp>=29
        # w_ref : (3, 192, 128) bf16 w_stack[j, l*64+k, i] = w[i, j, l, k]
        # o_ref : (896, 128) f32     out[h*32 + w, i]  (cols w in [28,32) unused)
        # b2_ref: (960, 192) bf16    scratch; row (h+1)*32 + w holds b_[h, :, w, :]
        b2_ref[...] = jnp.zeros_like(b2_ref)

        blocks = []
        for l in range(3):                     # width-kernel offset (static unroll)
            # A term: plain width unfold of one channel half.
            a_term = a_ref[:, l:l + W, c_a:c_a + CIN]            # (28, 28, 64)
            # B term: width unfold of the other half, then circular roll over w
            # (applied AFTER the unfold, so one wrap-around column is special).
            if shift == 1:
                b_term = jnp.concatenate(
                    [a_ref[:, 27 + l:28 + l, c_b:c_b + CIN],     # w = 0 (wrap)
                     a_ref[:, l:l + 27,      c_b:c_b + CIN]],    # w = 1..27
                    axis=1)
            else:
                b_term = jnp.concatenate(
                    [a_ref[:, l + 1:l + 28, c_b:c_b + CIN],      # w = 0..26
                     a_ref[:, l:l + 1,      c_b:c_b + CIN]],     # w = 27 (wrap)
                    axis=1)
            blocks.append(a_term + b_term)                       # (28, 28, 64) f32

        # (28, 28, 192) bf16; column K = l*64 + k.
        b_all = jnp.concatenate(blocks, axis=-1).astype(jnp.bfloat16)

        # Store per image row at sublane-aligned offsets 32*(h+1); rows
        # [0,32), [928,960) and cols w in [28,32) stay zero (height-unfold pad).
        for h in range(H):
            b2_ref[WP * (h + 1):WP * (h + 1) + W, :] = b_all[h]

        # Height-kernel offsets j = 0,1,2 -> aligned row offsets 0 / 32 / 64.
        # Accumulate straight into the f32 output (no zero-init pass).
        o_ref[...] = jnp.dot(b2_ref[0:M, :], w_ref[0],
                             preferred_element_type=jnp.float32)
        o_ref[...] += jnp.dot(b2_ref[WP:WP + M, :], w_ref[1],
                              preferred_element_type=jnp.float32)
        o_ref[...] += jnp.dot(b2_ref[2 * WP:2 * WP + M, :], w_ref[2],
                              preferred_element_type=jnp.float32)

    return kernel


def _fused_conv(a_pad, w_stack, shift):
    return pl.pallas_call(
        _make_kernel(shift),
        out_shape=jax.ShapeDtypeStruct((M, COUT), jnp.float32),
        grid=(1,),
        in_specs=[
            pl.BlockSpec((H, WP, 2 * CIN), lambda i: (0, 0, 0)),
            pl.BlockSpec((3, KF, COUT), lambda i: (0, 0, 0)),
        ],
        out_specs=pl.BlockSpec((M, COUT), lambda i: (0, 0)),
        scratch_shapes=[pltpu.VMEM((MP, KF), jnp.bfloat16)],
        compiler_params=pltpu.CompilerParams(
            dimension_semantics=("arbitrary",)),
        cost_estimate=pl.CostEstimate(
            flops=2 * M * COUT * 3 * KF,
            transcendentals=0,
            bytes_accessed=H * WP * 2 * CIN * 4 + 3 * KF * COUT * 2 + M * COUT * 4),
    )(a_pad, w_stack)


# ------------------------------ host-side glue ------------------------------ #
def prepare_weights(w):
    """(128,3,3,64) f32 -> (3, 192, 128) bf16, w_stack[j, l*64+k, i] = w[i,j,l,k].

    Hoisted out of the per-call path: call once and reuse across forwards."""
    return jnp.transpose(w, (1, 2, 3, 0)).reshape(3, KF, COUT).astype(jnp.bfloat16)


def _prep_activation(x, shift):
    """One fused XLA copy: NCHW -> NHWC, roll along W, pad W 28 -> 32 (1 left, 3 right)."""
    a = jnp.transpose(x, (0, 2, 3, 1))[0]                 # (28, 28, 128)
    a = jnp.roll(a, shift, axis=1)                        # torch.roll(t_2, shift, 2)
    return jnp.pad(a, ((0, 0), (1, 3), (0, 0)))           # (28, 32, 128)


@functools.partial(jax.jit, static_argnames=("shift",))
def kernel_generated_2_forward(x, w_stack, shift=1):
    """x: (1,128,28,28) f32, w_stack: prepare_weights(w) -> (1,128,28,28) f32."""
    a_pad = _prep_activation(x, shift)
    y_flat = _fused_conv(a_pad, w_stack, shift)           # (896, 128) f32
    y = y_flat.reshape(H, WP, COUT)[:, :W, :]             # drop the 4 pad cols
    return jnp.transpose(y, (2, 0, 1))[None]              # (1, 128, 28, 28)


# --------------------------- pure-JAX reference ----------------------------- #
def _reference_forward(x, w, shift):
    """Literal f32 transcription of the torch module."""
    a = jnp.transpose(x, (0, 2, 3, 1))[0]                              # NHWC
    a = jnp.roll(a, shift, axis=1)
    a_pad = jnp.pad(a, ((0, 0), (1, 1), (0, 0)))
    t2 = jnp.stack([a_pad[:, r:r + W, :] for r in range(3)], axis=1)   # (28,3,28,128)
    merged = jnp.roll(t2.reshape(H, 3, 2 * W, CIN), shift, axis=2)
    b_ = merged.reshape(H, 3, W, 2, CIN).sum(axis=3)                   # (28,3,28,64)
    b_pad = jnp.pad(b_, ((1, 1), (0, 0), (0, 0), (0, 0)))
    c = jnp.stack([b_pad[j:j + H] for j in range(3)], axis=0)          # (3,28,3,28,64)
    y = jnp.einsum('jnlok,ijlk->ino', c, w, precision='highest')[None]
    return y


if __name__ == "__main__":
    key = jax.random.PRNGKey(0)
    kx, kw = jax.random.split(key)
    # Shapes are dictated by the module's hard-coded reshapes (28x28 spatial, 128 ch).
    x = jax.random.normal(kx, (1, COUT, H, W), dtype=jnp.float32)
    w = jax.random.normal(kw, (COUT, 3, 3, CIN), dtype=jnp.float32)

    w_stack = prepare_weights(w)                                       # hoisted once

    for shift in (1, -1):    # the torch module draws +/-1 at construction time
        y = jax.block_until_ready(kernel_generated_2_forward(x, w_stack, shift=shift))
        assert y.shape == (1, COUT, H, W)
        ref = _reference_forward(x, w, shift)
        scale = jnp.max(jnp.abs(ref))
        max_err = jnp.max(jnp.abs(y - ref))
        # bf16 MXU operands with f32 accumulation over 576 terms: ~0.3% of max|ref|.
        assert max_err <= 2e-2 * scale, (
            f"shift={shift}: mismatch vs reference: {max_err} (scale {scale})")

    print("KERNEL_OK")
</pallas_src>

<mosaic_0001>
module attributes {stable_mosaic.version = 11 : i64} {
  func.func @kernel(%arg0: i32, %arg1: memref<28x32x128xf32, #tpu.memory_space<vmem>>, %arg2: memref<3x192x128xbf16, #tpu.memory_space<vmem>>, %arg3: memref<896x128xf32, #tpu.memory_space<vmem>>, %arg4: memref<960x192xbf16, #tpu.memory_space<vmem>>) attributes {dimension_semantics = [#tpu.dimension_semantics<arbitrary>], iteration_bounds = array<i64: 1>, scalar_prefetch = 0 : i64, scratch_operands = 1 : i64, tpu.core_type = #tpu.core_type<tc>, window_params = [{pipeline_mode = #tpu.pipeline_mode<synchronous>, transform_indices = @transform_0, window_bounds = array<i64: 28, 32, 128>}, {pipeline_mode = #tpu.pipeline_mode<synchronous>, transform_indices = @transform_1, window_bounds = array<i64: 3, 192, 128>}, {pipeline_mode = #tpu.pipeline_mode<synchronous>, transform_indices = @transform_2, window_bounds = array<i64: 896, 128>}]} {
    %cst = arith.constant 0.000000e+00 : bf16
    %0 = vector.broadcast %cst : bf16 to vector<960x192xbf16>
    %c0 = arith.constant 0 : index
    %c0_0 = arith.constant 0 : index
    %1 = vector.load %arg4[%c0, %c0_0] : memref<960x192xbf16, #tpu.memory_space<vmem>>, vector<960x192xbf16>
    tpu.vector_store %arg4[%c0, %c0_0], %0 {strides = array<i32>} : memref<960x192xbf16, #tpu.memory_space<vmem>>, vector<960x192xbf16>,
    %c0_1 = arith.constant 0 : index
    %c0_2 = arith.constant 0 : index
    %c0_3 = arith.constant 0 : index
    %2 = vector.load %arg1[%c0_1, %c0_2, %c0_3] : memref<28x32x128xf32, #tpu.memory_space<vmem>>, vector<28x28x64xf32>
    %c0_4 = arith.constant 0 : index
    %c27 = arith.constant 27 : index
    %c64 = arith.constant 64 : index
    %3 = vector.load %arg1[%c0_4, %c27, %c64] : memref<28x32x128xf32, #tpu.memory_space<vmem>>, vector<28x1x64xf32>
    %c0_5 = arith.constant 0 : index
    %c0_6 = arith.constant 0 : index
    %c64_7 = arith.constant 64 : index
    %4 = vector.load %arg1[%c0_5, %c0_6, %c64_7] : memref<28x32x128xf32, #tpu.memory_space<vmem>>, vector<28x27x64xf32>
    %5 = tpu.concatenate %3, %4 in 1 : vector<28x1x64xf32>, vector<28x27x64xf32> -> vector<28x28x64xf32>
    %6 = arith.addf %2, %5 : vector<28x28x64xf32>
    %c0_8 = arith.constant 0 : index
    %c1 = arith.constant 1 : index
    %c0_9 = arith.constant 0 : index
    %7 = vector.load %arg1[%c0_8, %c1, %c0_9] : memref<28x32x128xf32, #tpu.memory_space<vmem>>, vector<28x28x64xf32>
    %c0_10 = arith.constant 0 : index
    %c28 = arith.constant 28 : index
    %c64_11 = arith.constant 64 : index
    %8 = vector.load %arg1[%c0_10, %c28, %c64_11] : memref<28x32x128xf32, #tpu.memory_space<vmem>>, vector<28x1x64xf32>
    %c0_12 = arith.constant 0 : index
    %c1_13 = arith.constant 1 : index
    %c64_14 = arith.constant 64 : index
    %9 = vector.load %arg1[%c0_12, %c1_13, %c64_14] : memref<28x32x128xf32, #tpu.memory_space<vmem>>, vector<28x27x64xf32>
    %10 = tpu.concatenate %8, %9 in 1 : vector<28x1x64xf32>, vector<28x27x64xf32> -> vector<28x28x64xf32>
    %11 = arith.addf %7, %10 : vector<28x28x64xf32>
    %c0_15 = arith.constant 0 : index
    %c2 = arith.constant 2 : index
    %c0_16 = arith.constant 0 : index
    %12 = vector.load %arg1[%c0_15, %c2, %c0_16] : memref<28x32x128xf32, #tpu.memory_space<vmem>>, vector<28x28x64xf32>
    %c0_17 = arith.constant 0 : index
    %c29 = arith.constant 29 : index
    %c64_18 = arith.constant 64 : index
    %13 = vector.load %arg1[%c0_17, %c29, %c64_18] : memref<28x32x128xf32, #tpu.memory_space<vmem>>, vector<28x1x64xf32>
    %c0_19 = arith.constant 0 : index
    %c2_20 = arith.constant 2 : index
    %c64_21 = arith.constant 64 : index
    %14 = vector.load %arg1[%c0_19, %c2_20, %c64_21] : memref<28x32x128xf32, #tpu.memory_space<vmem>>, vector<28x27x64xf32>
    %15 = tpu.concatenate %13, %14 in 1 : vector<28x1x64xf32>, vector<28x27x64xf32> -> vector<28x28x64xf32>
    %16 = arith.addf %12, %15 : vector<28x28x64xf32>
    %17 = tpu.concatenate %6, %11, %16 in 2 : vector<28x28x64xf32>, vector<28x28x64xf32>, vector<28x28x64xf32> -> vector<28x28x192xf32>
    %18 = arith.truncf %17 : vector<28x28x192xf32> to vector<28x28x192xbf16>
    %19 = vector.extract_strided_slice %18 {offsets = [0, 0, 0], sizes = [1, 28, 192], strides = [1, 1, 1]} : vector<28x28x192xbf16> to vector<1x28x192xbf16>
    %20 = vector.shape_cast %19 : vector<1x28x192xbf16> to vector<28x192xbf16>
    %c32 = arith.constant 32 : index
    %c0_22 = arith.constant 0 : index
    %21 = vector.load %arg4[%c32, %c0_22] : memref<960x192xbf16, #tpu.memory_space<vmem>>, vector<28x192xbf16>
    tpu.vector_store %arg4[%c32, %c0_22], %20 {strides = array<i32>} : memref<960x192xbf16, #tpu.memory_space<vmem>>, vector<28x192xbf16>,
    %22 = vector.extract_strided_slice %18 {offsets = [1, 0, 0], sizes = [1, 28, 192], strides = [1, 1, 1]} : vector<28x28x192xbf16> to vector<1x28x192xbf16>
    %23 = vector.shape_cast %22 : vector<1x28x192xbf16> to vector<28x192xbf16>
    %c64_23 = arith.constant 64 : index
    %c0_24 = arith.constant 0 : index
    %24 = vector.load %arg4[%c64_23, %c0_24] : memref<960x192xbf16, #tpu.memory_space<vmem>>, vector<28x192xbf16>
    tpu.vector_store %arg4[%c64_23, %c0_24], %23 {strides = array<i32>} : memref<960x192xbf16, #tpu.memory_space<vmem>>, vector<28x192xbf16>,
    %25 = vector.extract_strided_slice %18 {offsets = [2, 0, 0], sizes = [1, 28, 192], strides = [1, 1, 1]} : vector<28x28x192xbf16> to vector<1x28x192xbf16>
    %26 = vector.shape_cast %25 : vector<1x28x192xbf16> to vector<28x192xbf16>
    %c96 = arith.constant 96 : index
    %c0_25 = arith.constant 0 : index
    %27 = vector.load %arg4[%c96, %c0_25] : memref<960x192xbf16, #tpu.memory_space<vmem>>, vector<28x192xbf16>
    tpu.vector_store %arg4[%c96, %c0_25], %26 {strides = array<i32>} : memref<960x192xbf16, #tpu.memory_space<vmem>>, vector<28x192xbf16>,
    %28 = vector.extract_strided_slice %18 {offsets = [3, 0, 0], sizes = [1, 28, 192], strides = [1, 1, 1]} : vector<28x28x192xbf16> to vector<1x28x192xbf16>
    %29 = vector.shape_cast %28 : vector<1x28x192xbf16> to vector<28x192xbf16>
    %c128 = arith.constant 128 : index
    %c0_26 = arith.constant 0 : index
    %30 = vector.load %arg4[%c128, %c0_26] : memref<960x192xbf16, #tpu.memory_space<vmem>>, vector<28x192xbf16>
    tpu.vector_store %arg4[%c128, %c0_26], %29 {strides = array<i32>} : memref<960x192xbf16, #tpu.memory_space<vmem>>, vector<28x192xbf16>,
    %31 = vector.extract_strided_slice %18 {offsets = [4, 0, 0], sizes = [1, 28, 192], strides = [1, 1, 1]} : vector<28x28x192xbf16> to vector<1x28x192xbf16>
    %32 = vector.shape_cast %31 : vector<1x28x192xbf16> to vector<28x192xbf16>
    %c160 = arith.constant 160 : index
    %c0_27 = arith.constant 0 : index
    %33 = vector.load %arg4[%c160, %c0_27] : memref<960x192xbf16, #tpu.memory_space<vmem>>, vector<28x192xbf16>
    tpu.vector_store %arg4[%c160, %c0_27], %32 {strides = array<i32>} : memref<960x192xbf16, #tpu.memory_space<vmem>>, vector<28x192xbf16>,
    %34 = vector.extract_strided_slice %18 {offsets = [5, 0, 0], sizes = [1, 28, 192], strides = [1, 1, 1]} : vector<28x28x192xbf16> to vector<1x28x192xbf16>
    %35 = vector.shape_cast %34 : vector<1x28x192xbf16> to vector<28x192xbf16>
    %c192 = arith.constant 192 : index
    %c0_28 = arith.constant 0 : index
    %36 = vector.load %arg4[%c192, %c0_28] : memref<960x192xbf16, #tpu.memory_space<vmem>>, vector<28x192xbf16>
    tpu.vector_store %arg4[%c192, %c0_28], %35 {strides = array<i32>} : memref<960x192xbf16, #tpu.memory_space<vmem>>, vector<28x192xbf16>,
    %37 = vector.extract_strided_slice %18 {offsets = [6, 0, 0], sizes = [1, 28, 192], strides = [1, 1, 1]} : vector<28x28x192xbf16> to vector<1x28x192xbf16>
    %38 = vector.shape_cast %37 : vector<1x28x192xbf16> to vector<28x192xbf16>
    %c224 = arith.constant 224 : index
    %c0_29 = arith.constant 0 : index
    %39 = vector.load %arg4[%c224, %c0_29] : memref<960x192xbf16, #tpu.memory_space<vmem>>, vector<28x192xbf16>
    tpu.vector_store %arg4[%c224, %c0_29], %38 {strides = array<i32>} : memref<960x192xbf16, #tpu.memory_space<vmem>>, vector<28x192xbf16>,
    %40 = vector.extract_strided_slice %18 {offsets = [7, 0, 0], sizes = [1, 28, 192], strides = [1, 1, 1]} : vector<28x28x192xbf16> to vector<1x28x192xbf16>
    %41 = vector.shape_cast %40 : vector<1x28x192xbf16> to vector<28x192xbf16>
    %c256 = arith.constant 256 : index
    %c0_30 = arith.constant 0 : index
    %42 = vector.load %arg4[%c256, %c0_30] : memref<960x192xbf16, #tpu.memory_space<vmem>>, vector<28x192xbf16>
    tpu.vector_store %arg4[%c256, %c0_30], %41 {strides = array<i32>} : memref<960x192xbf16, #tpu.memory_space<vmem>>, vector<28x192xbf16>,
    %43 = vector.extract_strided_slice %18 {offsets = [8, 0, 0], sizes = [1, 28, 192], strides = [1, 1, 1]} : vector<28x28x192xbf16> to vector<1x28x192xbf16>
    %44 = vector.shape_cast %43 : vector<1x28x192xbf16> to vector<28x192xbf16>
    %c288 = arith.constant 288 : index
    %c0_31 = arith.constant 0 : index
    %45 = vector.load %arg4[%c288, %c0_31] : memref<960x192xbf16, #tpu.memory_space<vmem>>, vector<28x192xbf16>
    tpu.vector_store %arg4[%c288, %c0_31], %44 {strides = array<i32>} : memref<960x192xbf16, #tpu.memory_space<vmem>>, vector<28x192xbf16>,
    %46 = vector.extract_strided_slice %18 {offsets = [9, 0, 0], sizes = [1, 28, 192], strides = [1, 1, 1]} : vector<28x28x192xbf16> to vector<1x28x192xbf16>
    %47 = vector.shape_cast %46 : vector<1x28x192xbf16> to vector<28x192xbf16>
    %c320 = arith.constant 320 : index
    %c0_32 = arith.constant 0 : index
    %48 = vector.load %arg4[%c320, %c0_32] : memref<960x192xbf16, #tpu.memory_space<vmem>>, vector<28x192xbf16>
    tpu.vector_store %arg4[%c320, %c0_32], %47 {strides = array<i32>} : memref<960x192xbf16, #tpu.memory_space<vmem>>, vector<28x192xbf16>,
    %49 = vector.extract_strided_slice %18 {offsets = [10, 0, 0], sizes = [1, 28, 192], strides = [1, 1, 1]} : vector<28x28x192xbf16> to vector<1x28x192xbf16>
    %50 = vector.shape_cast %49 : vector<1x28x192xbf16> to vector<28x192xbf16>
    %c352 = arith.constant 352 : index
    %c0_33 = arith.constant 0 : index
    %51 = vector.load %arg4[%c352, %c0_33] : memref<960x192xbf16, #tpu.memory_space<vmem>>, vector<28x192xbf16>
    tpu.vector_store %arg4[%c352, %c0_33], %50 {strides = array<i32>} : memref<960x192xbf16, #tpu.memory_space<vmem>>, vector<28x192xbf16>,
    %52 = vector.extract_strided_slice %18 {offsets = [11, 0, 0], sizes = [1, 28, 192], strides = [1, 1, 1]} : vector<28x28x192xbf16> to vector<1x28x192xbf16>
    %53 = vector.shape_cast %52 : vector<1x28x192xbf16> to vector<28x192xbf16>
    %c384 = arith.constant 384 : index
    %c0_34 = arith.constant 0 : index
    %54 = vector.load %arg4[%c384, %c0_34] : memref<960x192xbf16, #tpu.memory_space<vmem>>, vector<28x192xbf16>
    tpu.vector_store %arg4[%c384, %c0_34], %53 {strides = array<i32>} : memref<960x192xbf16, #tpu.memory_space<vmem>>, vector<28x192xbf16>,
    %55 = vector.extract_strided_slice %18 {offsets = [12, 0, 0], sizes = [1, 28, 192], strides = [1, 1, 1]} : vector<28x28x192xbf16> to vector<1x28x192xbf16>
    %56 = vector.shape_cast %55 : vector<1x28x192xbf16> to vector<28x192xbf16>
    %c416 = arith.constant 416 : index
    %c0_35 = arith.constant 0 : index
    %57 = vector.load %arg4[%c416, %c0_35] : memref<960x192xbf16, #tpu.memory_space<vmem>>, vector<28x192xbf16>
    tpu.vector_store %arg4[%c416, %c0_35], %56 {strides = array<i32>} : memref<960x192xbf16, #tpu.memory_space<vmem>>, vector<28x192xbf16>,
    %58 = vector.extract_strided_slice %18 {offsets = [13, 0, 0], sizes = [1, 28, 192], strides = [1, 1, 1]} : vector<28x28x192xbf16> to vector<1x28x192xbf16>
    %59 = vector.shape_cast %58 : vector<1x28x192xbf16> to vector<28x192xbf16>
    %c448 = arith.constant 448 : index
    %c0_36 = arith.constant 0 : index
    %60 = vector.load %arg4[%c448, %c0_36] : memref<960x192xbf16, #tpu.memory_space<vmem>>, vector<28x192xbf16>
    tpu.vector_store %arg4[%c448, %c0_36], %59 {strides = array<i32>} : memref<960x192xbf16, #tpu.memory_space<vmem>>, vector<28x192xbf16>,
    %61 = vector.extract_strided_slice %18 {offsets = [14, 0, 0], sizes = [1, 28, 192], strides = [1, 1, 1]} : vector<28x28x192xbf16> to vector<1x28x192xbf16>
    %62 = vector.shape_cast %61 : vector<1x28x192xbf16> to vector<28x192xbf16>
    %c480 = arith.constant 480 : index
    %c0_37 = arith.constant 0 : index
    %63 = vector.load %arg4[%c480, %c0_37] : memref<960x192xbf16, #tpu.memory_space<vmem>>, vector<28x192xbf16>
    tpu.vector_store %arg4[%c480, %c0_37], %62 {strides = array<i32>} : memref<960x192xbf16, #tpu.memory_space<vmem>>, vector<28x192xbf16>,
    %64 = vector.extract_strided_slice %18 {offsets = [15, 0, 0], sizes = [1, 28, 192], strides = [1, 1, 1]} : vector<28x28x192xbf16> to vector<1x28x192xbf16>
    %65 = vector.shape_cast %64 : vector<1x28x192xbf16> to vector<28x192xbf16>
    %c512 = arith.constant 512 : index
    %c0_38 = arith.constant 0 : index
    %66 = vector.load %arg4[%c512, %c0_38] : memref<960x192xbf16, #tpu.memory_space<vmem>>, vector<28x192xbf16>
    tpu.vector_store %arg4[%c512, %c0_38], %65 {strides = array<i32>} : memref<960x192xbf16, #tpu.memory_space<vmem>>, vector<28x192xbf16>,
    %67 = vector.extract_strided_slice %18 {offsets = [16, 0, 0], sizes = [1, 28, 192], strides = [1, 1, 1]} : vector<28x28x192xbf16> to vector<1x28x192xbf16>
    %68 = vector.shape_cast %67 : vector<1x28x192xbf16> to vector<28x192xbf16>
    %c544 = arith.constant 544 : index
    %c0_39 = arith.constant 0 : index
    %69 = vector.load %arg4[%c544, %c0_39] : memref<960x192xbf16, #tpu.memory_space<vmem>>, vector<28x192xbf16>
    tpu.vector_store %arg4[%c544, %c0_39], %68 {strides = array<i32>} : memref<960x192xbf16, #tpu.memory_space<vmem>>, vector<28x192xbf16>,
    %70 = vector.extract_strided_slice %18 {offsets = [17, 0, 0], sizes = [1, 28, 192], strides = [1, 1, 1]} : vector<28x28x192xbf16> to vector<1x28x192xbf16>
    %71 = vector.shape_cast %70 : vector<1x28x192xbf16> to vector<28x192xbf16>
    %c576 = arith.constant 576 : index
    %c0_40 = arith.constant 0 : index
    %72 = vector.load %arg4[%c576, %c0_40] : memref<960x192xbf16, #tpu.memory_space<vmem>>, vector<28x192xbf16>
    tpu.vector_store %arg4[%c576, %c0_40], %71 {strides = array<i32>} : memref<960x192xbf16, #tpu.memory_space<vmem>>, vector<28x192xbf16>,
    %73 = vector.extract_strided_slice %18 {offsets = [18, 0, 0], sizes = [1, 28, 192], strides = [1, 1, 1]} : vector<28x28x192xbf16> to vector<1x28x192xbf16>
    %74 = vector.shape_cast %73 : vector<1x28x192xbf16> to vector<28x192xbf16>
    %c608 = arith.constant 608 : index
    %c0_41 = arith.constant 0 : index
    %75 = vector.load %arg4[%c608, %c0_41] : memref<960x192xbf16, #tpu.memory_space<vmem>>, vector<28x192xbf16>
    tpu.vector_store %arg4[%c608, %c0_41], %74 {strides = array<i32>} : memref<960x192xbf16, #tpu.memory_space<vmem>>, vector<28x192xbf16>,
    %76 = vector.extract_strided_slice %18 {offsets = [19, 0, 0], sizes = [1, 28, 192], strides = [1, 1, 1]} : vector<28x28x192xbf16> to vector<1x28x192xbf16>
    %77 = vector.shape_cast %76 : vector<1x28x192xbf16> to vector<28x192xbf16>
    %c640 = arith.constant 640 : index
    %c0_42 = arith.constant 0 : index
    %78 = vector.load %arg4[%c640, %c0_42] : memref<960x192xbf16, #tpu.memory_space<vmem>>, vector<28x192xbf16>
    tpu.vector_store %arg4[%c640, %c0_42], %77 {strides = array<i32>} : memref<960x192xbf16, #tpu.memory_space<vmem>>, vector<28x192xbf16>,
    %79 = vector.extract_strided_slice %18 {offsets = [20, 0, 0], sizes = [1, 28, 192], strides = [1, 1, 1]} : vector<28x28x192xbf16> to vector<1x28x192xbf16>
    %80 = vector.shape_cast %79 : vector<1x28x192xbf16> to vector<28x192xbf16>
    %c672 = arith.constant 672 : index
    %c0_43 = arith.constant 0 : index
    %81 = vector.load %arg4[%c672, %c0_43] : memref<960x192xbf16, #tpu.memory_space<vmem>>, vector<28x192xbf16>
    tpu.vector_store %arg4[%c672, %c0_43], %80 {strides = array<i32>} : memref<960x192xbf16, #tpu.memory_space<vmem>>, vector<28x192xbf16>,
    %82 = vector.extract_strided_slice %18 {offsets = [21, 0, 0], sizes = [1, 28, 192], strides = [1, 1, 1]} : vector<28x28x192xbf16> to vector<1x28x192xbf16>
    %83 = vector.shape_cast %82 : vector<1x28x192xbf16> to vector<28x192xbf16>
    %c704 = arith.constant 704 : index
    %c0_44 = arith.constant 0 : index
    %84 = vector.load %arg4[%c704, %c0_44] : memref<960x192xbf16, #tpu.memory_space<vmem>>, vector<28x192xbf16>
    tpu.vector_store %arg4[%c704, %c0_44], %83 {strides = array<i32>} : memref<960x192xbf16, #tpu.memory_space<vmem>>, vector<28x192xbf16>,
    %85 = vector.extract_strided_slice %18 {offsets = [22, 0, 0], sizes = [1, 28, 192], strides = [1, 1, 1]} : vector<28x28x192xbf16> to vector<1x28x192xbf16>
    %86 = vector.shape_cast %85 : vector<1x28x192xbf16> to vector<28x192xbf16>
    %c736 = arith.constant 736 : index
    %c0_45 = arith.constant 0 : index
    %87 = vector.load %arg4[%c736, %c0_45] : memref<960x192xbf16, #tpu.memory_space<vmem>>, vector<28x192xbf16>
    tpu.vector_store %arg4[%c736, %c0_45], %86 {strides = array<i32>} : memref<960x192xbf16, #tpu.memory_space<vmem>>, vector<28x192xbf16>,
    %88 = vector.extract_strided_slice %18 {offsets = [23, 0, 0], sizes = [1, 28, 192], strides = [1, 1, 1]} : vector<28x28x192xbf16> to vector<1x28x192xbf16>
    %89 = vector.shape_cast %88 : vector<1x28x192xbf16> to vector<28x192xbf16>
    %c768 = arith.constant 768 : index
    %c0_46 = arith.constant 0 : index
    %90 = vector.load %arg4[%c768, %c0_46] : memref<960x192xbf16, #tpu.memory_space<vmem>>, vector<28x192xbf16>
    tpu.vector_store %arg4[%c768, %c0_46], %89 {strides = array<i32>} : memref<960x192xbf16, #tpu.memory_space<vmem>>, vector<28x192xbf16>,
    %91 = vector.extract_strided_slice %18 {offsets = [24, 0, 0], sizes = [1, 28, 192], strides = [1, 1, 1]} : vector<28x28x192xbf16> to vector<1x28x192xbf16>
    %92 = vector.shape_cast %91 : vector<1x28x192xbf16> to vector<28x192xbf16>
    %c800 = arith.constant 800 : index
    %c0_47 = arith.constant 0 : index
    %93 = vector.load %arg4[%c800, %c0_47] : memref<960x192xbf16, #tpu.memory_space<vmem>>, vector<28x192xbf16>
    tpu.vector_store %arg4[%c800, %c0_47], %92 {strides = array<i32>} : memref<960x192xbf16, #tpu.memory_space<vmem>>, vector<28x192xbf16>,
    %94 = vector.extract_strided_slice %18 {offsets = [25, 0, 0], sizes = [1, 28, 192], strides = [1, 1, 1]} : vector<28x28x192xbf16> to vector<1x28x192xbf16>
    %95 = vector.shape_cast %94 : vector<1x28x192xbf16> to vector<28x192xbf16>
    %c832 = arith.constant 832 : index
    %c0_48 = arith.constant 0 : index
    %96 = vector.load %arg4[%c832, %c0_48] : memref<960x192xbf16, #tpu.memory_space<vmem>>, vector<28x192xbf16>
    tpu.vector_store %arg4[%c832, %c0_48], %95 {strides = array<i32>} : memref<960x192xbf16, #tpu.memory_space<vmem>>, vector<28x192xbf16>,
    %97 = vector.extract_strided_slice %18 {offsets = [26, 0, 0], sizes = [1, 28, 192], strides = [1, 1, 1]} : vector<28x28x192xbf16> to vector<1x28x192xbf16>
    %98 = vector.shape_cast %97 : vector<1x28x192xbf16> to vector<28x192xbf16>
    %c864 = arith.constant 864 : index
    %c0_49 = arith.constant 0 : index
    %99 = vector.load %arg4[%c864, %c0_49] : memref<960x192xbf16, #tpu.memory_space<vmem>>, vector<28x192xbf16>
    tpu.vector_store %arg4[%c864, %c0_49], %98 {strides = array<i32>} : memref<960x192xbf16, #tpu.memory_space<vmem>>, vector<28x192xbf16>,
    %100 = vector.extract_strided_slice %18 {offsets = [27, 0, 0], sizes = [1, 28, 192], strides = [1, 1, 1]} : vector<28x28x192xbf16> to vector<1x28x192xbf16>
    %101 = vector.shape_cast %100 : vector<1x28x192xbf16> to vector<28x192xbf16>
    %c896 = arith.constant 896 : index
    %c0_50 = arith.constant 0 : index
    %102 = vector.load %arg4[%c896, %c0_50] : memref<960x192xbf16, #tpu.memory_space<vmem>>, vector<28x192xbf16>
    tpu.vector_store %arg4[%c896, %c0_50], %101 {strides = array<i32>} : memref<960x192xbf16, #tpu.memory_space<vmem>>, vector<28x192xbf16>,
    %c0_51 = arith.constant 0 : index
    %c0_52 = arith.constant 0 : index
    %103 = vector.load %arg4[%c0_51, %c0_52] : memref<960x192xbf16, #tpu.memory_space<vmem>>, vector<896x192xbf16>
    %c0_53 = arith.constant 0 : index
    %c0_54 = arith.constant 0 : index
    %c0_55 = arith.constant 0 : index
    %104 = vector.load %arg2[%c0_53, %c0_54, %c0_55] : memref<3x192x128xbf16, #tpu.memory_space<vmem>>, vector<1x192x128xbf16>
    %105 = vector.shape_cast %104 : vector<1x192x128xbf16> to vector<192x128xbf16>
    %cst_56 = arith.constant dense<0.000000e+00> : vector<896x128xf32>
    %106 = tpu.matmul %103, %105, %cst_56 {dimension_numbers = #tpu.dot_dimension_numbers<[1], [0], [0], [1], [0, 0, 1, 1], [], []>} : vector<896x192xbf16>, vector<192x128xbf16>, vector<896x128xf32> -> vector<896x128xf32>
    %c0_57 = arith.constant 0 : index
    %c0_58 = arith.constant 0 : index
    %107 = vector.load %arg3[%c0_57, %c0_58] : memref<896x128xf32, #tpu.memory_space<vmem>>, vector<896x128xf32>
    tpu.vector_store %arg3[%c0_57, %c0_58], %106 {strides = array<i32>} : memref<896x128xf32, #tpu.memory_space<vmem>>, vector<896x128xf32>,
    %c0_59 = arith.constant 0 : index
    %c0_60 = arith.constant 0 : index
    %108 = vector.load %arg3[%c0_59, %c0_60] : memref<896x128xf32, #tpu.memory_space<vmem>>, vector<896x128xf32>
    %c32_61 = arith.constant 32 : index
    %c0_62 = arith.constant 0 : index
    %109 = vector.load %arg4[%c32_61, %c0_62] : memref<960x192xbf16, #tpu.memory_space<vmem>>, vector<896x192xbf16>
    %c1_63 = arith.constant 1 : index
    %c0_64 = arith.constant 0 : index
    %c0_65 = arith.constant 0 : index
    %110 = vector.load %arg2[%c1_63, %c0_64, %c0_65] : memref<3x192x128xbf16, #tpu.memory_space<vmem>>, vector<1x192x128xbf16>
    %111 = vector.shape_cast %110 : vector<1x192x128xbf16> to vector<192x128xbf16>
    %cst_66 = arith.constant dense<0.000000e+00> : vector<896x128xf32>
    %112 = tpu.matmul %109, %111, %cst_66 {dimension_numbers = #tpu.dot_dimension_numbers<[1], [0], [0], [1], [0, 0, 1, 1], [], []>} : vector<896x192xbf16>, vector<192x128xbf16>, vector<896x128xf32> -> vector<896x128xf32>
    %113 = arith.addf %108, %112 : vector<896x128xf32>
    %c0_67 = arith.constant 0 : index
    %c0_68 = arith.constant 0 : index
    %114 = vector.load %arg3[%c0_67, %c0_68] : memref<896x128xf32, #tpu.memory_space<vmem>>, vector<896x128xf32>
    tpu.vector_store %arg3[%c0_67, %c0_68], %113 {strides = array<i32>} : memref<896x128xf32, #tpu.memory_space<vmem>>, vector<896x128xf32>,
    %c0_69 = arith.constant 0 : index
    %c0_70 = arith.constant 0 : index
    %115 = vector.load %arg3[%c0_69, %c0_70] : memref<896x128xf32, #tpu.memory_space<vmem>>, vector<896x128xf32>
    %c64_71 = arith.constant 64 : index
    %c0_72 = arith.constant 0 : index
    %116 = vector.load %arg4[%c64_71, %c0_72] : memref<960x192xbf16, #tpu.memory_space<vmem>>, vector<896x192xbf16>
    %c2_73 = arith.constant 2 : index
    %c0_74 = arith.constant 0 : index
    %c0_75 = arith.constant 0 : index
    %117 = vector.load %arg2[%c2_73, %c0_74, %c0_75] : memref<3x192x128xbf16, #tpu.memory_space<vmem>>, vector<1x192x128xbf16>
    %118 = vector.shape_cast %117 : vector<1x192x128xbf16> to vector<192x128xbf16>
    %cst_76 = arith.constant dense<0.000000e+00> : vector<896x128xf32>
    %119 = tpu.matmul %116, %118, %cst_76 {dimension_numbers = #tpu.dot_dimension_numbers<[1], [0], [0], [1], [0, 0, 1, 1], [], []>} : vector<896x192xbf16>, vector<192x128xbf16>, vector<896x128xf32> -> vector<896x128xf32>
    %120 = arith.addf %115, %119 : vector<896x128xf32>
    %c0_77 = arith.constant 0 : index
    %c0_78 = arith.constant 0 : index
    %121 = vector.load %arg3[%c0_77, %c0_78] : memref<896x128xf32, #tpu.memory_space<vmem>>, vector<896x128xf32>
    tpu.vector_store %arg3[%c0_77, %c0_78], %120 {strides = array<i32>} : memref<896x128xf32, #tpu.memory_space<vmem>>, vector<896x128xf32>,
    return
  }
  func.func @transform_0(%arg0: i32) -> (i32, i32, i32) {
    %c0_i32 = arith.constant 0 : i32
    %c0_i32_0 = arith.constant 0 : i32
    %c0_i32_1 = arith.constant 0 : i32
    %c0_i32_2 = arith.constant 0 : i32
    return %c0_i32, %c0_i32_0, %c0_i32_1 : i32, i32, i32
  }
  func.func @transform_1(%arg0: i32) -> (i32, i32, i32) {
    %c0_i32 = arith.constant 0 : i32
    %c0_i32_0 = arith.constant 0 : i32
    %c0_i32_1 = arith.constant 0 : i32
    %c0_i32_2 = arith.constant 0 : i32
    return %c0_i32, %c0_i32_0, %c0_i32_1 : i32, i32, i32
  }
  func.func @transform_2(%arg0: i32) -> (i32, i32) {
    %c0_i32 = arith.constant 0 : i32
    %c0_i32_0 = arith.constant 0 : i32
    %c0_i32_1 = arith.constant 0 : i32
    return %c0_i32, %c0_i32_0 : i32, i32
  }
}

</mosaic_0001>

<llo_original>
// kernel: kernel_generated_2_forward.1
$region0: #{kernel_generated_2_forward.1}
  #allocation0 [shape = 'u32[]', space=smem, size = 0x4, offset = 0x4, fixed_abs, tag = 'smem constant byte address 0x4 - core index']
  #allocation1 [shape = 'u32[144,128]{1,0:T(1,128)}', space=vmem, size = 0x12000, scoped, tag = 'internal scratch']
  #allocation2 [shape = 'bf16[960,192]{1,0:T(16,128)(2,1)}', space=vmem, size = 0x78000, scoped, tag = 'scratch operand']
  %s0 = inlined_call_operand.vmem [shape: f32[28,32,128], index: 0, kind: input, shape index: {}]
  %s1 = inlined_call_operand.vmem [shape: bf16[3,192,128], index: 1, kind: input, shape index: {}]
  %s2 = inlined_call_operand.vmem [shape: f32[896,128], index: 2, kind: output, shape index: {}]
  %s3 = sld [smem:[#allocation0]]
  $region18: #{kernel_generated_2_forward.1} parent=0
    _
  %s5 = ssub.s32 1, %s3
  %s6 = scalar_select 0, %s5, %s3
  // Predicated region
  $region2: #{kernel_generated_2_forward.1} parent=0 // pred_check
    _
  $region3: #{kernel_generated_2_forward.1} parent=0 // pred_check_branch
    %8 = sbr.rel (0) target = $region5
  $region4: #{kernel_generated_2_forward.1} parent=0 // pred_region
    _
  $region5: #{kernel_generated_2_forward.1} parent=0 // pred_fallthru
    _
  // Predicated region
  $region6: #{kernel_generated_2_forward.1} parent=0 // pred_check
    _
  $region7: #{kernel_generated_2_forward.1} parent=0 // pred_check_branch
    %10 = sbr.rel (0) target = $region9
  $region8: #{kernel_generated_2_forward.1} parent=0 // pred_region
    _
  $region9: #{kernel_generated_2_forward.1} parent=0 // pred_fallthru
    _
  %12 = vst [vmem:[#allocation2] sm:$0xff] 0
  %vm13 = vcmask 523264
  %14 = vst.msk [vmem:[#allocation2 + $0x8] sm:$0xff] %vm13, 0
  %15 = vst [vmem:[#allocation2 + $0x10] sm:$0xff] 0
  %16 = vst.msk [vmem:[#allocation2 + $0x18] sm:$0xff] %vm13, 0
  %17 = vst [vmem:[#allocation2 + $0x20] sm:$0xff] 0
  %18 = vst.msk [vmem:[#allocation2 + $0x28] sm:$0xff] %vm13, 0
  %19 = vst [vmem:[#allocation2 + $0x30] sm:$0xff] 0
  %20 = vst.msk [vmem:[#allocation2 + $0x38] sm:$0xff] %vm13, 0
  %21 = vst [vmem:[#allocation2 + $0x40] sm:$0xff] 0
  %22 = vst.msk [vmem:[#allocation2 + $0x48] sm:$0xff] %vm13, 0
  %23 = vst [vmem:[#allocation2 + $0x50] sm:$0xff] 0
  %24 = vst.msk [vmem:[#allocation2 + $0x58] sm:$0xff] %vm13, 0
  %25 = vst [vmem:[#allocation2 + $0x60] sm:$0xff] 0
  %26 = vst.msk [vmem:[#allocation2 + $0x68] sm:$0xff] %vm13, 0
  %27 = vst [vmem:[#allocation2 + $0x70] sm:$0xff] 0
  %28 = vst.msk [vmem:[#allocation2 + $0x78] sm:$0xff] %vm13, 0
  %29 = vst [vmem:[#allocation2 + $0x80] sm:$0xff] 0
  %30 = vst.msk [vmem:[#allocation2 + $0x88] sm:$0xff] %vm13, 0
  %31 = vst [vmem:[#allocation2 + $0x90] sm:$0xff] 0
  %32 = vst.msk [vmem:[#allocation2 + $0x98] sm:$0xff] %vm13, 0
  %33 = vst [vmem:[#allocation2 + $0xa0] sm:$0xff] 0
  %34 = vst.msk [vmem:[#allocation2 + $0xa8] sm:$0xff] %vm13, 0
  %35 = vst [vmem:[#allocation2 + $0xb0] sm:$0xff] 0
  %36 = vst.msk [vmem:[#allocation2 + $0xb8] sm:$0xff] %vm13, 0
  %37 = vst [vmem:[#allocation2 + $0xc0] sm:$0xff] 0
  %38 = vst.msk [vmem:[#allocation2 + $0xc8] sm:$0xff] %vm13, 0
  %39 = vst [vmem:[#allocation2 + $0xd0] sm:$0xff] 0
  %40 = vst.msk [vmem:[#allocation2 + $0xd8] sm:$0xff] %vm13, 0
  %41 = vst [vmem:[#allocation2 + $0xe0] sm:$0xff] 0
  %42 = vst.msk [vmem:[#allocation2 + $0xe8] sm:$0xff] %vm13, 0
  %43 = vst [vmem:[#allocation2 + $0xf0] sm:$0xff] 0
  %44 = vst.msk [vmem:[#allocation2 + $0xf8] sm:$0xff] %vm13, 0
  %45 = vst [vmem:[#allocation2 + $0x100] sm:$0xff] 0
  %46 = vst.msk [vmem:[#allocation2 + $0x108] sm:$0xff] %vm13, 0
  %47 = vst [vmem:[#allocation2 + $0x110] sm:$0xff] 0
  %48 = vst.msk [vmem:[#allocation2 + $0x118] sm:$0xff] %vm13, 0
  %49 = vst [vmem:[#allocation2 + $0x120] sm:$0xff] 0
  %50 = vst.msk [vmem:[#allocation2 + $0x128] sm:$0xff] %vm13, 0
  %51 = vst [vmem:[#allocation2 + $0x130] sm:$0xff] 0
  %52 = vst.msk [vmem:[#allocation2 + $0x138] sm:$0xff] %vm13, 0
  %53 = vst [vmem:[#allocation2 + $0x140] sm:$0xff] 0
  %54 = vst.msk [vmem:[#allocation2 + $0x148] sm:$0xff] %vm13, 0
  %55 = vst [vmem:[#allocation2 + $0x150] sm:$0xff] 0
  %56 = vst.msk [vmem:[#allocation2 + $0x158] sm:$0xff] %vm13, 0
  %57 = vst [vmem:[#allocation2 + $0x160] sm:$0xff] 0
  %58 = vst.msk [vmem:[#allocation2 + $0x168] sm:$0xff] %vm13, 0
  %59 = vst [vmem:[#allocation2 + $0x170] sm:$0xff] 0
  %60 = vst.msk [vmem:[#allocation2 + $0x178] sm:$0xff] %vm13, 0
  %61 = vst [vmem:[#allocation2 + $0x180] sm:$0xff] 0
  %62 = vst.msk [vmem:[#allocation2 + $0x188] sm:$0xff] %vm13, 0
  %63 = vst [vmem:[#allocation2 + $0x190] sm:$0xff] 0
  %64 = vst.msk [vmem:[#allocation2 + $0x198] sm:$0xff] %vm13, 0
  %65 = vst [vmem:[#allocation2 + $0x1a0] sm:$0xff] 0
  %66 = vst.msk [vmem:[#allocation2 + $0x1a8] sm:$0xff] %vm13, 0
  %67 = vst [vmem:[#allocation2 + $0x1b0] sm:$0xff] 0
  %68 = vst.msk [vmem:[#allocation2 + $0x1b8] sm:$0xff] %vm13, 0
  %69 = vst [vmem:[#allocation2 + $0x1c0] sm:$0xff] 0
  %70 = vst.msk [vmem:[#allocation2 + $0x1c8] sm:$0xff] %vm13, 0
  %71 = vst [vmem:[#allocation2 + $0x1d0] sm:$0xff] 0
  %72 = vst.msk [vmem:[#allocation2 + $0x1d8] sm:$0xff] %vm13, 0
  %73 = vst [vmem:[#allocation2 + $0x1e0] sm:$0xff] 0
  %74 = vst.msk [vmem:[#allocation2 + $0x1e8] sm:$0xff] %vm13, 0
  %75 = vst [vmem:[#allocation2 + $0x1f0] sm:$0xff] 0
  %76 = vst.msk [vmem:[#allocation2 + $0x1f8] sm:$0xff] %vm13, 0
  %77 = vst [vmem:[#allocation2 + $0x200] sm:$0xff] 0
  %78 = vst.msk [vmem:[#allocation2 + $0x208] sm:$0xff] %vm13, 0
  %79 = vst [vmem:[#allocation2 + $0x210] sm:$0xff] 0
  %80 = vst.msk [vmem:[#allocation2 + $0x218] sm:$0xff] %vm13, 0
  %81 = vst [vmem:[#allocation2 + $0x220] sm:$0xff] 0
  %82 = vst.msk [vmem:[#allocation2 + $0x228] sm:$0xff] %vm13, 0
  %83 = vst [vmem:[#allocation2 + $0x230] sm:$0xff] 0
  %84 = vst.msk [vmem:[#allocation2 + $0x238] sm:$0xff] %vm13, 0
  %85 = vst [vmem:[#allocation2 + $0x240] sm:$0xff] 0
  %86 = vst.msk [vmem:[#allocation2 + $0x248] sm:$0xff] %vm13, 0
  %87 = vst [vmem:[#allocation2 + $0x250] sm:$0xff] 0
  %88 = vst.msk [vmem:[#allocation2 + $0x258] sm:$0xff] %vm13, 0
  %89 = vst [vmem:[#allocation2 + $0x260] sm:$0xff] 0
  %90 = vst.msk [vmem:[#allocation2 + $0x268] sm:$0xff] %vm13, 0
  %91 = vst [vmem:[#allocation2 + $0x270] sm:$0xff] 0
  %92 = vst.msk [vmem:[#allocation2 + $0x278] sm:$0xff] %vm13, 0
  %93 = vst [vmem:[#allocation2 + $0x280] sm:$0xff] 0
  %94 = vst.msk [vmem:[#allocation2 + $0x288] sm:$0xff] %vm13, 0
  %95 = vst [vmem:[#allocation2 + $0x290] sm:$0xff] 0
  %96 = vst.msk [vmem:[#allocation2 + $0x298] sm:$0xff] %vm13, 0
  %97 = vst [vmem:[#allocation2 + $0x2a0] sm:$0xff] 0
  %98 = vst.msk [vmem:[#allocation2 + $0x2a8] sm:$0xff] %vm13, 0
  %99 = vst [vmem:[#allocation2 + $0x2b0] sm:$0xff] 0
  %100 = vst.msk [vmem:[#allocation2 + $0x2b8] sm:$0xff] %vm13, 0
  %101 = vst [vmem:[#allocation2 + $0x2c0] sm:$0xff] 0
  %102 = vst.msk [vmem:[#allocation2 + $0x2c8] sm:$0xff] %vm13, 0
  %103 = vst [vmem:[#allocation2 + $0x2d0] sm:$0xff] 0
  %104 = vst.msk [vmem:[#allocation2 + $0x2d8] sm:$0xff] %vm13, 0
  %105 = vst [vmem:[#allocation2 + $0x2e0] sm:$0xff] 0
  %106 = vst.msk [vmem:[#allocation2 + $0x2e8] sm:$0xff] %vm13, 0
  %107 = vst [vmem:[#allocation2 + $0x2f0] sm:$0xff] 0
  %108 = vst.msk [vmem:[#allocation2 + $0x2f8] sm:$0xff] %vm13, 0
  %109 = vst [vmem:[#allocation2 + $0x300] sm:$0xff] 0
  %110 = vst.msk [vmem:[#allocation2 + $0x308] sm:$0xff] %vm13, 0
  %111 = vst [vmem:[#allocation2 + $0x310] sm:$0xff] 0
  %112 = vst.msk [vmem:[#allocation2 + $0x318] sm:$0xff] %vm13, 0
  %113 = vst [vmem:[#allocation2 + $0x320] sm:$0xff] 0
  %114 = vst.msk [vmem:[#allocation2 + $0x328] sm:$0xff] %vm13, 0
  %115 = vst [vmem:[#allocation2 + $0x330] sm:$0xff] 0
  %116 = vst.msk [vmem:[#allocation2 + $0x338] sm:$0xff] %vm13, 0
  %117 = vst [vmem:[#allocation2 + $0x340] sm:$0xff] 0
  %118 = vst.msk [vmem:[#allocation2 + $0x348] sm:$0xff] %vm13, 0
  %119 = vst [vmem:[#allocation2 + $0x350] sm:$0xff] 0
  %120 = vst.msk [vmem:[#allocation2 + $0x358] sm:$0xff] %vm13, 0
  %121 = vst [vmem:[#allocation2 + $0x360] sm:$0xff] 0
  %122 = vst.msk [vmem:[#allocation2 + $0x368] sm:$0xff] %vm13, 0
  %123 = vst [vmem:[#allocation2 + $0x370] sm:$0xff] 0
  %124 = vst.msk [vmem:[#allocation2 + $0x378] sm:$0xff] %vm13, 0
  %125 = vst [vmem:[#allocation2 + $0x380] sm:$0xff] 0
  %126 = vst.msk [vmem:[#allocation2 + $0x388] sm:$0xff] %vm13, 0
  %127 = vst [vmem:[#allocation2 + $0x390] sm:$0xff] 0
  %128 = vst.msk [vmem:[#allocation2 + $0x398] sm:$0xff] %vm13, 0
  %129 = vst [vmem:[#allocation2 + $0x3a0] sm:$0xff] 0
  %130 = vst.msk [vmem:[#allocation2 + $0x3a8] sm:$0xff] %vm13, 0
  %131 = vst [vmem:[#allocation2 + $0x3b0] sm:$0xff] 0
  %132 = vst.msk [vmem:[#allocation2 + $0x3b8] sm:$0xff] %vm13, 0
  %v133 = vld [vmem:[%s0] sm:$0xff]
  %v134 = vld [vmem:[%s0 + $0x8] sm:$0xff]
  %v135 = vld [vmem:[%s0 + $0x10] sm:$0xff]
  %v136 = vld [vmem:[%s0 + $0x18] sm:$0xf]
  %v137 = vld [vmem:[%s0 + $0x20] sm:$0xff]
  %v138 = vld [vmem:[%s0 + $0x28] sm:$0xff]
  %v139 = vld [vmem:[%s0 + $0x30] sm:$0xff]
  %v140 = vld [vmem:[%s0 + $0x38] sm:$0xf]
  %v141 = vld [vmem:[%s0 + $0x40] sm:$0xff]
  %v142 = vld [vmem:[%s0 + $0x48] sm:$0xff]
  %v143 = vld [vmem:[%s0 + $0x50] sm:$0xff]
  %v144 = vld [vmem:[%s0 + $0x58] sm:$0xf]
  %v145 = vld [vmem:[%s0 + $0x60] sm:$0xff]
  %v146 = vld [vmem:[%s0 + $0x68] sm:$0xff]
  %v147 = vld [vmem:[%s0 + $0x70] sm:$0xff]
  %v148 = vld [vmem:[%s0 + $0x78] sm:$0xf]
  %v149 = vld [vmem:[%s0 + $0x80] sm:$0xff]
  %v150 = vld [vmem:[%s0 + $0x88] sm:$0xff]
  %v151 = vld [vmem:[%s0 + $0x90] sm:$0xff]
  %v152 = vld [vmem:[%s0 + $0x98] sm:$0xf]
  %v153 = vld [vmem:[%s0 + $0xa0] sm:$0xff]
  %v154 = vld [vmem:[%s0 + $0xa8] sm:$0xff]
  %v155 = vld [vmem:[%s0 + $0xb0] sm:$0xff]
  %v156 = vld [vmem:[%s0 + $0xb8] sm:$0xf]
  %v157 = vld [vmem:[%s0 + $0xc0] sm:$0xff]
  %v158 = vld [vmem:[%s0 + $0xc8] sm:$0xff]
  %v159 = vld [vmem:[%s0 + $0xd0] sm:$0xff]
  %v160 = vld [vmem:[%s0 + $0xd8] sm:$0xf]
  %v161 = vld [vmem:[%s0 + $0xe0] sm:$0xff]
  %v162 = vld [vmem:[%s0 + $0xe8] sm:$0xff]
  %v163 = vld [vmem:[%s0 + $0xf0] sm:$0xff]
  %v164 = vld [vmem:[%s0 + $0xf8] sm:$0xf]
  %v165 = vld [vmem:[%s0 + $0x100] sm:$0xff]
  %v166 = vld [vmem:[%s0 + $0x108] sm:$0xff]
  %v167 = vld [vmem:[%s0 + $0x110] sm:$0xff]
  %v168 = vld [vmem:[%s0 + $0x118] sm:$0xf]
  %v169 = vld [vmem:[%s0 + $0x120] sm:$0xff]
  %v170 = vld [vmem:[%s0 + $0x128] sm:$0xff]
  %v171 = vld [vmem:[%s0 + $0x130] sm:$0xff]
  %v172 = vld [vmem:[%s0 + $0x138] sm:$0xf]
  %v173 = vld [vmem:[%s0 + $0x140] sm:$0xff]
  %v174 = vld [vmem:[%s0 + $0x148] sm:$0xff]
  %v175 = vld [vmem:[%s0 + $0x150] sm:$0xff]
  %v176 = vld [vmem:[%s0 + $0x158] sm:$0xf]
  %v177 = vld [vmem:[%s0 + $0x160] sm:$0xff]
  %v178 = vld [vmem:[%s0 + $0x168] sm:$0xff]
  %v179 = vld [vmem:[%s0 + $0x170] sm:$0xff]
  %v180 = vld [vmem:[%s0 + $0x178] sm:$0xf]
  %v181 = vld [vmem:[%s0 + $0x180] sm:$0xff]
  %v182 = vld [vmem:[%s0 + $0x188] sm:$0xff]
  %v183 = vld [vmem:[%s0 + $0x190] sm:$0xff]
  %v184 = vld [vmem:[%s0 + $0x198] sm:$0xf]
  %v185 = vld [vmem:[%s0 + $0x1a0] sm:$0xff]
  %v186 = vld [vmem:[%s0 + $0x1a8] sm:$0xff]
  %v187 = vld [vmem:[%s0 + $0x1b0] sm:$0xff]
  %v188 = vld [vmem:[%s0 + $0x1b8] sm:$0xf]
  %v189 = vld [vmem:[%s0 + $0x1c0] sm:$0xff]
  %v190 = vld [vmem:[%s0 + $0x1c8] sm:$0xff]
  %v191 = vld [vmem:[%s0 + $0x1d0] sm:$0xff]
  %v192 = vld [vmem:[%s0 + $0x1d8] sm:$0xf]
  %v193 = vld [vmem:[%s0 + $0x1e0] sm:$0xff]
  %v194 = vld [vmem:[%s0 + $0x1e8] sm:$0xff]
  %v195 = vld [vmem:[%s0 + $0x1f0] sm:$0xff]
  %v196 = vld [vmem:[%s0 + $0x1f8] sm:$0xf]
  %v197 = vld [vmem:[%s0 + $0x200] sm:$0xff]
  %v198 = vld [vmem:[%s0 + $0x208] sm:$0xff]
  %v199 = vld [vmem:[%s0 + $0x210] sm:$0xff]
  %v200 = vld [vmem:[%s0 + $0x218] sm:$0xf]
  %v201 = vld [vmem:[%s0 + $0x220] sm:$0xff]
  %v202 = vld [vmem:[%s0 + $0x228] sm:$0xff]
  %v203 = vld [vmem:[%s0 + $0x230] sm:$0xff]
  %v204 = vld [vmem:[%s0 + $0x238] sm:$0xf]
  %v205 = vld [vmem:[%s0 + $0x240] sm:$0xff]
  %v206 = vld [vmem:[%s0 + $0x248] sm:$0xff]
  %v207 = vld [vmem:[%s0 + $0x250] sm:$0xff]
  %v208 = vld [vmem:[%s0 + $0x258] sm:$0xf]
  %v209 = vld [vmem:[%s0 + $0x260] sm:$0xff]
  %v210 = vld [vmem:[%s0 + $0x268] sm:$0xff]
  %v211 = vld [vmem:[%s0 + $0x270] sm:$0xff]
  %v212 = vld [vmem:[%s0 + $0x278] sm:$0xf]
  %v213 = vld [vmem:[%s0 + $0x280] sm:$0xff]
  %v214 = vld [vmem:[%s0 + $0x288] sm:$0xff]
  %v215 = vld [vmem:[%s0 + $0x290] sm:$0xff]
  %v216 = vld [vmem:[%s0 + $0x298] sm:$0xf]
  %v217 = vld [vmem:[%s0 + $0x2a0] sm:$0xff]
  %v218 = vld [vmem:[%s0 + $0x2a8] sm:$0xff]
  %v219 = vld [vmem:[%s0 + $0x2b0] sm:$0xff]
  %v220 = vld [vmem:[%s0 + $0x2b8] sm:$0xf]
  %v221 = vld [vmem:[%s0 + $0x2c0] sm:$0xff]
  %v222 = vld [vmem:[%s0 + $0x2c8] sm:$0xff]
  %v223 = vld [vmem:[%s0 + $0x2d0] sm:$0xff]
  %v224 = vld [vmem:[%s0 + $0x2d8] sm:$0xf]
  %v225 = vld [vmem:[%s0 + $0x2e0] sm:$0xff]
  %v226 = vld [vmem:[%s0 + $0x2e8] sm:$0xff]
  %v227 = vld [vmem:[%s0 + $0x2f0] sm:$0xff]
  %v228 = vld [vmem:[%s0 + $0x2f8] sm:$0xf]
  %v229 = vld [vmem:[%s0 + $0x300] sm:$0xff]
  %v230 = vld [vmem:[%s0 + $0x308] sm:$0xff]
  %v231 = vld [vmem:[%s0 + $0x310] sm:$0xff]
  %v232 = vld [vmem:[%s0 + $0x318] sm:$0xf]
  %v233 = vld [vmem:[%s0 + $0x320] sm:$0xff]
  %v234 = vld [vmem:[%s0 + $0x328] sm:$0xff]
  %v235 = vld [vmem:[%s0 + $0x330] sm:$0xff]
  %v236 = vld [vmem:[%s0 + $0x338] sm:$0xf]
  %v237 = vld [vmem:[%s0 + $0x340] sm:$0xff]
  %v238 = vld [vmem:[%s0 + $0x348] sm:$0xff]
  %v239 = vld [vmem:[%s0 + $0x350] sm:$0xff]
  %v240 = vld [vmem:[%s0 + $0x358] sm:$0xf]
  %v241 = vld [vmem:[%s0 + $0x360] sm:$0xff]
  %v242 = vld [vmem:[%s0 + $0x368] sm:$0xff]
  %v243 = vld [vmem:[%s0 + $0x370] sm:$0xff]
  %v244 = vld [vmem:[%s0 + $0x378] sm:$0xf]
  %v245 = vld [vmem:[%s0 + $0x1b] sm:$0x1]
  %v246 = vld [vmem:[%s0 + $0x3b] sm:$0x1]
  %v247 = vld [vmem:[%s0 + $0x5b] sm:$0x1]
  %v248 = vld [vmem:[%s0 + $0x7b] sm:$0x1]
  %v249 = vld [vmem:[%s0 + $0x9b] sm:$0x1]
  %v250 = vld [vmem:[%s0 + $0xbb] sm:$0x1]
  %v251 = vld [vmem:[%s0 + $0xdb] sm:$0x1]
  %v252 = vld [vmem:[%s0 + $0xfb] sm:$0x1]
  %v253 = vld [vmem:[%s0 + $0x11b] sm:$0x1]
  %v254 = vld [vmem:[%s0 + $0x13b] sm:$0x1]
  %v255 = vld [vmem:[%s0 + $0x15b] sm:$0x1]
  %v256 = vld [vmem:[%s0 + $0x17b] sm:$0x1]
  %v257 = vld [vmem:[%s0 + $0x19b] sm:$0x1]
  %v258 = vld [vmem:[%s0 + $0x1bb] sm:$0x1]
  %v259 = vld [vmem:[%s0 + $0x1db] sm:$0x1]
  %v260 = vld [vmem:[%s0 + $0x1fb] sm:$0x1]
  %v261 = vld [vmem:[%s0 + $0x21b] sm:$0x1]
  %v262 = vld [vmem:[%s0 + $0x23b] sm:$0x1]
  %v263 = vld [vmem:[%s0 + $0x25b] sm:$0x1]
  %v264 = vld [vmem:[%s0 + $0x27b] sm:$0x1]
  %v265 = vld [vmem:[%s0 + $0x29b] sm:$0x1]
  %v266 = vld [vmem:[%s0 + $0x2bb] sm:$0x1]
  %v267 = vld [vmem:[%s0 + $0x2db] sm:$0x1]
  %v268 = vld [vmem:[%s0 + $0x2fb] sm:$0x1]
  %v269 = vld [vmem:[%s0 + $0x31b] sm:$0x1]
  %v270 = vld [vmem:[%s0 + $0x33b] sm:$0x1]
  %v271 = vld [vmem:[%s0 + $0x35b] sm:$0x1]
  %v272 = vld [vmem:[%s0 + $0x37b] sm:$0x1]
  %v273 = vld [vmem:[%s0 + $0x18] sm:$0x7]
  %v274 = vld [vmem:[%s0 + $0x38] sm:$0x7]
  %v275 = vld [vmem:[%s0 + $0x58] sm:$0x7]
  %v276 = vld [vmem:[%s0 + $0x78] sm:$0x7]
  %v277 = vld [vmem:[%s0 + $0x98] sm:$0x7]
  %v278 = vld [vmem:[%s0 + $0xb8] sm:$0x7]
  %v279 = vld [vmem:[%s0 + $0xd8] sm:$0x7]
  %v280 = vld [vmem:[%s0 + $0xf8] sm:$0x7]
  %v281 = vld [vmem:[%s0 + $0x118] sm:$0x7]
  %v282 = vld [vmem:[%s0 + $0x138] sm:$0x7]
  %v283 = vld [vmem:[%s0 + $0x158] sm:$0x7]
  %v284 = vld [vmem:[%s0 + $0x178] sm:$0x7]
  %v285 = vld [vmem:[%s0 + $0x198] sm:$0x7]
  %v286 = vld [vmem:[%s0 + $0x1b8] sm:$0x7]
  %v287 = vld [vmem:[%s0 + $0x1d8] sm:$0x7]
  %v288 = vld [vmem:[%s0 + $0x1f8] sm:$0x7]
  %v289 = vld [vmem:[%s0 + $0x218] sm:$0x7]
  %v290 = vld [vmem:[%s0 + $0x238] sm:$0x7]
  %v291 = vld [vmem:[%s0 + $0x258] sm:$0x7]
  %v292 = vld [vmem:[%s0 + $0x278] sm:$0x7]
  %v293 = vld [vmem:[%s0 + $0x298] sm:$0x7]
  %v294 = vld [vmem:[%s0 + $0x2b8] sm:$0x7]
  %v295 = vld [vmem:[%s0 + $0x2d8] sm:$0x7]
  %v296 = vld [vmem:[%s0 + $0x2f8] sm:$0x7]
  %v297 = vld [vmem:[%s0 + $0x318] sm:$0x7]
  %v298 = vld [vmem:[%s0 + $0x338] sm:$0x7]
  %v299 = vld [vmem:[%s0 + $0x358] sm:$0x7]
  %v300 = vld [vmem:[%s0 + $0x378] sm:$0x7]
  %vm413 = vcmask 1040384
  %v414 = vrot.slane %v133, 7
  %v415 = vrot.slane %v134, 7
  %v416 = vsel %vm413, %v414, %v415
  %v417 = vrot.slane %v135, 7
  %v418 = vsel %vm413, %v415, %v417
  %v419 = vrot.slane %v273, 7
  %v420 = vsel %vm413, %v417, %v419
  %v421 = vrot.slane %v137, 7
  %v422 = vrot.slane %v138, 7
  %v423 = vsel %vm413, %v421, %v422
  %v424 = vrot.slane %v139, 7
  %v425 = vsel %vm413, %v422, %v424
  %v426 = vrot.slane %v274, 7
  %v427 = vsel %vm413, %v424, %v426
  %v428 = vrot.slane %v141, 7
  %v429 = vrot.slane %v142, 7
  %v430 = vsel %vm413, %v428, %v429
  %v431 = vrot.slane %v143, 7
  %v432 = vsel %vm413, %v429, %v431
  %v433 = vrot.slane %v275, 7
  %v434 = vsel %vm413, %v431, %v433
  %v435 = vrot.slane %v145, 7
  %v436 = vrot.slane %v146, 7
  %v437 = vsel %vm413, %v435, %v436
  %v438 = vrot.slane %v147, 7
  %v439 = vsel %vm413, %v436, %v438
  %v440 = vrot.slane %v276, 7
  %v441 = vsel %vm413, %v438, %v440
  %v442 = vrot.slane %v149, 7
  %v443 = vrot.slane %v150, 7
  %v444 = vsel %vm413, %v442, %v443
  %v445 = vrot.slane %v151, 7
  %v446 = vsel %vm413, %v443, %v445
  %v447 = vrot.slane %v277, 7
  %v448 = vsel %vm413, %v445, %v447
  %v449 = vrot.slane %v153, 7
  %v450 = vrot.slane %v154, 7
  %v451 = vsel %vm413, %v449, %v450
  %v452 = vrot.slane %v155, 7
  %v453 = vsel %vm413, %v450, %v452
  %v454 = vrot.slane %v278, 7
  %v455 = vsel %vm413, %v452, %v454
  %v456 = vrot.slane %v157, 7
  %v457 = vrot.slane %v158, 7
  %v458 = vsel %vm413, %v456, %v457
  %v459 = vrot.slane %v159, 7
  %v460 = vsel %vm413, %v457, %v459
  %v461 = vrot.slane %v279, 7
  %v462 = vsel %vm413, %v459, %v461
  %v463 = vrot.slane %v161, 7
  %v464 = vrot.slane %v162, 7
  %v465 = vsel %vm413, %v463, %v464
  %v466 = vrot.slane %v163, 7
  %v467 = vsel %vm413, %v464, %v466
  %v468 = vrot.slane %v280, 7
  %v469 = vsel %vm413, %v466, %v468
  %v470 = vrot.slane %v165, 7
  %v471 = vrot.slane %v166, 7
  %v472 = vsel %vm413, %v470, %v471
  %v473 = vrot.slane %v167, 7
  %v474 = vsel %vm413, %v471, %v473
  %v475 = vrot.slane %v281, 7
  %v476 = vsel %vm413, %v473, %v475
  %v477 = vrot.slane %v169, 7
  %v478 = vrot.slane %v170, 7
  %v479 = vsel %vm413, %v477, %v478
  %v480 = vrot.slane %v171, 7
  %v481 = vsel %vm413, %v478, %v480
  %v482 = vrot.slane %v282, 7
  %v483 = vsel %vm413, %v480, %v482
  %v484 = vrot.slane %v173, 7
  %v485 = vrot.slane %v174, 7
  %v486 = vsel %vm413, %v484, %v485
  %v487 = vrot.slane %v175, 7
  %v488 = vsel %vm413, %v485, %v487
  %v489 = vrot.slane %v283, 7
  %v490 = vsel %vm413, %v487, %v489
  %v491 = vrot.slane %v177, 7
  %v492 = vrot.slane %v178, 7
  %v493 = vsel %vm413, %v491, %v492
  %v494 = vrot.slane %v179, 7
  %v495 = vsel %vm413, %v492, %v494
  %v496 = vrot.slane %v284, 7
  %v497 = vsel %vm413, %v494, %v496
  %v498 = vrot.slane %v181, 7
  %v499 = vrot.slane %v182, 7
  %v500 = vsel %vm413, %v498, %v499
  %v501 = vrot.slane %v183, 7
  %v502 = vsel %vm413, %v499, %v501
  %v503 = vrot.slane %v285, 7
  %v504 = vsel %vm413, %v501, %v503
  %v505 = vrot.slane %v185, 7
  %v506 = vrot.slane %v186, 7
  %v507 = vsel %vm413, %v505, %v506
  %v508 = vrot.slane %v187, 7
  %v509 = vsel %vm413, %v506, %v508
  %v510 = vrot.slane %v286, 7
  %v511 = vsel %vm413, %v508, %v510
  %v512 = vrot.slane %v189, 7
  %v513 = vrot.slane %v190, 7
  %v514 = vsel %vm413, %v512, %v513
  %v515 = vrot.slane %v191, 7
  %v516 = vsel %vm413, %v513, %v515
  %v517 = vrot.slane %v287, 7
  %v518 = vsel %vm413, %v515, %v517
  %v519 = vrot.slane %v193, 7
  %v520 = vrot.slane %v194, 7
  %v521 = vsel %vm413, %v519, %v520
  %v522 = vrot.slane %v195, 7
  %v523 = vsel %vm413, %v520, %v522
  %v524 = vrot.slane %v288, 7
  %v525 = vsel %vm413, %v522, %v524
  %v526 = vrot.slane %v197, 7
  %v527 = vrot.slane %v198, 7
  %v528 = vsel %vm413, %v526, %v527
  %v529 = vrot.slane %v199, 7
  %v530 = vsel %vm413, %v527, %v529
  %v531 = vrot.slane %v289, 7
  %v532 = vsel %vm413, %v529, %v531
  %v533 = vrot.slane %v201, 7
  %v534 = vrot.slane %v202, 7
  %v535 = vsel %vm413, %v533, %v534
  %v536 = vrot.slane %v203, 7
  %v537 = vsel %vm413, %v534, %v536
  %v538 = vrot.slane %v290, 7
  %v539 = vsel %vm413, %v536, %v538
  %v540 = vrot.slane %v205, 7
  %v541 = vrot.slane %v206, 7
  %v542 = vsel %vm413, %v540, %v541
  %v543 = vrot.slane %v207, 7
  %v544 = vsel %vm413, %v541, %v543
  %v545 = vrot.slane %v291, 7
  %v546 = vsel %vm413, %v543, %v545
  %v547 = vrot.slane %v209, 7
  %v548 = vrot.slane %v210, 7
  %v549 = vsel %vm413, %v547, %v548
  %v550 = vrot.slane %v211, 7
  %v551 = vsel %vm413, %v548, %v550
  %v552 = vrot.slane %v292, 7
  %v553 = vsel %vm413, %v550, %v552
  %v554 = vrot.slane %v213, 7
  %v555 = vrot.slane %v214, 7
  %v556 = vsel %vm413, %v554, %v555
  %v557 = vrot.slane %v215, 7
  %v558 = vsel %vm413, %v555, %v557
  %v559 = vrot.slane %v293, 7
  %v560 = vsel %vm413, %v557, %v559
  %v561 = vrot.slane %v217, 7
  %v562 = vrot.slane %v218, 7
  %v563 = vsel %vm413, %v561, %v562
  %v564 = vrot.slane %v219, 7
  %v565 = vsel %vm413, %v562, %v564
  %v566 = vrot.slane %v294, 7
  %v567 = vsel %vm413, %v564, %v566
  %v568 = vrot.slane %v221, 7
  %v569 = vrot.slane %v222, 7
  %v570 = vsel %vm413, %v568, %v569
  %v571 = vrot.slane %v223, 7
  %v572 = vsel %vm413, %v569, %v571
  %v573 = vrot.slane %v295, 7
  %v574 = vsel %vm413, %v571, %v573
  %v575 = vrot.slane %v225, 7
  %v576 = vrot.slane %v226, 7
  %v577 = vsel %vm413, %v575, %v576
  %v578 = vrot.slane %v227, 7
  %v579 = vsel %vm413, %v576, %v578
  %v580 = vrot.slane %v296, 7
  %v581 = vsel %vm413, %v578, %v580
  %v582 = vrot.slane %v229, 7
  %v583 = vrot.slane %v230, 7
  %v584 = vsel %vm413, %v582, %v583
  %v585 = vrot.slane %v231, 7
  %v586 = vsel %vm413, %v583, %v585
  %v587 = vrot.slane %v297, 7
  %v588 = vsel %vm413, %v585, %v587
  %v589 = vrot.slane %v233, 7
  %v590 = vrot.slane %v234, 7
  %v591 = vsel %vm413, %v589, %v590
  %v592 = vrot.slane %v235, 7
  %v593 = vsel %vm413, %v590, %v592
  %v594 = vrot.slane %v298, 7
  %v595 = vsel %vm413, %v592, %v594
  %v596 = vrot.slane %v237, 7
  %v597 = vrot.slane %v238, 7
  %v598 = vsel %vm413, %v596, %v597
  %v599 = vrot.slane %v239, 7
  %v600 = vsel %vm413, %v597, %v599
  %v601 = vrot.slane %v299, 7
  %v602 = vsel %vm413, %v599, %v601
  %v603 = vrot.slane %v241, 7
  %v604 = vrot.slane %v242, 7
  %v605 = vsel %vm413, %v603, %v604
  %v606 = vrot.slane %v243, 7
  %v607 = vsel %vm413, %v604, %v606
  %v608 = vrot.slane %v300, 7
  %v609 = vsel %vm413, %v606, %v608
  %v638 = vsel %vm413, %v245, %v414
  %v639 = vsel %vm413, %v246, %v421
  %v640 = vsel %vm413, %v247, %v428
  %v641 = vsel %vm413, %v248, %v435
  %v642 = vsel %vm413, %v249, %v442
  %v643 = vsel %vm413, %v250, %v449
  %v644 = vsel %vm413, %v251, %v456
  %v645 = vsel %vm413, %v252, %v463
  %v646 = vsel %vm413, %v253, %v470
  %v647 = vsel %vm413, %v254, %v477
  %v648 = vsel %vm413, %v255, %v484
  %v649 = vsel %vm413, %v256, %v491
  %v650 = vsel %vm413, %v257, %v498
  %v651 = vsel %vm413, %v258, %v505
  %v652 = vsel %vm413, %v259, %v512
  %v653 = vsel %vm413, %v260, %v519
  %v654 = vsel %vm413, %v261, %v526
  %v655 = vsel %vm413, %v262, %v533
  %v656 = vsel %vm413, %v263, %v540
  %v657 = vsel %vm413, %v264, %v547
  %v658 = vsel %vm413, %v265, %v554
  %v659 = vsel %vm413, %v266, %v561
  %v660 = vsel %vm413, %v267, %v568
  %v661 = vsel %vm413, %v268, %v575
  %v662 = vsel %vm413, %v269, %v582
  %v663 = vsel %vm413, %v270, %v589
  %v664 = vsel %vm413, %v271, %v596
  %v665 = vsel %vm413, %v272, %v603
  %694 = vrot.lane.b32.xlu0 %v638, 64
  %v695 = vpop.permute.xlu0 %694
  %696 = vrot.lane.b32.xlu0 %v416, 64
  %v697 = vpop.permute.xlu0 %696
  %698 = vrot.lane.b32.xlu0 %v418, 64
  %v699 = vpop.permute.xlu0 %698
  %700 = vrot.lane.b32.xlu0 %v420, 64
  %v701 = vpop.permute.xlu0 %700
  %702 = vrot.lane.b32.xlu0 %v639, 64
  %v703 = vpop.permute.xlu0 %702
  %704 = vrot.lane.b32.xlu0 %v423, 64
  %v705 = vpop.permute.xlu0 %704
  %706 = vrot.lane.b32.xlu0 %v425, 64
  %v707 = vpop.permute.xlu0 %706
  %708 = vrot.lane.b32.xlu0 %v427, 64
  %v709 = vpop.permute.xlu0 %708
  %710 = vrot.lane.b32.xlu0 %v640, 64
  %v711 = vpop.permute.xlu0 %710
  %712 = vrot.lane.b32.xlu0 %v430, 64
  %v713 = vpop.permute.xlu0 %712
  %714 = vrot.lane.b32.xlu0 %v432, 64
  %v715 = vpop.permute.xlu0 %714
  %716 = vrot.lane.b32.xlu0 %v434, 64
  %v717 = vpop.permute.xlu0 %716
  %718 = vrot.lane.b32.xlu0 %v641, 64
  %v719 = vpop.permute.xlu0 %718
  %720 = vrot.lane.b32.xlu0 %v437, 64
  %v721 = vpop.permute.xlu0 %720
  %722 = vrot.lane.b32.xlu0 %v439, 64
  %v723 = vpop.permute.xlu0 %722
  %724 = vrot.lane.b32.xlu0 %v441, 64
  %v725 = vpop.permute.xlu0 %724
  %726 = vrot.lane.b32.xlu0 %v642, 64
  %v727 = vpop.permute.xlu0 %726
  %728 = vrot.lane.b32.xlu0 %v444, 64
  %v729 = vpop.permute.xlu0 %728
  %730 = vrot.lane.b32.xlu0 %v446, 64
  %v731 = vpop.permute.xlu0 %730
  %732 = vrot.lane.b32.xlu0 %v448, 64
  %v733 = vpop.permute.xlu0 %732
  %734 = vrot.lane.b32.xlu0 %v643, 64
  %v735 = vpop.permute.xlu0 %734
  %736 = vrot.lane.b32.xlu0 %v451, 64
  %v737 = vpop.permute.xlu0 %736
  %738 = vrot.lane.b32.xlu0 %v453, 64
  %v739 = vpop.permute.xlu0 %738
  %740 = vrot.lane.b32.xlu0 %v455, 64
  %v741 = vpop.permute.xlu0 %740
  %742 = vrot.lane.b32.xlu0 %v644, 64
  %v743 = vpop.permute.xlu0 %742
  %744 = vrot.lane.b32.xlu0 %v458, 64
  %v745 = vpop.permute.xlu0 %744
  %746 = vrot.lane.b32.xlu0 %v460, 64
  %v747 = vpop.permute.xlu0 %746
  %748 = vrot.lane.b32.xlu0 %v462, 64
  %v749 = vpop.permute.xlu0 %748
  %750 = vrot.lane.b32.xlu0 %v645, 64
  %v751 = vpop.permute.xlu0 %750
  %752 = vrot.lane.b32.xlu0 %v465, 64
  %v753 = vpop.permute.xlu0 %752
  %754 = vrot.lane.b32.xlu0 %v467, 64
  %v755 = vpop.permute.xlu0 %754
  %756 = vrot.lane.b32.xlu0 %v469, 64
  %v757 = vpop.permute.xlu0 %756
  %758 = vrot.lane.b32.xlu0 %v646, 64
  %v759 = vpop.permute.xlu0 %758
  %760 = vrot.lane.b32.xlu0 %v472, 64
  %v761 = vpop.permute.xlu0 %760
  %762 = vrot.lane.b32.xlu0 %v474, 64
  %v763 = vpop.permute.xlu0 %762
  %764 = vrot.lane.b32.xlu0 %v476, 64
  %v765 = vpop.permute.xlu0 %764
  %766 = vrot.lane.b32.xlu0 %v647, 64
  %v767 = vpop.permute.xlu0 %766
  %768 = vrot.lane.b32.xlu0 %v479, 64
  %v769 = vpop.permute.xlu0 %768
  %770 = vrot.lane.b32.xlu0 %v481, 64
  %v771 = vpop.permute.xlu0 %770
  %772 = vrot.lane.b32.xlu0 %v483, 64
  %v773 = vpop.permute.xlu0 %772
  %774 = vrot.lane.b32.xlu0 %v648, 64
  %v775 = vpop.permute.xlu0 %774
  %776 = vrot.lane.b32.xlu0 %v486, 64
  %v777 = vpop.permute.xlu0 %776
  %778 = vrot.lane.b32.xlu0 %v488, 64
  %v779 = vpop.permute.xlu0 %778
  %780 = vrot.lane.b32.xlu0 %v490, 64
  %v781 = vpop.permute.xlu0 %780
  %782 = vrot.lane.b32.xlu0 %v649, 64
  %v783 = vpop.permute.xlu0 %782
  %784 = vrot.lane.b32.xlu0 %v493, 64
  %v785 = vpop.permute.xlu0 %784
  %786 = vrot.lane.b32.xlu0 %v495, 64
  %v787 = vpop.permute.xlu0 %786
  %788 = vrot.lane.b32.xlu0 %v497, 64
  %v789 = vpop.permute.xlu0 %788
  %790 = vrot.lane.b32.xlu0 %v650, 64
  %v791 = vpop.permute.xlu0 %790
  %792 = vrot.lane.b32.xlu0 %v500, 64
  %v793 = vpop.permute.xlu0 %792
  %794 = vrot.lane.b32.xlu0 %v502, 64
  %v795 = vpop.permute.xlu0 %794
  %796 = vrot.lane.b32.xlu0 %v504, 64
  %v797 = vpop.permute.xlu0 %796
  %798 = vrot.lane.b32.xlu0 %v651, 64
  %v799 = vpop.permute.xlu0 %798
  %800 = vrot.lane.b32.xlu0 %v507, 64
  %v801 = vpop.permute.xlu0 %800
  %802 = vrot.lane.b32.xlu0 %v509, 64
  %v803 = vpop.permute.xlu0 %802
  %804 = vrot.lane.b32.xlu0 %v511, 64
  %v805 = vpop.permute.xlu0 %804
  %806 = vrot.lane.b32.xlu0 %v652, 64
  %v807 = vpop.permute.xlu0 %806
  %808 = vrot.lane.b32.xlu0 %v514, 64
  %v809 = vpop.permute.xlu0 %808
  %810 = vrot.lane.b32.xlu0 %v516, 64
  %v811 = vpop.permute.xlu0 %810
  %812 = vrot.lane.b32.xlu0 %v518, 64
  %v813 = vpop.permute.xlu0 %812
  %814 = vrot.lane.b32.xlu0 %v653, 64
  %v815 = vpop.permute.xlu0 %814
  %816 = vrot.lane.b32.xlu0 %v521, 64
  %v817 = vpop.permute.xlu0 %816
  %818 = vrot.lane.b32.xlu0 %v523, 64
  %v819 = vpop.permute.xlu0 %818
  %820 = vrot.lane.b32.xlu0 %v525, 64
  %v821 = vpop.permute.xlu0 %820
  %822 = vrot.lane.b32.xlu0 %v654, 64
  %v823 = vpop.permute.xlu0 %822
  %824 = vrot.lane.b32.xlu0 %v528, 64
  %v825 = vpop.permute.xlu0 %824
  %826 = vrot.lane.b32.xlu0 %v530, 64
  %v827 = vpop.permute.xlu0 %826
  %828 = vrot.lane.b32.xlu0 %v532, 64
  %v829 = vpop.permute.xlu0 %828
  %830 = vrot.lane.b32.xlu0 %v655, 64
  %v831 = vpop.permute.xlu0 %830
  %832 = vrot.lane.b32.xlu0 %v535, 64
  %v833 = vpop.permute.xlu0 %832
  %834 = vrot.lane.b32.xlu0 %v537, 64
  %v835 = vpop.permute.xlu0 %834
  %836 = vrot.lane.b32.xlu0 %v539, 64
  %v837 = vpop.permute.xlu0 %836
  %838 = vrot.lane.b32.xlu0 %v656, 64
  %v839 = vpop.permute.xlu0 %838
  %840 = vrot.lane.b32.xlu0 %v542, 64
  %v841 = vpop.permute.xlu0 %840
  %842 = vrot.lane.b32.xlu0 %v544, 64
  %v843 = vpop.permute.xlu0 %842
  %844 = vrot.lane.b32.xlu0 %v546, 64
  %v845 = vpop.permute.xlu0 %844
  %846 = vrot.lane.b32.xlu0 %v657, 64
  %v847 = vpop.permute.xlu0 %846
  %848 = vrot.lane.b32.xlu0 %v549, 64
  %v849 = vpop.permute.xlu0 %848
  %850 = vrot.lane.b32.xlu0 %v551, 64
  %v851 = vpop.permute.xlu0 %850
  %852 = vrot.lane.b32.xlu0 %v553, 64
  %v853 = vpop.permute.xlu0 %852
  %854 = vrot.lane.b32.xlu0 %v658, 64
  %v855 = vpop.permute.xlu0 %854
  %856 = vrot.lane.b32.xlu0 %v556, 64
  %v857 = vpop.permute.xlu0 %856
  %858 = vrot.lane.b32.xlu0 %v558, 64
  %v859 = vpop.permute.xlu0 %858
  %860 = vrot.lane.b32.xlu0 %v560, 64
  %v861 = vpop.permute.xlu0 %860
  %862 = vrot.lane.b32.xlu0 %v659, 64
  %v863 = vpop.permute.xlu0 %862
  %864 = vrot.lane.b32.xlu0 %v563, 64
  %v865 = vpop.permute.xlu0 %864
  %866 = vrot.lane.b32.xlu0 %v565, 64
  %v867 = vpop.permute.xlu0 %866
  %868 = vrot.lane.b32.xlu0 %v567, 64
  %v869 = vpop.permute.xlu0 %868
  %870 = vrot.lane.b32.xlu0 %v660, 64
  %v871 = vpop.permute.xlu0 %870
  %872 = vrot.lane.b32.xlu0 %v570, 64
  %v873 = vpop.permute.xlu0 %872
  %874 = vrot.lane.b32.xlu0 %v572, 64
  %v875 = vpop.permute.xlu0 %874
  %876 = vrot.lane.b32.xlu0 %v574, 64
  %v877 = vpop.permute.xlu0 %876
  %878 = vrot.lane.b32.xlu0 %v661, 64
  %v879 = vpop.permute.xlu0 %878
  %880 = vrot.lane.b32.xlu0 %v577, 64
  %v881 = vpop.permute.xlu0 %880
  %882 = vrot.lane.b32.xlu0 %v579, 64
  %v883 = vpop.permute.xlu0 %882
  %884 = vrot.lane.b32.xlu0 %v581, 64
  %v885 = vpop.permute.xlu0 %884
  %886 = vrot.lane.b32.xlu0 %v662, 64
  %v887 = vpop.permute.xlu0 %886
  %888 = vrot.lane.b32.xlu0 %v584, 64
  %v889 = vpop.permute.xlu0 %888
  %890 = vrot.lane.b32.xlu0 %v586, 64
  %v891 = vpop.permute.xlu0 %890
  %892 = vrot.lane.b32.xlu0 %v588, 64
  %v893 = vpop.permute.xlu0 %892
  %894 = vrot.lane.b32.xlu0 %v663, 64
  %v895 = vpop.permute.xlu0 %894
  %896 = vrot.lane.b32.xlu0 %v591, 64
  %v897 = vpop.permute.xlu0 %896
  %898 = vrot.lane.b32.xlu0 %v593, 64
  %v899 = vpop.permute.xlu0 %898
  %900 = vrot.lane.b32.xlu0 %v595, 64
  %v901 = vpop.permute.xlu0 %900
  %902 = vrot.lane.b32.xlu0 %v664, 64
  %v903 = vpop.permute.xlu0 %902
  %904 = vrot.lane.b32.xlu0 %v598, 64
  %v905 = vpop.permute.xlu0 %904
  %906 = vrot.lane.b32.xlu0 %v600, 64
  %v907 = vpop.permute.xlu0 %906
  %908 = vrot.lane.b32.xlu0 %v602, 64
  %v909 = vpop.permute.xlu0 %908
  %910 = vrot.lane.b32.xlu0 %v665, 64
  %v911 = vpop.permute.xlu0 %910
  %912 = vrot.lane.b32.xlu0 %v605, 64
  %v913 = vpop.permute.xlu0 %912
  %914 = vrot.lane.b32.xlu0 %v607, 64
  %v915 = vpop.permute.xlu0 %914
  %916 = vrot.lane.b32.xlu0 %v609, 64
  %v917 = vpop.permute.xlu0 %916
  %v1030 = vadd.f32 %v133, %v695
  %v1031 = vadd.f32 %v134, %v697
  %v1032 = vadd.f32 %v135, %v699
  %v1033 = vadd.f32 %v136, %v701
  %v1034 = vadd.f32 %v137, %v703
  %v1035 = vadd.f32 %v138, %v705
  %v1036 = vadd.f32 %v139, %v707
  %v1037 = vadd.f32 %v140, %v709
  %v1038 = vadd.f32 %v141, %v711
  %v1039 = vadd.f32 %v142, %v713
  %v1040 = vadd.f32 %v143, %v715
  %v1041 = vadd.f32 %v144, %v717
  %v1042 = vadd.f32 %v145, %v719
  %v1043 = vadd.f32 %v146, %v721
  %v1044 = vadd.f32 %v147, %v723
  %v1045 = vadd.f32 %v148, %v725
  %v1046 = vadd.f32 %v149, %v727
  %v1047 = vadd.f32 %v150, %v729
  %v1048 = vadd.f32 %v151, %v731
  %v1049 = vadd.f32 %v152, %v733
  %v1050 = vadd.f32 %v153, %v735
  %v1051 = vadd.f32 %v154, %v737
  %v1052 = vadd.f32 %v155, %v739
  %v1053 = vadd.f32 %v156, %v741
  %v1054 = vadd.f32 %v157, %v743
  %v1055 = vadd.f32 %v158, %v745
  %v1056 = vadd.f32 %v159, %v747
  %v1057 = vadd.f32 %v160, %v749
  %v1058 = vadd.f32 %v161, %v751
  %v1059 = vadd.f32 %v162, %v753
  %v1060 = vadd.f32 %v163, %v755
  %v1061 = vadd.f32 %v164, %v757
  %v1062 = vadd.f32 %v165, %v759
  %v1063 = vadd.f32 %v166, %v761
  %v1064 = vadd.f32 %v167, %v763
  %v1065 = vadd.f32 %v168, %v765
  %v1066 = vadd.f32 %v169, %v767
  %v1067 = vadd.f32 %v170, %v769
  %v1068 = vadd.f32 %v171, %v771
  %v1069 = vadd.f32 %v172, %v773
  %v1070 = vadd.f32 %v173, %v775
  %v1071 = vadd.f32 %v174, %v777
  %v1072 = vadd.f32 %v175, %v779
  %v1073 = vadd.f32 %v176, %v781
  %v1074 = vadd.f32 %v177, %v783
  %v1075 = vadd.f32 %v178, %v785
  %v1076 = vadd.f32 %v179, %v787
  %v1077 = vadd.f32 %v180, %v789
  %v1078 = vadd.f32 %v181, %v791
  %v1079 = vadd.f32 %v182, %v793
  %v1080 = vadd.f32 %v183, %v795
  %v1081 = vadd.f32 %v184, %v797
  %v1082 = vadd.f32 %v185, %v799
  %v1083 = vadd.f32 %v186, %v801
  %v1084 = vadd.f32 %v187, %v803
  %v1085 = vadd.f32 %v188, %v805
  %v1086 = vadd.f32 %v189, %v807
  %v1087 = vadd.f32 %v190, %v809
  %v1088 = vadd.f32 %v191, %v811
  %v1089 = vadd.f32 %v192, %v813
  %v1090 = vadd.f32 %v193, %v815
  %v1091 = vadd.f32 %v194, %v817
  %v1092 = vadd.f32 %v195, %v819
  %v1093 = vadd.f32 %v196, %v821
  %v1094 = vadd.f32 %v197, %v823
  %v1095 = vadd.f32 %v198, %v825
  %v1096 = vadd.f32 %v199, %v827
  %v1097 = vadd.f32 %v200, %v829
  %v1098 = vadd.f32 %v201, %v831
  %v1099 = vadd.f32 %v202, %v833
  %v1100 = vadd.f32 %v203, %v835
  %v1101 = vadd.f32 %v204, %v837
  %v1102 = vadd.f32 %v205, %v839
  %v1103 = vadd.f32 %v206, %v841
  %v1104 = vadd.f32 %v207, %v843
  %v1105 = vadd.f32 %v208, %v845
  %v1106 = vadd.f32 %v209, %v847
  %v1107 = vadd.f32 %v210, %v849
  %v1108 = vadd.f32 %v211, %v851
  %v1109 = vadd.f32 %v212, %v853
  %v1110 = vadd.f32 %v213, %v855
  %v1111 = vadd.f32 %v214, %v857
  %v1112 = vadd.f32 %v215, %v859
  %v1113 = vadd.f32 %v216, %v861
  %v1114 = vadd.f32 %v217, %v863
  %v1115 = vadd.f32 %v218, %v865
  %v1116 = vadd.f32 %v219, %v867
  %v1117 = vadd.f32 %v220, %v869
  %v1118 = vadd.f32 %v221, %v871
  %v1119 = vadd.f32 %v222, %v873
  %v1120 = vadd.f32 %v223, %v875
  %v1121 = vadd.f32 %v224, %v877
  %v1122 = vadd.f32 %v225, %v879
  %v1123 = vadd.f32 %v226, %v881
  %v1124 = vadd.f32 %v227, %v883
  %v1125 = vadd.f32 %v228, %v885
  %v1126 = vadd.f32 %v229, %v887
  %v1127 = vadd.f32 %v230, %v889
  %v1128 = vadd.f32 %v231, %v891
  %v1129 = vadd.f32 %v232, %v893
  %v1130 = vadd.f32 %v233, %v895
  %v1131 = vadd.f32 %v234, %v897
  %v1132 = vadd.f32 %v235, %v899
  %v1133 = vadd.f32 %v236, %v901
  %v1134 = vadd.f32 %v237, %v903
  %v1135 = vadd.f32 %v238, %v905
  %v1136 = vadd.f32 %v239, %v907
  %v1137 = vadd.f32 %v240, %v909
  %v1138 = vadd.f32 %v241, %v911
  %v1139 = vadd.f32 %v242, %v913
  %v1140 = vadd.f32 %v243, %v915
  %v1141 = vadd.f32 %v244, %v917
  %v1142 = vld [vmem:[%s0 + $0x1] sm:$0xff]
  %v1143 = vld [vmem:[%s0 + $0x9] sm:$0xff]
  %v1144 = vld [vmem:[%s0 + $0x11] sm:$0xff]
  %v1145 = vld [vmem:[%s0 + $0x19] sm:$0xf]
  %v1146 = vld [vmem:[%s0 + $0x21] sm:$0xff]
  %v1147 = vld [vmem:[%s0 + $0x29] sm:$0xff]
  %v1148 = vld [vmem:[%s0 + $0x31] sm:$0xff]
  %v1149 = vld [vmem:[%s0 + $0x39] sm:$0xf]
  %v1150 = vld [vmem:[%s0 + $0x41] sm:$0xff]
  %v1151 = vld [vmem:[%s0 + $0x49] sm:$0xff]
  %v1152 = vld [vmem:[%s0 + $0x51] sm:$0xff]
  %v1153 = vld [vmem:[%s0 + $0x59] sm:$0xf]
  %v1154 = vld [vmem:[%s0 + $0x61] sm:$0xff]
  %v1155 = vld [vmem:[%s0 + $0x69] sm:$0xff]
  %v1156 = vld [vmem:[%s0 + $0x71] sm:$0xff]
  %v1157 = vld [vmem:[%s0 + $0x79] sm:$0xf]
  %v1158 = vld [vmem:[%s0 + $0x81] sm:$0xff]
  %v1159 = vld [vmem:[%s0 + $0x89] sm:$0xff]
  %v1160 = vld [vmem:[%s0 + $0x91] sm:$0xff]
  %v1161 = vld [vmem:[%s0 + $0x99] sm:$0xf]
  %v1162 = vld [vmem:[%s0 + $0xa1] sm:$0xff]
  %v1163 = vld [vmem:[%s0 + $0xa9] sm:$0xff]
  %v1164 = vld [vmem:[%s0 + $0xb1] sm:$0xff]
  %v1165 = vld [vmem:[%s0 + $0xb9] sm:$0xf]
  %v1166 = vld [vmem:[%s0 + $0xc1] sm:$0xff]
  %v1167 = vld [vmem:[%s0 + $0xc9] sm:$0xff]
  %v1168 = vld [vmem:[%s0 + $0xd1] sm:$0xff]
  %v1169 = vld [vmem:[%s0 + $0xd9] sm:$0xf]
  %v1170 = vld [vmem:[%s0 + $0xe1] sm:$0xff]
  %v1171 = vld [vmem:[%s0 + $0xe9] sm:$0xff]
  %v1172 = vld [vmem:[%s0 + $0xf1] sm:$0xff]
  %v1173 = vld [vmem:[%s0 + $0xf9] sm:$0xf]
  %v1174 = vld [vmem:[%s0 + $0x101] sm:$0xff]
  %v1175 = vld [vmem:[%s0 + $0x109] sm:$0xff]
  %v1176 = vld [vmem:[%s0 + $0x111] sm:$0xff]
  %v1177 = vld [vmem:[%s0 + $0x119] sm:$0xf]
  %v1178 = vld [vmem:[%s0 + $0x121] sm:$0xff]
  %v1179 = vld [vmem:[%s0 + $0x129] sm:$0xff]
  %v1180 = vld [vmem:[%s0 + $0x131] sm:$0xff]
  %v1181 = vld [vmem:[%s0 + $0x139] sm:$0xf]
  %v1182 = vld [vmem:[%s0 + $0x141] sm:$0xff]
  %v1183 = vld [vmem:[%s0 + $0x149] sm:$0xff]
  %v1184 = vld [vmem:[%s0 + $0x151] sm:$0xff]
  %v1185 = vld [vmem:[%s0 + $0x159] sm:$0xf]
  %v1186 = vld [vmem:[%s0 + $0x161] sm:$0xff]
  %v1187 = vld [vmem:[%s0 + $0x169] sm:$0xff]
  %v1188 = vld [vmem:[%s0 + $0x171] sm:$0xff]
  %v1189 = vld [vmem:[%s0 + $0x179] sm:$0xf]
  %v1190 = vld [vmem:[%s0 + $0x181] sm:$0xff]
  %v1191 = vld [vmem:[%s0 + $0x189] sm:$0xff]
  %v1192 = vld [vmem:[%s0 + $0x191] sm:$0xff]
  %v1193 = vld [vmem:[%s0 + $0x199] sm:$0xf]
  %v1194 = vld [vmem:[%s0 + $0x1a1] sm:$0xff]
  %v1195 = vld [vmem:[%s0 + $0x1a9] sm:$0xff]
  %v1196 = vld [vmem:[%s0 + $0x1b1] sm:$0xff]
  %v1197 = vld [vmem:[%s0 + $0x1b9] sm:$0xf]
  %v1198 = vld [vmem:[%s0 + $0x1c1] sm:$0xff]
  %v1199 = vld [vmem:[%s0 + $0x1c9] sm:$0xff]
  %v1200 = vld [vmem:[%s0 + $0x1d1] sm:$0xff]
  %v1201 = vld [vmem:[%s0 + $0x1d9] sm:$0xf]
  %v1202 = vld [vmem:[%s0 + $0x1e1] sm:$0xff]
  %v1203 = vld [vmem:[%s0 + $0x1e9] sm:$0xff]
  %v1204 = vld [vmem:[%s0 + $0x1f1] sm:$0xff]
  %v1205 = vld [vmem:[%s0 + $0x1f9] sm:$0xf]
  %v1206 = vld [vmem:[%s0 + $0x201] sm:$0xff]
  %v1207 = vld [vmem:[%s0 + $0x209] sm:$0xff]
  %v1208 = vld [vmem:[%s0 + $0x211] sm:$0xff]
  %v1209 = vld [vmem:[%s0 + $0x219] sm:$0xf]
  %v1210 = vld [vmem:[%s0 + $0x221] sm:$0xff]
  %v1211 = vld [vmem:[%s0 + $0x229] sm:$0xff]
  %v1212 = vld [vmem:[%s0 + $0x231] sm:$0xff]
  %v1213 = vld [vmem:[%s0 + $0x239] sm:$0xf]
  %v1214 = vld [vmem:[%s0 + $0x241] sm:$0xff]
  %v1215 = vld [vmem:[%s0 + $0x249] sm:$0xff]
  %v1216 = vld [vmem:[%s0 + $0x251] sm:$0xff]
  %v1217 = vld [vmem:[%s0 + $0x259] sm:$0xf]
  %v1218 = vld [vmem:[%s0 + $0x261] sm:$0xff]
  %v1219 = vld [vmem:[%s0 + $0x269] sm:$0xff]
  %v1220 = vld [vmem:[%s0 + $0x271] sm:$0xff]
  %v1221 = vld [vmem:[%s0 + $0x279] sm:$0xf]
  %v1222 = vld [vmem:[%s0 + $0x281] sm:$0xff]
  %v1223 = vld [vmem:[%s0 + $0x289] sm:$0xff]
  %v1224 = vld [vmem:[%s0 + $0x291] sm:$0xff]
  %v1225 = vld [vmem:[%s0 + $0x299] sm:$0xf]
  %v1226 = vld [vmem:[%s0 + $0x2a1] sm:$0xff]
  %v1227 = vld [vmem:[%s0 + $0x2a9] sm:$0xff]
  %v1228 = vld [vmem:[%s0 + $0x2b1] sm:$0xff]
  %v1229 = vld [vmem:[%s0 + $0x2b9] sm:$0xf]
  %v1230 = vld [vmem:[%s0 + $0x2c1] sm:$0xff]
  %v1231 = vld [vmem:[%s0 + $0x2c9] sm:$0xff]
  %v1232 = vld [vmem:[%s0 + $0x2d1] sm:$0xff]
  %v1233 = vld [vmem:[%s0 + $0x2d9] sm:$0xf]
  %v1234 = vld [vmem:[%s0 + $0x2e1] sm:$0xff]
  %v1235 = vld [vmem:[%s0 + $0x2e9] sm:$0xff]
  %v1236 = vld [vmem:[%s0 + $0x2f1] sm:$0xff]
  %v1237 = vld [vmem:[%s0 + $0x2f9] sm:$0xf]
  %v1238 = vld [vmem:[%s0 + $0x301] sm:$0xff]
  %v1239 = vld [vmem:[%s0 + $0x309] sm:$0xff]
  %v1240 = vld [vmem:[%s0 + $0x311] sm:$0xff]
  %v1241 = vld [vmem:[%s0 + $0x319] sm:$0xf]
  %v1242 = vld [vmem:[%s0 + $0x321] sm:$0xff]
  %v1243 = vld [vmem:[%s0 + $0x329] sm:$0xff]
  %v1244 = vld [vmem:[%s0 + $0x331] sm:$0xff]
  %v1245 = vld [vmem:[%s0 + $0x339] sm:$0xf]
  %v1246 = vld [vmem:[%s0 + $0x341] sm:$0xff]
  %v1247 = vld [vmem:[%s0 + $0x349] sm:$0xff]
  %v1248 = vld [vmem:[%s0 + $0x351] sm:$0xff]
  %v1249 = vld [vmem:[%s0 + $0x359] sm:$0xf]
  %v1250 = vld [vmem:[%s0 + $0x361] sm:$0xff]
  %v1251 = vld [vmem:[%s0 + $0x369] sm:$0xff]
  %v1252 = vld [vmem:[%s0 + $0x371] sm:$0xff]
  %v1253 = vld [vmem:[%s0 + $0x379] sm:$0xf]
  %v1254 = vld [vmem:[%s0 + $0x1c] sm:$0x1]
  %v1255 = vld [vmem:[%s0 + $0x3c] sm:$0x1]
  %v1256 = vld [vmem:[%s0 + $0x5c] sm:$0x1]
  %v1257 = vld [vmem:[%s0 + $0x7c] sm:$0x1]
  %v1258 = vld [vmem:[%s0 + $0x9c] sm:$0x1]
  %v1259 = vld [vmem:[%s0 + $0xbc] sm:$0x1]
  %v1260 = vld [vmem:[%s0 + $0xdc] sm:$0x1]
  %v1261 = vld [vmem:[%s0 + $0xfc] sm:$0x1]
  %v1262 = vld [vmem:[%s0 + $0x11c] sm:$0x1]
  %v1263 = vld [vmem:[%s0 + $0x13c] sm:$0x1]
  %v1264 = vld [vmem:[%s0 + $0x15c] sm:$0x1]
  %v1265 = vld [vmem:[%s0 + $0x17c] sm:$0x1]
  %v1266 = vld [vmem:[%s0 + $0x19c] sm:$0x1]
  %v1267 = vld [vmem:[%s0 + $0x1bc] sm:$0x1]
  %v1268 = vld [vmem:[%s0 + $0x1dc] sm:$0x1]
  %v1269 = vld [vmem:[%s0 + $0x1fc] sm:$0x1]
  %v1270 = vld [vmem:[%s0 + $0x21c] sm:$0x1]
  %v1271 = vld [vmem:[%s0 + $0x23c] sm:$0x1]
  %v1272 = vld [vmem:[%s0 + $0x25c] sm:$0x1]
  %v1273 = vld [vmem:[%s0 + $0x27c] sm:$0x1]
  %v1274 = vld [vmem:[%s0 + $0x29c] sm:$0x1]
  %v1275 = vld [vmem:[%s0 + $0x2bc] sm:$0x1]
  %v1276 = vld [vmem:[%s0 + $0x2dc] sm:$0x1]
  %v1277 = vld [vmem:[%s0 + $0x2fc] sm:$0x1]
  %v1278 = vld [vmem:[%s0 + $0x31c] sm:$0x1]
  %v1279 = vld [vmem:[%s0 + $0x33c] sm:$0x1]
  %v1280 = vld [vmem:[%s0 + $0x35c] sm:$0x1]
  %v1281 = vld [vmem:[%s0 + $0x37c] sm:$0x1]
  %v1282 = vld [vmem:[%s0 + $0x19] sm:$0x7]
  %v1283 = vld [vmem:[%s0 + $0x39] sm:$0x7]
  %v1284 = vld [vmem:[%s0 + $0x59] sm:$0x7]
  %v1285 = vld [vmem:[%s0 + $0x79] sm:$0x7]
  %v1286 = vld [vmem:[%s0 + $0x99] sm:$0x7]
  %v1287 = vld [vmem:[%s0 + $0xb9] sm:$0x7]
  %v1288 = vld [vmem:[%s0 + $0xd9] sm:$0x7]
  %v1289 = vld [vmem:[%s0 + $0xf9] sm:$0x7]
  %v1290 = vld [vmem:[%s0 + $0x119] sm:$0x7]
  %v1291 = vld [vmem:[%s0 + $0x139] sm:$0x7]
  %v1292 = vld [vmem:[%s0 + $0x159] sm:$0x7]
  %v1293 = vld [vmem:[%s0 + $0x179] sm:$0x7]
  %v1294 = vld [vmem:[%s0 + $0x199] sm:$0x7]
  %v1295 = vld [vmem:[%s0 + $0x1b9] sm:$0x7]
  %v1296 = vld [vmem:[%s0 + $0x1d9] sm:$0x7]
  %v1297 = vld [vmem:[%s0 + $0x1f9] sm:$0x7]
  %v1298 = vld [vmem:[%s0 + $0x219] sm:$0x7]
  %v1299 = vld [vmem:[%s0 + $0x239] sm:$0x7]
  %v1300 = vld [vmem:[%s0 + $0x259] sm:$0x7]
  %v1301 = vld [vmem:[%s0 + $0x279] sm:$0x7]
  %v1302 = vld [vmem:[%s0 + $0x299] sm:$0x7]
  %v1303 = vld [vmem:[%s0 + $0x2b9] sm:$0x7]
  %v1304 = vld [vmem:[%s0 + $0x2d9] sm:$0x7]
  %v1305 = vld [vmem:[%s0 + $0x2f9] sm:$0x7]
  %v1306 = vld [vmem:[%s0 + $0x319] sm:$0x7]
  %v1307 = vld [vmem:[%s0 + $0x339] sm:$0x7]
  %v1308 = vld [vmem:[%s0 + $0x359] sm:$0x7]
  %v1309 = vld [vmem:[%s0 + $0x379] sm:$0x7]
  %v1422 = vrot.slane %v1142, 7
  %v1423 = vrot.slane %v1143, 7
  %v1424 = vsel %vm413, %v1422, %v1423
  %v1425 = vrot.slane %v1144, 7
  %v1426 = vsel %vm413, %v1423, %v1425
  %v1427 = vrot.slane %v1282, 7
  %v1428 = vsel %vm413, %v1425, %v1427
  %v1429 = vrot.slane %v1146, 7
  %v1430 = vrot.slane %v1147, 7
  %v1431 = vsel %vm413, %v1429, %v1430
  %v1432 = vrot.slane %v1148, 7
  %v1433 = vsel %vm413, %v1430, %v1432
  %v1434 = vrot.slane %v1283, 7
  %v1435 = vsel %vm413, %v1432, %v1434
  %v1436 = vrot.slane %v1150, 7
  %v1437 = vrot.slane %v1151, 7
  %v1438 = vsel %vm413, %v1436, %v1437
  %v1439 = vrot.slane %v1152, 7
  %v1440 = vsel %vm413, %v1437, %v1439
  %v1441 = vrot.slane %v1284, 7
  %v1442 = vsel %vm413, %v1439, %v1441
  %v1443 = vrot.slane %v1154, 7
  %v1444 = vrot.slane %v1155, 7
  %v1445 = vsel %vm413, %v1443, %v1444
  %v1446 = vrot.slane %v1156, 7
  %v1447 = vsel %vm413, %v1444, %v1446
  %v1448 = vrot.slane %v1285, 7
  %v1449 = vsel %vm413, %v1446, %v1448
  %v1450 = vrot.slane %v1158, 7
  %v1451 = vrot.slane %v1159, 7
  %v1452 = vsel %vm413, %v1450, %v1451
  %v1453 = vrot.slane %v1160, 7
  %v1454 = vsel %vm413, %v1451, %v1453
  %v1455 = vrot.slane %v1286, 7
  %v1456 = vsel %vm413, %v1453, %v1455
  %v1457 = vrot.slane %v1162, 7
  %v1458 = vrot.slane %v1163, 7
  %v1459 = vsel %vm413, %v1457, %v1458
  %v1460 = vrot.slane %v1164, 7
  %v1461 = vsel %vm413, %v1458, %v1460
  %v1462 = vrot.slane %v1287, 7
  %v1463 = vsel %vm413, %v1460, %v1462
  %v1464 = vrot.slane %v1166, 7
  %v1465 = vrot.slane %v1167, 7
  %v1466 = vsel %vm413, %v1464, %v1465
  %v1467 = vrot.slane %v1168, 7
  %v1468 = vsel %vm413, %v1465, %v1467
  %v1469 = vrot.slane %v1288, 7
  %v1470 = vsel %vm413, %v1467, %v1469
  %v1471 = vrot.slane %v1170, 7
  %v1472 = vrot.slane %v1171, 7
  %v1473 = vsel %vm413, %v1471, %v1472
  %v1474 = vrot.slane %v1172, 7
  %v1475 = vsel %vm413, %v1472, %v1474
  %v1476 = vrot.slane %v1289, 7
  %v1477 = vsel %vm413, %v1474, %v1476
  %v1478 = vrot.slane %v1174, 7
  %v1479 = vrot.slane %v1175, 7
  %v1480 = vsel %vm413, %v1478, %v1479
  %v1481 = vrot.slane %v1176, 7
  %v1482 = vsel %vm413, %v1479, %v1481
  %v1483 = vrot.slane %v1290, 7
  %v1484 = vsel %vm413, %v1481, %v1483
  %v1485 = vrot.slane %v1178, 7
  %v1486 = vrot.slane %v1179, 7
  %v1487 = vsel %vm413, %v1485, %v1486
  %v1488 = vrot.slane %v1180, 7
  %v1489 = vsel %vm413, %v1486, %v1488
  %v1490 = vrot.slane %v1291, 7
  %v1491 = vsel %vm413, %v1488, %v1490
  %v1492 = vrot.slane %v1182, 7
  %v1493 = vrot.slane %v1183, 7
  %v1494 = vsel %vm413, %v1492, %v1493
  %v1495 = vrot.slane %v1184, 7
  %v1496 = vsel %vm413, %v1493, %v1495
  %v1497 = vrot.slane %v1292, 7
  %v1498 = vsel %vm413, %v1495, %v1497
  %v1499 = vrot.slane %v1186, 7
  %v1500 = vrot.slane %v1187, 7
  %v1501 = vsel %vm413, %v1499, %v1500
  %v1502 = vrot.slane %v1188, 7
  %v1503 = vsel %vm413, %v1500, %v1502
  %v1504 = vrot.slane %v1293, 7
  %v1505 = vsel %vm413, %v1502, %v1504
  %v1506 = vrot.slane %v1190, 7
  %v1507 = vrot.slane %v1191, 7
  %v1508 = vsel %vm413, %v1506, %v1507
  %v1509 = vrot.slane %v1192, 7
  %v1510 = vsel %vm413, %v1507, %v1509
  %v1511 = vrot.slane %v1294, 7
  %v1512 = vsel %vm413, %v1509, %v1511
  %v1513 = vrot.slane %v1194, 7
  %v1514 = vrot.slane %v1195, 7
  %v1515 = vsel %vm413, %v1513, %v1514
  %v1516 = vrot.slane %v1196, 7
  %v1517 = vsel %vm413, %v1514, %v1516
  %v1518 = vrot.slane %v1295, 7
  %v1519 = vsel %vm413, %v1516, %v1518
  %v1520 = vrot.slane %v1198, 7
  %v1521 = vrot.slane %v1199, 7
  %v1522 = vsel %vm413, %v1520, %v1521
  %v1523 = vrot.slane %v1200, 7
  %v1524 = vsel %vm413, %v1521, %v1523
  %v1525 = vrot.slane %v1296, 7
  %v1526 = vsel %vm413, %v1523, %v1525
  %v1527 = vrot.slane %v1202, 7
  %v1528 = vrot.slane %v1203, 7
  %v1529 = vsel %vm413, %v1527, %v1528
  %v1530 = vrot.slane %v1204, 7
  %v1531 = vsel %vm413, %v1528, %v1530
  %v1532 = vrot.slane %v1297, 7
  %v1533 = vsel %vm413, %v1530, %v1532
  %v1534 = vrot.slane %v1206, 7
  %v1535 = vrot.slane %v1207, 7
  %v1536 = vsel %vm413, %v1534, %v1535
  %v1537 = vrot.slane %v1208, 7
  %v1538 = vsel %vm413, %v1535, %v1537
  %v1539 = vrot.slane %v1298, 7
  %v1540 = vsel %vm413, %v1537, %v1539
  %v1541 = vrot.slane %v1210, 7
  %v1542 = vrot.slane %v1211, 7
  %v1543 = vsel %vm413, %v1541, %v1542
  %v1544 = vrot.slane %v1212, 7
  %v1545 = vsel %vm413, %v1542, %v1544
  %v1546 = vrot.slane %v1299, 7
  %v1547 = vsel %vm413, %v1544, %v1546
  %v1548 = vrot.slane %v1214, 7
  %v1549 = vrot.slane %v1215, 7
  %v1550 = vsel %vm413, %v1548, %v1549
  %v1551 = vrot.slane %v1216, 7
  %v1552 = vsel %vm413, %v1549, %v1551
  %v1553 = vrot.slane %v1300, 7
  %v1554 = vsel %vm413, %v1551, %v1553
  %v1555 = vrot.slane %v1218, 7
  %v1556 = vrot.slane %v1219, 7
  %v1557 = vsel %vm413, %v1555, %v1556
  %v1558 = vrot.slane %v1220, 7
  %v1559 = vsel %vm413, %v1556, %v1558
  %v1560 = vrot.slane %v1301, 7
  %v1561 = vsel %vm413, %v1558, %v1560
  %v1562 = vrot.slane %v1222, 7
  %v1563 = vrot.slane %v1223, 7
  %v1564 = vsel %vm413, %v1562, %v1563
  %v1565 = vrot.slane %v1224, 7
  %v1566 = vsel %vm413, %v1563, %v1565
  %v1567 = vrot.slane %v1302, 7
  %v1568 = vsel %vm413, %v1565, %v1567
  %v1569 = vrot.slane %v1226, 7
  %v1570 = vrot.slane %v1227, 7
  %v1571 = vsel %vm413, %v1569, %v1570
  %v1572 = vrot.slane %v1228, 7
  %v1573 = vsel %vm413, %v1570, %v1572
  %v1574 = vrot.slane %v1303, 7
  %v1575 = vsel %vm413, %v1572, %v1574
  %v1576 = vrot.slane %v1230, 7
  %v1577 = vrot.slane %v1231, 7
  %v1578 = vsel %vm413, %v1576, %v1577
  %v1579 = vrot.slane %v1232, 7
  %v1580 = vsel %vm413, %v1577, %v1579
  %v1581 = vrot.slane %v1304, 7
  %v1582 = vsel %vm413, %v1579, %v1581
  %v1583 = vrot.slane %v1234, 7
  %v1584 = vrot.slane %v1235, 7
  %v1585 = vsel %vm413, %v1583, %v1584
  %v1586 = vrot.slane %v1236, 7
  %v1587 = vsel %vm413, %v1584, %v1586
  %v1588 = vrot.slane %v1305, 7
  %v1589 = vsel %vm413, %v1586, %v1588
  %v1590 = vrot.slane %v1238, 7
  %v1591 = vrot.slane %v1239, 7
  %v1592 = vsel %vm413, %v1590, %v1591
  %v1593 = vrot.slane %v1240, 7
  %v1594 = vsel %vm413, %v1591, %v1593
  %v1595 = vrot.slane %v1306, 7
  %v1596 = vsel %vm413, %v1593, %v1595
  %v1597 = vrot.slane %v1242, 7
  %v1598 = vrot.slane %v1243, 7
  %v1599 = vsel %vm413, %v1597, %v1598
  %v1600 = vrot.slane %v1244, 7
  %v1601 = vsel %vm413, %v1598, %v1600
  %v1602 = vrot.slane %v1307, 7
  %v1603 = vsel %vm413, %v1600, %v1602
  %v1604 = vrot.slane %v1246, 7
  %v1605 = vrot.slane %v1247, 7
  %v1606 = vsel %vm413, %v1604, %v1605
  %v1607 = vrot.slane %v1248, 7
  %v1608 = vsel %vm413, %v1605, %v1607
  %v1609 = vrot.slane %v1308, 7
  %v1610 = vsel %vm413, %v1607, %v1609
  %v1611 = vrot.slane %v1250, 7
  %v1612 = vrot.slane %v1251, 7
  %v1613 = vsel %vm413, %v1611, %v1612
  %v1614 = vrot.slane %v1252, 7
  %v1615 = vsel %vm413, %v1612, %v1614
  %v1616 = vrot.slane %v1309, 7
  %v1617 = vsel %vm413, %v1614, %v1616
  %v1646 = vsel %vm413, %v1254, %v1422
  %v1647 = vsel %vm413, %v1255, %v1429
  %v1648 = vsel %vm413, %v1256, %v1436
  %v1649 = vsel %vm413, %v1257, %v1443
  %v1650 = vsel %vm413, %v1258, %v1450
  %v1651 = vsel %vm413, %v1259, %v1457
  %v1652 = vsel %vm413, %v1260, %v1464
  %v1653 = vsel %vm413, %v1261, %v1471
  %v1654 = vsel %vm413, %v1262, %v1478
  %v1655 = vsel %vm413, %v1263, %v1485
  %v1656 = vsel %vm413, %v1264, %v1492
  %v1657 = vsel %vm413, %v1265, %v1499
  %v1658 = vsel %vm413, %v1266, %v1506
  %v1659 = vsel %vm413, %v1267, %v1513
  %v1660 = vsel %vm413, %v1268, %v1520
  %v1661 = vsel %vm413, %v1269, %v1527
  %v1662 = vsel %vm413, %v1270, %v1534
  %v1663 = vsel %vm413, %v1271, %v1541
  %v1664 = vsel %vm413, %v1272, %v1548
  %v1665 = vsel %vm413, %v1273, %v1555
  %v1666 = vsel %vm413, %v1274, %v1562
  %v1667 = vsel %vm413, %v1275, %v1569
  %v1668 = vsel %vm413, %v1276, %v1576
  %v1669 = vsel %vm413, %v1277, %v1583
  %v1670 = vsel %vm413, %v1278, %v1590
  %v1671 = vsel %vm413, %v1279, %v1597
  %v1672 = vsel %vm413, %v1280, %v1604
  %v1673 = vsel %vm413, %v1281, %v1611
  %1702 = vrot.lane.b32.xlu0 %v1646, 64
  %v1703 = vpop.permute.xlu0 %1702
  %1704 = vrot.lane.b32.xlu0 %v1424, 64
  %v1705 = vpop.permute.xlu0 %1704
  %1706 = vrot.lane.b32.xlu0 %v1426, 64
  %v1707 = vpop.permute.xlu0 %1706
  %1708 = vrot.lane.b32.xlu0 %v1428, 64
  %v1709 = vpop.permute.xlu0 %1708
  %1710 = vrot.lane.b32.xlu0 %v1647, 64
  %v1711 = vpop.permute.xlu0 %1710
  %1712 = vrot.lane.b32.xlu0 %v1431, 64
  %v1713 = vpop.permute.xlu0 %1712
  %1714 = vrot.lane.b32.xlu0 %v1433, 64
  %v1715 = vpop.permute.xlu0 %1714
  %1716 = vrot.lane.b32.xlu0 %v1435, 64
  %v1717 = vpop.permute.xlu0 %1716
  %1718 = vrot.lane.b32.xlu0 %v1648, 64
  %v1719 = vpop.permute.xlu0 %1718
  %1720 = vrot.lane.b32.xlu0 %v1438, 64
  %v1721 = vpop.permute.xlu0 %1720
  %1722 = vrot.lane.b32.xlu0 %v1440, 64
  %v1723 = vpop.permute.xlu0 %1722
  %1724 = vrot.lane.b32.xlu0 %v1442, 64
  %v1725 = vpop.permute.xlu0 %1724
  %1726 = vrot.lane.b32.xlu0 %v1649, 64
  %v1727 = vpop.permute.xlu0 %1726
  %1728 = vrot.lane.b32.xlu0 %v1445, 64
  %v1729 = vpop.permute.xlu0 %1728
  %1730 = vrot.lane.b32.xlu0 %v1447, 64
  %v1731 = vpop.permute.xlu0 %1730
  %1732 = vrot.lane.b32.xlu0 %v1449, 64
  %v1733 = vpop.permute.xlu0 %1732
  %1734 = vrot.lane.b32.xlu0 %v1650, 64
  %v1735 = vpop.permute.xlu0 %1734
  %1736 = vrot.lane.b32.xlu0 %v1452, 64
  %v1737 = vpop.permute.xlu0 %1736
  %1738 = vrot.lane.b32.xlu0 %v1454, 64
  %v1739 = vpop.permute.xlu0 %1738
  %1740 = vrot.lane.b32.xlu0 %v1456, 64
  %v1741 = vpop.permute.xlu0 %1740
  %1742 = vrot.lane.b32.xlu0 %v1651, 64
  %v1743 = vpop.permute.xlu0 %1742
  %1744 = vrot.lane.b32.xlu0 %v1459, 64
  %v1745 = vpop.permute.xlu0 %1744
  %1746 = vrot.lane.b32.xlu0 %v1461, 64
  %v1747 = vpop.permute.xlu0 %1746
  %1748 = vrot.lane.b32.xlu0 %v1463, 64
  %v1749 = vpop.permute.xlu0 %1748
  %1750 = vrot.lane.b32.xlu0 %v1652, 64
  %v1751 = vpop.permute.xlu0 %1750
  %1752 = vrot.lane.b32.xlu0 %v1466, 64
  %v1753 = vpop.permute.xlu0 %1752
  %1754 = vrot.lane.b32.xlu0 %v1468, 64
  %v1755 = vpop.permute.xlu0 %1754
  %1756 = vrot.lane.b32.xlu0 %v1470, 64
  %v1757 = vpop.permute.xlu0 %1756
  %1758 = vrot.lane.b32.xlu0 %v1653, 64
  %v1759 = vpop.permute.xlu0 %1758
  %1760 = vrot.lane.b32.xlu0 %v1473, 64
  %v1761 = vpop.permute.xlu0 %1760
  %1762 = vrot.lane.b32.xlu0 %v1475, 64
  %v1763 = vpop.permute.xlu0 %1762
  %1764 = vrot.lane.b32.xlu0 %v1477, 64
  %v1765 = vpop.permute.xlu0 %1764
  %1766 = vrot.lane.b32.xlu0 %v1654, 64
  %v1767 = vpop.permute.xlu0 %1766
  %1768 = vrot.lane.b32.xlu0 %v1480, 64
  %v1769 = vpop.permute.xlu0 %1768
  %1770 = vrot.lane.b32.xlu0 %v1482, 64
  %v1771 = vpop.permute.xlu0 %1770
  %1772 = vrot.lane.b32.xlu0 %v1484, 64
  %v1773 = vpop.permute.xlu0 %1772
  %1774 = vrot.lane.b32.xlu0 %v1655, 64
  %v1775 = vpop.permute.xlu0 %1774
  %1776 = vrot.lane.b32.xlu0 %v1487, 64
  %v1777 = vpop.permute.xlu0 %1776
  %1778 = vrot.lane.b32.xlu0 %v1489, 64
  %v1779 = vpop.permute.xlu0 %1778
  %1780 = vrot.lane.b32.xlu0 %v1491, 64
  %v1781 = vpop.permute.xlu0 %1780
  %1782 = vrot.lane.b32.xlu0 %v1656, 64
  %v1783 = vpop.permute.xlu0 %1782
  %1784 = vrot.lane.b32.xlu0 %v1494, 64
  %v1785 = vpop.permute.xlu0 %1784
  %1786 = vrot.lane.b32.xlu0 %v1496, 64
  %v1787 = vpop.permute.xlu0 %1786
  %1788 = vrot.lane.b32.xlu0 %v1498, 64
  %v1789 = vpop.permute.xlu0 %1788
  %1790 = vrot.lane.b32.xlu0 %v1657, 64
  %v1791 = vpop.permute.xlu0 %1790
  %1792 = vrot.lane.b32.xlu0 %v1501, 64
  %v1793 = vpop.permute.xlu0 %1792
  %1794 = vrot.lane.b32.xlu0 %v1503, 64
  %v1795 = vpop.permute.xlu0 %1794
  %1796 = vrot.lane.b32.xlu0 %v1505, 64
  %v1797 = vpop.permute.xlu0 %1796
  %1798 = vrot.lane.b32.xlu0 %v1658, 64
  %v1799 = vpop.permute.xlu0 %1798
  %1800 = vrot.lane.b32.xlu0 %v1508, 64
  %v1801 = vpop.permute.xlu0 %1800
  %1802 = vrot.lane.b32.xlu0 %v1510, 64
  %v1803 = vpop.permute.xlu0 %1802
  %1804 = vrot.lane.b32.xlu0 %v1512, 64
  %v1805 = vpop.permute.xlu0 %1804
  %1806 = vrot.lane.b32.xlu0 %v1659, 64
  %v1807 = vpop.permute.xlu0 %1806
  %1808 = vrot.lane.b32.xlu0 %v1515, 64
  %v1809 = vpop.permute.xlu0 %1808
  %1810 = vrot.lane.b32.xlu0 %v1517, 64
  %v1811 = vpop.permute.xlu0 %1810
  %1812 = vrot.lane.b32.xlu0 %v1519, 64
  %v1813 = vpop.permute.xlu0 %1812
  %1814 = vrot.lane.b32.xlu0 %v1660, 64
  %v1815 = vpop.permute.xlu0 %1814
  %1816 = vrot.lane.b32.xlu0 %v1522, 64
  %v1817 = vpop.permute.xlu0 %1816
  %1818 = vrot.lane.b32.xlu0 %v1524, 64
  %v1819 = vpop.permute.xlu0 %1818
  %1820 = vrot.lane.b32.xlu0 %v1526, 64
  %v1821 = vpop.permute.xlu0 %1820
  %1822 = vrot.lane.b32.xlu0 %v1661, 64
  %v1823 = vpop.permute.xlu0 %1822
  %1824 = vrot.lane.b32.xlu0 %v1529, 64
  %v1825 = vpop.permute.xlu0 %1824
  %1826 = vrot.lane.b32.xlu0 %v1531, 64
  %v1827 = vpop.permute.xlu0 %1826
  %1828 = vrot.lane.b32.xlu0 %v1533, 64
  %v1829 = vpop.permute.xlu0 %1828
  %1830 = vrot.lane.b32.xlu0 %v1662, 64
  %v1831 = vpop.permute.xlu0 %1830
  %1832 = vrot.lane.b32.xlu0 %v1536, 64
  %v1833 = vpop.permute.xlu0 %1832
  %1834 = vrot.lane.b32.xlu0 %v1538, 64
  %v1835 = vpop.permute.xlu0 %1834
  %1836 = vrot.lane.b32.xlu0 %v1540, 64
  %v1837 = vpop.permute.xlu0 %1836
  %1838 = vrot.lane.b32.xlu0 %v1663, 64
  %v1839 = vpop.permute.xlu0 %1838
  %1840 = vrot.lane.b32.xlu0 %v1543, 64
  %v1841 = vpop.permute.xlu0 %1840
  %1842 = vrot.lane.b32.xlu0 %v1545, 64
  %v1843 = vpop.permute.xlu0 %1842
  %1844 = vrot.lane.b32.xlu0 %v1547, 64
  %v1845 = vpop.permute.xlu0 %1844
  %1846 = vrot.lane.b32.xlu0 %v1664, 64
  %v1847 = vpop.permute.xlu0 %1846
  %1848 = vrot.lane.b32.xlu0 %v1550, 64
  %v1849 = vpop.permute.xlu0 %1848
  %1850 = vrot.lane.b32.xlu0 %v1552, 64
  %v1851 = vpop.permute.xlu0 %1850
  %1852 = vrot.lane.b32.xlu0 %v1554, 64
  %v1853 = vpop.permute.xlu0 %1852
  %1854 = vrot.lane.b32.xlu0 %v1665, 64
  %v1855 = vpop.permute.xlu0 %1854
  %1856 = vrot.lane.b32.xlu0 %v1557, 64
  %v1857 = vpop.permute.xlu0 %1856
  %1858 = vrot.lane.b32.xlu0 %v1559, 64
  %v1859 = vpop.permute.xlu0 %1858
  %1860 = vrot.lane.b32.xlu0 %v1561, 64
  %v1861 = vpop.permute.xlu0 %1860
  %1862 = vrot.lane.b32.xlu0 %v1666, 64
  %v1863 = vpop.permute.xlu0 %1862
  %1864 = vrot.lane.b32.xlu0 %v1564, 64
  %v1865 = vpop.permute.xlu0 %1864
  %1866 = vrot.lane.b32.xlu0 %v1566, 64
  %v1867 = vpop.permute.xlu0 %1866
  %1868 = vrot.lane.b32.xlu0 %v1568, 64
  %v1869 = vpop.permute.xlu0 %1868
  %1870 = vrot.lane.b32.xlu0 %v1667, 64
  %v1871 = vpop.permute.xlu0 %1870
  %1872 = vrot.lane.b32.xlu0 %v1571, 64
  %v1873 = vpop.permute.xlu0 %1872
  %1874 = vrot.lane.b32.xlu0 %v1573, 64
  %v1875 = vpop.permute.xlu0 %1874
  %1876 = vrot.lane.b32.xlu0 %v1575, 64
  %v1877 = vpop.permute.xlu0 %1876
  %1878 = vrot.lane.b32.xlu0 %v1668, 64
  %v1879 = vpop.permute.xlu0 %1878
  %1880 = vrot.lane.b32.xlu0 %v1578, 64
  %v1881 = vpop.permute.xlu0 %1880
  %1882 = vrot.lane.b32.xlu0 %v1580, 64
  %v1883 = vpop.permute.xlu0 %1882
  %1884 = vrot.lane.b32.xlu0 %v1582, 64
  %v1885 = vpop.permute.xlu0 %1884
  %1886 = vrot.lane.b32.xlu0 %v1669, 64
  %v1887 = vpop.permute.xlu0 %1886
  %1888 = vrot.lane.b32.xlu0 %v1585, 64
  %v1889 = vpop.permute.xlu0 %1888
  %1890 = vrot.lane.b32.xlu0 %v1587, 64
  %v1891 = vpop.permute.xlu0 %1890
  %1892 = vrot.lane.b32.xlu0 %v1589, 64
  %v1893 = vpop.permute.xlu0 %1892
  %1894 = vrot.lane.b32.xlu0 %v1670, 64
  %v1895 = vpop.permute.xlu0 %1894
  %1896 = vrot.lane.b32.xlu0 %v1592, 64
  %v1897 = vpop.permute.xlu0 %1896
  %1898 = vrot.lane.b32.xlu0 %v1594, 64
  %v1899 = vpop.permute.xlu0 %1898
  %1900 = vrot.lane.b32.xlu0 %v1596, 64
  %v1901 = vpop.permute.xlu0 %1900
  %1902 = vrot.lane.b32.xlu0 %v1671, 64
  %v1903 = vpop.permute.xlu0 %1902
  %1904 = vrot.lane.b32.xlu0 %v1599, 64
  %v1905 = vpop.permute.xlu0 %1904
  %1906 = vrot.lane.b32.xlu0 %v1601, 64
  %v1907 = vpop.permute.xlu0 %1906
  %1908 = vrot.lane.b32.xlu0 %v1603, 64
  %v1909 = vpop.permute.xlu0 %1908
  %1910 = vrot.lane.b32.xlu0 %v1672, 64
  %v1911 = vpop.permute.xlu0 %1910
  %1912 = vrot.lane.b32.xlu0 %v1606, 64
  %v1913 = vpop.permute.xlu0 %1912
  %1914 = vrot.lane.b32.xlu0 %v1608, 64
  %v1915 = vpop.permute.xlu0 %1914
  %1916 = vrot.lane.b32.xlu0 %v1610, 64
  %v1917 = vpop.permute.xlu0 %1916
  %1918 = vrot.lane.b32.xlu0 %v1673, 64
  %v1919 = vpop.permute.xlu0 %1918
  %1920 = vrot.lane.b32.xlu0 %v1613, 64
  %v1921 = vpop.permute.xlu0 %1920
  %1922 = vrot.lane.b32.xlu0 %v1615, 64
  %v1923 = vpop.permute.xlu0 %1922
  %1924 = vrot.lane.b32.xlu0 %v1617, 64
  %v1925 = vpop.permute.xlu0 %1924
  %v2038 = vadd.f32 %v1142, %v1703
  %v2039 = vadd.f32 %v1143, %v1705
  %v2040 = vadd.f32 %v1144, %v1707
  %v2041 = vadd.f32 %v1145, %v1709
  %v2042 = vadd.f32 %v1146, %v1711
  %v2043 = vadd.f32 %v1147, %v1713
  %v2044 = vadd.f32 %v1148, %v1715
  %v2045 = vadd.f32 %v1149, %v1717
  %v2046 = vadd.f32 %v1150, %v1719
  %v2047 = vadd.f32 %v1151, %v1721
  %v2048 = vadd.f32 %v1152, %v1723
  %v2049 = vadd.f32 %v1153, %v1725
  %v2050 = vadd.f32 %v1154, %v1727
  %v2051 = vadd.f32 %v1155, %v1729
  %v2052 = vadd.f32 %v1156, %v1731
  %v2053 = vadd.f32 %v1157, %v1733
  %v2054 = vadd.f32 %v1158, %v1735
  %v2055 = vadd.f32 %v1159, %v1737
  %v2056 = vadd.f32 %v1160, %v1739
  %v2057 = vadd.f32 %v1161, %v1741
  %v2058 = vadd.f32 %v1162, %v1743
  %v2059 = vadd.f32 %v1163, %v1745
  %v2060 = vadd.f32 %v1164, %v1747
  %v2061 = vadd.f32 %v1165, %v1749
  %v2062 = vadd.f32 %v1166, %v1751
  %v2063 = vadd.f32 %v1167, %v1753
  %v2064 = vadd.f32 %v1168, %v1755
  %v2065 = vadd.f32 %v1169, %v1757
  %v2066 = vadd.f32 %v1170, %v1759
  %v2067 = vadd.f32 %v1171, %v1761
  %v2068 = vadd.f32 %v1172, %v1763
  %v2069 = vadd.f32 %v1173, %v1765
  %v2070 = vadd.f32 %v1174, %v1767
  %v2071 = vadd.f32 %v1175, %v1769
  %v2072 = vadd.f32 %v1176, %v1771
  %v2073 = vadd.f32 %v1177, %v1773
  %v2074 = vadd.f32 %v1178, %v1775
  %v2075 = vadd.f32 %v1179, %v1777
  %v2076 = vadd.f32 %v1180, %v1779
  %v2077 = vadd.f32 %v1181, %v1781
  %v2078 = vadd.f32 %v1182, %v1783
  %v2079 = vadd.f32 %v1183, %v1785
  %v2080 = vadd.f32 %v1184, %v1787
  %v2081 = vadd.f32 %v1185, %v1789
  %v2082 = vadd.f32 %v1186, %v1791
  %v2083 = vadd.f32 %v1187, %v1793
  %v2084 = vadd.f32 %v1188, %v1795
  %v2085 = vadd.f32 %v1189, %v1797
  %v2086 = vadd.f32 %v1190, %v1799
  %v2087 = vadd.f32 %v1191, %v1801
  %v2088 = vadd.f32 %v1192, %v1803
  %v2089 = vadd.f32 %v1193, %v1805
  %v2090 = vadd.f32 %v1194, %v1807
  %v2091 = vadd.f32 %v1195, %v1809
  %v2092 = vadd.f32 %v1196, %v1811
  %v2093 = vadd.f32 %v1197, %v1813
  %v2094 = vadd.f32 %v1198, %v1815
  %v2095 = vadd.f32 %v1199, %v1817
  %v2096 = vadd.f32 %v1200, %v1819
  %v2097 = vadd.f32 %v1201, %v1821
  %v2098 = vadd.f32 %v1202, %v1823
  %v2099 = vadd.f32 %v1203, %v1825
  %v2100 = vadd.f32 %v1204, %v1827
  %v2101 = vadd.f32 %v1205, %v1829
  %v2102 = vadd.f32 %v1206, %v1831
  %v2103 = vadd.f32 %v1207, %v1833
  %v2104 = vadd.f32 %v1208, %v1835
  %v2105 = vadd.f32 %v1209, %v1837
  %v2106 = vadd.f32 %v1210, %v1839
  %v2107 = vadd.f32 %v1211, %v1841
  %v2108 = vadd.f32 %v1212, %v1843
  %v2109 = vadd.f32 %v1213, %v1845
  %v2110 = vadd.f32 %v1214, %v1847
  %v2111 = vadd.f32 %v1215, %v1849
  %v2112 = vadd.f32 %v1216, %v1851
  %v2113 = vadd.f32 %v1217, %v1853
  %v2114 = vadd.f32 %v1218, %v1855
  %v2115 = vadd.f32 %v1219, %v1857
  %v2116 = vadd.f32 %v1220, %v1859
  %v2117 = vadd.f32 %v1221, %v1861
  %v2118 = vadd.f32 %v1222, %v1863
  %v2119 = vadd.f32 %v1223, %v1865
  %v2120 = vadd.f32 %v1224, %v1867
  %v2121 = vadd.f32 %v1225, %v1869
  %v2122 = vadd.f32 %v1226, %v1871
  %v2123 = vadd.f32 %v1227, %v1873
  %v2124 = vadd.f32 %v1228, %v1875
  %v2125 = vadd.f32 %v1229, %v1877
  %v2126 = vadd.f32 %v1230, %v1879
  %v2127 = vadd.f32 %v1231, %v1881
  %v2128 = vadd.f32 %v1232, %v1883
  %v2129 = vadd.f32 %v1233, %v1885
  %v2130 = vadd.f32 %v1234, %v1887
  %v2131 = vadd.f32 %v1235, %v1889
  %v2132 = vadd.f32 %v1236, %v1891
  %v2133 = vadd.f32 %v1237, %v1893
  %v2134 = vadd.f32 %v1238, %v1895
  %v2135 = vadd.f32 %v1239, %v1897
  %v2136 = vadd.f32 %v1240, %v1899
  %v2137 = vadd.f32 %v1241, %v1901
  %v2138 = vadd.f32 %v1242, %v1903
  %v2139 = vadd.f32 %v1243, %v1905
  %v2140 = vadd.f32 %v1244, %v1907
  %v2141 = vadd.f32 %v1245, %v1909
  %v2142 = vadd.f32 %v1246, %v1911
  %v2143 = vadd.f32 %v1247, %v1913
  %v2144 = vadd.f32 %v1248, %v1915
  %v2145 = vadd.f32 %v1249, %v1917
  %v2146 = vadd.f32 %v1250, %v1919
  %v2147 = vadd.f32 %v1251, %v1921
  %v2148 = vadd.f32 %v1252, %v1923
  %v2149 = vadd.f32 %v1253, %v1925
  %v2150 = vld [vmem:[%s0 + $0x2] sm:$0xff]
  %v2151 = vld [vmem:[%s0 + $0xa] sm:$0xff]
  %v2152 = vld [vmem:[%s0 + $0x12] sm:$0xff]
  %v2153 = vld [vmem:[%s0 + $0x1a] sm:$0xf]
  %v2154 = vld [vmem:[%s0 + $0x22] sm:$0xff]
  %v2155 = vld [vmem:[%s0 + $0x2a] sm:$0xff]
  %v2156 = vld [vmem:[%s0 + $0x32] sm:$0xff]
  %v2157 = vld [vmem:[%s0 + $0x3a] sm:$0xf]
  %v2158 = vld [vmem:[%s0 + $0x42] sm:$0xff]
  %v2159 = vld [vmem:[%s0 + $0x4a] sm:$0xff]
  %v2160 = vld [vmem:[%s0 + $0x52] sm:$0xff]
  %v2161 = vld [vmem:[%s0 + $0x5a] sm:$0xf]
  %v2162 = vld [vmem:[%s0 + $0x62] sm:$0xff]
  %v2163 = vld [vmem:[%s0 + $0x6a] sm:$0xff]
  %v2164 = vld [vmem:[%s0 + $0x72] sm:$0xff]
  %v2165 = vld [vmem:[%s0 + $0x7a] sm:$0xf]
  %v2166 = vld [vmem:[%s0 + $0x82] sm:$0xff]
  %v2167 = vld [vmem:[%s0 + $0x8a] sm:$0xff]
  %v2168 = vld [vmem:[%s0 + $0x92] sm:$0xff]
  %v2169 = vld [vmem:[%s0 + $0x9a] sm:$0xf]
  %v2170 = vld [vmem:[%s0 + $0xa2] sm:$0xff]
  %v2171 = vld [vmem:[%s0 + $0xaa] sm:$0xff]
  %v2172 = vld [vmem:[%s0 + $0xb2] sm:$0xff]
  %v2173 = vld [vmem:[%s0 + $0xba] sm:$0xf]
  %v2174 = vld [vmem:[%s0 + $0xc2] sm:$0xff]
  %v2175 = vld [vmem:[%s0 + $0xca] sm:$0xff]
  %v2176 = vld [vmem:[%s0 + $0xd2] sm:$0xff]
  %v2177 = vld [vmem:[%s0 + $0xda] sm:$0xf]
  %v2178 = vld [vmem:[%s0 + $0xe2] sm:$0xff]
  %v2179 = vld [vmem:[%s0 + $0xea] sm:$0xff]
  %v2180 = vld [vmem:[%s0 + $0xf2] sm:$0xff]
  %v2181 = vld [vmem:[%s0 + $0xfa] sm:$0xf]
  %v2182 = vld [vmem:[%s0 + $0x102] sm:$0xff]
  %v2183 = vld [vmem:[%s0 + $0x10a] sm:$0xff]
  %v2184 = vld [vmem:[%s0 + $0x112] sm:$0xff]
  %v2185 = vld [vmem:[%s0 + $0x11a] sm:$0xf]
  %v2186 = vld [vmem:[%s0 + $0x122] sm:$0xff]
  %v2187 = vld [vmem:[%s0 + $0x12a] sm:$0xff]
  %v2188 = vld [vmem:[%s0 + $0x132] sm:$0xff]
  %v2189 = vld [vmem:[%s0 + $0x13a] sm:$0xf]
  %v2190 = vld [vmem:[%s0 + $0x142] sm:$0xff]
  %v2191 = vld [vmem:[%s0 + $0x14a] sm:$0xff]
  %v2192 = vld [vmem:[%s0 + $0x152] sm:$0xff]
  %v2193 = vld [vmem:[%s0 + $0x15a] sm:$0xf]
  %v2194 = vld [vmem:[%s0 + $0x162] sm:$0xff]
  %v2195 = vld [vmem:[%s0 + $0x16a] sm:$0xff]
  %v2196 = vld [vmem:[%s0 + $0x172] sm:$0xff]
  %v2197 = vld [vmem:[%s0 + $0x17a] sm:$0xf]
  %v2198 = vld [vmem:[%s0 + $0x182] sm:$0xff]
  %v2199 = vld [vmem:[%s0 + $0x18a] sm:$0xff]
  %v2200 = vld [vmem:[%s0 + $0x192] sm:$0xff]
  %v2201 = vld [vmem:[%s0 + $0x19a] sm:$0xf]
  %v2202 = vld [vmem:[%s0 + $0x1a2] sm:$0xff]
  %v2203 = vld [vmem:[%s0 + $0x1aa] sm:$0xff]
  %v2204 = vld [vmem:[%s0 + $0x1b2] sm:$0xff]
  %v2205 = vld [vmem:[%s0 + $0x1ba] sm:$0xf]
  %v2206 = vld [vmem:[%s0 + $0x1c2] sm:$0xff]
  %v2207 = vld [vmem:[%s0 + $0x1ca] sm:$0xff]
  %v2208 = vld [vmem:[%s0 + $0x1d2] sm:$0xff]
  %v2209 = vld [vmem:[%s0 + $0x1da] sm:$0xf]
  %v2210 = vld [vmem:[%s0 + $0x1e2] sm:$0xff]
  %v2211 = vld [vmem:[%s0 + $0x1ea] sm:$0xff]
  %v2212 = vld [vmem:[%s0 + $0x1f2] sm:$0xff]
  %v2213 = vld [vmem:[%s0 + $0x1fa] sm:$0xf]
  %v2214 = vld [vmem:[%s0 + $0x202] sm:$0xff]
  %v2215 = vld [vmem:[%s0 + $0x20a] sm:$0xff]
  %v2216 = vld [vmem:[%s0 + $0x212] sm:$0xff]
  %v2217 = vld [vmem:[%s0 + $0x21a] sm:$0xf]
  %v2218 = vld [vmem:[%s0 + $0x222] sm:$0xff]
  %v2219 = vld [vmem:[%s0 + $0x22a] sm:$0xff]
  %v2220 = vld [vmem:[%s0 + $0x232] sm:$0xff]
  %v2221 = vld [vmem:[%s0 + $0x23a] sm:$0xf]
  %v2222 = vld [vmem:[%s0 + $0x242] sm:$0xff]
  %v2223 = vld [vmem:[%s0 + $0x24a] sm:$0xff]
  %v2224 = vld [vmem:[%s0 + $0x252] sm:$0xff]
  %v2225 = vld [vmem:[%s0 + $0x25a] sm:$0xf]
  %v2226 = vld [vmem:[%s0 + $0x262] sm:$0xff]
  %v2227 = vld [vmem:[%s0 + $0x26a] sm:$0xff]
  %v2228 = vld [vmem:[%s0 + $0x272] sm:$0xff]
  %v2229 = vld [vmem:[%s0 + $0x27a] sm:$0xf]
  %v2230 = vld [vmem:[%s0 + $0x282] sm:$0xff]
  %v2231 = vld [vmem:[%s0 + $0x28a] sm:$0xff]
  %v2232 = vld [vmem:[%s0 + $0x292] sm:$0xff]
  %v2233 = vld [vmem:[%s0 + $0x29a] sm:$0xf]
  %v2234 = vld [vmem:[%s0 + $0x2a2] sm:$0xff]
  %v2235 = vld [vmem:[%s0 + $0x2aa] sm:$0xff]
  %v2236 = vld [vmem:[%s0 + $0x2b2] sm:$0xff]
  %v2237 = vld [vmem:[%s0 + $0x2ba] sm:$0xf]
  %v2238 = vld [vmem:[%s0 + $0x2c2] sm:$0xff]
  %v2239 = vld [vmem:[%s0 + $0x2ca] sm:$0xff]
  %v2240 = vld [vmem:[%s0 + $0x2d2] sm:$0xff]
  %v2241 = vld [vmem:[%s0 + $0x2da] sm:$0xf]
  %v2242 = vld [vmem:[%s0 + $0x2e2] sm:$0xff]
  %v2243 = vld [vmem:[%s0 + $0x2ea] sm:$0xff]
  %v2244 = vld [vmem:[%s0 + $0x2f2] sm:$0xff]
  %v2245 = vld [vmem:[%s0 + $0x2fa] sm:$0xf]
  %v2246 = vld [vmem:[%s0 + $0x302] sm:$0xff]
  %v2247 = vld [vmem:[%s0 + $0x30a] sm:$0xff]
  %v2248 = vld [vmem:[%s0 + $0x312] sm:$0xff]
  %v2249 = vld [vmem:[%s0 + $0x31a] sm:$0xf]
  %v2250 = vld [vmem:[%s0 + $0x322] sm:$0xff]
  %v2251 = vld [vmem:[%s0 + $0x32a] sm:$0xff]
  %v2252 = vld [vmem:[%s0 + $0x332] sm:$0xff]
  %v2253 = vld [vmem:[%s0 + $0x33a] sm:$0xf]
  %v2254 = vld [vmem:[%s0 + $0x342] sm:$0xff]
  %v2255 = vld [vmem:[%s0 + $0x34a] sm:$0xff]
  %v2256 = vld [vmem:[%s0 + $0x352] sm:$0xff]
  %v2257 = vld [vmem:[%s0 + $0x35a] sm:$0xf]
  %v2258 = vld [vmem:[%s0 + $0x362] sm:$0xff]
  %v2259 = vld [vmem:[%s0 + $0x36a] sm:$0xff]
  %v2260 = vld [vmem:[%s0 + $0x372] sm:$0xff]
  %v2261 = vld [vmem:[%s0 + $0x37a] sm:$0xf]
  %v2262 = vld [vmem:[%s0 + $0x1d] sm:$0x1]
  %v2263 = vld [vmem:[%s0 + $0x3d] sm:$0x1]
  %v2264 = vld [vmem:[%s0 + $0x5d] sm:$0x1]
  %v2265 = vld [vmem:[%s0 + $0x7d] sm:$0x1]
  %v2266 = vld [vmem:[%s0 + $0x9d] sm:$0x1]
  %v2267 = vld [vmem:[%s0 + $0xbd] sm:$0x1]
  %v2268 = vld [vmem:[%s0 + $0xdd] sm:$0x1]
  %v2269 = vld [vmem:[%s0 + $0xfd] sm:$0x1]
  %v2270 = vld [vmem:[%s0 + $0x11d] sm:$0x1]
  %v2271 = vld [vmem:[%s0 + $0x13d] sm:$0x1]
  %v2272 = vld [vmem:[%s0 + $0x15d] sm:$0x1]
  %v2273 = vld [vmem:[%s0 + $0x17d] sm:$0x1]
  %v2274 = vld [vmem:[%s0 + $0x19d] sm:$0x1]
  %v2275 = vld [vmem:[%s0 + $0x1bd] sm:$0x1]
  %v2276 = vld [vmem:[%s0 + $0x1dd] sm:$0x1]
  %v2277 = vld [vmem:[%s0 + $0x1fd] sm:$0x1]
  %v2278 = vld [vmem:[%s0 + $0x21d] sm:$0x1]
  %v2279 = vld [vmem:[%s0 + $0x23d] sm:$0x1]
  %v2280 = vld [vmem:[%s0 + $0x25d] sm:$0x1]
  %v2281 = vld [vmem:[%s0 + $0x27d] sm:$0x1]
  %v2282 = vld [vmem:[%s0 + $0x29d] sm:$0x1]
  %v2283 = vld [vmem:[%s0 + $0x2bd] sm:$0x1]
  %v2284 = vld [vmem:[%s0 + $0x2dd] sm:$0x1]
  %v2285 = vld [vmem:[%s0 + $0x2fd] sm:$0x1]
  %v2286 = vld [vmem:[%s0 + $0x31d] sm:$0x1]
  %v2287 = vld [vmem:[%s0 + $0x33d] sm:$0x1]
  %v2288 = vld [vmem:[%s0 + $0x35d] sm:$0x1]
  %v2289 = vld [vmem:[%s0 + $0x37d] sm:$0x1]
  %v2290 = vld [vmem:[%s0 + $0x1a] sm:$0x7]
  %v2291 = vld [vmem:[%s0 + $0x3a] sm:$0x7]
  %v2292 = vld [vmem:[%s0 + $0x5a] sm:$0x7]
  %v2293 = vld [vmem:[%s0 + $0x7a] sm:$0x7]
  %v2294 = vld [vmem:[%s0 + $0x9a] sm:$0x7]
  %v2295 = vld [vmem:[%s0 + $0xba] sm:$0x7]
  %v2296 = vld [vmem:[%s0 + $0xda] sm:$0x7]
  %v2297 = vld [vmem:[%s0 + $0xfa] sm:$0x7]
  %v2298 = vld [vmem:[%s0 + $0x11a] sm:$0x7]
  %v2299 = vld [vmem:[%s0 + $0x13a] sm:$0x7]
  %v2300 = vld [vmem:[%s0 + $0x15a] sm:$0x7]
  %v2301 = vld [vmem:[%s0 + $0x17a] sm:$0x7]
  %v2302 = vld [vmem:[%s0 + $0x19a] sm:$0x7]
  %v2303 = vld [vmem:[%s0 + $0x1ba] sm:$0x7]
  %v2304 = vld [vmem:[%s0 + $0x1da] sm:$0x7]
  %v2305 = vld [vmem:[%s0 + $0x1fa] sm:$0x7]
  %v2306 = vld [vmem:[%s0 + $0x21a] sm:$0x7]
  %v2307 = vld [vmem:[%s0 + $0x23a] sm:$0x7]
  %v2308 = vld [vmem:[%s0 + $0x25a] sm:$0x7]
  %v2309 = vld [vmem:[%s0 + $0x27a] sm:$0x7]
  %v2310 = vld [vmem:[%s0 + $0x29a] sm:$0x7]
  %v2311 = vld [vmem:[%s0 + $0x2ba] sm:$0x7]
  %v2312 = vld [vmem:[%s0 + $0x2da] sm:$0x7]
  %v2313 = vld [vmem:[%s0 + $0x2fa] sm:$0x7]
  %v2314 = vld [vmem:[%s0 + $0x31a] sm:$0x7]
  %v2315 = vld [vmem:[%s0 + $0x33a] sm:$0x7]
  %v2316 = vld [vmem:[%s0 + $0x35a] sm:$0x7]
  %v2317 = vld [vmem:[%s0 + $0x37a] sm:$0x7]
  %v2430 = vrot.slane %v2150, 7
  %v2431 = vrot.slane %v2151, 7
  %v2432 = vsel %vm413, %v2430, %v2431
  %v2433 = vrot.slane %v2152, 7
  %v2434 = vsel %vm413, %v2431, %v2433
  %v2435 = vrot.slane %v2290, 7
  %v2436 = vsel %vm413, %v2433, %v2435
  %v2437 = vrot.slane %v2154, 7
  %v2438 = vrot.slane %v2155, 7
  %v2439 = vsel %vm413, %v2437, %v2438
  %v2440 = vrot.slane %v2156, 7
  %v2441 = vsel %vm413, %v2438, %v2440
  %v2442 = vrot.slane %v2291, 7
  %v2443 = vsel %vm413, %v2440, %v2442
  %v2444 = vrot.slane %v2158, 7
  %v2445 = vrot.slane %v2159, 7
  %v2446 = vsel %vm413, %v2444, %v2445
  %v2447 = vrot.slane %v2160, 7
  %v2448 = vsel %vm413, %v2445, %v2447
  %v2449 = vrot.slane %v2292, 7
  %v2450 = vsel %vm413, %v2447, %v2449
  %v2451 = vrot.slane %v2162, 7
  %v2452 = vrot.slane %v2163, 7
  %v2453 = vsel %vm413, %v2451, %v2452
  %v2454 = vrot.slane %v2164, 7
  %v2455 = vsel %vm413, %v2452, %v2454
  %v2456 = vrot.slane %v2293, 7
  %v2457 = vsel %vm413, %v2454, %v2456
  %v2458 = vrot.slane %v2166, 7
  %v2459 = vrot.slane %v2167, 7
  %v2460 = vsel %vm413, %v2458, %v2459
  %v2461 = vrot.slane %v2168, 7
  %v2462 = vsel %vm413, %v2459, %v2461
  %v2463 = vrot.slane %v2294, 7
  %v2464 = vsel %vm413, %v2461, %v2463
  %v2465 = vrot.slane %v2170, 7
  %v2466 = vrot.slane %v2171, 7
  %v2467 = vsel %vm413, %v2465, %v2466
  %v2468 = vrot.slane %v2172, 7
  %v2469 = vsel %vm413, %v2466, %v2468
  %v2470 = vrot.slane %v2295, 7
  %v2471 = vsel %vm413, %v2468, %v2470
  %v2472 = vrot.slane %v2174, 7
  %v2473 = vrot.slane %v2175, 7
  %v2474 = vsel %vm413, %v2472, %v2473
  %v2475 = vrot.slane %v2176, 7
  %v2476 = vsel %vm413, %v2473, %v2475
  %v2477 = vrot.slane %v2296, 7
  %v2478 = vsel %vm413, %v2475, %v2477
  %v2479 = vrot.slane %v2178, 7
  %v2480 = vrot.slane %v2179, 7
  %v2481 = vsel %vm413, %v2479, %v2480
  %v2482 = vrot.slane %v2180, 7
  %v2483 = vsel %vm413, %v2480, %v2482
  %v2484 = vrot.slane %v2297, 7
  %v2485 = vsel %vm413, %v2482, %v2484
  %v2486 = vrot.slane %v2182, 7
  %v2487 = vrot.slane %v2183, 7
  %v2488 = vsel %vm413, %v2486, %v2487
  %v2489 = vrot.slane %v2184, 7
  %v2490 = vsel %vm413, %v2487, %v2489
  %v2491 = vrot.slane %v2298, 7
  %v2492 = vsel %vm413, %v2489, %v2491
  %v2493 = vrot.slane %v2186, 7
  %v2494 = vrot.slane %v2187, 7
  %v2495 = vsel %vm413, %v2493, %v2494
  %v2496 = vrot.slane %v2188, 7
  %v2497 = vsel %vm413, %v2494, %v2496
  %v2498 = vrot.slane %v2299, 7
  %v2499 = vsel %vm413, %v2496, %v2498
  %v2500 = vrot.slane %v2190, 7
  %v2501 = vrot.slane %v2191, 7
  %v2502 = vsel %vm413, %v2500, %v2501
  %v2503 = vrot.slane %v2192, 7
  %v2504 = vsel %vm413, %v2501, %v2503
  %v2505 = vrot.slane %v2300, 7
  %v2506 = vsel %vm413, %v2503, %v2505
  %v2507 = vrot.slane %v2194, 7
  %v2508 = vrot.slane %v2195, 7
  %v2509 = vsel %vm413, %v2507, %v2508
  %v2510 = vrot.slane %v2196, 7
  %v2511 = vsel %vm413, %v2508, %v2510
  %v2512 = vrot.slane %v2301, 7
  %v2513 = vsel %vm413, %v2510, %v2512
  %v2514 = vrot.slane %v2198, 7
  %v2515 = vrot.slane %v2199, 7
  %v2516 = vsel %vm413, %v2514, %v2515
  %v2517 = vrot.slane %v2200, 7
  %v2518 = vsel %vm413, %v2515, %v2517
  %v2519 = vrot.slane %v2302, 7
  %v2520 = vsel %vm413, %v2517, %v2519
  %v2521 = vrot.slane %v2202, 7
  %v2522 = vrot.slane %v2203, 7
  %v2523 = vsel %vm413, %v2521, %v2522
  %v2524 = vrot.slane %v2204, 7
  %v2525 = vsel %vm413, %v2522, %v2524
  %v2526 = vrot.slane %v2303, 7
  %v2527 = vsel %vm413, %v2524, %v2526
  %v2528 = vrot.slane %v2206, 7
  %v2529 = vrot.slane %v2207, 7
  %v2530 = vsel %vm413, %v2528, %v2529
  %v2531 = vrot.slane %v2208, 7
  %v2532 = vsel %vm413, %v2529, %v2531
  %v2533 = vrot.slane %v2304, 7
  %v2534 = vsel %vm413, %v2531, %v2533
  %v2535 = vrot.slane %v2210, 7
  %v2536 = vrot.slane %v2211, 7
  %v2537 = vsel %vm413, %v2535, %v2536
  %v2538 = vrot.slane %v2212, 7
  %v2539 = vsel %vm413, %v2536, %v2538
  %v2540 = vrot.slane %v2305, 7
  %v2541 = vsel %vm413, %v2538, %v2540
  %v2542 = vrot.slane %v2214, 7
  %v2543 = vrot.slane %v2215, 7
  %v2544 = vsel %vm413, %v2542, %v2543
  %v2545 = vrot.slane %v2216, 7
  %v2546 = vsel %vm413, %v2543, %v2545
  %v2547 = vrot.slane %v2306, 7
  %v2548 = vsel %vm413, %v2545, %v2547
  %v2549 = vrot.slane %v2218, 7
  %v2550 = vrot.slane %v2219, 7
  %v2551 = vsel %vm413, %v2549, %v2550
  %v2552 = vrot.slane %v2220, 7
  %v2553 = vsel %vm413, %v2550, %v2552
  %v2554 = vrot.slane %v2307, 7
  %v2555 = vsel %vm413, %v2552, %v2554
  %v2556 = vrot.slane %v2222, 7
  %v2557 = vrot.slane %v2223, 7
  %v2558 = vsel %vm413, %v2556, %v2557
  %v2559 = vrot.slane %v2224, 7
  %v2560 = vsel %vm413, %v2557, %v2559
  %v2561 = vrot.slane %v2308, 7
  %v2562 = vsel %vm413, %v2559, %v2561
  %v2563 = vrot.slane %v2226, 7
  %v2564 = vrot.slane %v2227, 7
  %v2565 = vsel %vm413, %v2563, %v2564
  %v2566 = vrot.slane %v2228, 7
  %v2567 = vsel %vm413, %v2564, %v2566
  %v2568 = vrot.slane %v2309, 7
  %v2569 = vsel %vm413, %v2566, %v2568
  %v2570 = vrot.slane %v2230, 7
  %v2571 = vrot.slane %v2231, 7
  %v2572 = vsel %vm413, %v2570, %v2571
  %v2573 = vrot.slane %v2232, 7
  %v2574 = vsel %vm413, %v2571, %v2573
  %v2575 = vrot.slane %v2310, 7
  %v2576 = vsel %vm413, %v2573, %v2575
  %v2577 = vrot.slane %v2234, 7
  %v2578 = vrot.slane %v2235, 7
  %v2579 = vsel %vm413, %v2577, %v2578
  %v2580 = vrot.slane %v2236, 7
  %v2581 = vsel %vm413, %v2578, %v2580
  %v2582 = vrot.slane %v2311, 7
  %v2583 = vsel %vm413, %v2580, %v2582
  %v2584 = vrot.slane %v2238, 7
  %v2585 = vrot.slane %v2239, 7
  %v2586 = vsel %vm413, %v2584, %v2585
  %v2587 = vrot.slane %v2240, 7
  %v2588 = vsel %vm413, %v2585, %v2587
  %v2589 = vrot.slane %v2312, 7
  %v2590 = vsel %vm413, %v2587, %v2589
  %v2591 = vrot.slane %v2242, 7
  %v2592 = vrot.slane %v2243, 7
  %v2593 = vsel %vm413, %v2591, %v2592
  %v2594 = vrot.slane %v2244, 7
  %v2595 = vsel %vm413, %v2592, %v2594
  %v2596 = vrot.slane %v2313, 7
  %v2597 = vsel %vm413, %v2594, %v2596
  %v2598 = vrot.slane %v2246, 7
  %v2599 = vrot.slane %v2247, 7
  %v2600 = vsel %vm413, %v2598, %v2599
  %v2601 = vrot.slane %v2248, 7
  %v2602 = vsel %vm413, %v2599, %v2601
  %v2603 = vrot.slane %v2314, 7
  %v2604 = vsel %vm413, %v2601, %v2603
  %v2605 = vrot.slane %v2250, 7
  %v2606 = vrot.slane %v2251, 7
  %v2607 = vsel %vm413, %v2605, %v2606
  %v2608 = vrot.slane %v2252, 7
  %v2609 = vsel %vm413, %v2606, %v2608
  %v2610 = vrot.slane %v2315, 7
  %v2611 = vsel %vm413, %v2608, %v2610
  %v2612 = vrot.slane %v2254, 7
  %v2613 = vrot.slane %v2255, 7
  %v2614 = vsel %vm413, %v2612, %v2613
  %v2615 = vrot.slane %v2256, 7
  %v2616 = vsel %vm413, %v2613, %v2615
  %v2617 = vrot.slane %v2316, 7
  %v2618 = vsel %vm413, %v2615, %v2617
  %v2619 = vrot.slane %v2258, 7
  %v2620 = vrot.slane %v2259, 7
  %v2621 = vsel %vm413, %v2619, %v2620
  %v2622 = vrot.slane %v2260, 7
  %v2623 = vsel %vm413, %v2620, %v2622
  %v2624 = vrot.slane %v2317, 7
  %v2625 = vsel %vm413, %v2622, %v2624
  %v2654 = vsel %vm413, %v2262, %v2430
  %v2655 = vsel %vm413, %v2263, %v2437
  %v2656 = vsel %vm413, %v2264, %v2444
  %v2657 = vsel %vm413, %v2265, %v2451
  %v2658 = vsel %vm413, %v2266, %v2458
  %v2659 = vsel %vm413, %v2267, %v2465
  %v2660 = vsel %vm413, %v2268, %v2472
  %v2661 = vsel %vm413, %v2269, %v2479
  %v2662 = vsel %vm413, %v2270, %v2486
  %v2663 = vsel %vm413, %v2271, %v2493
  %v2664 = vsel %vm413, %v2272, %v2500
  %v2665 = vsel %vm413, %v2273, %v2507
  %v2666 = vsel %vm413, %v2274, %v2514
  %v2667 = vsel %vm413, %v2275, %v2521
  %v2668 = vsel %vm413, %v2276, %v2528
  %v2669 = vsel %vm413, %v2277, %v2535
  %v2670 = vsel %vm413, %v2278, %v2542
  %v2671 = vsel %vm413, %v2279, %v2549
  %v2672 = vsel %vm413, %v2280, %v2556
  %v2673 = vsel %vm413, %v2281, %v2563
  %v2674 = vsel %vm413, %v2282, %v2570
  %v2675 = vsel %vm413, %v2283, %v2577
  %v2676 = vsel %vm413, %v2284, %v2584
  %v2677 = vsel %vm413, %v2285, %v2591
  %v2678 = vsel %vm413, %v2286, %v2598
  %v2679 = vsel %vm413, %v2287, %v2605
  %v2680 = vsel %vm413, %v2288, %v2612
  %v2681 = vsel %vm413, %v2289, %v2619
  %2710 = vrot.lane.b32.xlu0 %v2654, 64
  %v2711 = vpop.permute.xlu0 %2710
  %2712 = vrot.lane.b32.xlu0 %v2432, 64
  %v2713 = vpop.permute.xlu0 %2712
  %2714 = vrot.lane.b32.xlu0 %v2434, 64
  %v2715 = vpop.permute.xlu0 %2714
  %2716 = vrot.lane.b32.xlu0 %v2436, 64
  %v2717 = vpop.permute.xlu0 %2716
  %2718 = vrot.lane.b32.xlu0 %v2655, 64
  %v2719 = vpop.permute.xlu0 %2718
  %2720 = vrot.lane.b32.xlu0 %v2439, 64
  %v2721 = vpop.permute.xlu0 %2720
  %2722 = vrot.lane.b32.xlu0 %v2441, 64
  %v2723 = vpop.permute.xlu0 %2722
  %2724 = vrot.lane.b32.xlu0 %v2443, 64
  %v2725 = vpop.permute.xlu0 %2724
  %2726 = vrot.lane.b32.xlu0 %v2656, 64
  %v2727 = vpop.permute.xlu0 %2726
  %2728 = vrot.lane.b32.xlu0 %v2446, 64
  %v2729 = vpop.permute.xlu0 %2728
  %2730 = vrot.lane.b32.xlu0 %v2448, 64
  %v2731 = vpop.permute.xlu0 %2730
  %2732 = vrot.lane.b32.xlu0 %v2450, 64
  %v2733 = vpop.permute.xlu0 %2732
  %2734 = vrot.lane.b32.xlu0 %v2657, 64
  %v2735 = vpop.permute.xlu0 %2734
  %2736 = vrot.lane.b32.xlu0 %v2453, 64
  %v2737 = vpop.permute.xlu0 %2736
  %2738 = vrot.lane.b32.xlu0 %v2455, 64
  %v2739 = vpop.permute.xlu0 %2738
  %2740 = vrot.lane.b32.xlu0 %v2457, 64
  %v2741 = vpop.permute.xlu0 %2740
  %2742 = vrot.lane.b32.xlu0 %v2658, 64
  %v2743 = vpop.permute.xlu0 %2742
  %2744 = vrot.lane.b32.xlu0 %v2460, 64
  %v2745 = vpop.permute.xlu0 %2744
  %2746 = vrot.lane.b32.xlu0 %v2462, 64
  %v2747 = vpop.permute.xlu0 %2746
  %2748 = vrot.lane.b32.xlu0 %v2464, 64
  %v2749 = vpop.permute.xlu0 %2748
  %2750 = vrot.lane.b32.xlu0 %v2659, 64
  %v2751 = vpop.permute.xlu0 %2750
  %2752 = vrot.lane.b32.xlu0 %v2467, 64
  %v2753 = vpop.permute.xlu0 %2752
  %2754 = vrot.lane.b32.xlu0 %v2469, 64
  %v2755 = vpop.permute.xlu0 %2754
  %2756 = vrot.lane.b32.xlu0 %v2471, 64
  %v2757 = vpop.permute.xlu0 %2756
  %2758 = vrot.lane.b32.xlu0 %v2660, 64
  %v2759 = vpop.permute.xlu0 %2758
  %2760 = vrot.lane.b32.xlu0 %v2474, 64
  %v2761 = vpop.permute.xlu0 %2760
  %2762 = vrot.lane.b32.xlu0 %v2476, 64
  %v2763 = vpop.permute.xlu0 %2762
  %2764 = vrot.lane.b32.xlu0 %v2478, 64
  %v2765 = vpop.permute.xlu0 %2764
  %2766 = vrot.lane.b32.xlu0 %v2661, 64
  %v2767 = vpop.permute.xlu0 %2766
  %2768 = vrot.lane.b32.xlu0 %v2481, 64
  %v2769 = vpop.permute.xlu0 %2768
  %2770 = vrot.lane.b32.xlu0 %v2483, 64
  %v2771 = vpop.permute.xlu0 %2770
  %2772 = vrot.lane.b32.xlu0 %v2485, 64
  %v2773 = vpop.permute.xlu0 %2772
  %2774 = vrot.lane.b32.xlu0 %v2662, 64
  %v2775 = vpop.permute.xlu0 %2774
  %2776 = vrot.lane.b32.xlu0 %v2488, 64
  %v2777 = vpop.permute.xlu0 %2776
  %2778 = vrot.lane.b32.xlu0 %v2490, 64
  %v2779 = vpop.permute.xlu0 %2778
  %2780 = vrot.lane.b32.xlu0 %v2492, 64
  %v2781 = vpop.permute.xlu0 %2780
  %2782 = vrot.lane.b32.xlu0 %v2663, 64
  %v2783 = vpop.permute.xlu0 %2782
  %2784 = vrot.lane.b32.xlu0 %v2495, 64
  %v2785 = vpop.permute.xlu0 %2784
  %2786 = vrot.lane.b32.xlu0 %v2497, 64
  %v2787 = vpop.permute.xlu0 %2786
  %2788 = vrot.lane.b32.xlu0 %v2499, 64
  %v2789 = vpop.permute.xlu0 %2788
  %2790 = vrot.lane.b32.xlu0 %v2664, 64
  %v2791 = vpop.permute.xlu0 %2790
  %2792 = vrot.lane.b32.xlu0 %v2502, 64
  %v2793 = vpop.permute.xlu0 %2792
  %2794 = vrot.lane.b32.xlu0 %v2504, 64
  %v2795 = vpop.permute.xlu0 %2794
  %2796 = vrot.lane.b32.xlu0 %v2506, 64
  %v2797 = vpop.permute.xlu0 %2796
  %2798 = vrot.lane.b32.xlu0 %v2665, 64
  %v2799 = vpop.permute.xlu0 %2798
  %2800 = vrot.lane.b32.xlu0 %v2509, 64
  %v2801 = vpop.permute.xlu0 %2800
  %2802 = vrot.lane.b32.xlu0 %v2511, 64
  %v2803 = vpop.permute.xlu0 %2802
  %2804 = vrot.lane.b32.xlu0 %v2513, 64
  %v2805 = vpop.permute.xlu0 %2804
  %2806 = vrot.lane.b32.xlu0 %v2666, 64
  %v2807 = vpop.permute.xlu0 %2806
  %2808 = vrot.lane.b32.xlu0 %v2516, 64
  %v2809 = vpop.permute.xlu0 %2808
  %2810 = vrot.lane.b32.xlu0 %v2518, 64
  %v2811 = vpop.permute.xlu0 %2810
  %2812 = vrot.lane.b32.xlu0 %v2520, 64
  %v2813 = vpop.permute.xlu0 %2812
  %2814 = vrot.lane.b32.xlu0 %v2667, 64
  %v2815 = vpop.permute.xlu0 %2814
  %2816 = vrot.lane.b32.xlu0 %v2523, 64
  %v2817 = vpop.permute.xlu0 %2816
  %2818 = vrot.lane.b32.xlu0 %v2525, 64
  %v2819 = vpop.permute.xlu0 %2818
  %2820 = vrot.lane.b32.xlu0 %v2527, 64
  %v2821 = vpop.permute.xlu0 %2820
  %2822 = vrot.lane.b32.xlu0 %v2668, 64
  %v2823 = vpop.permute.xlu0 %2822
  %2824 = vrot.lane.b32.xlu0 %v2530, 64
  %v2825 = vpop.permute.xlu0 %2824
  %2826 = vrot.lane.b32.xlu0 %v2532, 64
  %v2827 = vpop.permute.xlu0 %2826
  %2828 = vrot.lane.b32.xlu0 %v2534, 64
  %v2829 = vpop.permute.xlu0 %2828
  %2830 = vrot.lane.b32.xlu0 %v2669, 64
  %v2831 = vpop.permute.xlu0 %2830
  %2832 = vrot.lane.b32.xlu0 %v2537, 64
  %v2833 = vpop.permute.xlu0 %2832
  %2834 = vrot.lane.b32.xlu0 %v2539, 64
  %v2835 = vpop.permute.xlu0 %2834
  %2836 = vrot.lane.b32.xlu0 %v2541, 64
  %v2837 = vpop.permute.xlu0 %2836
  %2838 = vrot.lane.b32.xlu0 %v2670, 64
  %v2839 = vpop.permute.xlu0 %2838
  %2840 = vrot.lane.b32.xlu0 %v2544, 64
  %v2841 = vpop.permute.xlu0 %2840
  %2842 = vrot.lane.b32.xlu0 %v2546, 64
  %v2843 = vpop.permute.xlu0 %2842
  %2844 = vrot.lane.b32.xlu0 %v2548, 64
  %v2845 = vpop.permute.xlu0 %2844
  %2846 = vrot.lane.b32.xlu0 %v2671, 64
  %v2847 = vpop.permute.xlu0 %2846
  %2848 = vrot.lane.b32.xlu0 %v2551, 64
  %v2849 = vpop.permute.xlu0 %2848
  %2850 = vrot.lane.b32.xlu0 %v2553, 64
  %v2851 = vpop.permute.xlu0 %2850
  %2852 = vrot.lane.b32.xlu0 %v2555, 64
  %v2853 = vpop.permute.xlu0 %2852
  %2854 = vrot.lane.b32.xlu0 %v2672, 64
  %v2855 = vpop.permute.xlu0 %2854
  %2856 = vrot.lane.b32.xlu0 %v2558, 64
  %v2857 = vpop.permute.xlu0 %2856
  %2858 = vrot.lane.b32.xlu0 %v2560, 64
  %v2859 = vpop.permute.xlu0 %2858
  %2860 = vrot.lane.b32.xlu0 %v2562, 64
  %v2861 = vpop.permute.xlu0 %2860
  %2862 = vrot.lane.b32.xlu0 %v2673, 64
  %v2863 = vpop.permute.xlu0 %2862
  %2864 = vrot.lane.b32.xlu0 %v2565, 64
  %v2865 = vpop.permute.xlu0 %2864
  %2866 = vrot.lane.b32.xlu0 %v2567, 64
  %v2867 = vpop.permute.xlu0 %2866
  %2868 = vrot.lane.b32.xlu0 %v2569, 64
  %v2869 = vpop.permute.xlu0 %2868
  %2870 = vrot.lane.b32.xlu0 %v2674, 64
  %v2871 = vpop.permute.xlu0 %2870
  %2872 = vrot.lane.b32.xlu0 %v2572, 64
  %v2873 = vpop.permute.xlu0 %2872
  %2874 = vrot.lane.b32.xlu0 %v2574, 64
  %v2875 = vpop.permute.xlu0 %2874
  %2876 = vrot.lane.b32.xlu0 %v2576, 64
  %v2877 = vpop.permute.xlu0 %2876
  %2878 = vrot.lane.b32.xlu0 %v2675, 64
  %v2879 = vpop.permute.xlu0 %2878
  %2880 = vrot.lane.b32.xlu0 %v2579, 64
  %v2881 = vpop.permute.xlu0 %2880
  %2882 = vrot.lane.b32.xlu0 %v2581, 64
  %v2883 = vpop.permute.xlu0 %2882
  %2884 = vrot.lane.b32.xlu0 %v2583, 64
  %v2885 = vpop.permute.xlu0 %2884
  %2886 = vrot.lane.b32.xlu0 %v2676, 64
  %v2887 = vpop.permute.xlu0 %2886
  %2888 = vrot.lane.b32.xlu0 %v2586, 64
  %v2889 = vpop.permute.xlu0 %2888
  %2890 = vrot.lane.b32.xlu0 %v2588, 64
  %v2891 = vpop.permute.xlu0 %2890
  %2892 = vrot.lane.b32.xlu0 %v2590, 64
  %v2893 = vpop.permute.xlu0 %2892
  %2894 = vrot.lane.b32.xlu0 %v2677, 64
  %v2895 = vpop.permute.xlu0 %2894
  %2896 = vrot.lane.b32.xlu0 %v2593, 64
  %v2897 = vpop.permute.xlu0 %2896
  %2898 = vrot.lane.b32.xlu0 %v2595, 64
  %v2899 = vpop.permute.xlu0 %2898
  %2900 = vrot.lane.b32.xlu0 %v2597, 64
  %v2901 = vpop.permute.xlu0 %2900
  %2902 = vrot.lane.b32.xlu0 %v2678, 64
  %v2903 = vpop.permute.xlu0 %2902
  %2904 = vrot.lane.b32.xlu0 %v2600, 64
  %v2905 = vpop.permute.xlu0 %2904
  %2906 = vrot.lane.b32.xlu0 %v2602, 64
  %v2907 = vpop.permute.xlu0 %2906
  %2908 = vrot.lane.b32.xlu0 %v2604, 64
  %v2909 = vpop.permute.xlu0 %2908
  %2910 = vrot.lane.b32.xlu0 %v2679, 64
  %v2911 = vpop.permute.xlu0 %2910
  %2912 = vrot.lane.b32.xlu0 %v2607, 64
  %v2913 = vpop.permute.xlu0 %2912
  %2914 = vrot.lane.b32.xlu0 %v2609, 64
  %v2915 = vpop.permute.xlu0 %2914
  %2916 = vrot.lane.b32.xlu0 %v2611, 64
  %v2917 = vpop.permute.xlu0 %2916
  %2918 = vrot.lane.b32.xlu0 %v2680, 64
  %v2919 = vpop.permute.xlu0 %2918
  %2920 = vrot.lane.b32.xlu0 %v2614, 64
  %v2921 = vpop.permute.xlu0 %2920
  %2922 = vrot.lane.b32.xlu0 %v2616, 64
  %v2923 = vpop.permute.xlu0 %2922
  %2924 = vrot.lane.b32.xlu0 %v2618, 64
  %v2925 = vpop.permute.xlu0 %2924
  %2926 = vrot.lane.b32.xlu0 %v2681, 64
  %v2927 = vpop.permute.xlu0 %2926
  %2928 = vrot.lane.b32.xlu0 %v2621, 64
  %v2929 = vpop.permute.xlu0 %2928
  %2930 = vrot.lane.b32.xlu0 %v2623, 64
  %v2931 = vpop.permute.xlu0 %2930
  %2932 = vrot.lane.b32.xlu0 %v2625, 64
  %v2933 = vpop.permute.xlu0 %2932
  %v3046 = vadd.f32 %v2150, %v2711
  %v3047 = vadd.f32 %v2151, %v2713
  %v3048 = vadd.f32 %v2152, %v2715
  %v3049 = vadd.f32 %v2153, %v2717
  %v3050 = vadd.f32 %v2154, %v2719
  %v3051 = vadd.f32 %v2155, %v2721
  %v3052 = vadd.f32 %v2156, %v2723
  %v3053 = vadd.f32 %v2157, %v2725
  %v3054 = vadd.f32 %v2158, %v2727
  %v3055 = vadd.f32 %v2159, %v2729
  %v3056 = vadd.f32 %v2160, %v2731
  %v3057 = vadd.f32 %v2161, %v2733
  %v3058 = vadd.f32 %v2162, %v2735
  %v3059 = vadd.f32 %v2163, %v2737
  %v3060 = vadd.f32 %v2164, %v2739
  %v3061 = vadd.f32 %v2165, %v2741
  %v3062 = vadd.f32 %v2166, %v2743
  %v3063 = vadd.f32 %v2167, %v2745
  %v3064 = vadd.f32 %v2168, %v2747
  %v3065 = vadd.f32 %v2169, %v2749
  %v3066 = vadd.f32 %v2170, %v2751
  %v3067 = vadd.f32 %v2171, %v2753
  %v3068 = vadd.f32 %v2172, %v2755
  %v3069 = vadd.f32 %v2173, %v2757
  %v3070 = vadd.f32 %v2174, %v2759
  %v3071 = vadd.f32 %v2175, %v2761
  %v3072 = vadd.f32 %v2176, %v2763
  %v3073 = vadd.f32 %v2177, %v2765
  %v3074 = vadd.f32 %v2178, %v2767
  %v3075 = vadd.f32 %v2179, %v2769
  %v3076 = vadd.f32 %v2180, %v2771
  %v3077 = vadd.f32 %v2181, %v2773
  %v3078 = vadd.f32 %v2182, %v2775
  %v3079 = vadd.f32 %v2183, %v2777
  %v3080 = vadd.f32 %v2184, %v2779
  %v3081 = vadd.f32 %v2185, %v2781
  %v3082 = vadd.f32 %v2186, %v2783
  %v3083 = vadd.f32 %v2187, %v2785
  %v3084 = vadd.f32 %v2188, %v2787
  %v3085 = vadd.f32 %v2189, %v2789
  %v3086 = vadd.f32 %v2190, %v2791
  %v3087 = vadd.f32 %v2191, %v2793
  %v3088 = vadd.f32 %v2192, %v2795
  %v3089 = vadd.f32 %v2193, %v2797
  %v3090 = vadd.f32 %v2194, %v2799
  %v3091 = vadd.f32 %v2195, %v2801
  %v3092 = vadd.f32 %v2196, %v2803
  %v3093 = vadd.f32 %v2197, %v2805
  %v3094 = vadd.f32 %v2198, %v2807
  %v3095 = vadd.f32 %v2199, %v2809
  %v3096 = vadd.f32 %v2200, %v2811
  %v3097 = vadd.f32 %v2201, %v2813
  %v3098 = vadd.f32 %v2202, %v2815
  %v3099 = vadd.f32 %v2203, %v2817
  %v3100 = vadd.f32 %v2204, %v2819
  %v3101 = vadd.f32 %v2205, %v2821
  %v3102 = vadd.f32 %v2206, %v2823
  %v3103 = vadd.f32 %v2207, %v2825
  %v3104 = vadd.f32 %v2208, %v2827
  %v3105 = vadd.f32 %v2209, %v2829
  %v3106 = vadd.f32 %v2210, %v2831
  %v3107 = vadd.f32 %v2211, %v2833
  %v3108 = vadd.f32 %v2212, %v2835
  %v3109 = vadd.f32 %v2213, %v2837
  %v3110 = vadd.f32 %v2214, %v2839
  %v3111 = vadd.f32 %v2215, %v2841
  %v3112 = vadd.f32 %v2216, %v2843
  %v3113 = vadd.f32 %v2217, %v2845
  %v3114 = vadd.f32 %v2218, %v2847
  %v3115 = vadd.f32 %v2219, %v2849
  %v3116 = vadd.f32 %v2220, %v2851
  %v3117 = vadd.f32 %v2221, %v2853
  %v3118 = vadd.f32 %v2222, %v2855
  %v3119 = vadd.f32 %v2223, %v2857
  %v3120 = vadd.f32 %v2224, %v2859
  %v3121 = vadd.f32 %v2225, %v2861
  %v3122 = vadd.f32 %v2226, %v2863
  %v3123 = vadd.f32 %v2227, %v2865
  %v3124 = vadd.f32 %v2228, %v2867
  %v3125 = vadd.f32 %v2229, %v2869
  %v3126 = vadd.f32 %v2230, %v2871
  %v3127 = vadd.f32 %v2231, %v2873
  %v3128 = vadd.f32 %v2232, %v2875
  %v3129 = vadd.f32 %v2233, %v2877
  %v3130 = vadd.f32 %v2234, %v2879
  %v3131 = vadd.f32 %v2235, %v2881
  %v3132 = vadd.f32 %v2236, %v2883
  %v3133 = vadd.f32 %v2237, %v2885
  %v3134 = vadd.f32 %v2238, %v2887
  %v3135 = vadd.f32 %v2239, %v2889
  %v3136 = vadd.f32 %v2240, %v2891
  %v3137 = vadd.f32 %v2241, %v2893
  %v3138 = vadd.f32 %v2242, %v2895
  %v3139 = vadd.f32 %v2243, %v2897
  %v3140 = vadd.f32 %v2244, %v2899
  %v3141 = vadd.f32 %v2245, %v2901
  %v3142 = vadd.f32 %v2246, %v2903
  %v3143 = vadd.f32 %v2247, %v2905
  %v3144 = vadd.f32 %v2248, %v2907
  %v3145 = vadd.f32 %v2249, %v2909
  %v3146 = vadd.f32 %v2250, %v2911
  %v3147 = vadd.f32 %v2251, %v2913
  %v3148 = vadd.f32 %v2252, %v2915
  %v3149 = vadd.f32 %v2253, %v2917
  %v3150 = vadd.f32 %v2254, %v2919
  %v3151 = vadd.f32 %v2255, %v2921
  %v3152 = vadd.f32 %v2256, %v2923
  %v3153 = vadd.f32 %v2257, %v2925
  %v3154 = vadd.f32 %v2258, %v2927
  %v3155 = vadd.f32 %v2259, %v2929
  %v3156 = vadd.f32 %v2260, %v2931
  %v3157 = vadd.f32 %v2261, %v2933
  %3270 = vrot.lane.b32.xlu0 %v2038, 64
  %v3271 = vpop.permute.xlu0 %3270
  %3272 = vrot.lane.b32.xlu0 %v2039, 64
  %v3273 = vpop.permute.xlu0 %3272
  %3274 = vrot.lane.b32.xlu0 %v2040, 64
  %v3275 = vpop.permute.xlu0 %3274
  %3276 = vrot.lane.b32.xlu0 %v2041, 64
  %v3277 = vpop.permute.xlu0 %3276
  %3278 = vrot.lane.b32.xlu0 %v2042, 64
  %v3279 = vpop.permute.xlu0 %3278
  %3280 = vrot.lane.b32.xlu0 %v2043, 64
  %v3281 = vpop.permute.xlu0 %3280
  %3282 = vrot.lane.b32.xlu0 %v2044, 64
  %v3283 = vpop.permute.xlu0 %3282
  %3284 = vrot.lane.b32.xlu0 %v2045, 64
  %v3285 = vpop.permute.xlu0 %3284
  %3286 = vrot.lane.b32.xlu0 %v2046, 64
  %v3287 = vpop.permute.xlu0 %3286
  %3288 = vrot.lane.b32.xlu0 %v2047, 64
  %v3289 = vpop.permute.xlu0 %3288
  %3290 = vrot.lane.b32.xlu0 %v2048, 64
  %v3291 = vpop.permute.xlu0 %3290
  %3292 = vrot.lane.b32.xlu0 %v2049, 64
  %v3293 = vpop.permute.xlu0 %3292
  %3294 = vrot.lane.b32.xlu0 %v2050, 64
  %v3295 = vpop.permute.xlu0 %3294
  %3296 = vrot.lane.b32.xlu0 %v2051, 64
  %v3297 = vpop.permute.xlu0 %3296
  %3298 = vrot.lane.b32.xlu0 %v2052, 64
  %v3299 = vpop.permute.xlu0 %3298
  %3300 = vrot.lane.b32.xlu0 %v2053, 64
  %v3301 = vpop.permute.xlu0 %3300
  %3302 = vrot.lane.b32.xlu0 %v2054, 64
  %v3303 = vpop.permute.xlu0 %3302
  %3304 = vrot.lane.b32.xlu0 %v2055, 64
  %v3305 = vpop.permute.xlu0 %3304
  %3306 = vrot.lane.b32.xlu0 %v2056, 64
  %v3307 = vpop.permute.xlu0 %3306
  %3308 = vrot.lane.b32.xlu0 %v2057, 64
  %v3309 = vpop.permute.xlu0 %3308
  %3310 = vrot.lane.b32.xlu0 %v2058, 64
  %v3311 = vpop.permute.xlu0 %3310
  %3312 = vrot.lane.b32.xlu0 %v2059, 64
  %v3313 = vpop.permute.xlu0 %3312
  %3314 = vrot.lane.b32.xlu0 %v2060, 64
  %v3315 = vpop.permute.xlu0 %3314
  %3316 = vrot.lane.b32.xlu0 %v2061, 64
  %v3317 = vpop.permute.xlu0 %3316
  %3318 = vrot.lane.b32.xlu0 %v2062, 64
  %v3319 = vpop.permute.xlu0 %3318
  %3320 = vrot.lane.b32.xlu0 %v2063, 64
  %v3321 = vpop.permute.xlu0 %3320
  %3322 = vrot.lane.b32.xlu0 %v2064, 64
  %v3323 = vpop.permute.xlu0 %3322
  %3324 = vrot.lane.b32.xlu0 %v2065, 64
  %v3325 = vpop.permute.xlu0 %3324
  %3326 = vrot.lane.b32.xlu0 %v2066, 64
  %v3327 = vpop.permute.xlu0 %3326
  %3328 = vrot.lane.b32.xlu0 %v2067, 64
  %v3329 = vpop.permute.xlu0 %3328
  %3330 = vrot.lane.b32.xlu0 %v2068, 64
  %v3331 = vpop.permute.xlu0 %3330
  %3332 = vrot.lane.b32.xlu0 %v2069, 64
  %v3333 = vpop.permute.xlu0 %3332
  %3334 = vrot.lane.b32.xlu0 %v2070, 64
  %v3335 = vpop.permute.xlu0 %3334
  %3336 = vrot.lane.b32.xlu0 %v2071, 64
  %v3337 = vpop.permute.xlu0 %3336
  %3338 = vrot.lane.b32.xlu0 %v2072, 64
  %v3339 = vpop.permute.xlu0 %3338
  %3340 = vrot.lane.b32.xlu0 %v2073, 64
  %v3341 = vpop.permute.xlu0 %3340
  %3342 = vrot.lane.b32.xlu0 %v2074, 64
  %v3343 = vpop.permute.xlu0 %3342
  %3344 = vrot.lane.b32.xlu0 %v2075, 64
  %v3345 = vpop.permute.xlu0 %3344
  %3346 = vrot.lane.b32.xlu0 %v2076, 64
  %v3347 = vpop.permute.xlu0 %3346
  %3348 = vrot.lane.b32.xlu0 %v2077, 64
  %v3349 = vpop.permute.xlu0 %3348
  %3350 = vrot.lane.b32.xlu0 %v2078, 64
  %v3351 = vpop.permute.xlu0 %3350
  %3352 = vrot.lane.b32.xlu0 %v2079, 64
  %v3353 = vpop.permute.xlu0 %3352
  %3354 = vrot.lane.b32.xlu0 %v2080, 64
  %v3355 = vpop.permute.xlu0 %3354
  %3356 = vrot.lane.b32.xlu0 %v2081, 64
  %v3357 = vpop.permute.xlu0 %3356
  %3358 = vrot.lane.b32.xlu0 %v2082, 64
  %v3359 = vpop.permute.xlu0 %3358
  %3360 = vrot.lane.b32.xlu0 %v2083, 64
  %v3361 = vpop.permute.xlu0 %3360
  %3362 = vrot.lane.b32.xlu0 %v2084, 64
  %v3363 = vpop.permute.xlu0 %3362
  %3364 = vrot.lane.b32.xlu0 %v2085, 64
  %v3365 = vpop.permute.xlu0 %3364
  %3366 = vrot.lane.b32.xlu0 %v2086, 64
  %v3367 = vpop.permute.xlu0 %3366
  %3368 = vrot.lane.b32.xlu0 %v2087, 64
  %v3369 = vpop.permute.xlu0 %3368
  %3370 = vrot.lane.b32.xlu0 %v2088, 64
  %v3371 = vpop.permute.xlu0 %3370
  %3372 = vrot.lane.b32.xlu0 %v2089, 64
  %v3373 = vpop.permute.xlu0 %3372
  %3374 = vrot.lane.b32.xlu0 %v2090, 64
  %v3375 = vpop.permute.xlu0 %3374
  %3376 = vrot.lane.b32.xlu0 %v2091, 64
  %v3377 = vpop.permute.xlu0 %3376
  %3378 = vrot.lane.b32.xlu0 %v2092, 64
  %v3379 = vpop.permute.xlu0 %3378
  %3380 = vrot.lane.b32.xlu0 %v2093, 64
  %v3381 = vpop.permute.xlu0 %3380
  %3382 = vrot.lane.b32.xlu0 %v2094, 64
  %v3383 = vpop.permute.xlu0 %3382
  %3384 = vrot.lane.b32.xlu0 %v2095, 64
  %v3385 = vpop.permute.xlu0 %3384
  %3386 = vrot.lane.b32.xlu0 %v2096, 64
  %v3387 = vpop.permute.xlu0 %3386
  %3388 = vrot.lane.b32.xlu0 %v2097, 64
  %v3389 = vpop.permute.xlu0 %3388
  %3390 = vrot.lane.b32.xlu0 %v2098, 64
  %v3391 = vpop.permute.xlu0 %3390
  %3392 = vrot.lane.b32.xlu0 %v2099, 64
  %v3393 = vpop.permute.xlu0 %3392
  %3394 = vrot.lane.b32.xlu0 %v2100, 64
  %v3395 = vpop.permute.xlu0 %3394
  %3396 = vrot.lane.b32.xlu0 %v2101, 64
  %v3397 = vpop.permute.xlu0 %3396
  %3398 = vrot.lane.b32.xlu0 %v2102, 64
  %v3399 = vpop.permute.xlu0 %3398
  %3400 = vrot.lane.b32.xlu0 %v2103, 64
  %v3401 = vpop.permute.xlu0 %3400
  %3402 = vrot.lane.b32.xlu0 %v2104, 64
  %v3403 = vpop.permute.xlu0 %3402
  %3404 = vrot.lane.b32.xlu0 %v2105, 64
  %v3405 = vpop.permute.xlu0 %3404
  %3406 = vrot.lane.b32.xlu0 %v2106, 64
  %v3407 = vpop.permute.xlu0 %3406
  %3408 = vrot.lane.b32.xlu0 %v2107, 64
  %v3409 = vpop.permute.xlu0 %3408
  %3410 = vrot.lane.b32.xlu0 %v2108, 64
  %v3411 = vpop.permute.xlu0 %3410
  %3412 = vrot.lane.b32.xlu0 %v2109, 64
  %v3413 = vpop.permute.xlu0 %3412
  %3414 = vrot.lane.b32.xlu0 %v2110, 64
  %v3415 = vpop.permute.xlu0 %3414
  %3416 = vrot.lane.b32.xlu0 %v2111, 64
  %v3417 = vpop.permute.xlu0 %3416
  %3418 = vrot.lane.b32.xlu0 %v2112, 64
  %v3419 = vpop.permute.xlu0 %3418
  %3420 = vrot.lane.b32.xlu0 %v2113, 64
  %v3421 = vpop.permute.xlu0 %3420
  %3422 = vrot.lane.b32.xlu0 %v2114, 64
  %v3423 = vpop.permute.xlu0 %3422
  %3424 = vrot.lane.b32.xlu0 %v2115, 64
  %v3425 = vpop.permute.xlu0 %3424
  %3426 = vrot.lane.b32.xlu0 %v2116, 64
  %v3427 = vpop.permute.xlu0 %3426
  %3428 = vrot.lane.b32.xlu0 %v2117, 64
  %v3429 = vpop.permute.xlu0 %3428
  %3430 = vrot.lane.b32.xlu0 %v2118, 64
  %v3431 = vpop.permute.xlu0 %3430
  %3432 = vrot.lane.b32.xlu0 %v2119, 64
  %v3433 = vpop.permute.xlu0 %3432
  %3434 = vrot.lane.b32.xlu0 %v2120, 64
  %v3435 = vpop.permute.xlu0 %3434
  %3436 = vrot.lane.b32.xlu0 %v2121, 64
  %v3437 = vpop.permute.xlu0 %3436
  %3438 = vrot.lane.b32.xlu0 %v2122, 64
  %v3439 = vpop.permute.xlu0 %3438
  %3440 = vrot.lane.b32.xlu0 %v2123, 64
  %v3441 = vpop.permute.xlu0 %3440
  %3442 = vrot.lane.b32.xlu0 %v2124, 64
  %v3443 = vpop.permute.xlu0 %3442
  %3444 = vrot.lane.b32.xlu0 %v2125, 64
  %v3445 = vpop.permute.xlu0 %3444
  %3446 = vrot.lane.b32.xlu0 %v2126, 64
  %v3447 = vpop.permute.xlu0 %3446
  %3448 = vrot.lane.b32.xlu0 %v2127, 64
  %v3449 = vpop.permute.xlu0 %3448
  %3450 = vrot.lane.b32.xlu0 %v2128, 64
  %v3451 = vpop.permute.xlu0 %3450
  %3452 = vrot.lane.b32.xlu0 %v2129, 64
  %v3453 = vpop.permute.xlu0 %3452
  %3454 = vrot.lane.b32.xlu0 %v2130, 64
  %v3455 = vpop.permute.xlu0 %3454
  %3456 = vrot.lane.b32.xlu0 %v2131, 64
  %v3457 = vpop.permute.xlu0 %3456
  %3458 = vrot.lane.b32.xlu0 %v2132, 64
  %v3459 = vpop.permute.xlu0 %3458
  %3460 = vrot.lane.b32.xlu0 %v2133, 64
  %v3461 = vpop.permute.xlu0 %3460
  %3462 = vrot.lane.b32.xlu0 %v2134, 64
  %v3463 = vpop.permute.xlu0 %3462
  %3464 = vrot.lane.b32.xlu0 %v2135, 64
  %v3465 = vpop.permute.xlu0 %3464
  %3466 = vrot.lane.b32.xlu0 %v2136, 64
  %v3467 = vpop.permute.xlu0 %3466
  %3468 = vrot.lane.b32.xlu0 %v2137, 64
  %v3469 = vpop.permute.xlu0 %3468
  %3470 = vrot.lane.b32.xlu0 %v2138, 64
  %v3471 = vpop.permute.xlu0 %3470
  %3472 = vrot.lane.b32.xlu0 %v2139, 64
  %v3473 = vpop.permute.xlu0 %3472
  %3474 = vrot.lane.b32.xlu0 %v2140, 64
  %v3475 = vpop.permute.xlu0 %3474
  %3476 = vrot.lane.b32.xlu0 %v2141, 64
  %v3477 = vpop.permute.xlu0 %3476
  %3478 = vrot.lane.b32.xlu0 %v2142, 64
  %v3479 = vpop.permute.xlu0 %3478
  %3480 = vrot.lane.b32.xlu0 %v2143, 64
  %v3481 = vpop.permute.xlu0 %3480
  %3482 = vrot.lane.b32.xlu0 %v2144, 64
  %v3483 = vpop.permute.xlu0 %3482
  %3484 = vrot.lane.b32.xlu0 %v2145, 64
  %v3485 = vpop.permute.xlu0 %3484
  %3486 = vrot.lane.b32.xlu0 %v2146, 64
  %v3487 = vpop.permute.xlu0 %3486
  %3488 = vrot.lane.b32.xlu0 %v2147, 64
  %v3489 = vpop.permute.xlu0 %3488
  %3490 = vrot.lane.b32.xlu0 %v2148, 64
  %v3491 = vpop.permute.xlu0 %3490
  %3492 = vrot.lane.b32.xlu0 %v2149, 64
  %v3493 = vpop.permute.xlu0 %3492
  %v3606 = vsel %vm13, %v1030, %v3271
  %v3607 = vsel %vm13, %v1031, %v3273
  %v3608 = vsel %vm13, %v1032, %v3275
  %v3609 = vsel %vm13, %v1033, %v3277
  %v3610 = vsel %vm13, %v1034, %v3279
  %v3611 = vsel %vm13, %v1035, %v3281
  %v3612 = vsel %vm13, %v1036, %v3283
  %v3613 = vsel %vm13, %v1037, %v3285
  %v3614 = vsel %vm13, %v1038, %v3287
  %v3615 = vsel %vm13, %v1039, %v3289
  %v3616 = vsel %vm13, %v1040, %v3291
  %v3617 = vsel %vm13, %v1041, %v3293
  %v3618 = vsel %vm13, %v1042, %v3295
  %v3619 = vsel %vm13, %v1043, %v3297
  %v3620 = vsel %vm13, %v1044, %v3299
  %v3621 = vsel %vm13, %v1045, %v3301
  %v3622 = vsel %vm13, %v1046, %v3303
  %v3623 = vsel %vm13, %v1047, %v3305
  %v3624 = vsel %vm13, %v1048, %v3307
  %v3625 = vsel %vm13, %v1049, %v3309
  %v3626 = vsel %vm13, %v1050, %v3311
  %v3627 = vsel %vm13, %v1051, %v3313
  %v3628 = vsel %vm13, %v1052, %v3315
  %v3629 = vsel %vm13, %v1053, %v3317
  %v3630 = vsel %vm13, %v1054, %v3319
  %v3631 = vsel %vm13, %v1055, %v3321
  %v3632 = vsel %vm13, %v1056, %v3323
  %v3633 = vsel %vm13, %v1057, %v3325
  %v3634 = vsel %vm13, %v1058, %v3327
  %v3635 = vsel %vm13, %v1059, %v3329
  %v3636 = vsel %vm13, %v1060, %v3331
  %v3637 = vsel %vm13, %v1061, %v3333
  %v3638 = vsel %vm13, %v1062, %v3335
  %v3639 = vsel %vm13, %v1063, %v3337
  %v3640 = vsel %vm13, %v1064, %v3339
  %v3641 = vsel %vm13, %v1065, %v3341
  %v3642 = vsel %vm13, %v1066, %v3343
  %v3643 = vsel %vm13, %v1067, %v3345
  %v3644 = vsel %vm13, %v1068, %v3347
  %v3645 = vsel %vm13, %v1069, %v3349
  %v3646 = vsel %vm13, %v1070, %v3351
  %v3647 = vsel %vm13, %v1071, %v3353
  %v3648 = vsel %vm13, %v1072, %v3355
  %v3649 = vsel %vm13, %v1073, %v3357
  %v3650 = vsel %vm13, %v1074, %v3359
  %v3651 = vsel %vm13, %v1075, %v3361
  %v3652 = vsel %vm13, %v1076, %v3363
  %v3653 = vsel %vm13, %v1077, %v3365
  %v3654 = vsel %vm13, %v1078, %v3367
  %v3655 = vsel %vm13, %v1079, %v3369
  %v3656 = vsel %vm13, %v1080, %v3371
  %v3657 = vsel %vm13, %v1081, %v3373
  %v3658 = vsel %vm13, %v1082, %v3375
  %v3659 = vsel %vm13, %v1083, %v3377
  %v3660 = vsel %vm13, %v1084, %v3379
  %v3661 = vsel %vm13, %v1085, %v3381
  %v3662 = vsel %vm13, %v1086, %v3383
  %v3663 = vsel %vm13, %v1087, %v3385
  %v3664 = vsel %vm13, %v1088, %v3387
  %v3665 = vsel %vm13, %v1089, %v3389
  %v3666 = vsel %vm13, %v1090, %v3391
  %v3667 = vsel %vm13, %v1091, %v3393
  %v3668 = vsel %vm13, %v1092, %v3395
  %v3669 = vsel %vm13, %v1093, %v3397
  %v3670 = vsel %vm13, %v1094, %v3399
  %v3671 = vsel %vm13, %v1095, %v3401
  %v3672 = vsel %vm13, %v1096, %v3403
  %v3673 = vsel %vm13, %v1097, %v3405
  %v3674 = vsel %vm13, %v1098, %v3407
  %v3675 = vsel %vm13, %v1099, %v3409
  %v3676 = vsel %vm13, %v1100, %v3411
  %v3677 = vsel %vm13, %v1101, %v3413
  %v3678 = vsel %vm13, %v1102, %v3415
  %v3679 = vsel %vm13, %v1103, %v3417
  %v3680 = vsel %vm13, %v1104, %v3419
  %v3681 = vsel %vm13, %v1105, %v3421
  %v3682 = vsel %vm13, %v1106, %v3423
  %v3683 = vsel %vm13, %v1107, %v3425
  %v3684 = vsel %vm13, %v1108, %v3427
  %v3685 = vsel %vm13, %v1109, %v3429
  %v3686 = vsel %vm13, %v1110, %v3431
  %v3687 = vsel %vm13, %v1111, %v3433
  %v3688 = vsel %vm13, %v1112, %v3435
  %v3689 = vsel %vm13, %v1113, %v3437
  %v3690 = vsel %vm13, %v1114, %v3439
  %v3691 = vsel %vm13, %v1115, %v3441
  %v3692 = vsel %vm13, %v1116, %v3443
  %v3693 = vsel %vm13, %v1117, %v3445
  %v3694 = vsel %vm13, %v1118, %v3447
  %v3695 = vsel %vm13, %v1119, %v3449
  %v3696 = vsel %vm13, %v1120, %v3451
  %v3697 = vsel %vm13, %v1121, %v3453
  %v3698 = vsel %vm13, %v1122, %v3455
  %v3699 = vsel %vm13, %v1123, %v3457
  %v3700 = vsel %vm13, %v1124, %v3459
  %v3701 = vsel %vm13, %v1125, %v3461
  %v3702 = vsel %vm13, %v1126, %v3463
  %v3703 = vsel %vm13, %v1127, %v3465
  %v3704 = vsel %vm13, %v1128, %v3467
  %v3705 = vsel %vm13, %v1129, %v3469
  %v3706 = vsel %vm13, %v1130, %v3471
  %v3707 = vsel %vm13, %v1131, %v3473
  %v3708 = vsel %vm13, %v1132, %v3475
  %v3709 = vsel %vm13, %v1133, %v3477
  %v3710 = vsel %vm13, %v1134, %v3479
  %v3711 = vsel %vm13, %v1135, %v3481
  %v3712 = vsel %vm13, %v1136, %v3483
  %v3713 = vsel %vm13, %v1137, %v3485
  %v3714 = vsel %vm13, %v1138, %v3487
  %v3715 = vsel %vm13, %v1139, %v3489
  %v3716 = vsel %vm13, %v1140, %v3491
  %v3717 = vsel %vm13, %v1141, %v3493
  %v3718 = vpack.c.bf16 %v3607, %v3606
  %v3719 = vpack.c.bf16 %v3047, %v3046
  %v3720 = vpack.c.bf16 %v3609, %v3608
  %v3721 = vpack.c.bf16 %v3049, %v3048
  %v3722 = vpack.c.bf16 %v3611, %v3610
  %v3723 = vpack.c.bf16 %v3051, %v3050
  %v3724 = vpack.c.bf16 %v3613, %v3612
  %v3725 = vpack.c.bf16 %v3053, %v3052
  %v3726 = vpack.c.bf16 %v3615, %v3614
  %v3727 = vpack.c.bf16 %v3055, %v3054
  %v3728 = vpack.c.bf16 %v3617, %v3616
  %v3729 = vpack.c.bf16 %v3057, %v3056
  %v3730 = vpack.c.bf16 %v3619, %v3618
  %v3731 = vpack.c.bf16 %v3059, %v3058
  %v3732 = vpack.c.bf16 %v3621, %v3620
  %v3733 = vpack.c.bf16 %v3061, %v3060
  %v3734 = vpack.c.bf16 %v3623, %v3622
  %v3735 = vpack.c.bf16 %v3063, %v3062
  %v3736 = vpack.c.bf16 %v3625, %v3624
  %v3737 = vpack.c.bf16 %v3065, %v3064
  %v3738 = vpack.c.bf16 %v3627, %v3626
  %v3739 = vpack.c.bf16 %v3067, %v3066
  %v3740 = vpack.c.bf16 %v3629, %v3628
  %v3741 = vpack.c.bf16 %v3069, %v3068
  %v3742 = vpack.c.bf16 %v3631, %v3630
  %v3743 = vpack.c.bf16 %v3071, %v3070
  %v3744 = vpack.c.bf16 %v3633, %v3632
  %v3745 = vpack.c.bf16 %v3073, %v3072
  %v3746 = vpack.c.bf16 %v3635, %v3634
  %v3747 = vpack.c.bf16 %v3075, %v3074
  %v3748 = vpack.c.bf16 %v3637, %v3636
  %v3749 = vpack.c.bf16 %v3077, %v3076
  %v3750 = vpack.c.bf16 %v3639, %v3638
  %v3751 = vpack.c.bf16 %v3079, %v3078
  %v3752 = vpack.c.bf16 %v3641, %v3640
  %v3753 = vpack.c.bf16 %v3081, %v3080
  %v3754 = vpack.c.bf16 %v3643, %v3642
  %v3755 = vpack.c.bf16 %v3083, %v3082
  %v3756 = vpack.c.bf16 %v3645, %v3644
  %v3757 = vpack.c.bf16 %v3085, %v3084
  %v3758 = vpack.c.bf16 %v3647, %v3646
  %v3759 = vpack.c.bf16 %v3087, %v3086
  %v3760 = vpack.c.bf16 %v3649, %v3648
  %v3761 = vpack.c.bf16 %v3089, %v3088
  %v3762 = vpack.c.bf16 %v3651, %v3650
  %v3763 = vpack.c.bf16 %v3091, %v3090
  %v3764 = vpack.c.bf16 %v3653, %v3652
  %v3765 = vpack.c.bf16 %v3093, %v3092
  %v3766 = vpack.c.bf16 %v3655, %v3654
  %v3767 = vpack.c.bf16 %v3095, %v3094
  %v3768 = vpack.c.bf16 %v3657, %v3656
  %v3769 = vpack.c.bf16 %v3097, %v3096
  %v3770 = vpack.c.bf16 %v3659, %v3658
  %v3771 = vpack.c.bf16 %v3099, %v3098
  %v3772 = vpack.c.bf16 %v3661, %v3660
  %v3773 = vpack.c.bf16 %v3101, %v3100
  %v3774 = vpack.c.bf16 %v3663, %v3662
  %v3775 = vpack.c.bf16 %v3103, %v3102
  %v3776 = vpack.c.bf16 %v3665, %v3664
  %v3777 = vpack.c.bf16 %v3105, %v3104
  %v3778 = vpack.c.bf16 %v3667, %v3666
  %v3779 = vpack.c.bf16 %v3107, %v3106
  %v3780 = vpack.c.bf16 %v3669, %v3668
  %v3781 = vpack.c.bf16 %v3109, %v3108
  %v3782 = vpack.c.bf16 %v3671, %v3670
  %v3783 = vpack.c.bf16 %v3111, %v3110
  %v3784 = vpack.c.bf16 %v3673, %v3672
  %v3785 = vpack.c.bf16 %v3113, %v3112
  %v3786 = vpack.c.bf16 %v3675, %v3674
  %v3787 = vpack.c.bf16 %v3115, %v3114
  %v3788 = vpack.c.bf16 %v3677, %v3676
  %v3789 = vpack.c.bf16 %v3117, %v3116
  %v3790 = vpack.c.bf16 %v3679, %v3678
  %v3791 = vpack.c.bf16 %v3119, %v3118
  %v3792 = vpack.c.bf16 %v3681, %v3680
  %v3793 = vpack.c.bf16 %v3121, %v3120
  %v3794 = vpack.c.bf16 %v3683, %v3682
  %v3795 = vpack.c.bf16 %v3123, %v3122
  %v3796 = vpack.c.bf16 %v3685, %v3684
  %v3797 = vpack.c.bf16 %v3125, %v3124
  %v3798 = vpack.c.bf16 %v3687, %v3686
  %v3799 = vpack.c.bf16 %v3127, %v3126
  %v3800 = vpack.c.bf16 %v3689, %v3688
  %v3801 = vpack.c.bf16 %v3129, %v3128
  %v3802 = vpack.c.bf16 %v3691, %v3690
  %v3803 = vpack.c.bf16 %v3131, %v3130
  %v3804 = vpack.c.bf16 %v3693, %v3692
  %v3805 = vpack.c.bf16 %v3133, %v3132
  %v3806 = vpack.c.bf16 %v3695, %v3694
  %v3807 = vpack.c.bf16 %v3135, %v3134
  %v3808 = vpack.c.bf16 %v3697, %v3696
  %v3809 = vpack.c.bf16 %v3137, %v3136
  %v3810 = vpack.c.bf16 %v3699, %v3698
  %v3811 = vpack.c.bf16 %v3139, %v3138
  %v3812 = vpack.c.bf16 %v3701, %v3700
  %v3813 = vpack.c.bf16 %v3141, %v3140
  %v3814 = vpack.c.bf16 %v3703, %v3702
  %v3815 = vpack.c.bf16 %v3143, %v3142
  %v3816 = vpack.c.bf16 %v3705, %v3704
  %v3817 = vpack.c.bf16 %v3145, %v3144
  %v3818 = vpack.c.bf16 %v3707, %v3706
  %v3819 = vpack.c.bf16 %v3147, %v3146
  %v3820 = vpack.c.bf16 %v3709, %v3708
  %v3821 = vpack.c.bf16 %v3149, %v3148
  %v3822 = vpack.c.bf16 %v3711, %v3710
  %v3823 = vpack.c.bf16 %v3151, %v3150
  %v3824 = vpack.c.bf16 %v3713, %v3712
  %v3825 = vpack.c.bf16 %v3153, %v3152
  %v3826 = vpack.c.bf16 %v3715, %v3714
  %v3827 = vpack.c.bf16 %v3155, %v3154
  %v3828 = vpack.c.bf16 %v3717, %v3716
  %v3829 = vpack.c.bf16 %v3157, %v3156
  %3830 = vst [vmem:[#allocation2 + $0x20] sm:$0xff] %v3718
  %3831 = vst.msk [vmem:[#allocation2 + $0x28] sm:$0xff] %vm13, %v3719
  %3832 = vst [vmem:[#allocation2 + $0x30] sm:$0x3f] %v3720
  %vm3833 = vcmask 521216
  %3834 = vst.msk [vmem:[#allocation2 + $0x38] sm:$0x3f] %vm3833, %v3721
  %3835 = vst [vmem:[#allocation2 + $0x40] sm:$0xff] %v3722
  %3836 = vst.msk [vmem:[#allocation2 + $0x48] sm:$0xff] %vm13, %v3723
  %3837 = vst [vmem:[#allocation2 + $0x50] sm:$0x3f] %v3724
  %3838 = vst.msk [vmem:[#allocation2 + $0x58] sm:$0x3f] %vm3833, %v3725
  %3839 = vst [vmem:[#allocation2 + $0x60] sm:$0xff] %v3726
  %3840 = vst.msk [vmem:[#allocation2 + $0x68] sm:$0xff] %vm13, %v3727
  %3841 = vst [vmem:[#allocation2 + $0x70] sm:$0x3f] %v3728
  %3842 = vst.msk [vmem:[#allocation2 + $0x78] sm:$0x3f] %vm3833, %v3729
  %3843 = vst [vmem:[#allocation2 + $0x80] sm:$0xff] %v3730
  %3844 = vst.msk [vmem:[#allocation2 + $0x88] sm:$0xff] %vm13, %v3731
  %3845 = vst [vmem:[#allocation2 + $0x90] sm:$0x3f] %v3732
  %3846 = vst.msk [vmem:[#allocation2 + $0x98] sm:$0x3f] %vm3833, %v3733
  %3847 = vst [vmem:[#allocation2 + $0xa0] sm:$0xff] %v3734
  %3848 = vst.msk [vmem:[#allocation2 + $0xa8] sm:$0xff] %vm13, %v3735
  %3849 = vst [vmem:[#allocation2 + $0xb0] sm:$0x3f] %v3736
  %3850 = vst.msk [vmem:[#allocation2 + $0xb8] sm:$0x3f] %vm3833, %v3737
  %3851 = vst [vmem:[#allocation2 + $0xc0] sm:$0xff] %v3738
  %3852 = vst.msk [vmem:[#allocation2 + $0xc8] sm:$0xff] %vm13, %v3739
  %3853 = vst [vmem:[#allocation2 + $0xd0] sm:$0x3f] %v3740
  %3854 = vst.msk [vmem:[#allocation2 + $0xd8] sm:$0x3f] %vm3833, %v3741
  %3855 = vst [vmem:[#allocation2 + $0xe0] sm:$0xff] %v3742
  %3856 = vst.msk [vmem:[#allocation2 + $0xe8] sm:$0xff] %vm13, %v3743
  %3857 = vst [vmem:[#allocation2 + $0xf0] sm:$0x3f] %v3744
  %3858 = vst.msk [vmem:[#allocation2 + $0xf8] sm:$0x3f] %vm3833, %v3745
  %3859 = vst [vmem:[#allocation2 + $0x100] sm:$0xff] %v3746
  %3860 = vst.msk [vmem:[#allocation2 + $0x108] sm:$0xff] %vm13, %v3747
  %3861 = vst [vmem:[#allocation2 + $0x110] sm:$0x3f] %v3748
  %3862 = vst.msk [vmem:[#allocation2 + $0x118] sm:$0x3f] %vm3833, %v3749
  %3863 = vst [vmem:[#allocation2 + $0x120] sm:$0xff] %v3750
  %3864 = vst.msk [vmem:[#allocation2 + $0x128] sm:$0xff] %vm13, %v3751
  %3865 = vst [vmem:[#allocation2 + $0x130] sm:$0x3f] %v3752
  %3866 = vst.msk [vmem:[#allocation2 + $0x138] sm:$0x3f] %vm3833, %v3753
  %3867 = vst [vmem:[#allocation2 + $0x140] sm:$0xff] %v3754
  %3868 = vst.msk [vmem:[#allocation2 + $0x148] sm:$0xff] %vm13, %v3755
  %3869 = vst [vmem:[#allocation2 + $0x150] sm:$0x3f] %v3756
  %3870 = vst.msk [vmem:[#allocation2 + $0x158] sm:$0x3f] %vm3833, %v3757
  %3871 = vst [vmem:[#allocation2 + $0x160] sm:$0xff] %v3758
  %3872 = vst.msk [vmem:[#allocation2 + $0x168] sm:$0xff] %vm13, %v3759
  %3873 = vst [vmem:[#allocation2 + $0x170] sm:$0x3f] %v3760
  %3874 = vst.msk [vmem:[#allocation2 + $0x178] sm:$0x3f] %vm3833, %v3761
  %3875 = vst [vmem:[#allocation2 + $0x180] sm:$0xff] %v3762
  %3876 = vst.msk [vmem:[#allocation2 + $0x188] sm:$0xff] %vm13, %v3763
  %3877 = vst [vmem:[#allocation2 + $0x190] sm:$0x3f] %v3764
  %3878 = vst.msk [vmem:[#allocation2 + $0x198] sm:$0x3f] %vm3833, %v3765
  %3879 = vst [vmem:[#allocation2 + $0x1a0] sm:$0xff] %v3766
  %3880 = vst.msk [vmem:[#allocation2 + $0x1a8] sm:$0xff] %vm13, %v3767
  %3881 = vst [vmem:[#allocation2 + $0x1b0] sm:$0x3f] %v3768
  %3882 = vst.msk [vmem:[#allocation2 + $0x1b8] sm:$0x3f] %vm3833, %v3769
  %3883 = vst [vmem:[#allocation2 + $0x1c0] sm:$0xff] %v3770
  %3884 = vst.msk [vmem:[#allocation2 + $0x1c8] sm:$0xff] %vm13, %v3771
  %3885 = vst [vmem:[#allocation2 + $0x1d0] sm:$0x3f] %v3772
  %3886 = vst.msk [vmem:[#allocation2 + $0x1d8] sm:$0x3f] %vm3833, %v3773
  %3887 = vst [vmem:[#allocation2 + $0x1e0] sm:$0xff] %v3774
  %3888 = vst.msk [vmem:[#allocation2 + $0x1e8] sm:$0xff] %vm13, %v3775
  %3889 = vst [vmem:[#allocation2 + $0x1f0] sm:$0x3f] %v3776
  %3890 = vst.msk [vmem:[#allocation2 + $0x1f8] sm:$0x3f] %vm3833, %v3777
  %3891 = vst [vmem:[#allocation2 + $0x200] sm:$0xff] %v3778
  %3892 = vst.msk [vmem:[#allocation2 + $0x208] sm:$0xff] %vm13, %v3779
  %3893 = vst [vmem:[#allocation2 + $0x210] sm:$0x3f] %v3780
  %3894 = vst.msk [vmem:[#allocation2 + $0x218] sm:$0x3f] %vm3833, %v3781
  %3895 = vst [vmem:[#allocation2 + $0x220] sm:$0xff] %v3782
  %3896 = vst.msk [vmem:[#allocation2 + $0x228] sm:$0xff] %vm13, %v3783
  %3897 = vst [vmem:[#allocation2 + $0x230] sm:$0x3f] %v3784
  %3898 = vst.msk [vmem:[#allocation2 + $0x238] sm:$0x3f] %vm3833, %v3785
  %3899 = vst [vmem:[#allocation2 + $0x240] sm:$0xff] %v3786
  %3900 = vst.msk [vmem:[#allocation2 + $0x248] sm:$0xff] %vm13, %v3787
  %3901 = vst [vmem:[#allocation2 + $0x250] sm:$0x3f] %v3788
  %3902 = vst.msk [vmem:[#allocation2 + $0x258] sm:$0x3f] %vm3833, %v3789
  %3903 = vst [vmem:[#allocation2 + $0x260] sm:$0xff] %v3790
  %3904 = vst.msk [vmem:[#allocation2 + $0x268] sm:$0xff] %vm13, %v3791
  %3905 = vst [vmem:[#allocation2 + $0x270] sm:$0x3f] %v3792
  %3906 = vst.msk [vmem:[#allocation2 + $0x278] sm:$0x3f] %vm3833, %v3793
  %3907 = vst [vmem:[#allocation2 + $0x280] sm:$0xff] %v3794
  %3908 = vst.msk [vmem:[#allocation2 + $0x288] sm:$0xff] %vm13, %v3795
  %3909 = vst [vmem:[#allocation2 + $0x290] sm:$0x3f] %v3796
  %3910 = vst.msk [vmem:[#allocation2 + $0x298] sm:$0x3f] %vm3833, %v3797
  %3911 = vst [vmem:[#allocation2 + $0x2a0] sm:$0xff] %v3798
  %3912 = vst.msk [vmem:[#allocation2 + $0x2a8] sm:$0xff] %vm13, %v3799
  %3913 = vst [vmem:[#allocation2 + $0x2b0] sm:$0x3f] %v3800
  %3914 = vst.msk [vmem:[#allocation2 + $0x2b8] sm:$0x3f] %vm3833, %v3801
  %3915 = vst [vmem:[#allocation2 + $0x2c0] sm:$0xff] %v3802
  %3916 = vst.msk [vmem:[#allocation2 + $0x2c8] sm:$0xff] %vm13, %v3803
  %3917 = vst [vmem:[#allocation2 + $0x2d0] sm:$0x3f] %v3804
  %3918 = vst.msk [vmem:[#allocation2 + $0x2d8] sm:$0x3f] %vm3833, %v3805
  %3919 = vst [vmem:[#allocation2 + $0x2e0] sm:$0xff] %v3806
  %3920 = vst.msk [vmem:[#allocation2 + $0x2e8] sm:$0xff] %vm13, %v3807
  %3921 = vst [vmem:[#allocation2 + $0x2f0] sm:$0x3f] %v3808
  %3922 = vst.msk [vmem:[#allocation2 + $0x2f8] sm:$0x3f] %vm3833, %v3809
  %3923 = vst [vmem:[#allocation2 + $0x300] sm:$0xff] %v3810
  %3924 = vst.msk [vmem:[#allocation2 + $0x308] sm:$0xff] %vm13, %v3811
  %3925 = vst [vmem:[#allocation2 + $0x310] sm:$0x3f] %v3812
  %3926 = vst.msk [vmem:[#allocation2 + $0x318] sm:$0x3f] %vm3833, %v3813
  %3927 = vst [vmem:[#allocation2 + $0x320] sm:$0xff] %v3814
  %3928 = vst.msk [vmem:[#allocation2 + $0x328] sm:$0xff] %vm13, %v3815
  %3929 = vst [vmem:[#allocation2 + $0x330] sm:$0x3f] %v3816
  %3930 = vst.msk [vmem:[#allocation2 + $0x338] sm:$0x3f] %vm3833, %v3817
  %3931 = vst [vmem:[#allocation2 + $0x340] sm:$0xff] %v3818
  %3932 = vst.msk [vmem:[#allocation2 + $0x348] sm:$0xff] %vm13, %v3819
  %3933 = vst [vmem:[#allocation2 + $0x350] sm:$0x3f] %v3820
  %3934 = vst.msk [vmem:[#allocation2 + $0x358] sm:$0x3f] %vm3833, %v3821
  %3935 = vst [vmem:[#allocation2 + $0x360] sm:$0xff] %v3822
  %3936 = vst.msk [vmem:[#allocation2 + $0x368] sm:$0xff] %vm13, %v3823
  %3937 = vst [vmem:[#allocation2 + $0x370] sm:$0x3f] %v3824
  %3938 = vst.msk [vmem:[#allocation2 + $0x378] sm:$0x3f] %vm3833, %v3825
  %3939 = vst [vmem:[#allocation2 + $0x380] sm:$0xff] %v3826
  %3940 = vst.msk [vmem:[#allocation2 + $0x388] sm:$0xff] %vm13, %v3827
  %3941 = vst [vmem:[#allocation2 + $0x390] sm:$0x3f] %v3828
  %3942 = vst.msk [vmem:[#allocation2 + $0x398] sm:$0x3f] %vm3833, %v3829
  %v3943 = vld [vmem:[#allocation2] sm:$0xff]
  %v3944 = vld [vmem:[#allocation2 + $0x8] sm:$0xff]
  %v3945 = vld [vmem:[#allocation2 + $0x10] sm:$0xff]
  %v3946 = vld [vmem:[#allocation2 + $0x18] sm:$0xff]
  %v3947 = vld [vmem:[#allocation2 + $0x20] sm:$0xff]
  %v3948 = vld [vmem:[#allocation2 + $0x28] sm:$0xff]
  %v3949 = vld [vmem:[#allocation2 + $0x30] sm:$0xff]
  %v3950 = vld [vmem:[#allocation2 + $0x38] sm:$0xff]
  %v3951 = vld [vmem:[#allocation2 + $0x40] sm:$0xff]
  %v3952 = vld [vmem:[#allocation2 + $0x48] sm:$0xff]
  %v3953 = vld [vmem:[#allocation2 + $0x50] sm:$0xff]
  %v3954 = vld [vmem:[#allocation2 + $0x58] sm:$0xff]
  %v3955 = vld [vmem:[#allocation2 + $0x60] sm:$0xff]
  %v3956 = vld [vmem:[#allocation2 + $0x68] sm:$0xff]
  %v3957 = vld [vmem:[#allocation2 + $0x70] sm:$0xff]
  %v3958 = vld [vmem:[#allocation2 + $0x78] sm:$0xff]
  %v3959 = vld [vmem:[#allocation2 + $0x80] sm:$0xff]
  %v3960 = vld [vmem:[#allocation2 + $0x88] sm:$0xff]
  %v3961 = vld [vmem:[#allocation2 + $0x90] sm:$0xff]
  %v3962 = vld [vmem:[#allocation2 + $0x98] sm:$0xff]
  %v3963 = vld [vmem:[#allocation2 + $0xa0] sm:$0xff]
  %v3964 = vld [vmem:[#allocation2 + $0xa8] sm:$0xff]
  %v3965 = vld [vmem:[#allocation2 + $0xb0] sm:$0xff]
  %v3966 = vld [vmem:[#allocation2 + $0xb8] sm:$0xff]
  %v3967 = vld [vmem:[#allocation2 + $0xc0] sm:$0xff]
  %v3968 = vld [vmem:[#allocation2 + $0xc8] sm:$0xff]
  %v3969 = vld [vmem:[#allocation2 + $0xd0] sm:$0xff]
  %v3970 = vld [vmem:[#allocation2 + $0xd8] sm:$0xff]
  %v3971 = vld [vmem:[#allocation2 + $0xe0] sm:$0xff]
  %v3972 = vld [vmem:[#allocation2 + $0xe8] sm:$0xff]
  %v3973 = vld [vmem:[#allocation2 + $0xf0] sm:$0xff]
  %v3974 = vld [vmem:[#allocation2 + $0xf8] sm:$0xff]
  %v3975 = vld [vmem:[#allocation2 + $0x100] sm:$0xff]
  %v3976 = vld [vmem:[#allocation2 + $0x108] sm:$0xff]
  %v3977 = vld [vmem:[#allocation2 + $0x110] sm:$0xff]
  %v3978 = vld [vmem:[#allocation2 + $0x118] sm:$0xff]
  %v3979 = vld [vmem:[#allocation2 + $0x120] sm:$0xff]
  %v3980 = vld [vmem:[#allocation2 + $0x128] sm:$0xff]
  %v3981 = vld [vmem:[#allocation2 + $0x130] sm:$0xff]
  %v3982 = vld [vmem:[#allocation2 + $0x138] sm:$0xff]
  %v3983 = vld [vmem:[#allocation2 + $0x140] sm:$0xff]
  %v3984 = vld [vmem:[#allocation2 + $0x148] sm:$0xff]
  %v3985 = vld [vmem:[#allocation2 + $0x150] sm:$0xff]
  %v3986 = vld [vmem:[#allocation2 + $0x158] sm:$0xff]
  %v3987 = vld [vmem:[#allocation2 + $0x160] sm:$0xff]
  %v3988 = vld [vmem:[#allocation2 + $0x168] sm:$0xff]
  %v3989 = vld [vmem:[#allocation2 + $0x170] sm:$0xff]
  %v3990 = vld [vmem:[#allocation2 + $0x178] sm:$0xff]
  %v3991 = vld [vmem:[#allocation2 + $0x180] sm:$0xff]
  %v3992 = vld [vmem:[#allocation2 + $0x188] sm:$0xff]
  %v3993 = vld [vmem:[#allocation2 + $0x190] sm:$0xff]
  %v3994 = vld [vmem:[#allocation2 + $0x198] sm:$0xff]
  %v3995 = vld [vmem:[#allocation2 + $0x1a0] sm:$0xff]
  %v3996 = vld [vmem:[#allocation2 + $0x1a8] sm:$0xff]
  %v3997 = vld [vmem:[#allocation2 + $0x1b0] sm:$0xff]
  %v3998 = vld [vmem:[#allocation2 + $0x1b8] sm:$0xff]
  %v3999 = vld [vmem:[#allocation2 + $0x1c0] sm:$0xff]
  %v4000 = vld [vmem:[#allocation2 + $0x1c8] sm:$0xff]
  %v4001 = vld [vmem:[#allocation2 + $0x1d0] sm:$0xff]
  %v4002 = vld [vmem:[#allocation2 + $0x1d8] sm:$0xff]
  %v4003 = vld [vmem:[#allocation2 + $0x1e0] sm:$0xff]
  %v4004 = vld [vmem:[#allocation2 + $0x1e8] sm:$0xff]
  %v4005 = vld [vmem:[#allocation2 + $0x1f0] sm:$0xff]
  %v4006 = vld [vmem:[#allocation2 + $0x1f8] sm:$0xff]
  %v4007 = vld [vmem:[#allocation2 + $0x200] sm:$0xff]
  %v4008 = vld [vmem:[#allocation2 + $0x208] sm:$0xff]
  %v4009 = vld [vmem:[#allocation2 + $0x210] sm:$0xff]
  %v4010 = vld [vmem:[#allocation2 + $0x218] sm:$0xff]
  %v4011 = vld [vmem:[#allocation2 + $0x220] sm:$0xff]
  %v4012 = vld [vmem:[#allocation2 + $0x228] sm:$0xff]
  %v4013 = vld [vmem:[#allocation2 + $0x230] sm:$0xff]
  %v4014 = vld [vmem:[#allocation2 + $0x238] sm:$0xff]
  %v4015 = vld [vmem:[#allocation2 + $0x240] sm:$0xff]
  %v4016 = vld [vmem:[#allocation2 + $0x248] sm:$0xff]
  %v4017 = vld [vmem:[#allocation2 + $0x250] sm:$0xff]
  %v4018 = vld [vmem:[#allocation2 + $0x258] sm:$0xff]
  %v4019 = vld [vmem:[#allocation2 + $0x260] sm:$0xff]
  %v4020 = vld [vmem:[#allocation2 + $0x268] sm:$0xff]
  %v4021 = vld [vmem:[#allocation2 + $0x270] sm:$0xff]
  %v4022 = vld [vmem:[#allocation2 + $0x278] sm:$0xff]
  %v4023 = vld [vmem:[#allocation2 + $0x280] sm:$0xff]
  %v4024 = vld [vmem:[#allocation2 + $0x288] sm:$0xff]
  %v4025 = vld [vmem:[#allocation2 + $0x290] sm:$0xff]
  %v4026 = vld [vmem:[#allocation2 + $0x298] sm:$0xff]
  %v4027 = vld [vmem:[#allocation2 + $0x2a0] sm:$0xff]
  %v4028 = vld [vmem:[#allocation2 + $0x2a8] sm:$0xff]
  %v4029 = vld [vmem:[#allocation2 + $0x2b0] sm:$0xff]
  %v4030 = vld [vmem:[#allocation2 + $0x2b8] sm:$0xff]
  %v4031 = vld [vmem:[#allocation2 + $0x2c0] sm:$0xff]
  %v4032 = vld [vmem:[#allocation2 + $0x2c8] sm:$0xff]
  %v4033 = vld [vmem:[#allocation2 + $0x2d0] sm:$0xff]
  %v4034 = vld [vmem:[#allocation2 + $0x2d8] sm:$0xff]
  %v4035 = vld [vmem:[#allocation2 + $0x2e0] sm:$0xff]
  %v4036 = vld [vmem:[#allocation2 + $0x2e8] sm:$0xff]
  %v4037 = vld [vmem:[#allocation2 + $0x2f0] sm:$0xff]
  %v4038 = vld [vmem:[#allocation2 + $0x2f8] sm:$0xff]
  %v4039 = vld [vmem:[#allocation2 + $0x300] sm:$0xff]
  %v4040 = vld [vmem:[#allocation2 + $0x308] sm:$0xff]
  %v4041 = vld [vmem:[#allocation2 + $0x310] sm:$0xff]
  %v4042 = vld [vmem:[#allocation2 + $0x318] sm:$0xff]
  %v4043 = vld [vmem:[#allocation2 + $0x320] sm:$0xff]
  %v4044 = vld [vmem:[#allocation2 + $0x328] sm:$0xff]
  %v4045 = vld [vmem:[#allocation2 + $0x330] sm:$0xff]
  %v4046 = vld [vmem:[#allocation2 + $0x338] sm:$0xff]
  %v4047 = vld [vmem:[#allocation2 + $0x340] sm:$0xff]
  %v4048 = vld [vmem:[#allocation2 + $0x348] sm:$0xff]
  %v4049 = vld [vmem:[#allocation2 + $0x350] sm:$0xff]
  %v4050 = vld [vmem:[#allocation2 + $0x358] sm:$0xff]
  %v4051 = vld [vmem:[#allocation2 + $0x360] sm:$0xff]
  %v4052 = vld [vmem:[#allocation2 + $0x368] sm:$0xff]
  %v4053 = vld [vmem:[#allocation2 + $0x370] sm:$0xff]
  %v4054 = vld [vmem:[#allocation2 + $0x378] sm:$0xff]
  %v4055 = vld [vmem:[%s1] sm:$0xf]
  %v4056 = vld [vmem:[%s1 + $0x4] sm:$0xf]
  %v4057 = vld [vmem:[%s1 + $0x8] sm:$0xf]
  %v4058 = vld [vmem:[%s1 + $0xc] sm:$0xf]
  %v4059 = vld [vmem:[%s1 + $0x10] sm:$0xf]
  %v4060 = vld [vmem:[%s1 + $0x14] sm:$0xf]
  %v4061 = vld [vmem:[%s1 + $0x18] sm:$0xf]
  %v4062 = vld [vmem:[%s1 + $0x1c] sm:$0xf]
  %v4063 = vld [vmem:[%s1 + $0x20] sm:$0xf]
  %v4064 = vld [vmem:[%s1 + $0x24] sm:$0xf]
  %v4065 = vld [vmem:[%s1 + $0x28] sm:$0xf]
  %v4066 = vld [vmem:[%s1 + $0x2c] sm:$0xf]
  %v4067 = vld [vmem:[%s1 + $0x30] sm:$0xf]
  %v4068 = vld [vmem:[%s1 + $0x34] sm:$0xf]
  %v4069 = vld [vmem:[%s1 + $0x38] sm:$0xf]
  %v4070 = vld [vmem:[%s1 + $0x3c] sm:$0xf]
  %v4071 = vld [vmem:[%s1 + $0x40] sm:$0xf]
  %v4072 = vld [vmem:[%s1 + $0x44] sm:$0xf]
  %v4073 = vld [vmem:[%s1 + $0x48] sm:$0xf]
  %v4074 = vld [vmem:[%s1 + $0x4c] sm:$0xf]
  %v4075 = vld [vmem:[%s1 + $0x50] sm:$0xf]
  %v4076 = vld [vmem:[%s1 + $0x54] sm:$0xf]
  %v4077 = vld [vmem:[%s1 + $0x58] sm:$0xf]
  %v4078 = vld [vmem:[%s1 + $0x5c] sm:$0xf]
  %v4103 = vunpack.c.l.b16 %v4055
  %v4104 = vunpack.c.l.b16 %v4056
  %v4105 = vunpack.c.l.b16 %v4057
  %v4106 = vunpack.c.l.b16 %v4058
  %v4107 = vunpack.c.l.b16 %v4059
  %v4108 = vunpack.c.l.b16 %v4060
  %v4109 = vunpack.c.l.b16 %v4061
  %v4110 = vunpack.c.l.b16 %v4062
  %v4111 = vunpack.c.l.b16 %v4063
  %v4112 = vunpack.c.l.b16 %v4064
  %v4113 = vunpack.c.l.b16 %v4065
  %v4114 = vunpack.c.l.b16 %v4066
  %v4115 = vunpack.c.l.b16 %v4067
  %v4116 = vunpack.c.l.b16 %v4068
  %v4117 = vunpack.c.l.b16 %v4069
  %v4118 = vunpack.c.l.b16 %v4070
  %v4119 = vunpack.c.l.b16 %v4071
  %v4120 = vunpack.c.l.b16 %v4072
  %v4121 = vunpack.c.l.b16 %v4073
  %v4122 = vunpack.c.l.b16 %v4074
  %v4123 = vunpack.c.l.b16 %v4075
  %v4124 = vunpack.c.l.b16 %v4076
  %v4125 = vunpack.c.l.b16 %v4077
  %v4126 = vunpack.c.l.b16 %v4078
  %v4127 = vpack.c.b16 %v4104, %v4103
  %v4128 = vpack.c.b16 %v4106, %v4105
  %v4129 = vpack.c.b16 %v4108, %v4107
  %v4130 = vpack.c.b16 %v4110, %v4109
  %v4131 = vpack.c.b16 %v4112, %v4111
  %v4132 = vpack.c.b16 %v4114, %v4113
  %v4133 = vpack.c.b16 %v4116, %v4115
  %v4134 = vpack.c.b16 %v4118, %v4117
  %v4135 = vpack.c.b16 %v4120, %v4119
  %v4136 = vpack.c.b16 %v4122, %v4121
  %v4137 = vpack.c.b16 %v4124, %v4123
  %v4138 = vpack.c.b16 %v4126, %v4125
  %v4152 = vsel %vm13, %v3944, 0
  %v4155 = vsel %vm13, %v3946, 0
  %v4158 = vsel %vm13, %v3948, 0
  %v4161 = vsel %vm13, %v3950, 0
  %v4164 = vsel %vm13, %v3952, 0
  %v4167 = vsel %vm13, %v3954, 0
  %v4170 = vsel %vm13, %v3956, 0
  %v4173 = vsel %vm13, %v3958, 0
  %v4176 = vsel %vm13, %v3960, 0
  %v4179 = vsel %vm13, %v3962, 0
  %v4182 = vsel %vm13, %v3964, 0
  %v4185 = vsel %vm13, %v3966, 0
  %v4188 = vsel %vm13, %v3968, 0
  %v4191 = vsel %vm13, %v3970, 0
  %v4194 = vsel %vm13, %v3972, 0
  %v4197 = vsel %vm13, %v3974, 0
  %v4200 = vsel %vm13, %v3976, 0
  %v4203 = vsel %vm13, %v3978, 0
  %v4206 = vsel %vm13, %v3980, 0
  %v4209 = vsel %vm13, %v3982, 0
  %v4212 = vsel %vm13, %v3984, 0
  %v4215 = vsel %vm13, %v3986, 0
  %v4218 = vsel %vm13, %v3988, 0
  %v4221 = vsel %vm13, %v3990, 0
  %v4224 = vsel %vm13, %v3992, 0
  %v4227 = vsel %vm13, %v3994, 0
  %v4230 = vsel %vm13, %v3996, 0
  %v4233 = vsel %vm13, %v3998, 0
  %v4236 = vsel %vm13, %v4000, 0
  %v4239 = vsel %vm13, %v4002, 0
  %v4242 = vsel %vm13, %v4004, 0
  %v4245 = vsel %vm13, %v4006, 0
  %v4248 = vsel %vm13, %v4008, 0
  %v4251 = vsel %vm13, %v4010, 0
  %v4254 = vsel %vm13, %v4012, 0
  %v4257 = vsel %vm13, %v4014, 0
  %v4260 = vsel %vm13, %v4016, 0
  %v4263 = vsel %vm13, %v4018, 0
  %v4266 = vsel %vm13, %v4020, 0
  %v4269 = vsel %vm13, %v4022, 0
  %v4272 = vsel %vm13, %v4024, 0
  %v4275 = vsel %vm13, %v4026, 0
  %v4278 = vsel %vm13, %v4028, 0
  %v4281 = vsel %vm13, %v4030, 0
  %v4284 = vsel %vm13, %v4032, 0
  %v4287 = vsel %vm13, %v4034, 0
  %v4290 = vsel %vm13, %v4036, 0
  %v4293 = vsel %vm13, %v4038, 0
  %v4296 = vsel %vm13, %v4040, 0
  %v4299 = vsel %vm13, %v4042, 0
  %v4302 = vsel %vm13, %v4044, 0
  %v4305 = vsel %vm13, %v4046, 0
  %v4308 = vsel %vm13, %v4048, 0
  %v4311 = vsel %vm13, %v4050, 0
  %v4314 = vsel %vm13, %v4052, 0
  %v4317 = vsel %vm13, %v4054, 0
  %4319 = vmatprep.subr.bf16.mxu0 0
  %4320 = vmatpush1.bf16.msra.mxu0 %v4127
  %4321 = vmatprep.subr.bf16.mxu0 0
  %4322 = vmatpush1.bf16.msra.mxu0 %v4128
  %4323 = vmatprep.subr.bf16.mxu0 0
  %4324 = vmatpush1.bf16.msra.mxu0 %v4129
  %4325 = vmatprep.subr.bf16.mxu0 0
  %4326 = vmatpush1.bf16.msra.mxu0 %v4130
  %4327 = vmatprep.subr.bf16.mxu0 0
  %4328 = vmatpush1.bf16.msra.mxu0 %v4131
  %4329 = vmatprep.subr.bf16.mxu0 0
  %4330 = vmatpush1.bf16.msra.mxu0 %v4132
  %4331 = vmatprep.subr.bf16.mxu0 0
  %4332 = vmatpush1.bf16.msra.mxu0 %v4133
  %4333 = vmatprep.subr.bf16.mxu0 0
  %4334 = vmatpush1.bf16.msra.mxu0 %v4134
  %4335 = vmatprep.subr.bf16.mxu0 0
  %4336 = vmatpush1.bf16.msra.mxu0 %v4135
  %4337 = vmatprep.subr.bf16.mxu0 0
  %4338 = vmatpush1.bf16.msra.mxu0 %v4136
  %4339 = vmatprep.subr.bf16.mxu0 0
  %4340 = vmatpush1.bf16.msra.mxu0 %v4137
  %4341 = vmatprep.subr.bf16.mxu0 0
  %4342 = vmatpush1.bf16.msra.mxu0 %v4138
  %4343 = vmatprep.subr.bf16.mxu0 0
  %4344 = vmatpush1.bf16.msra.mxu0 0
  %4345 = vmatprep.subr.bf16.mxu0 0
  %4346 = vmatpush1.bf16.msra.mxu0 0
  %4347 = vmatprep.subr.bf16.mxu0 0
  %4348 = vmatpush1.bf16.msra.mxu0 0
  %4349 = vmatprep.subr.bf16.mxu0 0
  %4350 = vmatpush1.bf16.msra.mxu0 0
  %4351 = vmatprep.mubr.bf16.mxu0 %v4152
  %4352 = vmatmul.mubr.bf16.gmra.mrb[0].mxu0 %v3943
  %v4353 = vpop.f32.mrb[0].mxu0
  %v4354 = vadd.f32 0.0, %v4353
  %v4355 = vpop.f32.mrb[0].mxu0
  %v4356 = vpop.f32.mrb[0].mxu0
  %v4357 = vadd.f32 0.0, %v4356
  %v4358 = vpop.f32.mrb[0].mxu0
  %4359 = vmatprep.mubr.bf16.mxu0 %v4155
  %4360 = vmatmul.mubr.bf16.gmra.mrb[0].mxu0 %v3945
  %v4361 = vpop.f32.mrb[0].mxu0
  %v4362 = vadd.f32 0.0, %v4361
  %v4363 = vpop.f32.mrb[0].mxu0
  %v4364 = vpop.f32.mrb[0].mxu0
  %v4365 = vadd.f32 0.0, %v4364
  %v4366 = vpop.f32.mrb[0].mxu0
  %4367 = vmatprep.mubr.bf16.mxu0 %v4158
  %4368 = vmatmul.mubr.bf16.gmra.mrb[0].mxu0 %v3947
  %v4369 = vpop.f32.mrb[0].mxu0
  %v4370 = vadd.f32 0.0, %v4369
  %v4371 = vpop.f32.mrb[0].mxu0
  %v4372 = vpop.f32.mrb[0].mxu0
  %v4373 = vadd.f32 0.0, %v4372
  %v4374 = vpop.f32.mrb[0].mxu0
  %4375 = vmatprep.mubr.bf16.mxu0 %v4161
  %4376 = vmatmul.mubr.bf16.gmra.mrb[0].mxu0 %v3949
  %v4377 = vpop.f32.mrb[0].mxu0
  %v4378 = vadd.f32 0.0, %v4377
  %v4379 = vpop.f32.mrb[0].mxu0
  %v4380 = vpop.f32.mrb[0].mxu0
  %v4381 = vadd.f32 0.0, %v4380
  %v4382 = vpop.f32.mrb[0].mxu0
  %4383 = vmatprep.mubr.bf16.mxu0 %v4164
  %4384 = vmatmul.mubr.bf16.gmra.mrb[0].mxu0 %v3951
  %v4385 = vpop.f32.mrb[0].mxu0
  %v4386 = vadd.f32 0.0, %v4385
  %v4387 = vpop.f32.mrb[0].mxu0
  %v4388 = vpop.f32.mrb[0].mxu0
  %v4389 = vadd.f32 0.0, %v4388
  %v4390 = vpop.f32.mrb[0].mxu0
  %4391 = vmatprep.mubr.bf16.mxu0 %v4167
  %4392 = vmatmul.mubr.bf16.gmra.mrb[0].mxu0 %v3953
  %v4393 = vpop.f32.mrb[0].mxu0
  %v4394 = vadd.f32 0.0, %v4393
  %v4395 = vpop.f32.mrb[0].mxu0
  %v4396 = vpop.f32.mrb[0].mxu0
  %v4397 = vadd.f32 0.0, %v4396
  %v4398 = vpop.f32.mrb[0].mxu0
  %4399 = vmatprep.mubr.bf16.mxu0 %v4170
  %4400 = vmatmul.mubr.bf16.gmra.mrb[0].mxu0 %v3955
  %v4401 = vpop.f32.mrb[0].mxu0
  %v4402 = vadd.f32 0.0, %v4401
  %v4403 = vpop.f32.mrb[0].mxu0
  %v4404 = vpop.f32.mrb[0].mxu0
  %v4405 = vadd.f32 0.0, %v4404
  %v4406 = vpop.f32.mrb[0].mxu0
  %4407 = vmatprep.mubr.bf16.mxu0 %v4173
  %4408 = vmatmul.mubr.bf16.gmra.mrb[0].mxu0 %v3957
  %v4409 = vpop.f32.mrb[0].mxu0
  %v4410 = vadd.f32 0.0, %v4409
  %v4411 = vpop.f32.mrb[0].mxu0
  %v4412 = vpop.f32.mrb[0].mxu0
  %v4413 = vadd.f32 0.0, %v4412
  %v4414 = vpop.f32.mrb[0].mxu0
  %4415 = vmatprep.mubr.bf16.mxu0 %v4176
  %4416 = vmatmul.mubr.bf16.gmra.mrb[0].mxu0 %v3959
  %v4417 = vpop.f32.mrb[0].mxu0
  %v4418 = vadd.f32 0.0, %v4417
  %v4419 = vpop.f32.mrb[0].mxu0
  %v4420 = vpop.f32.mrb[0].mxu0
  %v4421 = vadd.f32 0.0, %v4420
  %v4422 = vpop.f32.mrb[0].mxu0
  %4423 = vmatprep.mubr.bf16.mxu0 %v4179
  %4424 = vmatmul.mubr.bf16.gmra.mrb[0].mxu0 %v3961
  %v4425 = vpop.f32.mrb[0].mxu0
  %v4426 = vadd.f32 0.0, %v4425
  %v4427 = vpop.f32.mrb[0].mxu0
  %v4428 = vpop.f32.mrb[0].mxu0
  %v4429 = vadd.f32 0.0, %v4428
  %v4430 = vpop.f32.mrb[0].mxu0
  %4431 = vmatprep.mubr.bf16.mxu0 %v4182
  %4432 = vmatmul.mubr.bf16.gmra.mrb[0].mxu0 %v3963
  %v4433 = vpop.f32.mrb[0].mxu0
  %v4434 = vadd.f32 0.0, %v4433
  %v4435 = vpop.f32.mrb[0].mxu0
  %v4436 = vpop.f32.mrb[0].mxu0
  %v4437 = vadd.f32 0.0, %v4436
  %v4438 = vpop.f32.mrb[0].mxu0
  %4439 = vmatprep.mubr.bf16.mxu0 %v4185
  %4440 = vmatmul.mubr.bf16.gmra.mrb[0].mxu0 %v3965
  %v4441 = vpop.f32.mrb[0].mxu0
  %v4442 = vadd.f32 0.0, %v4441
  %v4443 = vpop.f32.mrb[0].mxu0
  %v4444 = vpop.f32.mrb[0].mxu0
  %v4445 = vadd.f32 0.0, %v4444
  %v4446 = vpop.f32.mrb[0].mxu0
  %4447 = vmatprep.mubr.bf16.mxu0 %v4188
  %4448 = vmatmul.mubr.bf16.gmra.mrb[0].mxu0 %v3967
  %v4449 = vpop.f32.mrb[0].mxu0
  %v4450 = vadd.f32 0.0, %v4449
  %v4451 = vpop.f32.mrb[0].mxu0
  %v4452 = vpop.f32.mrb[0].mxu0
  %v4453 = vadd.f32 0.0, %v4452
  %v4454 = vpop.f32.mrb[0].mxu0
  %4455 = vmatprep.mubr.bf16.mxu0 %v4191
  %4456 = vmatmul.mubr.bf16.gmra.mrb[0].mxu0 %v3969
  %v4457 = vpop.f32.mrb[0].mxu0
  %v4458 = vadd.f32 0.0, %v4457
  %v4459 = vpop.f32.mrb[0].mxu0
  %v4460 = vpop.f32.mrb[0].mxu0
  %v4461 = vadd.f32 0.0, %v4460
  %v4462 = vpop.f32.mrb[0].mxu0
  %4463 = vmatprep.mubr.bf16.mxu0 %v4194
  %4464 = vmatmul.mubr.bf16.gmra.mrb[0].mxu0 %v3971
  %v4465 = vpop.f32.mrb[0].mxu0
  %v4466 = vadd.f32 0.0, %v4465
  %v4467 = vpop.f32.mrb[0].mxu0
  %v4468 = vpop.f32.mrb[0].mxu0
  %v4469 = vadd.f32 0.0, %v4468
  %v4470 = vpop.f32.mrb[0].mxu0
  %4471 = vmatprep.mubr.bf16.mxu0 %v4197
  %4472 = vmatmul.mubr.bf16.gmra.mrb[0].mxu0 %v3973
  %v4473 = vpop.f32.mrb[0].mxu0
  %v4474 = vadd.f32 0.0, %v4473
  %v4475 = vpop.f32.mrb[0].mxu0
  %v4476 = vpop.f32.mrb[0].mxu0
  %v4477 = vadd.f32 0.0, %v4476
  %v4478 = vpop.f32.mrb[0].mxu0
  %4479 = vmatprep.mubr.bf16.mxu0 %v4200
  %4480 = vmatmul.mubr.bf16.gmra.mrb[0].mxu0 %v3975
  %v4481 = vpop.f32.mrb[0].mxu0
  %v4482 = vadd.f32 0.0, %v4481
  %v4483 = vpop.f32.mrb[0].mxu0
  %v4484 = vpop.f32.mrb[0].mxu0
  %v4485 = vadd.f32 0.0, %v4484
  %v4486 = vpop.f32.mrb[0].mxu0
  %4487 = vmatprep.mubr.bf16.mxu0 %v4203
  %4488 = vmatmul.mubr.bf16.gmra.mrb[0].mxu0 %v3977
  %v4489 = vpop.f32.mrb[0].mxu0
  %v4490 = vadd.f32 0.0, %v4489
  %v4491 = vpop.f32.mrb[0].mxu0
  %v4492 = vpop.f32.mrb[0].mxu0
  %v4493 = vadd.f32 0.0, %v4492
  %v4494 = vpop.f32.mrb[0].mxu0
  %4495 = vmatprep.mubr.bf16.mxu0 %v4206
  %4496 = vmatmul.mubr.bf16.gmra.mrb[0].mxu0 %v3979
  %v4497 = vpop.f32.mrb[0].mxu0
  %v4498 = vadd.f32 0.0, %v4497
  %v4499 = vpop.f32.mrb[0].mxu0
  %v4500 = vpop.f32.mrb[0].mxu0
  %v4501 = vadd.f32 0.0, %v4500
  %v4502 = vpop.f32.mrb[0].mxu0
  %4503 = vmatprep.mubr.bf16.mxu0 %v4209
  %4504 = vmatmul.mubr.bf16.gmra.mrb[0].mxu0 %v3981
  %v4505 = vpop.f32.mrb[0].mxu0
  %v4506 = vadd.f32 0.0, %v4505
  %v4507 = vpop.f32.mrb[0].mxu0
  %v4508 = vpop.f32.mrb[0].mxu0
  %v4509 = vadd.f32 0.0, %v4508
  %v4510 = vpop.f32.mrb[0].mxu0
  %4511 = vmatprep.mubr.bf16.mxu0 %v4212
  %4512 = vmatmul.mubr.bf16.gmra.mrb[0].mxu0 %v3983
  %v4513 = vpop.f32.mrb[0].mxu0
  %v4514 = vadd.f32 0.0, %v4513
  %v4515 = vpop.f32.mrb[0].mxu0
  %v4516 = vpop.f32.mrb[0].mxu0
  %v4517 = vadd.f32 0.0, %v4516
  %v4518 = vpop.f32.mrb[0].mxu0
  %4519 = vmatprep.mubr.bf16.mxu0 %v4215
  %4520 = vmatmul.mubr.bf16.gmra.mrb[0].mxu0 %v3985
  %v4521 = vpop.f32.mrb[0].mxu0
  %v4522 = vadd.f32 0.0, %v4521
  %v4523 = vpop.f32.mrb[0].mxu0
  %v4524 = vpop.f32.mrb[0].mxu0
  %v4525 = vadd.f32 0.0, %v4524
  %v4526 = vpop.f32.mrb[0].mxu0
  %4527 = vmatprep.mubr.bf16.mxu0 %v4218
  %4528 = vmatmul.mubr.bf16.gmra.mrb[0].mxu0 %v3987
  %v4529 = vpop.f32.mrb[0].mxu0
  %v4530 = vadd.f32 0.0, %v4529
  %v4531 = vpop.f32.mrb[0].mxu0
  %v4532 = vpop.f32.mrb[0].mxu0
  %v4533 = vadd.f32 0.0, %v4532
  %v4534 = vpop.f32.mrb[0].mxu0
  %4535 = vmatprep.mubr.bf16.mxu0 %v4221
  %4536 = vmatmul.mubr.bf16.gmra.mrb[0].mxu0 %v3989
  %v4537 = vpop.f32.mrb[0].mxu0
  %v4538 = vadd.f32 0.0, %v4537
  %v4539 = vpop.f32.mrb[0].mxu0
  %v4540 = vpop.f32.mrb[0].mxu0
  %v4541 = vadd.f32 0.0, %v4540
  %v4542 = vpop.f32.mrb[0].mxu0
  %4543 = vmatprep.mubr.bf16.mxu0 %v4224
  %4544 = vmatmul.mubr.bf16.gmra.mrb[0].mxu0 %v3991
  %v4545 = vpop.f32.mrb[0].mxu0
  %v4546 = vadd.f32 0.0, %v4545
  %v4547 = vpop.f32.mrb[0].mxu0
  %v4548 = vpop.f32.mrb[0].mxu0
  %v4549 = vadd.f32 0.0, %v4548
  %v4550 = vpop.f32.mrb[0].mxu0
  %4551 = vmatprep.mubr.bf16.mxu0 %v4227
  %4552 = vmatmul.mubr.bf16.gmra.mrb[0].mxu0 %v3993
  %v4553 = vpop.f32.mrb[0].mxu0
  %v4554 = vadd.f32 0.0, %v4553
  %v4555 = vpop.f32.mrb[0].mxu0
  %v4556 = vpop.f32.mrb[0].mxu0
  %v4557 = vadd.f32 0.0, %v4556
  %v4558 = vpop.f32.mrb[0].mxu0
  %4559 = vmatprep.mubr.bf16.mxu0 %v4230
  %4560 = vmatmul.mubr.bf16.gmra.mrb[0].mxu0 %v3995
  %v4561 = vpop.f32.mrb[0].mxu0
  %v4562 = vadd.f32 0.0, %v4561
  %v4563 = vpop.f32.mrb[0].mxu0
  %v4564 = vpop.f32.mrb[0].mxu0
  %v4565 = vadd.f32 0.0, %v4564
  %v4566 = vpop.f32.mrb[0].mxu0
  %4567 = vmatprep.mubr.bf16.mxu0 %v4233
  %4568 = vmatmul.mubr.bf16.gmra.mrb[0].mxu0 %v3997
  %v4569 = vpop.f32.mrb[0].mxu0
  %v4570 = vadd.f32 0.0, %v4569
  %v4571 = vpop.f32.mrb[0].mxu0
  %v4572 = vpop.f32.mrb[0].mxu0
  %v4573 = vadd.f32 0.0, %v4572
  %v4574 = vpop.f32.mrb[0].mxu0
  %4575 = vmatprep.mubr.bf16.mxu0 %v4236
  %4576 = vmatmul.mubr.bf16.gmra.mrb[0].mxu0 %v3999
  %v4577 = vpop.f32.mrb[0].mxu0
  %v4578 = vadd.f32 0.0, %v4577
  %v4579 = vpop.f32.mrb[0].mxu0
  %v4580 = vpop.f32.mrb[0].mxu0
  %v4581 = vadd.f32 0.0, %v4580
  %v4582 = vpop.f32.mrb[0].mxu0
  %4583 = vmatprep.mubr.bf16.mxu0 %v4239
  %4584 = vmatmul.mubr.bf16.gmra.mrb[0].mxu0 %v4001
  %v4585 = vpop.f32.mrb[0].mxu0
  %v4586 = vadd.f32 0.0, %v4585
  %v4587 = vpop.f32.mrb[0].mxu0
  %v4588 = vpop.f32.mrb[0].mxu0
  %v4589 = vadd.f32 0.0, %v4588
  %v4590 = vpop.f32.mrb[0].mxu0
  %4591 = vmatprep.mubr.bf16.mxu0 %v4242
  %4592 = vmatmul.mubr.bf16.gmra.mrb[0].mxu0 %v4003
  %v4593 = vpop.f32.mrb[0].mxu0
  %v4594 = vadd.f32 0.0, %v4593
  %v4595 = vpop.f32.mrb[0].mxu0
  %v4596 = vpop.f32.mrb[0].mxu0
  %v4597 = vadd.f32 0.0, %v4596
  %v4598 = vpop.f32.mrb[0].mxu0
  %4599 = vmatprep.mubr.bf16.mxu0 %v4245
  %4600 = vmatmul.mubr.bf16.gmra.mrb[0].mxu0 %v4005
  %v4601 = vpop.f32.mrb[0].mxu0
  %v4602 = vadd.f32 0.0, %v4601
  %v4603 = vpop.f32.mrb[0].mxu0
  %v4604 = vpop.f32.mrb[0].mxu0
  %v4605 = vadd.f32 0.0, %v4604
  %v4606 = vpop.f32.mrb[0].mxu0
  %4607 = vmatprep.mubr.bf16.mxu0 %v4248
  %4608 = vmatmul.mubr.bf16.gmra.mrb[0].mxu0 %v4007
  %v4609 = vpop.f32.mrb[0].mxu0
  %v4610 = vadd.f32 0.0, %v4609
  %v4611 = vpop.f32.mrb[0].mxu0
  %v4612 = vpop.f32.mrb[0].mxu0
  %v4613 = vadd.f32 0.0, %v4612
  %v4614 = vpop.f32.mrb[0].mxu0
  %4615 = vmatprep.mubr.bf16.mxu0 %v4251
  %4616 = vmatmul.mubr.bf16.gmra.mrb[0].mxu0 %v4009
  %v4617 = vpop.f32.mrb[0].mxu0
  %v4618 = vadd.f32 0.0, %v4617
  %v4619 = vpop.f32.mrb[0].mxu0
  %v4620 = vpop.f32.mrb[0].mxu0
  %v4621 = vadd.f32 0.0, %v4620
  %v4622 = vpop.f32.mrb[0].mxu0
  %4623 = vmatprep.mubr.bf16.mxu0 %v4254
  %4624 = vmatmul.mubr.bf16.gmra.mrb[0].mxu0 %v4011
  %v4625 = vpop.f32.mrb[0].mxu0
  %v4626 = vadd.f32 0.0, %v4625
  %v4627 = vpop.f32.mrb[0].mxu0
  %v4628 = vpop.f32.mrb[0].mxu0
  %v4629 = vadd.f32 0.0, %v4628
  %v4630 = vpop.f32.mrb[0].mxu0
  %4631 = vmatprep.mubr.bf16.mxu0 %v4257
  %4632 = vmatmul.mubr.bf16.gmra.mrb[0].mxu0 %v4013
  %v4633 = vpop.f32.mrb[0].mxu0
  %v4634 = vadd.f32 0.0, %v4633
  %v4635 = vpop.f32.mrb[0].mxu0
  %v4636 = vpop.f32.mrb[0].mxu0
  %v4637 = vadd.f32 0.0, %v4636
  %v4638 = vpop.f32.mrb[0].mxu0
  %4639 = vmatprep.mubr.bf16.mxu0 %v4260
  %4640 = vmatmul.mubr.bf16.gmra.mrb[0].mxu0 %v4015
  %v4641 = vpop.f32.mrb[0].mxu0
  %v4642 = vadd.f32 0.0, %v4641
  %v4643 = vpop.f32.mrb[0].mxu0
  %v4644 = vpop.f32.mrb[0].mxu0
  %v4645 = vadd.f32 0.0, %v4644
  %v4646 = vpop.f32.mrb[0].mxu0
  %4647 = vmatprep.mubr.bf16.mxu0 %v4263
  %4648 = vmatmul.mubr.bf16.gmra.mrb[0].mxu0 %v4017
  %v4649 = vpop.f32.mrb[0].mxu0
  %v4650 = vadd.f32 0.0, %v4649
  %v4651 = vpop.f32.mrb[0].mxu0
  %v4652 = vpop.f32.mrb[0].mxu0
  %v4653 = vadd.f32 0.0, %v4652
  %v4654 = vpop.f32.mrb[0].mxu0
  %4655 = vmatprep.mubr.bf16.mxu0 %v4266
  %4656 = vmatmul.mubr.bf16.gmra.mrb[0].mxu0 %v4019
  %v4657 = vpop.f32.mrb[0].mxu0
  %v4658 = vadd.f32 0.0, %v4657
  %v4659 = vpop.f32.mrb[0].mxu0
  %v4660 = vpop.f32.mrb[0].mxu0
  %v4661 = vadd.f32 0.0, %v4660
  %v4662 = vpop.f32.mrb[0].mxu0
  %4663 = vmatprep.mubr.bf16.mxu0 %v4269
  %4664 = vmatmul.mubr.bf16.gmra.mrb[0].mxu0 %v4021
  %v4665 = vpop.f32.mrb[0].mxu0
  %v4666 = vadd.f32 0.0, %v4665
  %v4667 = vpop.f32.mrb[0].mxu0
  %v4668 = vpop.f32.mrb[0].mxu0
  %v4669 = vadd.f32 0.0, %v4668
  %v4670 = vpop.f32.mrb[0].mxu0
  %4671 = vmatprep.mubr.bf16.mxu0 %v4272
  %4672 = vmatmul.mubr.bf16.gmra.mrb[0].mxu0 %v4023
  %v4673 = vpop.f32.mrb[0].mxu0
  %v4674 = vadd.f32 0.0, %v4673
  %v4675 = vpop.f32.mrb[0].mxu0
  %v4676 = vpop.f32.mrb[0].mxu0
  %v4677 = vadd.f32 0.0, %v4676
  %v4678 = vpop.f32.mrb[0].mxu0
  %4679 = vmatprep.mubr.bf16.mxu0 %v4275
  %4680 = vmatmul.mubr.bf16.gmra.mrb[0].mxu0 %v4025
  %v4681 = vpop.f32.mrb[0].mxu0
  %v4682 = vadd.f32 0.0, %v4681
  %v4683 = vpop.f32.mrb[0].mxu0
  %v4684 = vpop.f32.mrb[0].mxu0
  %v4685 = vadd.f32 0.0, %v4684
  %v4686 = vpop.f32.mrb[0].mxu0
  %4687 = vmatprep.mubr.bf16.mxu0 %v4278
  %4688 = vmatmul.mubr.bf16.gmra.mrb[0].mxu0 %v4027
  %v4689 = vpop.f32.mrb[0].mxu0
  %v4690 = vadd.f32 0.0, %v4689
  %v4691 = vpop.f32.mrb[0].mxu0
  %v4692 = vpop.f32.mrb[0].mxu0
  %v4693 = vadd.f32 0.0, %v4692
  %v4694 = vpop.f32.mrb[0].mxu0
  %4695 = vmatprep.mubr.bf16.mxu0 %v4281
  %4696 = vmatmul.mubr.bf16.gmra.mrb[0].mxu0 %v4029
  %v4697 = vpop.f32.mrb[0].mxu0
  %v4698 = vadd.f32 0.0, %v4697
  %v4699 = vpop.f32.mrb[0].mxu0
  %v4700 = vpop.f32.mrb[0].mxu0
  %v4701 = vadd.f32 0.0, %v4700
  %v4702 = vpop.f32.mrb[0].mxu0
  %4703 = vmatprep.mubr.bf16.mxu0 %v4284
  %4704 = vmatmul.mubr.bf16.gmra.mrb[0].mxu0 %v4031
  %v4705 = vpop.f32.mrb[0].mxu0
  %v4706 = vadd.f32 0.0, %v4705
  %v4707 = vpop.f32.mrb[0].mxu0
  %v4708 = vpop.f32.mrb[0].mxu0
  %v4709 = vadd.f32 0.0, %v4708
  %v4710 = vpop.f32.mrb[0].mxu0
  %4711 = vmatprep.mubr.bf16.mxu0 %v4287
  %4712 = vmatmul.mubr.bf16.gmra.mrb[0].mxu0 %v4033
  %v4713 = vpop.f32.mrb[0].mxu0
  %v4714 = vadd.f32 0.0, %v4713
  %v4715 = vpop.f32.mrb[0].mxu0
  %v4716 = vpop.f32.mrb[0].mxu0
  %v4717 = vadd.f32 0.0, %v4716
  %v4718 = vpop.f32.mrb[0].mxu0
  %4719 = vmatprep.mubr.bf16.mxu0 %v4290
  %4720 = vmatmul.mubr.bf16.gmra.mrb[0].mxu0 %v4035
  %v4721 = vpop.f32.mrb[0].mxu0
  %v4722 = vadd.f32 0.0, %v4721
  %v4723 = vpop.f32.mrb[0].mxu0
  %v4724 = vpop.f32.mrb[0].mxu0
  %v4725 = vadd.f32 0.0, %v4724
  %v4726 = vpop.f32.mrb[0].mxu0
  %4727 = vmatprep.mubr.bf16.mxu0 %v4293
  %4728 = vmatmul.mubr.bf16.gmra.mrb[0].mxu0 %v4037
  %v4729 = vpop.f32.mrb[0].mxu0
  %v4730 = vadd.f32 0.0, %v4729
  %v4731 = vpop.f32.mrb[0].mxu0
  %v4732 = vpop.f32.mrb[0].mxu0
  %v4733 = vadd.f32 0.0, %v4732
  %v4734 = vpop.f32.mrb[0].mxu0
  %4735 = vmatprep.mubr.bf16.mxu0 %v4296
  %4736 = vmatmul.mubr.bf16.gmra.mrb[0].mxu0 %v4039
  %v4737 = vpop.f32.mrb[0].mxu0
  %v4738 = vadd.f32 0.0, %v4737
  %v4739 = vpop.f32.mrb[0].mxu0
  %v4740 = vpop.f32.mrb[0].mxu0
  %v4741 = vadd.f32 0.0, %v4740
  %v4742 = vpop.f32.mrb[0].mxu0
  %4743 = vmatprep.mubr.bf16.mxu0 %v4299
  %4744 = vmatmul.mubr.bf16.gmra.mrb[0].mxu0 %v4041
  %v4745 = vpop.f32.mrb[0].mxu0
  %v4746 = vadd.f32 0.0, %v4745
  %v4747 = vpop.f32.mrb[0].mxu0
  %v4748 = vpop.f32.mrb[0].mxu0
  %v4749 = vadd.f32 0.0, %v4748
  %v4750 = vpop.f32.mrb[0].mxu0
  %4751 = vmatprep.mubr.bf16.mxu0 %v4302
  %4752 = vmatmul.mubr.bf16.gmra.mrb[0].mxu0 %v4043
  %v4753 = vpop.f32.mrb[0].mxu0
  %v4754 = vadd.f32 0.0, %v4753
  %v4755 = vpop.f32.mrb[0].mxu0
  %v4756 = vpop.f32.mrb[0].mxu0
  %v4757 = vadd.f32 0.0, %v4756
  %v4758 = vpop.f32.mrb[0].mxu0
  %4759 = vmatprep.mubr.bf16.mxu0 %v4305
  %4760 = vmatmul.mubr.bf16.gmra.mrb[0].mxu0 %v4045
  %v4761 = vpop.f32.mrb[0].mxu0
  %v4762 = vadd.f32 0.0, %v4761
  %v4763 = vpop.f32.mrb[0].mxu0
  %v4764 = vpop.f32.mrb[0].mxu0
  %v4765 = vadd.f32 0.0, %v4764
  %v4766 = vpop.f32.mrb[0].mxu0
  %4767 = vmatprep.mubr.bf16.mxu0 %v4308
  %4768 = vmatmul.mubr.bf16.gmra.mrb[0].mxu0 %v4047
  %v4769 = vpop.f32.mrb[0].mxu0
  %v4770 = vadd.f32 0.0, %v4769
  %v4771 = vpop.f32.mrb[0].mxu0
  %v4772 = vpop.f32.mrb[0].mxu0
  %v4773 = vadd.f32 0.0, %v4772
  %v4774 = vpop.f32.mrb[0].mxu0
  %4775 = vmatprep.mubr.bf16.mxu0 %v4311
  %4776 = vmatmul.mubr.bf16.gmra.mrb[0].mxu0 %v4049
  %v4777 = vpop.f32.mrb[0].mxu0
  %v4778 = vadd.f32 0.0, %v4777
  %v4779 = vpop.f32.mrb[0].mxu0
  %v4780 = vpop.f32.mrb[0].mxu0
  %v4781 = vadd.f32 0.0, %v4780
  %v4782 = vpop.f32.mrb[0].mxu0
  %4783 = vmatprep.mubr.bf16.mxu0 %v4314
  %4784 = vmatmul.mubr.bf16.gmra.mrb[0].mxu0 %v4051
  %v4785 = vpop.f32.mrb[0].mxu0
  %v4786 = vadd.f32 0.0, %v4785
  %v4787 = vpop.f32.mrb[0].mxu0
  %v4788 = vpop.f32.mrb[0].mxu0
  %v4789 = vadd.f32 0.0, %v4788
  %v4790 = vpop.f32.mrb[0].mxu0
  %4791 = vmatprep.mubr.bf16.mxu0 %v4317
  %4792 = vmatmul.mubr.bf16.gmra.mrb[0].mxu0 %v4053
  %v4793 = vpop.f32.mrb[0].mxu0
  %v4794 = vadd.f32 0.0, %v4793
  %v4795 = vpop.f32.mrb[0].mxu0
  %v4796 = vpop.f32.mrb[0].mxu0
  %v4797 = vadd.f32 0.0, %v4796
  %v4798 = vpop.f32.mrb[0].mxu0
  %4799 = vdwg.mxu0
  %4800 = vst [vmem:[%s2] sm:$0xff] %v4354
  %4801 = vst [vmem:[%s2 + $0x8] sm:$0xff] %v4357
  %4802 = vst [vmem:[%s2 + $0x10] sm:$0xff] %v4362
  %4803 = vst [vmem:[%s2 + $0x18] sm:$0xff] %v4365
  %4804 = vst [vmem:[%s2 + $0x20] sm:$0xff] %v4370
  %4805 = vst [vmem:[%s2 + $0x28] sm:$0xff] %v4373
  %4806 = vst [vmem:[%s2 + $0x30] sm:$0xff] %v4378
  %4807 = vst [vmem:[%s2 + $0x38] sm:$0xff] %v4381
  %4808 = vst [vmem:[%s2 + $0x40] sm:$0xff] %v4386
  %4809 = vst [vmem:[%s2 + $0x48] sm:$0xff] %v4389
  %4810 = vst [vmem:[%s2 + $0x50] sm:$0xff] %v4394
  %4811 = vst [vmem:[%s2 + $0x58] sm:$0xff] %v4397
  %4812 = vst [vmem:[%s2 + $0x60] sm:$0xff] %v4402
  %4813 = vst [vmem:[%s2 + $0x68] sm:$0xff] %v4405
  %4814 = vst [vmem:[%s2 + $0x70] sm:$0xff] %v4410
  %4815 = vst [vmem:[%s2 + $0x78] sm:$0xff] %v4413
  %4816 = vst [vmem:[%s2 + $0x80] sm:$0xff] %v4418
  %4817 = vst [vmem:[%s2 + $0x88] sm:$0xff] %v4421
  %4818 = vst [vmem:[%s2 + $0x90] sm:$0xff] %v4426
  %4819 = vst [vmem:[%s2 + $0x98] sm:$0xff] %v4429
  %4820 = vst [vmem:[%s2 + $0xa0] sm:$0xff] %v4434
  %4821 = vst [vmem:[%s2 + $0xa8] sm:$0xff] %v4437
  %4822 = vst [vmem:[%s2 + $0xb0] sm:$0xff] %v4442
  %4823 = vst [vmem:[%s2 + $0xb8] sm:$0xff] %v4445
  %4824 = vst [vmem:[%s2 + $0xc0] sm:$0xff] %v4450
  %4825 = vst [vmem:[%s2 + $0xc8] sm:$0xff] %v4453
  %4826 = vst [vmem:[%s2 + $0xd0] sm:$0xff] %v4458
  %4827 = vst [vmem:[%s2 + $0xd8] sm:$0xff] %v4461
  %4828 = vst [vmem:[%s2 + $0xe0] sm:$0xff] %v4466
  %4829 = vst [vmem:[%s2 + $0xe8] sm:$0xff] %v4469
  %4830 = vst [vmem:[%s2 + $0xf0] sm:$0xff] %v4474
  %4831 = vst [vmem:[%s2 + $0xf8] sm:$0xff] %v4477
  %4832 = vst [vmem:[%s2 + $0x100] sm:$0xff] %v4482
  %4833 = vst [vmem:[%s2 + $0x108] sm:$0xff] %v4485
  %4834 = vst [vmem:[%s2 + $0x110] sm:$0xff] %v4490
  %4835 = vst [vmem:[%s2 + $0x118] sm:$0xff] %v4493
  %4836 = vst [vmem:[%s2 + $0x120] sm:$0xff] %v4498
  %4837 = vst [vmem:[%s2 + $0x128] sm:$0xff] %v4501
  %4838 = vst [vmem:[%s2 + $0x130] sm:$0xff] %v4506
  %4839 = vst [vmem:[%s2 + $0x138] sm:$0xff] %v4509
  %4840 = vst [vmem:[%s2 + $0x140] sm:$0xff] %v4514
  %4841 = vst [vmem:[%s2 + $0x148] sm:$0xff] %v4517
  %4842 = vst [vmem:[%s2 + $0x150] sm:$0xff] %v4522
  %4843 = vst [vmem:[%s2 + $0x158] sm:$0xff] %v4525
  %4844 = vst [vmem:[%s2 + $0x160] sm:$0xff] %v4530
  %4845 = vst [vmem:[%s2 + $0x168] sm:$0xff] %v4533
  %4846 = vst [vmem:[%s2 + $0x170] sm:$0xff] %v4538
  %4847 = vst [vmem:[%s2 + $0x178] sm:$0xff] %v4541
  %4848 = vst [vmem:[%s2 + $0x180] sm:$0xff] %v4546
  %4849 = vst [vmem:[%s2 + $0x188] sm:$0xff] %v4549
  %4850 = vst [vmem:[%s2 + $0x190] sm:$0xff] %v4554
  %4851 = vst [vmem:[%s2 + $0x198] sm:$0xff] %v4557
  %4852 = vst [vmem:[%s2 + $0x1a0] sm:$0xff] %v4562
  %4853 = vst [vmem:[%s2 + $0x1a8] sm:$0xff] %v4565
  %4854 = vst [vmem:[%s2 + $0x1b0] sm:$0xff] %v4570
  %4855 = vst [vmem:[%s2 + $0x1b8] sm:$0xff] %v4573
  %4856 = vst [vmem:[%s2 + $0x1c0] sm:$0xff] %v4578
  %4857 = vst [vmem:[%s2 + $0x1c8] sm:$0xff] %v4581
  %4858 = vst [vmem:[%s2 + $0x1d0] sm:$0xff] %v4586
  %4859 = vst [vmem:[%s2 + $0x1d8] sm:$0xff] %v4589
  %4860 = vst [vmem:[%s2 + $0x1e0] sm:$0xff] %v4594
  %4861 = vst [vmem:[%s2 + $0x1e8] sm:$0xff] %v4597
  %4862 = vst [vmem:[%s2 + $0x1f0] sm:$0xff] %v4602
  %4863 = vst [vmem:[%s2 + $0x1f8] sm:$0xff] %v4605
  %4864 = vst [vmem:[%s2 + $0x200] sm:$0xff] %v4610
  %4865 = vst [vmem:[%s2 + $0x208] sm:$0xff] %v4613
  %4866 = vst [vmem:[%s2 + $0x210] sm:$0xff] %v4618
  %4867 = vst [vmem:[%s2 + $0x218] sm:$0xff] %v4621
  %4868 = vst [vmem:[%s2 + $0x220] sm:$0xff] %v4626
  %4869 = vst [vmem:[%s2 + $0x228] sm:$0xff] %v4629
  %4870 = vst [vmem:[%s2 + $0x230] sm:$0xff] %v4634
  %4871 = vst [vmem:[%s2 + $0x238] sm:$0xff] %v4637
  %4872 = vst [vmem:[%s2 + $0x240] sm:$0xff] %v4642
  %4873 = vst [vmem:[%s2 + $0x248] sm:$0xff] %v4645
  %4874 = vst [vmem:[%s2 + $0x250] sm:$0xff] %v4650
  %4875 = vst [vmem:[%s2 + $0x258] sm:$0xff] %v4653
  %4876 = vst [vmem:[%s2 + $0x260] sm:$0xff] %v4658
  %4877 = vst [vmem:[%s2 + $0x268] sm:$0xff] %v4661
  %4878 = vst [vmem:[%s2 + $0x270] sm:$0xff] %v4666
  %4879 = vst [vmem:[%s2 + $0x278] sm:$0xff] %v4669
  %4880 = vst [vmem:[%s2 + $0x280] sm:$0xff] %v4674
  %4881 = vst [vmem:[%s2 + $0x288] sm:$0xff] %v4677
  %4882 = vst [vmem:[%s2 + $0x290] sm:$0xff] %v4682
  %4883 = vst [vmem:[%s2 + $0x298] sm:$0xff] %v4685
  %4884 = vst [vmem:[%s2 + $0x2a0] sm:$0xff] %v4690
  %4885 = vst [vmem:[%s2 + $0x2a8] sm:$0xff] %v4693
  %4886 = vst [vmem:[%s2 + $0x2b0] sm:$0xff] %v4698
  %4887 = vst [vmem:[%s2 + $0x2b8] sm:$0xff] %v4701
  %4888 = vst [vmem:[%s2 + $0x2c0] sm:$0xff] %v4706
  %4889 = vst [vmem:[%s2 + $0x2c8] sm:$0xff] %v4709
  %4890 = vst [vmem:[%s2 + $0x2d0] sm:$0xff] %v4714
  %4891 = vst [vmem:[%s2 + $0x2d8] sm:$0xff] %v4717
  %4892 = vst [vmem:[%s2 + $0x2e0] sm:$0xff] %v4722
  %4893 = vst [vmem:[%s2 + $0x2e8] sm:$0xff] %v4725
  %4894 = vst [vmem:[%s2 + $0x2f0] sm:$0xff] %v4730
  %4895 = vst [vmem:[%s2 + $0x2f8] sm:$0xff] %v4733
  %4896 = vst [vmem:[%s2 + $0x300] sm:$0xff] %v4738
  %4897 = vst [vmem:[%s2 + $0x308] sm:$0xff] %v4741
  %4898 = vst [vmem:[%s2 + $0x310] sm:$0xff] %v4746
  %4899 = vst [vmem:[%s2 + $0x318] sm:$0xff] %v4749
  %4900 = vst [vmem:[%s2 + $0x320] sm:$0xff] %v4754
  %4901 = vst [vmem:[%s2 + $0x328] sm:$0xff] %v4757
  %4902 = vst [vmem:[%s2 + $0x330] sm:$0xff] %v4762
  %4903 = vst [vmem:[%s2 + $0x338] sm:$0xff] %v4765
  %4904 = vst [vmem:[%s2 + $0x340] sm:$0xff] %v4770
  %4905 = vst [vmem:[%s2 + $0x348] sm:$0xff] %v4773
  %4906 = vst [vmem:[%s2 + $0x350] sm:$0xff] %v4778
  %4907 = vst [vmem:[%s2 + $0x358] sm:$0xff] %v4781
  %4908 = vst [vmem:[%s2 + $0x360] sm:$0xff] %v4786
  %4909 = vst [vmem:[%s2 + $0x368] sm:$0xff] %v4789
  %4910 = vst [vmem:[%s2 + $0x370] sm:$0xff] %v4794
  %4911 = vst [vmem:[%s2 + $0x378] sm:$0xff] %v4797
  %v4912 = vld [vmem:[%s2] sm:$0xff]
  %v4913 = vld [vmem:[%s2 + $0x8] sm:$0xff]
  %v4914 = vld [vmem:[%s2 + $0x10] sm:$0xff]
  %v4915 = vld [vmem:[%s2 + $0x18] sm:$0xff]
  %v4916 = vld [vmem:[%s2 + $0x20] sm:$0xff]
  %v4917 = vld [vmem:[%s2 + $0x28] sm:$0xff]
  %v4918 = vld [vmem:[%s2 + $0x30] sm:$0xff]
  %v4919 = vld [vmem:[%s2 + $0x38] sm:$0xff]
  %v4920 = vld [vmem:[%s2 + $0x40] sm:$0xff]
  %v4921 = vld [vmem:[%s2 + $0x48] sm:$0xff]
  %v4922 = vld [vmem:[%s2 + $0x50] sm:$0xff]
  %v4923 = vld [vmem:[%s2 + $0x58] sm:$0xff]
  %v4924 = vld [vmem:[%s2 + $0x60] sm:$0xff]
  %v4925 = vld [vmem:[%s2 + $0x68] sm:$0xff]
  %v4926 = vld [vmem:[%s2 + $0x70] sm:$0xff]
  %v4927 = vld [vmem:[%s2 + $0x78] sm:$0xff]
  %v4928 = vld [vmem:[%s2 + $0x80] sm:$0xff]
  %v4929 = vld [vmem:[%s2 + $0x88] sm:$0xff]
  %v4930 = vld [vmem:[%s2 + $0x90] sm:$0xff]
  %v4931 = vld [vmem:[%s2 + $0x98] sm:$0xff]
  %v4932 = vld [vmem:[%s2 + $0xa0] sm:$0xff]
  %v4933 = vld [vmem:[%s2 + $0xa8] sm:$0xff]
  %v4934 = vld [vmem:[%s2 + $0xb0] sm:$0xff]
  %v4935 = vld [vmem:[%s2 + $0xb8] sm:$0xff]
  %v4936 = vld [vmem:[%s2 + $0xc0] sm:$0xff]
  %v4937 = vld [vmem:[%s2 + $0xc8] sm:$0xff]
  %v4938 = vld [vmem:[%s2 + $0xd0] sm:$0xff]
  %v4939 = vld [vmem:[%s2 + $0xd8] sm:$0xff]
  %v4940 = vld [vmem:[%s2 + $0xe0] sm:$0xff]
  %v4941 = vld [vmem:[%s2 + $0xe8] sm:$0xff]
  %v4942 = vld [vmem:[%s2 + $0xf0] sm:$0xff]
  %v4943 = vld [vmem:[%s2 + $0xf8] sm:$0xff]
  %v4944 = vld [vmem:[%s2 + $0x100] sm:$0xff]
  %v4945 = vld [vmem:[%s2 + $0x108] sm:$0xff]
  %v4946 = vld [vmem:[%s2 + $0x110] sm:$0xff]
  %v4947 = vld [vmem:[%s2 + $0x118] sm:$0xff]
  %v4948 = vld [vmem:[%s2 + $0x120] sm:$0xff]
  %v4949 = vld [vmem:[%s2 + $0x128] sm:$0xff]
  %v4950 = vld [vmem:[%s2 + $0x130] sm:$0xff]
  %v4951 = vld [vmem:[%s2 + $0x138] sm:$0xff]
  %v4952 = vld [vmem:[%s2 + $0x140] sm:$0xff]
  %v4953 = vld [vmem:[%s2 + $0x148] sm:$0xff]
  %v4954 = vld [vmem:[%s2 + $0x150] sm:$0xff]
  %v4955 = vld [vmem:[%s2 + $0x158] sm:$0xff]
  %v4956 = vld [vmem:[%s2 + $0x160] sm:$0xff]
  %v4957 = vld [vmem:[%s2 + $0x168] sm:$0xff]
  %v4958 = vld [vmem:[%s2 + $0x170] sm:$0xff]
  %v4959 = vld [vmem:[%s2 + $0x178] sm:$0xff]
  %v4960 = vld [vmem:[%s2 + $0x180] sm:$0xff]
  %v4961 = vld [vmem:[%s2 + $0x188] sm:$0xff]
  %v4962 = vld [vmem:[%s2 + $0x190] sm:$0xff]
  %v4963 = vld [vmem:[%s2 + $0x198] sm:$0xff]
  %v4964 = vld [vmem:[%s2 + $0x1a0] sm:$0xff]
  %v4965 = vld [vmem:[%s2 + $0x1a8] sm:$0xff]
  %v4966 = vld [vmem:[%s2 + $0x1b0] sm:$0xff]
  %v4967 = vld [vmem:[%s2 + $0x1b8] sm:$0xff]
  %v4968 = vld [vmem:[%s2 + $0x1c0] sm:$0xff]
  %v4969 = vld [vmem:[%s2 + $0x1c8] sm:$0xff]
  %v4970 = vld [vmem:[%s2 + $0x1d0] sm:$0xff]
  %v4971 = vld [vmem:[%s2 + $0x1d8] sm:$0xff]
  %v4972 = vld [vmem:[%s2 + $0x1e0] sm:$0xff]
  %v4973 = vld [vmem:[%s2 + $0x1e8] sm:$0xff]
  %v4974 = vld [vmem:[%s2 + $0x1f0] sm:$0xff]
  %v4975 = vld [vmem:[%s2 + $0x1f8] sm:$0xff]
  %v4976 = vld [vmem:[%s2 + $0x200] sm:$0xff]
  %v4977 = vld [vmem:[%s2 + $0x208] sm:$0xff]
  %v4978 = vld [vmem:[%s2 + $0x210] sm:$0xff]
  %v4979 = vld [vmem:[%s2 + $0x218] sm:$0xff]
  %v4980 = vld [vmem:[%s2 + $0x220] sm:$0xff]
  %v4981 = vld [vmem:[%s2 + $0x228] sm:$0xff]
  %v4982 = vld [vmem:[%s2 + $0x230] sm:$0xff]
  %v4983 = vld [vmem:[%s2 + $0x238] sm:$0xff]
  %v4984 = vld [vmem:[%s2 + $0x240] sm:$0xff]
  %v4985 = vld [vmem:[%s2 + $0x248] sm:$0xff]
  %v4986 = vld [vmem:[%s2 + $0x250] sm:$0xff]
  %v4987 = vld [vmem:[%s2 + $0x258] sm:$0xff]
  %v4988 = vld [vmem:[%s2 + $0x260] sm:$0xff]
  %v4989 = vld [vmem:[%s2 + $0x268] sm:$0xff]
  %v4990 = vld [vmem:[%s2 + $0x270] sm:$0xff]
  %v4991 = vld [vmem:[%s2 + $0x278] sm:$0xff]
  %v4992 = vld [vmem:[%s2 + $0x280] sm:$0xff]
  %v4993 = vld [vmem:[%s2 + $0x288] sm:$0xff]
  %v4994 = vld [vmem:[%s2 + $0x290] sm:$0xff]
  %v4995 = vld [vmem:[%s2 + $0x298] sm:$0xff]
  %v4996 = vld [vmem:[%s2 + $0x2a0] sm:$0xff]
  %v4997 = vld [vmem:[%s2 + $0x2a8] sm:$0xff]
  %v4998 = vld [vmem:[%s2 + $0x2b0] sm:$0xff]
  %v4999 = vld [vmem:[%s2 + $0x2b8] sm:$0xff]
  %v5000 = vld [vmem:[%s2 + $0x2c0] sm:$0xff]
  %v5001 = vld [vmem:[%s2 + $0x2c8] sm:$0xff]
  %v5002 = vld [vmem:[%s2 + $0x2d0] sm:$0xff]
  %v5003 = vld [vmem:[%s2 + $0x2d8] sm:$0xff]
  %v5004 = vld [vmem:[%s2 + $0x2e0] sm:$0xff]
  %v5005 = vld [vmem:[%s2 + $0x2e8] sm:$0xff]
  %v5006 = vld [vmem:[%s2 + $0x2f0] sm:$0xff]
  %v5007 = vld [vmem:[%s2 + $0x2f8] sm:$0xff]
  %v5008 = vld [vmem:[%s2 + $0x300] sm:$0xff]
  %v5009 = vld [vmem:[%s2 + $0x308] sm:$0xff]
  %v5010 = vld [vmem:[%s2 + $0x310] sm:$0xff]
  %v5011 = vld [vmem:[%s2 + $0x318] sm:$0xff]
  %v5012 = vld [vmem:[%s2 + $0x320] sm:$0xff]
  %v5013 = vld [vmem:[%s2 + $0x328] sm:$0xff]
  %v5014 = vld [vmem:[%s2 + $0x330] sm:$0xff]
  %v5015 = vld [vmem:[%s2 + $0x338] sm:$0xff]
  %v5016 = vld [vmem:[%s2 + $0x340] sm:$0xff]
  %v5017 = vld [vmem:[%s2 + $0x348] sm:$0xff]
  %v5018 = vld [vmem:[%s2 + $0x350] sm:$0xff]
  %v5019 = vld [vmem:[%s2 + $0x358] sm:$0xff]
  %v5020 = vld [vmem:[%s2 + $0x360] sm:$0xff]
  %v5021 = vld [vmem:[%s2 + $0x368] sm:$0xff]
  %v5022 = vld [vmem:[%s2 + $0x370] sm:$0xff]
  %v5023 = vld [vmem:[%s2 + $0x378] sm:$0xff]
  %v5024 = vld [vmem:[#allocation2 + $0x20] sm:$0xff]
  %v5025 = vld [vmem:[#allocation2 + $0x28] sm:$0xff]
  %v5026 = vld [vmem:[#allocation2 + $0x30] sm:$0xff]
  %v5027 = vld [vmem:[#allocation2 + $0x38] sm:$0xff]
  %v5028 = vld [vmem:[#allocation2 + $0x40] sm:$0xff]
  %v5029 = vld [vmem:[#allocation2 + $0x48] sm:$0xff]
  %v5030 = vld [vmem:[#allocation2 + $0x50] sm:$0xff]
  %v5031 = vld [vmem:[#allocation2 + $0x58] sm:$0xff]
  %v5032 = vld [vmem:[#allocation2 + $0x60] sm:$0xff]
  %v5033 = vld [vmem:[#allocation2 + $0x68] sm:$0xff]
  %v5034 = vld [vmem:[#allocation2 + $0x70] sm:$0xff]
  %v5035 = vld [vmem:[#allocation2 + $0x78] sm:$0xff]
  %v5036 = vld [vmem:[#allocation2 + $0x80] sm:$0xff]
  %v5037 = vld [vmem:[#allocation2 + $0x88] sm:$0xff]
  %v5038 = vld [vmem:[#allocation2 + $0x90] sm:$0xff]
  %v5039 = vld [vmem:[#allocation2 + $0x98] sm:$0xff]
  %v5040 = vld [vmem:[#allocation2 + $0xa0] sm:$0xff]
  %v5041 = vld [vmem:[#allocation2 + $0xa8] sm:$0xff]
  %v5042 = vld [vmem:[#allocation2 + $0xb0] sm:$0xff]
  %v5043 = vld [vmem:[#allocation2 + $0xb8] sm:$0xff]
  %v5044 = vld [vmem:[#allocation2 + $0xc0] sm:$0xff]
  %v5045 = vld [vmem:[#allocation2 + $0xc8] sm:$0xff]
  %v5046 = vld [vmem:[#allocation2 + $0xd0] sm:$0xff]
  %v5047 = vld [vmem:[#allocation2 + $0xd8] sm:$0xff]
  %v5048 = vld [vmem:[#allocation2 + $0xe0] sm:$0xff]
  %v5049 = vld [vmem:[#allocation2 + $0xe8] sm:$0xff]
  %v5050 = vld [vmem:[#allocation2 + $0xf0] sm:$0xff]
  %v5051 = vld [vmem:[#allocation2 + $0xf8] sm:$0xff]
  %v5052 = vld [vmem:[#allocation2 + $0x100] sm:$0xff]
  %v5053 = vld [vmem:[#allocation2 + $0x108] sm:$0xff]
  %v5054 = vld [vmem:[#allocation2 + $0x110] sm:$0xff]
  %v5055 = vld [vmem:[#allocation2 + $0x118] sm:$0xff]
  %v5056 = vld [vmem:[#allocation2 + $0x120] sm:$0xff]
  %v5057 = vld [vmem:[#allocation2 + $0x128] sm:$0xff]
  %v5058 = vld [vmem:[#allocation2 + $0x130] sm:$0xff]
  %v5059 = vld [vmem:[#allocation2 + $0x138] sm:$0xff]
  %v5060 = vld [vmem:[#allocation2 + $0x140] sm:$0xff]
  %v5061 = vld [vmem:[#allocation2 + $0x148] sm:$0xff]
  %v5062 = vld [vmem:[#allocation2 + $0x150] sm:$0xff]
  %v5063 = vld [vmem:[#allocation2 + $0x158] sm:$0xff]
  %v5064 = vld [vmem:[#allocation2 + $0x160] sm:$0xff]
  %v5065 = vld [vmem:[#allocation2 + $0x168] sm:$0xff]
  %v5066 = vld [vmem:[#allocation2 + $0x170] sm:$0xff]
  %v5067 = vld [vmem:[#allocation2 + $0x178] sm:$0xff]
  %v5068 = vld [vmem:[#allocation2 + $0x180] sm:$0xff]
  %v5069 = vld [vmem:[#allocation2 + $0x188] sm:$0xff]
  %v5070 = vld [vmem:[#allocation2 + $0x190] sm:$0xff]
  %v5071 = vld [vmem:[#allocation2 + $0x198] sm:$0xff]
  %v5072 = vld [vmem:[#allocation2 + $0x1a0] sm:$0xff]
  %v5073 = vld [vmem:[#allocation2 + $0x1a8] sm:$0xff]
  %v5074 = vld [vmem:[#allocation2 + $0x1b0] sm:$0xff]
  %v5075 = vld [vmem:[#allocation2 + $0x1b8] sm:$0xff]
  %v5076 = vld [vmem:[#allocation2 + $0x1c0] sm:$0xff]
  %v5077 = vld [vmem:[#allocation2 + $0x1c8] sm:$0xff]
  %v5078 = vld [vmem:[#allocation2 + $0x1d0] sm:$0xff]
  %v5079 = vld [vmem:[#allocation2 + $0x1d8] sm:$0xff]
  %v5080 = vld [vmem:[#allocation2 + $0x1e0] sm:$0xff]
  %v5081 = vld [vmem:[#allocation2 + $0x1e8] sm:$0xff]
  %v5082 = vld [vmem:[#allocation2 + $0x1f0] sm:$0xff]
  %v5083 = vld [vmem:[#allocation2 + $0x1f8] sm:$0xff]
  %v5084 = vld [vmem:[#allocation2 + $0x200] sm:$0xff]
  %v5085 = vld [vmem:[#allocation2 + $0x208] sm:$0xff]
  %v5086 = vld [vmem:[#allocation2 + $0x210] sm:$0xff]
  %v5087 = vld [vmem:[#allocation2 + $0x218] sm:$0xff]
  %v5088 = vld [vmem:[#allocation2 + $0x220] sm:$0xff]
  %v5089 = vld [vmem:[#allocation2 + $0x228] sm:$0xff]
  %v5090 = vld [vmem:[#allocation2 + $0x230] sm:$0xff]
  %v5091 = vld [vmem:[#allocation2 + $0x238] sm:$0xff]
  %v5092 = vld [vmem:[#allocation2 + $0x240] sm:$0xff]
  %v5093 = vld [vmem:[#allocation2 + $0x248] sm:$0xff]
  %v5094 = vld [vmem:[#allocation2 + $0x250] sm:$0xff]
  %v5095 = vld [vmem:[#allocation2 + $0x258] sm:$0xff]
  %v5096 = vld [vmem:[#allocation2 + $0x260] sm:$0xff]
  %v5097 = vld [vmem:[#allocation2 + $0x268] sm:$0xff]
  %v5098 = vld [vmem:[#allocation2 + $0x270] sm:$0xff]
  %v5099 = vld [vmem:[#allocation2 + $0x278] sm:$0xff]
  %v5100 = vld [vmem:[#allocation2 + $0x280] sm:$0xff]
  %v5101 = vld [vmem:[#allocation2 + $0x288] sm:$0xff]
  %v5102 = vld [vmem:[#allocation2 + $0x290] sm:$0xff]
  %v5103 = vld [vmem:[#allocation2 + $0x298] sm:$0xff]
  %v5104 = vld [vmem:[#allocation2 + $0x2a0] sm:$0xff]
  %v5105 = vld [vmem:[#allocation2 + $0x2a8] sm:$0xff]
  %v5106 = vld [vmem:[#allocation2 + $0x2b0] sm:$0xff]
  %v5107 = vld [vmem:[#allocation2 + $0x2b8] sm:$0xff]
  %v5108 = vld [vmem:[#allocation2 + $0x2c0] sm:$0xff]
  %v5109 = vld [vmem:[#allocation2 + $0x2c8] sm:$0xff]
  %v5110 = vld [vmem:[#allocation2 + $0x2d0] sm:$0xff]
  %v5111 = vld [vmem:[#allocation2 + $0x2d8] sm:$0xff]
  %v5112 = vld [vmem:[#allocation2 + $0x2e0] sm:$0xff]
  %v5113 = vld [vmem:[#allocation2 + $0x2e8] sm:$0xff]
  %v5114 = vld [vmem:[#allocation2 + $0x2f0] sm:$0xff]
  %v5115 = vld [vmem:[#allocation2 + $0x2f8] sm:$0xff]
  %v5116 = vld [vmem:[#allocation2 + $0x300] sm:$0xff]
  %v5117 = vld [vmem:[#allocation2 + $0x308] sm:$0xff]
  %v5118 = vld [vmem:[#allocation2 + $0x310] sm:$0xff]
  %v5119 = vld [vmem:[#allocation2 + $0x318] sm:$0xff]
  %v5120 = vld [vmem:[#allocation2 + $0x320] sm:$0xff]
  %v5121 = vld [vmem:[#allocation2 + $0x328] sm:$0xff]
  %v5122 = vld [vmem:[#allocation2 + $0x330] sm:$0xff]
  %v5123 = vld [vmem:[#allocation2 + $0x338] sm:$0xff]
  %v5124 = vld [vmem:[#allocation2 + $0x340] sm:$0xff]
  %v5125 = vld [vmem:[#allocation2 + $0x348] sm:$0xff]
  %v5126 = vld [vmem:[#allocation2 + $0x350] sm:$0xff]
  %v5127 = vld [vmem:[#allocation2 + $0x358] sm:$0xff]
  %v5128 = vld [vmem:[#allocation2 + $0x360] sm:$0xff]
  %v5129 = vld [vmem:[#allocation2 + $0x368] sm:$0xff]
  %v5130 = vld [vmem:[#allocation2 + $0x370] sm:$0xff]
  %v5131 = vld [vmem:[#allocation2 + $0x378] sm:$0xff]
  %v5132 = vld [vmem:[#allocation2 + $0x380] sm:$0xff]
  %v5133 = vld [vmem:[#allocation2 + $0x388] sm:$0xff]
  %v5134 = vld [vmem:[#allocation2 + $0x390] sm:$0xff]
  %v5135 = vld [vmem:[#allocation2 + $0x398] sm:$0xff]
  %s5136 = scalar_lea.vmem %s1, 96
  %v5137 = vld [vmem:[%s5136] sm:$0xf]
  %v5138 = vld [vmem:[%s5136 + $0x4] sm:$0xf]
  %v5139 = vld [vmem:[%s5136 + $0x8] sm:$0xf]
  %v5140 = vld [vmem:[%s5136 + $0xc] sm:$0xf]
  %v5141 = vld [vmem:[%s5136 + $0x10] sm:$0xf]
  %v5142 = vld [vmem:[%s5136 + $0x14] sm:$0xf]
  %v5143 = vld [vmem:[%s5136 + $0x18] sm:$0xf]
  %v5144 = vld [vmem:[%s5136 + $0x1c] sm:$0xf]
  %v5145 = vld [vmem:[%s5136 + $0x20] sm:$0xf]
  %v5146 = vld [vmem:[%s5136 + $0x24] sm:$0xf]
  %v5147 = vld [vmem:[%s5136 + $0x28] sm:$0xf]
  %v5148 = vld [vmem:[%s5136 + $0x2c] sm:$0xf]
  %v5149 = vld [vmem:[%s5136 + $0x30] sm:$0xf]
  %v5150 = vld [vmem:[%s5136 + $0x34] sm:$0xf]
  %v5151 = vld [vmem:[%s5136 + $0x38] sm:$0xf]
  %v5152 = vld [vmem:[%s5136 + $0x3c] sm:$0xf]
  %v5153 = vld [vmem:[%s5136 + $0x40] sm:$0xf]
  %v5154 = vld [vmem:[%s5136 + $0x44] sm:$0xf]
  %v5155 = vld [vmem:[%s5136 + $0x48] sm:$0xf]
  %v5156 = vld [vmem:[%s5136 + $0x4c] sm:$0xf]
  %v5157 = vld [vmem:[%s5136 + $0x50] sm:$0xf]
  %v5158 = vld [vmem:[%s5136 + $0x54] sm:$0xf]
  %v5159 = vld [vmem:[%s5136 + $0x58] sm:$0xf]
  %v5160 = vld [vmem:[%s5136 + $0x5c] sm:$0xf]
  %v5185 = vunpack.c.l.b16 %v5137
  %v5186 = vunpack.c.l.b16 %v5138
  %v5187 = vunpack.c.l.b16 %v5139
  %v5188 = vunpack.c.l.b16 %v5140
  %v5189 = vunpack.c.l.b16 %v5141
  %v5190 = vunpack.c.l.b16 %v5142
  %v5191 = vunpack.c.l.b16 %v5143
  %v5192 = vunpack.c.l.b16 %v5144
  %v5193 = vunpack.c.l.b16 %v5145
  %v5194 = vunpack.c.l.b16 %v5146
  %v5195 = vunpack.c.l.b16 %v5147
  %v5196 = vunpack.c.l.b16 %v5148
  %v5197 = vunpack.c.l.b16 %v5149
  %v5198 = vunpack.c.l.b16 %v5150
  %v5199 = vunpack.c.l.b16 %v5151
  %v5200 = vunpack.c.l.b16 %v5152
  %v5201 = vunpack.c.l.b16 %v5153
  %v5202 = vunpack.c.l.b16 %v5154
  %v5203 = vunpack.c.l.b16 %v5155
  %v5204 = vunpack.c.l.b16 %v5156
  %v5205 = vunpack.c.l.b16 %v5157
  %v5206 = vunpack.c.l.b16 %v5158
  %v5207 = vunpack.c.l.b16 %v5159
  %v5208 = vunpack.c.l.b16 %v5160
  %v5209 = vpack.c.b16 %v5186, %v5185
  %v5210 = vpack.c.b16 %v5188, %v5187
  %v5211 = vpack.c.b16 %v5190, %v5189
  %v5212 = vpack.c.b16 %v5192, %v5191
  %v5213 = vpack.c.b16 %v5194, %v5193
  %v5214 = vpack.c.b16 %v5196, %v5195
  %v5215 = vpack.c.b16 %v5198, %v5197
  %v5216 = vpack.c.b16 %v5200, %v5199
  %v5217 = vpack.c.b16 %v5202, %v5201
  %v5218 = vpack.c.b16 %v5204, %v5203
  %v5219 = vpack.c.b16 %v5206, %v5205
  %v5220 = vpack.c.b16 %v5208, %v5207
  %v5234 = vsel %vm13, %v5025, 0
  %v5237 = vsel %vm13, %v5027, 0
  %v5240 = vsel %vm13, %v5029, 0
  %v5243 = vsel %vm13, %v5031, 0
  %v5246 = vsel %vm13, %v5033, 0
  %v5249 = vsel %vm13, %v5035, 0
  %v5252 = vsel %vm13, %v5037, 0
  %v5255 = vsel %vm13, %v5039, 0
  %v5258 = vsel %vm13, %v5041, 0
  %v5261 = vsel %vm13, %v5043, 0
  %v5264 = vsel %vm13, %v5045, 0
  %v5267 = vsel %vm13, %v5047, 0
  %v5270 = vsel %vm13, %v5049, 0
  %v5273 = vsel %vm13, %v5051, 0
  %v5276 = vsel %vm13, %v5053, 0
  %v5279 = vsel %vm13, %v5055, 0
  %v5282 = vsel %vm13, %v5057, 0
  %v5285 = vsel %vm13, %v5059, 0
  %v5288 = vsel %vm13, %v5061, 0
  %v5291 = vsel %vm13, %v5063, 0
  %v5294 = vsel %vm13, %v5065, 0
  %v5297 = vsel %vm13, %v5067, 0
  %v5300 = vsel %vm13, %v5069, 0
  %v5303 = vsel %vm13, %v5071, 0
  %v5306 = vsel %vm13, %v5073, 0
  %v5309 = vsel %vm13, %v5075, 0
  %v5312 = vsel %vm13, %v5077, 0
  %v5315 = vsel %vm13, %v5079, 0
  %v5318 = vsel %vm13, %v5081, 0
  %v5321 = vsel %vm13, %v5083, 0
  %v5324 = vsel %vm13, %v5085, 0
  %v5327 = vsel %vm13, %v5087, 0
  %v5330 = vsel %vm13, %v5089, 0
  %v5333 = vsel %vm13, %v5091, 0
  %v5336 = vsel %vm13, %v5093, 0
  %v5339 = vsel %vm13, %v5095, 0
  %v5342 = vsel %vm13, %v5097, 0
  %v5345 = vsel %vm13, %v5099, 0
  %v5348 = vsel %vm13, %v5101, 0
  %v5351 = vsel %vm13, %v5103, 0
  %v5354 = vsel %vm13, %v5105, 0
  %v5357 = vsel %vm13, %v5107, 0
  %v5360 = vsel %vm13, %v5109, 0
  %v5363 = vsel %vm13, %v5111, 0
  %v5366 = vsel %vm13, %v5113, 0
  %v5369 = vsel %vm13, %v5115, 0
  %v5372 = vsel %vm13, %v5117, 0
  %v5375 = vsel %vm13, %v5119, 0
  %v5378 = vsel %vm13, %v5121, 0
  %v5381 = vsel %vm13, %v5123, 0
  %v5384 = vsel %vm13, %v5125, 0
  %v5387 = vsel %vm13, %v5127, 0
  %v5390 = vsel %vm13, %v5129, 0
  %v5393 = vsel %vm13, %v5131, 0
  %v5396 = vsel %vm13, %v5133, 0
  %v5399 = vsel %vm13, %v5135, 0
  %5401 = vmatprep.subr.bf16.mxu0 0
  %5402 = vmatpush1.bf16.msra.mxu0 %v5209
  %5403 = vmatprep.subr.bf16.mxu0 0
  %5404 = vmatpush1.bf16.msra.mxu0 %v5210
  %5405 = vmatprep.subr.bf16.mxu0 0
  %5406 = vmatpush1.bf16.msra.mxu0 %v5211
  %5407 = vmatprep.subr.bf16.mxu0 0
  %5408 = vmatpush1.bf16.msra.mxu0 %v5212
  %5409 = vmatprep.subr.bf16.mxu0 0
  %5410 = vmatpush1.bf16.msra.mxu0 %v5213
  %5411 = vmatprep.subr.bf16.mxu0 0
  %5412 = vmatpush1.bf16.msra.mxu0 %v5214
  %5413 = vmatprep.subr.bf16.mxu0 0
  %5414 = vmatpush1.bf16.msra.mxu0 %v5215
  %5415 = vmatprep.subr.bf16.mxu0 0
  %5416 = vmatpush1.bf16.msra.mxu0 %v5216
  %5417 = vmatprep.subr.bf16.mxu0 0
  %5418 = vmatpush1.bf16.msra.mxu0 %v5217
  %5419 = vmatprep.subr.bf16.mxu0 0
  %5420 = vmatpush1.bf16.msra.mxu0 %v5218
  %5421 = vmatprep.subr.bf16.mxu0 0
  %5422 = vmatpush1.bf16.msra.mxu0 %v5219
  %5423 = vmatprep.subr.bf16.mxu0 0
  %5424 = vmatpush1.bf16.msra.mxu0 %v5220
  %5425 = vmatprep.subr.bf16.mxu0 0
  %5426 = vmatpush1.bf16.msra.mxu0 0
  %5427 = vmatprep.subr.bf16.mxu0 0
  %5428 = vmatpush1.bf16.msra.mxu0 0
  %5429 = vmatprep.subr.bf16.mxu0 0
  %5430 = vmatpush1.bf16.msra.mxu0 0
  %5431 = vmatprep.subr.bf16.mxu0 0
  %5432 = vmatpush1.bf16.msra.mxu0 0
  %5433 = vmatprep.mubr.bf16.mxu0 %v5234
  %5434 = vmatmul.mubr.bf16.gmra.mrb[0].mxu0 %v5024
  %v5435 = vpop.f32.mrb[0].mxu0
  %v5436 = vadd.f32 0.0, %v5435
  %v5437 = vpop.f32.mrb[0].mxu0
  %v5438 = vpop.f32.mrb[0].mxu0
  %v5439 = vadd.f32 0.0, %v5438
  %v5440 = vpop.f32.mrb[0].mxu0
  %5441 = vmatprep.mubr.bf16.mxu0 %v5237
  %5442 = vmatmul.mubr.bf16.gmra.mrb[0].mxu0 %v5026
  %v5443 = vpop.f32.mrb[0].mxu0
  %v5444 = vadd.f32 0.0, %v5443
  %v5445 = vpop.f32.mrb[0].mxu0
  %v5446 = vpop.f32.mrb[0].mxu0
  %v5447 = vadd.f32 0.0, %v5446
  %v5448 = vpop.f32.mrb[0].mxu0
  %5449 = vmatprep.mubr.bf16.mxu0 %v5240
  %5450 = vmatmul.mubr.bf16.gmra.mrb[0].mxu0 %v5028
  %v5451 = vpop.f32.mrb[0].mxu0
  %v5452 = vadd.f32 0.0, %v5451
  %v5453 = vpop.f32.mrb[0].mxu0
  %v5454 = vpop.f32.mrb[0].mxu0
  %v5455 = vadd.f32 0.0, %v5454
  %v5456 = vpop.f32.mrb[0].mxu0
  %5457 = vmatprep.mubr.bf16.mxu0 %v5243
  %5458 = vmatmul.mubr.bf16.gmra.mrb[0].mxu0 %v5030
  %v5459 = vpop.f32.mrb[0].mxu0
  %v5460 = vadd.f32 0.0, %v5459
  %v5461 = vpop.f32.mrb[0].mxu0
  %v5462 = vpop.f32.mrb[0].mxu0
  %v5463 = vadd.f32 0.0, %v5462
  %v5464 = vpop.f32.mrb[0].mxu0
  %5465 = vmatprep.mubr.bf16.mxu0 %v5246
  %5466 = vmatmul.mubr.bf16.gmra.mrb[0].mxu0 %v5032
  %v5467 = vpop.f32.mrb[0].mxu0
  %v5468 = vadd.f32 0.0, %v5467
  %v5469 = vpop.f32.mrb[0].mxu0
  %v5470 = vpop.f32.mrb[0].mxu0
  %v5471 = vadd.f32 0.0, %v5470
  %v5472 = vpop.f32.mrb[0].mxu0
  %5473 = vmatprep.mubr.bf16.mxu0 %v5249
  %5474 = vmatmul.mubr.bf16.gmra.mrb[0].mxu0 %v5034
  %v5475 = vpop.f32.mrb[0].mxu0
  %v5476 = vadd.f32 0.0, %v5475
  %v5477 = vpop.f32.mrb[0].mxu0
  %v5478 = vpop.f32.mrb[0].mxu0
  %v5479 = vadd.f32 0.0, %v5478
  %v5480 = vpop.f32.mrb[0].mxu0
  %5481 = vmatprep.mubr.bf16.mxu0 %v5252
  %5482 = vmatmul.mubr.bf16.gmra.mrb[0].mxu0 %v5036
  %v5483 = vpop.f32.mrb[0].mxu0
  %v5484 = vadd.f32 0.0, %v5483
  %v5485 = vpop.f32.mrb[0].mxu0
  %v5486 = vpop.f32.mrb[0].mxu0
  %v5487 = vadd.f32 0.0, %v5486
  %v5488 = vpop.f32.mrb[0].mxu0
  %5489 = vmatprep.mubr.bf16.mxu0 %v5255
  %5490 = vmatmul.mubr.bf16.gmra.mrb[0].mxu0 %v5038
  %v5491 = vpop.f32.mrb[0].mxu0
  %v5492 = vadd.f32 0.0, %v5491
  %v5493 = vpop.f32.mrb[0].mxu0
  %v5494 = vpop.f32.mrb[0].mxu0
  %v5495 = vadd.f32 0.0, %v5494
  %v5496 = vpop.f32.mrb[0].mxu0
  %5497 = vmatprep.mubr.bf16.mxu0 %v5258
  %5498 = vmatmul.mubr.bf16.gmra.mrb[0].mxu0 %v5040
  %v5499 = vpop.f32.mrb[0].mxu0
  %v5500 = vadd.f32 0.0, %v5499
  %v5501 = vpop.f32.mrb[0].mxu0
  %v5502 = vpop.f32.mrb[0].mxu0
  %v5503 = vadd.f32 0.0, %v5502
  %v5504 = vpop.f32.mrb[0].mxu0
  %5505 = vmatprep.mubr.bf16.mxu0 %v5261
  %5506 = vmatmul.mubr.bf16.gmra.mrb[0].mxu0 %v5042
  %v5507 = vpop.f32.mrb[0].mxu0
  %v5508 = vadd.f32 0.0, %v5507
  %v5509 = vpop.f32.mrb[0].mxu0
  %v5510 = vpop.f32.mrb[0].mxu0
  %v5511 = vadd.f32 0.0, %v5510
  %v5512 = vpop.f32.mrb[0].mxu0
  %5513 = vmatprep.mubr.bf16.mxu0 %v5264
  %5514 = vmatmul.mubr.bf16.gmra.mrb[0].mxu0 %v5044
  %v5515 = vpop.f32.mrb[0].mxu0
  %v5516 = vadd.f32 0.0, %v5515
  %v5517 = vpop.f32.mrb[0].mxu0
  %v5518 = vpop.f32.mrb[0].mxu0
  %v5519 = vadd.f32 0.0, %v5518
  %v5520 = vpop.f32.mrb[0].mxu0
  %5521 = vmatprep.mubr.bf16.mxu0 %v5267
  %5522 = vmatmul.mubr.bf16.gmra.mrb[0].mxu0 %v5046
  %v5523 = vpop.f32.mrb[0].mxu0
  %v5524 = vadd.f32 0.0, %v5523
  %v5525 = vpop.f32.mrb[0].mxu0
  %v5526 = vpop.f32.mrb[0].mxu0
  %v5527 = vadd.f32 0.0, %v5526
  %v5528 = vpop.f32.mrb[0].mxu0
  %5529 = vmatprep.mubr.bf16.mxu0 %v5270
  %5530 = vmatmul.mubr.bf16.gmra.mrb[0].mxu0 %v5048
  %v5531 = vpop.f32.mrb[0].mxu0
  %v5532 = vadd.f32 0.0, %v5531
  %v5533 = vpop.f32.mrb[0].mxu0
  %v5534 = vpop.f32.mrb[0].mxu0
  %v5535 = vadd.f32 0.0, %v5534
  %v5536 = vpop.f32.mrb[0].mxu0
  %5537 = vmatprep.mubr.bf16.mxu0 %v5273
  %5538 = vmatmul.mubr.bf16.gmra.mrb[0].mxu0 %v5050
  %v5539 = vpop.f32.mrb[0].mxu0
  %v5540 = vadd.f32 0.0, %v5539
  %v5541 = vpop.f32.mrb[0].mxu0
  %v5542 = vpop.f32.mrb[0].mxu0
  %v5543 = vadd.f32 0.0, %v5542
  %v5544 = vpop.f32.mrb[0].mxu0
  %5545 = vmatprep.mubr.bf16.mxu0 %v5276
  %5546 = vmatmul.mubr.bf16.gmra.mrb[0].mxu0 %v5052
  %v5547 = vpop.f32.mrb[0].mxu0
  %v5548 = vadd.f32 0.0, %v5547
  %v5549 = vpop.f32.mrb[0].mxu0
  %v5550 = vpop.f32.mrb[0].mxu0
  %v5551 = vadd.f32 0.0, %v5550
  %v5552 = vpop.f32.mrb[0].mxu0
  %5553 = vmatprep.mubr.bf16.mxu0 %v5279
  %5554 = vmatmul.mubr.bf16.gmra.mrb[0].mxu0 %v5054
  %v5555 = vpop.f32.mrb[0].mxu0
  %v5556 = vadd.f32 0.0, %v5555
  %v5557 = vpop.f32.mrb[0].mxu0
  %v5558 = vpop.f32.mrb[0].mxu0
  %v5559 = vadd.f32 0.0, %v5558
  %v5560 = vpop.f32.mrb[0].mxu0
  %5561 = vmatprep.mubr.bf16.mxu0 %v5282
  %5562 = vmatmul.mubr.bf16.gmra.mrb[0].mxu0 %v5056
  %v5563 = vpop.f32.mrb[0].mxu0
  %v5564 = vadd.f32 0.0, %v5563
  %v5565 = vpop.f32.mrb[0].mxu0
  %v5566 = vpop.f32.mrb[0].mxu0
  %v5567 = vadd.f32 0.0, %v5566
  %v5568 = vpop.f32.mrb[0].mxu0
  %5569 = vmatprep.mubr.bf16.mxu0 %v5285
  %5570 = vmatmul.mubr.bf16.gmra.mrb[0].mxu0 %v5058
  %v5571 = vpop.f32.mrb[0].mxu0
  %v5572 = vadd.f32 0.0, %v5571
  %v5573 = vpop.f32.mrb[0].mxu0
  %v5574 = vpop.f32.mrb[0].mxu0
  %v5575 = vadd.f32 0.0, %v5574
  %v5576 = vpop.f32.mrb[0].mxu0
  %5577 = vmatprep.mubr.bf16.mxu0 %v5288
  %5578 = vmatmul.mubr.bf16.gmra.mrb[0].mxu0 %v5060
  %v5579 = vpop.f32.mrb[0].mxu0
  %v5580 = vadd.f32 0.0, %v5579
  %v5581 = vpop.f32.mrb[0].mxu0
  %v5582 = vpop.f32.mrb[0].mxu0
  %v5583 = vadd.f32 0.0, %v5582
  %v5584 = vpop.f32.mrb[0].mxu0
  %5585 = vmatprep.mubr.bf16.mxu0 %v5291
  %5586 = vmatmul.mubr.bf16.gmra.mrb[0].mxu0 %v5062
  %v5587 = vpop.f32.mrb[0].mxu0
  %v5588 = vadd.f32 0.0, %v5587
  %v5589 = vpop.f32.mrb[0].mxu0
  %v5590 = vpop.f32.mrb[0].mxu0
  %v5591 = vadd.f32 0.0, %v5590
  %v5592 = vpop.f32.mrb[0].mxu0
  %5593 = vmatprep.mubr.bf16.mxu0 %v5294
  %5594 = vmatmul.mubr.bf16.gmra.mrb[0].mxu0 %v5064
  %v5595 = vpop.f32.mrb[0].mxu0
  %v5596 = vadd.f32 0.0, %v5595
  %v5597 = vpop.f32.mrb[0].mxu0
  %v5598 = vpop.f32.mrb[0].mxu0
  %v5599 = vadd.f32 0.0, %v5598
  %v5600 = vpop.f32.mrb[0].mxu0
  %5601 = vmatprep.mubr.bf16.mxu0 %v5297
  %5602 = vmatmul.mubr.bf16.gmra.mrb[0].mxu0 %v5066
  %v5603 = vpop.f32.mrb[0].mxu0
  %v5604 = vadd.f32 0.0, %v5603
  %v5605 = vpop.f32.mrb[0].mxu0
  %v5606 = vpop.f32.mrb[0].mxu0
  %v5607 = vadd.f32 0.0, %v5606
  %v5608 = vpop.f32.mrb[0].mxu0
  %5609 = vmatprep.mubr.bf16.mxu0 %v5300
  %5610 = vmatmul.mubr.bf16.gmra.mrb[0].mxu0 %v5068
  %v5611 = vpop.f32.mrb[0].mxu0
  %v5612 = vadd.f32 0.0, %v5611
  %v5613 = vpop.f32.mrb[0].mxu0
  %v5614 = vpop.f32.mrb[0].mxu0
  %v5615 = vadd.f32 0.0, %v5614
  %v5616 = vpop.f32.mrb[0].mxu0
  %5617 = vmatprep.mubr.bf16.mxu0 %v5303
  %5618 = vmatmul.mubr.bf16.gmra.mrb[0].mxu0 %v5070
  %v5619 = vpop.f32.mrb[0].mxu0
  %v5620 = vadd.f32 0.0, %v5619
  %v5621 = vpop.f32.mrb[0].mxu0
  %v5622 = vpop.f32.mrb[0].mxu0
  %v5623 = vadd.f32 0.0, %v5622
  %v5624 = vpop.f32.mrb[0].mxu0
  %5625 = vmatprep.mubr.bf16.mxu0 %v5306
  %5626 = vmatmul.mubr.bf16.gmra.mrb[0].mxu0 %v5072
  %v5627 = vpop.f32.mrb[0].mxu0
  %v5628 = vadd.f32 0.0, %v5627
  %v5629 = vpop.f32.mrb[0].mxu0
  %v5630 = vpop.f32.mrb[0].mxu0
  %v5631 = vadd.f32 0.0, %v5630
  %v5632 = vpop.f32.mrb[0].mxu0
  %5633 = vmatprep.mubr.bf16.mxu0 %v5309
  %5634 = vmatmul.mubr.bf16.gmra.mrb[0].mxu0 %v5074
  %v5635 = vpop.f32.mrb[0].mxu0
  %v5636 = vadd.f32 0.0, %v5635
  %v5637 = vpop.f32.mrb[0].mxu0
  %v5638 = vpop.f32.mrb[0].mxu0
  %v5639 = vadd.f32 0.0, %v5638
  %v5640 = vpop.f32.mrb[0].mxu0
  %5641 = vmatprep.mubr.bf16.mxu0 %v5312
  %5642 = vmatmul.mubr.bf16.gmra.mrb[0].mxu0 %v5076
  %v5643 = vpop.f32.mrb[0].mxu0
  %v5644 = vadd.f32 0.0, %v5643
  %v5645 = vpop.f32.mrb[0].mxu0
  %v5646 = vpop.f32.mrb[0].mxu0
  %v5647 = vadd.f32 0.0, %v5646
  %v5648 = vpop.f32.mrb[0].mxu0
  %5649 = vmatprep.mubr.bf16.mxu0 %v5315
  %5650 = vmatmul.mubr.bf16.gmra.mrb[0].mxu0 %v5078
  %v5651 = vpop.f32.mrb[0].mxu0
  %v5652 = vadd.f32 0.0, %v5651
  %v5653 = vpop.f32.mrb[0].mxu0
  %v5654 = vpop.f32.mrb[0].mxu0
  %v5655 = vadd.f32 0.0, %v5654
  %v5656 = vpop.f32.mrb[0].mxu0
  %5657 = vmatprep.mubr.bf16.mxu0 %v5318
  %5658 = vmatmul.mubr.bf16.gmra.mrb[0].mxu0 %v5080
  %v5659 = vpop.f32.mrb[0].mxu0
  %v5660 = vadd.f32 0.0, %v5659
  %v5661 = vpop.f32.mrb[0].mxu0
  %v5662 = vpop.f32.mrb[0].mxu0
  %v5663 = vadd.f32 0.0, %v5662
  %v5664 = vpop.f32.mrb[0].mxu0
  %5665 = vmatprep.mubr.bf16.mxu0 %v5321
  %5666 = vmatmul.mubr.bf16.gmra.mrb[0].mxu0 %v5082
  %v5667 = vpop.f32.mrb[0].mxu0
  %v5668 = vadd.f32 0.0, %v5667
  %v5669 = vpop.f32.mrb[0].mxu0
  %v5670 = vpop.f32.mrb[0].mxu0
  %v5671 = vadd.f32 0.0, %v5670
  %v5672 = vpop.f32.mrb[0].mxu0
  %5673 = vmatprep.mubr.bf16.mxu0 %v5324
  %5674 = vmatmul.mubr.bf16.gmra.mrb[0].mxu0 %v5084
  %v5675 = vpop.f32.mrb[0].mxu0
  %v5676 = vadd.f32 0.0, %v5675
  %v5677 = vpop.f32.mrb[0].mxu0
  %v5678 = vpop.f32.mrb[0].mxu0
  %v5679 = vadd.f32 0.0, %v5678
  %v5680 = vpop.f32.mrb[0].mxu0
  %5681 = vmatprep.mubr.bf16.mxu0 %v5327
  %5682 = vmatmul.mubr.bf16.gmra.mrb[0].mxu0 %v5086
  %v5683 = vpop.f32.mrb[0].mxu0
  %v5684 = vadd.f32 0.0, %v5683
  %v5685 = vpop.f32.mrb[0].mxu0
  %v5686 = vpop.f32.mrb[0].mxu0
  %v5687 = vadd.f32 0.0, %v5686
  %v5688 = vpop.f32.mrb[0].mxu0
  %5689 = vmatprep.mubr.bf16.mxu0 %v5330
  %5690 = vmatmul.mubr.bf16.gmra.mrb[0].mxu0 %v5088
  %v5691 = vpop.f32.mrb[0].mxu0
  %v5692 = vadd.f32 0.0, %v5691
  %v5693 = vpop.f32.mrb[0].mxu0
  %v5694 = vpop.f32.mrb[0].mxu0
  %v5695 = vadd.f32 0.0, %v5694
  %v5696 = vpop.f32.mrb[0].mxu0
  %5697 = vmatprep.mubr.bf16.mxu0 %v5333
  %5698 = vmatmul.mubr.bf16.gmra.mrb[0].mxu0 %v5090
  %v5699 = vpop.f32.mrb[0].mxu0
  %v5700 = vadd.f32 0.0, %v5699
  %v5701 = vpop.f32.mrb[0].mxu0
  %v5702 = vpop.f32.mrb[0].mxu0
  %v5703 = vadd.f32 0.0, %v5702
  %v5704 = vpop.f32.mrb[0].mxu0
  %5705 = vmatprep.mubr.bf16.mxu0 %v5336
  %5706 = vmatmul.mubr.bf16.gmra.mrb[0].mxu0 %v5092
  %v5707 = vpop.f32.mrb[0].mxu0
  %v5708 = vadd.f32 0.0, %v5707
  %v5709 = vpop.f32.mrb[0].mxu0
  %v5710 = vpop.f32.mrb[0].mxu0
  %v5711 = vadd.f32 0.0, %v5710
  %v5712 = vpop.f32.mrb[0].mxu0
  %5713 = vmatprep.mubr.bf16.mxu0 %v5339
  %5714 = vmatmul.mubr.bf16.gmra.mrb[0].mxu0 %v5094
  %v5715 = vpop.f32.mrb[0].mxu0
  %v5716 = vadd.f32 0.0, %v5715
  %v5717 = vpop.f32.mrb[0].mxu0
  %v5718 = vpop.f32.mrb[0].mxu0
  %v5719 = vadd.f32 0.0, %v5718
  %v5720 = vpop.f32.mrb[0].mxu0
  %5721 = vmatprep.mubr.bf16.mxu0 %v5342
  %5722 = vmatmul.mubr.bf16.gmra.mrb[0].mxu0 %v5096
  %v5723 = vpop.f32.mrb[0].mxu0
  %v5724 = vadd.f32 0.0, %v5723
  %v5725 = vpop.f32.mrb[0].mxu0
  %v5726 = vpop.f32.mrb[0].mxu0
  %v5727 = vadd.f32 0.0, %v5726
  %v5728 = vpop.f32.mrb[0].mxu0
  %5729 = vmatprep.mubr.bf16.mxu0 %v5345
  %5730 = vmatmul.mubr.bf16.gmra.mrb[0].mxu0 %v5098
  %v5731 = vpop.f32.mrb[0].mxu0
  %v5732 = vadd.f32 0.0, %v5731
  %v5733 = vpop.f32.mrb[0].mxu0
  %v5734 = vpop.f32.mrb[0].mxu0
  %v5735 = vadd.f32 0.0, %v5734
  %v5736 = vpop.f32.mrb[0].mxu0
  %5737 = vmatprep.mubr.bf16.mxu0 %v5348
  %5738 = vmatmul.mubr.bf16.gmra.mrb[0].mxu0 %v5100
  %v5739 = vpop.f32.mrb[0].mxu0
  %v5740 = vadd.f32 0.0, %v5739
  %v5741 = vpop.f32.mrb[0].mxu0
  %v5742 = vpop.f32.mrb[0].mxu0
  %v5743 = vadd.f32 0.0, %v5742
  %v5744 = vpop.f32.mrb[0].mxu0
  %5745 = vmatprep.mubr.bf16.mxu0 %v5351
  %5746 = vmatmul.mubr.bf16.gmra.mrb[0].mxu0 %v5102
  %v5747 = vpop.f32.mrb[0].mxu0
  %v5748 = vadd.f32 0.0, %v5747
  %v5749 = vpop.f32.mrb[0].mxu0
  %v5750 = vpop.f32.mrb[0].mxu0
  %v5751 = vadd.f32 0.0, %v5750
  %v5752 = vpop.f32.mrb[0].mxu0
  %5753 = vmatprep.mubr.bf16.mxu0 %v5354
  %5754 = vmatmul.mubr.bf16.gmra.mrb[0].mxu0 %v5104
  %v5755 = vpop.f32.mrb[0].mxu0
  %v5756 = vadd.f32 0.0, %v5755
  %v5757 = vpop.f32.mrb[0].mxu0
  %v5758 = vpop.f32.mrb[0].mxu0
  %v5759 = vadd.f32 0.0, %v5758
  %v5760 = vpop.f32.mrb[0].mxu0
  %5761 = vmatprep.mubr.bf16.mxu0 %v5357
  %5762 = vmatmul.mubr.bf16.gmra.mrb[0].mxu0 %v5106
  %v5763 = vpop.f32.mrb[0].mxu0
  %v5764 = vadd.f32 0.0, %v5763
  %v5765 = vpop.f32.mrb[0].mxu0
  %v5766 = vpop.f32.mrb[0].mxu0
  %v5767 = vadd.f32 0.0, %v5766
  %v5768 = vpop.f32.mrb[0].mxu0
  %5769 = vmatprep.mubr.bf16.mxu0 %v5360
  %5770 = vmatmul.mubr.bf16.gmra.mrb[0].mxu0 %v5108
  %v5771 = vpop.f32.mrb[0].mxu0
  %v5772 = vadd.f32 0.0, %v5771
  %v5773 = vpop.f32.mrb[0].mxu0
  %v5774 = vpop.f32.mrb[0].mxu0
  %v5775 = vadd.f32 0.0, %v5774
  %v5776 = vpop.f32.mrb[0].mxu0
  %5777 = vmatprep.mubr.bf16.mxu0 %v5363
  %5778 = vmatmul.mubr.bf16.gmra.mrb[0].mxu0 %v5110
  %v5779 = vpop.f32.mrb[0].mxu0
  %v5780 = vadd.f32 0.0, %v5779
  %v5781 = vpop.f32.mrb[0].mxu0
  %v5782 = vpop.f32.mrb[0].mxu0
  %v5783 = vadd.f32 0.0, %v5782
  %v5784 = vpop.f32.mrb[0].mxu0
  %5785 = vmatprep.mubr.bf16.mxu0 %v5366
  %5786 = vmatmul.mubr.bf16.gmra.mrb[0].mxu0 %v5112
  %v5787 = vpop.f32.mrb[0].mxu0
  %v5788 = vadd.f32 0.0, %v5787
  %v5789 = vpop.f32.mrb[0].mxu0
  %v5790 = vpop.f32.mrb[0].mxu0
  %v5791 = vadd.f32 0.0, %v5790
  %v5792 = vpop.f32.mrb[0].mxu0
  %5793 = vmatprep.mubr.bf16.mxu0 %v5369
  %5794 = vmatmul.mubr.bf16.gmra.mrb[0].mxu0 %v5114
  %v5795 = vpop.f32.mrb[0].mxu0
  %v5796 = vadd.f32 0.0, %v5795
  %v5797 = vpop.f32.mrb[0].mxu0
  %v5798 = vpop.f32.mrb[0].mxu0
  %v5799 = vadd.f32 0.0, %v5798
  %v5800 = vpop.f32.mrb[0].mxu0
  %5801 = vmatprep.mubr.bf16.mxu0 %v5372
  %5802 = vmatmul.mubr.bf16.gmra.mrb[0].mxu0 %v5116
  %v5803 = vpop.f32.mrb[0].mxu0
  %v5804 = vadd.f32 0.0, %v5803
  %v5805 = vpop.f32.mrb[0].mxu0
  %v5806 = vpop.f32.mrb[0].mxu0
  %v5807 = vadd.f32 0.0, %v5806
  %v5808 = vpop.f32.mrb[0].mxu0
  %5809 = vmatprep.mubr.bf16.mxu0 %v5375
  %5810 = vmatmul.mubr.bf16.gmra.mrb[0].mxu0 %v5118
  %v5811 = vpop.f32.mrb[0].mxu0
  %v5812 = vadd.f32 0.0, %v5811
  %v5813 = vpop.f32.mrb[0].mxu0
  %v5814 = vpop.f32.mrb[0].mxu0
  %v5815 = vadd.f32 0.0, %v5814
  %v5816 = vpop.f32.mrb[0].mxu0
  %5817 = vmatprep.mubr.bf16.mxu0 %v5378
  %5818 = vmatmul.mubr.bf16.gmra.mrb[0].mxu0 %v5120
  %v5819 = vpop.f32.mrb[0].mxu0
  %v5820 = vadd.f32 0.0, %v5819
  %v5821 = vpop.f32.mrb[0].mxu0
  %v5822 = vpop.f32.mrb[0].mxu0
  %v5823 = vadd.f32 0.0, %v5822
  %v5824 = vpop.f32.mrb[0].mxu0
  %5825 = vmatprep.mubr.bf16.mxu0 %v5381
  %5826 = vmatmul.mubr.bf16.gmra.mrb[0].mxu0 %v5122
  %v5827 = vpop.f32.mrb[0].mxu0
  %v5828 = vadd.f32 0.0, %v5827
  %v5829 = vpop.f32.mrb[0].mxu0
  %v5830 = vpop.f32.mrb[0].mxu0
  %v5831 = vadd.f32 0.0, %v5830
  %v5832 = vpop.f32.mrb[0].mxu0
  %5833 = vmatprep.mubr.bf16.mxu0 %v5384
  %5834 = vmatmul.mubr.bf16.gmra.mrb[0].mxu0 %v5124
  %v5835 = vpop.f32.mrb[0].mxu0
  %v5836 = vadd.f32 0.0, %v5835
  %v5837 = vpop.f32.mrb[0].mxu0
  %v5838 = vpop.f32.mrb[0].mxu0
  %v5839 = vadd.f32 0.0, %v5838
  %v5840 = vpop.f32.mrb[0].mxu0
  %5841 = vmatprep.mubr.bf16.mxu0 %v5387
  %5842 = vmatmul.mubr.bf16.gmra.mrb[0].mxu0 %v5126
  %v5843 = vpop.f32.mrb[0].mxu0
  %v5844 = vadd.f32 0.0, %v5843
  %v5845 = vpop.f32.mrb[0].mxu0
  %v5846 = vpop.f32.mrb[0].mxu0
  %v5847 = vadd.f32 0.0, %v5846
  %v5848 = vpop.f32.mrb[0].mxu0
  %5849 = vmatprep.mubr.bf16.mxu0 %v5390
  %5850 = vmatmul.mubr.bf16.gmra.mrb[0].mxu0 %v5128
  %v5851 = vpop.f32.mrb[0].mxu0
  %v5852 = vadd.f32 0.0, %v5851
  %v5853 = vpop.f32.mrb[0].mxu0
  %v5854 = vpop.f32.mrb[0].mxu0
  %v5855 = vadd.f32 0.0, %v5854
  %v5856 = vpop.f32.mrb[0].mxu0
  %5857 = vmatprep.mubr.bf16.mxu0 %v5393
  %5858 = vmatmul.mubr.bf16.gmra.mrb[0].mxu0 %v5130
  %v5859 = vpop.f32.mrb[0].mxu0
  %v5860 = vadd.f32 0.0, %v5859
  %v5861 = vpop.f32.mrb[0].mxu0
  %v5862 = vpop.f32.mrb[0].mxu0
  %v5863 = vadd.f32 0.0, %v5862
  %v5864 = vpop.f32.mrb[0].mxu0
  %5865 = vmatprep.mubr.bf16.mxu0 %v5396
  %5866 = vmatmul.mubr.bf16.gmra.mrb[0].mxu0 %v5132
  %v5867 = vpop.f32.mrb[0].mxu0
  %v5868 = vadd.f32 0.0, %v5867
  %v5869 = vpop.f32.mrb[0].mxu0
  %v5870 = vpop.f32.mrb[0].mxu0
  %v5871 = vadd.f32 0.0, %v5870
  %v5872 = vpop.f32.mrb[0].mxu0
  %5873 = vmatprep.mubr.bf16.mxu0 %v5399
  %5874 = vmatmul.mubr.bf16.gmra.mrb[0].mxu0 %v5134
  %v5875 = vpop.f32.mrb[0].mxu0
  %v5876 = vadd.f32 0.0, %v5875
  %v5877 = vpop.f32.mrb[0].mxu0
  %v5878 = vpop.f32.mrb[0].mxu0
  %v5879 = vadd.f32 0.0, %v5878
  %v5880 = vpop.f32.mrb[0].mxu0
  %5881 = vdwg.mxu0
  %v5882 = vadd.f32 %v4912, %v5436
  %v5883 = vadd.f32 %v4913, %v5439
  %v5884 = vadd.f32 %v4914, %v5444
  %v5885 = vadd.f32 %v4915, %v5447
  %v5886 = vadd.f32 %v4916, %v5452
  %v5887 = vadd.f32 %v4917, %v5455
  %v5888 = vadd.f32 %v4918, %v5460
  %v5889 = vadd.f32 %v4919, %v5463
  %v5890 = vadd.f32 %v4920, %v5468
  %v5891 = vadd.f32 %v4921, %v5471
  %v5892 = vadd.f32 %v4922, %v5476
  %v5893 = vadd.f32 %v4923, %v5479
  %v5894 = vadd.f32 %v4924, %v5484
  %v5895 = vadd.f32 %v4925, %v5487
  %v5896 = vadd.f32 %v4926, %v5492
  %v5897 = vadd.f32 %v4927, %v5495
  %v5898 = vadd.f32 %v4928, %v5500
  %v5899 = vadd.f32 %v4929, %v5503
  %v5900 = vadd.f32 %v4930, %v5508
  %v5901 = vadd.f32 %v4931, %v5511
  %v5902 = vadd.f32 %v4932, %v5516
  %v5903 = vadd.f32 %v4933, %v5519
  %v5904 = vadd.f32 %v4934, %v5524
  %v5905 = vadd.f32 %v4935, %v5527
  %v5906 = vadd.f32 %v4936, %v5532
  %v5907 = vadd.f32 %v4937, %v5535
  %v5908 = vadd.f32 %v4938, %v5540
  %v5909 = vadd.f32 %v4939, %v5543
  %v5910 = vadd.f32 %v4940, %v5548
  %v5911 = vadd.f32 %v4941, %v5551
  %v5912 = vadd.f32 %v4942, %v5556
  %v5913 = vadd.f32 %v4943, %v5559
  %v5914 = vadd.f32 %v4944, %v5564
  %v5915 = vadd.f32 %v4945, %v5567
  %v5916 = vadd.f32 %v4946, %v5572
  %v5917 = vadd.f32 %v4947, %v5575
  %v5918 = vadd.f32 %v4948, %v5580
  %v5919 = vadd.f32 %v4949, %v5583
  %v5920 = vadd.f32 %v4950, %v5588
  %v5921 = vadd.f32 %v4951, %v5591
  %v5922 = vadd.f32 %v4952, %v5596
  %v5923 = vadd.f32 %v4953, %v5599
  %v5924 = vadd.f32 %v4954, %v5604
  %v5925 = vadd.f32 %v4955, %v5607
  %v5926 = vadd.f32 %v4956, %v5612
  %v5927 = vadd.f32 %v4957, %v5615
  %v5928 = vadd.f32 %v4958, %v5620
  %v5929 = vadd.f32 %v4959, %v5623
  %v5930 = vadd.f32 %v4960, %v5628
  %v5931 = vadd.f32 %v4961, %v5631
  %v5932 = vadd.f32 %v4962, %v5636
  %v5933 = vadd.f32 %v4963, %v5639
  %v5934 = vadd.f32 %v4964, %v5644
  %v5935 = vadd.f32 %v4965, %v5647
  %v5936 = vadd.f32 %v4966, %v5652
  %v5937 = vadd.f32 %v4967, %v5655
  %v5938 = vadd.f32 %v4968, %v5660
  %v5939 = vadd.f32 %v4969, %v5663
  %v5940 = vadd.f32 %v4970, %v5668
  %v5941 = vadd.f32 %v4971, %v5671
  %v5942 = vadd.f32 %v4972, %v5676
  %v5943 = vadd.f32 %v4973, %v5679
  %v5944 = vadd.f32 %v4974, %v5684
  %v5945 = vadd.f32 %v4975, %v5687
  %v5946 = vadd.f32 %v4976, %v5692
  %v5947 = vadd.f32 %v4977, %v5695
  %v5948 = vadd.f32 %v4978, %v5700
  %v5949 = vadd.f32 %v4979, %v5703
  %v5950 = vadd.f32 %v4980, %v5708
  %v5951 = vadd.f32 %v4981, %v5711
  %v5952 = vadd.f32 %v4982, %v5716
  %v5953 = vadd.f32 %v4983, %v5719
  %v5954 = vadd.f32 %v4984, %v5724
  %v5955 = vadd.f32 %v4985, %v5727
  %v5956 = vadd.f32 %v4986, %v5732
  %v5957 = vadd.f32 %v4987, %v5735
  %v5958 = vadd.f32 %v4988, %v5740
  %v5959 = vadd.f32 %v4989, %v5743
  %v5960 = vadd.f32 %v4990, %v5748
  %v5961 = vadd.f32 %v4991, %v5751
  %v5962 = vadd.f32 %v4992, %v5756
  %v5963 = vadd.f32 %v4993, %v5759
  %v5964 = vadd.f32 %v4994, %v5764
  %v5965 = vadd.f32 %v4995, %v5767
  %v5966 = vadd.f32 %v4996, %v5772
  %v5967 = vadd.f32 %v4997, %v5775
  %v5968 = vadd.f32 %v4998, %v5780
  %v5969 = vadd.f32 %v4999, %v5783
  %v5970 = vadd.f32 %v5000, %v5788
  %v5971 = vadd.f32 %v5001, %v5791
  %v5972 = vadd.f32 %v5002, %v5796
  %v5973 = vadd.f32 %v5003, %v5799
  %v5974 = vadd.f32 %v5004, %v5804
  %v5975 = vadd.f32 %v5005, %v5807
  %v5976 = vadd.f32 %v5006, %v5812
  %v5977 = vadd.f32 %v5007, %v5815
  %v5978 = vadd.f32 %v5008, %v5820
  %v5979 = vadd.f32 %v5009, %v5823
  %v5980 = vadd.f32 %v5010, %v5828
  %v5981 = vadd.f32 %v5011, %v5831
  %v5982 = vadd.f32 %v5012, %v5836
  %v5983 = vadd.f32 %v5013, %v5839
  %v5984 = vadd.f32 %v5014, %v5844
  %v5985 = vadd.f32 %v5015, %v5847
  %v5986 = vadd.f32 %v5016, %v5852
  %v5987 = vadd.f32 %v5017, %v5855
  %v5988 = vadd.f32 %v5018, %v5860
  %v5989 = vadd.f32 %v5019, %v5863
  %v5990 = vadd.f32 %v5020, %v5868
  %v5991 = vadd.f32 %v5021, %v5871
  %v5992 = vadd.f32 %v5022, %v5876
  %v5993 = vadd.f32 %v5023, %v5879
  %5994 = vst [vmem:[%s2] sm:$0xff] %v5882
  %5995 = vst [vmem:[%s2 + $0x8] sm:$0xff] %v5883
  %5996 = vst [vmem:[%s2 + $0x10] sm:$0xff] %v5884
  %5997 = vst [vmem:[%s2 + $0x18] sm:$0xff] %v5885
  %5998 = vst [vmem:[%s2 + $0x20] sm:$0xff] %v5886
  %5999 = vst [vmem:[%s2 + $0x28] sm:$0xff] %v5887
  %6000 = vst [vmem:[%s2 + $0x30] sm:$0xff] %v5888
  %6001 = vst [vmem:[%s2 + $0x38] sm:$0xff] %v5889
  %6002 = vst [vmem:[%s2 + $0x40] sm:$0xff] %v5890
  %6003 = vst [vmem:[%s2 + $0x48] sm:$0xff] %v5891
  %6004 = vst [vmem:[%s2 + $0x50] sm:$0xff] %v5892
  %6005 = vst [vmem:[%s2 + $0x58] sm:$0xff] %v5893
  %6006 = vst [vmem:[%s2 + $0x60] sm:$0xff] %v5894
  %6007 = vst [vmem:[%s2 + $0x68] sm:$0xff] %v5895
  %6008 = vst [vmem:[%s2 + $0x70] sm:$0xff] %v5896
  %6009 = vst [vmem:[%s2 + $0x78] sm:$0xff] %v5897
  %6010 = vst [vmem:[%s2 + $0x80] sm:$0xff] %v5898
  %6011 = vst [vmem:[%s2 + $0x88] sm:$0xff] %v5899
  %6012 = vst [vmem:[%s2 + $0x90] sm:$0xff] %v5900
  %6013 = vst [vmem:[%s2 + $0x98] sm:$0xff] %v5901
  %6014 = vst [vmem:[%s2 + $0xa0] sm:$0xff] %v5902
  %6015 = vst [vmem:[%s2 + $0xa8] sm:$0xff] %v5903
  %6016 = vst [vmem:[%s2 + $0xb0] sm:$0xff] %v5904
  %6017 = vst [vmem:[%s2 + $0xb8] sm:$0xff] %v5905
  %6018 = vst [vmem:[%s2 + $0xc0] sm:$0xff] %v5906
  %6019 = vst [vmem:[%s2 + $0xc8] sm:$0xff] %v5907
  %6020 = vst [vmem:[%s2 + $0xd0] sm:$0xff] %v5908
  %6021 = vst [vmem:[%s2 + $0xd8] sm:$0xff] %v5909
  %6022 = vst [vmem:[%s2 + $0xe0] sm:$0xff] %v5910
  %6023 = vst [vmem:[%s2 + $0xe8] sm:$0xff] %v5911
  %6024 = vst [vmem:[%s2 + $0xf0] sm:$0xff] %v5912
  %6025 = vst [vmem:[%s2 + $0xf8] sm:$0xff] %v5913
  %6026 = vst [vmem:[%s2 + $0x100] sm:$0xff] %v5914
  %6027 = vst [vmem:[%s2 + $0x108] sm:$0xff] %v5915
  %6028 = vst [vmem:[%s2 + $0x110] sm:$0xff] %v5916
  %6029 = vst [vmem:[%s2 + $0x118] sm:$0xff] %v5917
  %6030 = vst [vmem:[%s2 + $0x120] sm:$0xff] %v5918
  %6031 = vst [vmem:[%s2 + $0x128] sm:$0xff] %v5919
  %6032 = vst [vmem:[%s2 + $0x130] sm:$0xff] %v5920
  %6033 = vst [vmem:[%s2 + $0x138] sm:$0xff] %v5921
  %6034 = vst [vmem:[%s2 + $0x140] sm:$0xff] %v5922
  %6035 = vst [vmem:[%s2 + $0x148] sm:$0xff] %v5923
  %6036 = vst [vmem:[%s2 + $0x150] sm:$0xff] %v5924
  %6037 = vst [vmem:[%s2 + $0x158] sm:$0xff] %v5925
  %6038 = vst [vmem:[%s2 + $0x160] sm:$0xff] %v5926
  %6039 = vst [vmem:[%s2 + $0x168] sm:$0xff] %v5927
  %6040 = vst [vmem:[%s2 + $0x170] sm:$0xff] %v5928
  %6041 = vst [vmem:[%s2 + $0x178] sm:$0xff] %v5929
  %6042 = vst [vmem:[%s2 + $0x180] sm:$0xff] %v5930
  %6043 = vst [vmem:[%s2 + $0x188] sm:$0xff] %v5931
  %6044 = vst [vmem:[%s2 + $0x190] sm:$0xff] %v5932
  %6045 = vst [vmem:[%s2 + $0x198] sm:$0xff] %v5933
  %6046 = vst [vmem:[%s2 + $0x1a0] sm:$0xff] %v5934
  %6047 = vst [vmem:[%s2 + $0x1a8] sm:$0xff] %v5935
  %6048 = vst [vmem:[%s2 + $0x1b0] sm:$0xff] %v5936
  %6049 = vst [vmem:[%s2 + $0x1b8] sm:$0xff] %v5937
  %6050 = vst [vmem:[%s2 + $0x1c0] sm:$0xff] %v5938
  %6051 = vst [vmem:[%s2 + $0x1c8] sm:$0xff] %v5939
  %6052 = vst [vmem:[%s2 + $0x1d0] sm:$0xff] %v5940
  %6053 = vst [vmem:[%s2 + $0x1d8] sm:$0xff] %v5941
  %6054 = vst [vmem:[%s2 + $0x1e0] sm:$0xff] %v5942
  %6055 = vst [vmem:[%s2 + $0x1e8] sm:$0xff] %v5943
  %6056 = vst [vmem:[%s2 + $0x1f0] sm:$0xff] %v5944
  %6057 = vst [vmem:[%s2 + $0x1f8] sm:$0xff] %v5945
  %6058 = vst [vmem:[%s2 + $0x200] sm:$0xff] %v5946
  %6059 = vst [vmem:[%s2 + $0x208] sm:$0xff] %v5947
  %6060 = vst [vmem:[%s2 + $0x210] sm:$0xff] %v5948
  %6061 = vst [vmem:[%s2 + $0x218] sm:$0xff] %v5949
  %6062 = vst [vmem:[%s2 + $0x220] sm:$0xff] %v5950
  %6063 = vst [vmem:[%s2 + $0x228] sm:$0xff] %v5951
  %6064 = vst [vmem:[%s2 + $0x230] sm:$0xff] %v5952
  %6065 = vst [vmem:[%s2 + $0x238] sm:$0xff] %v5953
  %6066 = vst [vmem:[%s2 + $0x240] sm:$0xff] %v5954
  %6067 = vst [vmem:[%s2 + $0x248] sm:$0xff] %v5955
  %6068 = vst [vmem:[%s2 + $0x250] sm:$0xff] %v5956
  %6069 = vst [vmem:[%s2 + $0x258] sm:$0xff] %v5957
  %6070 = vst [vmem:[%s2 + $0x260] sm:$0xff] %v5958
  %6071 = vst [vmem:[%s2 + $0x268] sm:$0xff] %v5959
  %6072 = vst [vmem:[%s2 + $0x270] sm:$0xff] %v5960
  %6073 = vst [vmem:[%s2 + $0x278] sm:$0xff] %v5961
  %6074 = vst [vmem:[%s2 + $0x280] sm:$0xff] %v5962
  %6075 = vst [vmem:[%s2 + $0x288] sm:$0xff] %v5963
  %6076 = vst [vmem:[%s2 + $0x290] sm:$0xff] %v5964
  %6077 = vst [vmem:[%s2 + $0x298] sm:$0xff] %v5965
  %6078 = vst [vmem:[%s2 + $0x2a0] sm:$0xff] %v5966
  %6079 = vst [vmem:[%s2 + $0x2a8] sm:$0xff] %v5967
  %6080 = vst [vmem:[%s2 + $0x2b0] sm:$0xff] %v5968
  %6081 = vst [vmem:[%s2 + $0x2b8] sm:$0xff] %v5969
  %6082 = vst [vmem:[%s2 + $0x2c0] sm:$0xff] %v5970
  %6083 = vst [vmem:[%s2 + $0x2c8] sm:$0xff] %v5971
  %6084 = vst [vmem:[%s2 + $0x2d0] sm:$0xff] %v5972
  %6085 = vst [vmem:[%s2 + $0x2d8] sm:$0xff] %v5973
  %6086 = vst [vmem:[%s2 + $0x2e0] sm:$0xff] %v5974
  %6087 = vst [vmem:[%s2 + $0x2e8] sm:$0xff] %v5975
  %6088 = vst [vmem:[%s2 + $0x2f0] sm:$0xff] %v5976
  %6089 = vst [vmem:[%s2 + $0x2f8] sm:$0xff] %v5977
  %6090 = vst [vmem:[%s2 + $0x300] sm:$0xff] %v5978
  %6091 = vst [vmem:[%s2 + $0x308] sm:$0xff] %v5979
  %6092 = vst [vmem:[%s2 + $0x310] sm:$0xff] %v5980
  %6093 = vst [vmem:[%s2 + $0x318] sm:$0xff] %v5981
  %6094 = vst [vmem:[%s2 + $0x320] sm:$0xff] %v5982
  %6095 = vst [vmem:[%s2 + $0x328] sm:$0xff] %v5983
  %6096 = vst [vmem:[%s2 + $0x330] sm:$0xff] %v5984
  %6097 = vst [vmem:[%s2 + $0x338] sm:$0xff] %v5985
  %6098 = vst [vmem:[%s2 + $0x340] sm:$0xff] %v5986
  %6099 = vst [vmem:[%s2 + $0x348] sm:$0xff] %v5987
  %6100 = vst [vmem:[%s2 + $0x350] sm:$0xff] %v5988
  %6101 = vst [vmem:[%s2 + $0x358] sm:$0xff] %v5989
  %6102 = vst [vmem:[%s2 + $0x360] sm:$0xff] %v5990
  %6103 = vst [vmem:[%s2 + $0x368] sm:$0xff] %v5991
  %6104 = vst [vmem:[%s2 + $0x370] sm:$0xff] %v5992
  %6105 = vst [vmem:[%s2 + $0x378] sm:$0xff] %v5993
  %v6106 = vld [vmem:[%s2] sm:$0xff]
  %v6107 = vld [vmem:[%s2 + $0x8] sm:$0xff]
  %v6108 = vld [vmem:[%s2 + $0x10] sm:$0xff]
  %v6109 = vld [vmem:[%s2 + $0x18] sm:$0xff]
  %v6110 = vld [vmem:[%s2 + $0x20] sm:$0xff]
  %v6111 = vld [vmem:[%s2 + $0x28] sm:$0xff]
  %v6112 = vld [vmem:[%s2 + $0x30] sm:$0xff]
  %v6113 = vld [vmem:[%s2 + $0x38] sm:$0xff]
  %v6114 = vld [vmem:[%s2 + $0x40] sm:$0xff]
  %v6115 = vld [vmem:[%s2 + $0x48] sm:$0xff]
  %v6116 = vld [vmem:[%s2 + $0x50] sm:$0xff]
  %v6117 = vld [vmem:[%s2 + $0x58] sm:$0xff]
  %v6118 = vld [vmem:[%s2 + $0x60] sm:$0xff]
  %v6119 = vld [vmem:[%s2 + $0x68] sm:$0xff]
  %v6120 = vld [vmem:[%s2 + $0x70] sm:$0xff]
  %v6121 = vld [vmem:[%s2 + $0x78] sm:$0xff]
  %v6122 = vld [vmem:[%s2 + $0x80] sm:$0xff]
  %v6123 = vld [vmem:[%s2 + $0x88] sm:$0xff]
  %v6124 = vld [vmem:[%s2 + $0x90] sm:$0xff]
  %v6125 = vld [vmem:[%s2 + $0x98] sm:$0xff]
  %v6126 = vld [vmem:[%s2 + $0xa0] sm:$0xff]
  %v6127 = vld [vmem:[%s2 + $0xa8] sm:$0xff]
  %v6128 = vld [vmem:[%s2 + $0xb0] sm:$0xff]
  %v6129 = vld [vmem:[%s2 + $0xb8] sm:$0xff]
  %v6130 = vld [vmem:[%s2 + $0xc0] sm:$0xff]
  %v6131 = vld [vmem:[%s2 + $0xc8] sm:$0xff]
  %v6132 = vld [vmem:[%s2 + $0xd0] sm:$0xff]
  %v6133 = vld [vmem:[%s2 + $0xd8] sm:$0xff]
  %v6134 = vld [vmem:[%s2 + $0xe0] sm:$0xff]
  %v6135 = vld [vmem:[%s2 + $0xe8] sm:$0xff]
  %v6136 = vld [vmem:[%s2 + $0xf0] sm:$0xff]
  %v6137 = vld [vmem:[%s2 + $0xf8] sm:$0xff]
  %v6138 = vld [vmem:[%s2 + $0x100] sm:$0xff]
  %v6139 = vld [vmem:[%s2 + $0x108] sm:$0xff]
  %v6140 = vld [vmem:[%s2 + $0x110] sm:$0xff]
  %v6141 = vld [vmem:[%s2 + $0x118] sm:$0xff]
  %v6142 = vld [vmem:[%s2 + $0x120] sm:$0xff]
  %v6143 = vld [vmem:[%s2 + $0x128] sm:$0xff]
  %v6144 = vld [vmem:[%s2 + $0x130] sm:$0xff]
  %v6145 = vld [vmem:[%s2 + $0x138] sm:$0xff]
  %v6146 = vld [vmem:[%s2 + $0x140] sm:$0xff]
  %v6147 = vld [vmem:[%s2 + $0x148] sm:$0xff]
  %v6148 = vld [vmem:[%s2 + $0x150] sm:$0xff]
  %v6149 = vld [vmem:[%s2 + $0x158] sm:$0xff]
  %v6150 = vld [vmem:[%s2 + $0x160] sm:$0xff]
  %v6151 = vld [vmem:[%s2 + $0x168] sm:$0xff]
  %v6152 = vld [vmem:[%s2 + $0x170] sm:$0xff]
  %v6153 = vld [vmem:[%s2 + $0x178] sm:$0xff]
  %v6154 = vld [vmem:[%s2 + $0x180] sm:$0xff]
  %v6155 = vld [vmem:[%s2 + $0x188] sm:$0xff]
  %v6156 = vld [vmem:[%s2 + $0x190] sm:$0xff]
  %v6157 = vld [vmem:[%s2 + $0x198] sm:$0xff]
  %v6158 = vld [vmem:[%s2 + $0x1a0] sm:$0xff]
  %v6159 = vld [vmem:[%s2 + $0x1a8] sm:$0xff]
  %v6160 = vld [vmem:[%s2 + $0x1b0] sm:$0xff]
  %v6161 = vld [vmem:[%s2 + $0x1b8] sm:$0xff]
  %v6162 = vld [vmem:[%s2 + $0x1c0] sm:$0xff]
  %v6163 = vld [vmem:[%s2 + $0x1c8] sm:$0xff]
  %v6164 = vld [vmem:[%s2 + $0x1d0] sm:$0xff]
  %v6165 = vld [vmem:[%s2 + $0x1d8] sm:$0xff]
  %v6166 = vld [vmem:[%s2 + $0x1e0] sm:$0xff]
  %v6167 = vld [vmem:[%s2 + $0x1e8] sm:$0xff]
  %v6168 = vld [vmem:[%s2 + $0x1f0] sm:$0xff]
  %v6169 = vld [vmem:[%s2 + $0x1f8] sm:$0xff]
  %v6170 = vld [vmem:[%s2 + $0x200] sm:$0xff]
  %v6171 = vld [vmem:[%s2 + $0x208] sm:$0xff]
  %v6172 = vld [vmem:[%s2 + $0x210] sm:$0xff]
  %v6173 = vld [vmem:[%s2 + $0x218] sm:$0xff]
  %v6174 = vld [vmem:[%s2 + $0x220] sm:$0xff]
  %v6175 = vld [vmem:[%s2 + $0x228] sm:$0xff]
  %v6176 = vld [vmem:[%s2 + $0x230] sm:$0xff]
  %v6177 = vld [vmem:[%s2 + $0x238] sm:$0xff]
  %v6178 = vld [vmem:[%s2 + $0x240] sm:$0xff]
  %v6179 = vld [vmem:[%s2 + $0x248] sm:$0xff]
  %v6180 = vld [vmem:[%s2 + $0x250] sm:$0xff]
  %v6181 = vld [vmem:[%s2 + $0x258] sm:$0xff]
  %v6182 = vld [vmem:[%s2 + $0x260] sm:$0xff]
  %v6183 = vld [vmem:[%s2 + $0x268] sm:$0xff]
  %v6184 = vld [vmem:[%s2 + $0x270] sm:$0xff]
  %v6185 = vld [vmem:[%s2 + $0x278] sm:$0xff]
  %v6186 = vld [vmem:[%s2 + $0x280] sm:$0xff]
  %v6187 = vld [vmem:[%s2 + $0x288] sm:$0xff]
  %v6188 = vld [vmem:[%s2 + $0x290] sm:$0xff]
  %v6189 = vld [vmem:[%s2 + $0x298] sm:$0xff]
  %v6190 = vld [vmem:[%s2 + $0x2a0] sm:$0xff]
  %v6191 = vld [vmem:[%s2 + $0x2a8] sm:$0xff]
  %v6192 = vld [vmem:[%s2 + $0x2b0] sm:$0xff]
  %v6193 = vld [vmem:[%s2 + $0x2b8] sm:$0xff]
  %v6194 = vld [vmem:[%s2 + $0x2c0] sm:$0xff]
  %v6195 = vld [vmem:[%s2 + $0x2c8] sm:$0xff]
  %v6196 = vld [vmem:[%s2 + $0x2d0] sm:$0xff]
  %v6197 = vld [vmem:[%s2 + $0x2d8] sm:$0xff]
  %v6198 = vld [vmem:[%s2 + $0x2e0] sm:$0xff]
  %v6199 = vld [vmem:[%s2 + $0x2e8] sm:$0xff]
  %v6200 = vld [vmem:[%s2 + $0x2f0] sm:$0xff]
  %v6201 = vld [vmem:[%s2 + $0x2f8] sm:$0xff]
  %v6202 = vld [vmem:[%s2 + $0x300] sm:$0xff]
  %v6203 = vld [vmem:[%s2 + $0x308] sm:$0xff]
  %v6204 = vld [vmem:[%s2 + $0x310] sm:$0xff]
  %v6205 = vld [vmem:[%s2 + $0x318] sm:$0xff]
  %v6206 = vld [vmem:[%s2 + $0x320] sm:$0xff]
  %v6207 = vld [vmem:[%s2 + $0x328] sm:$0xff]
  %v6208 = vld [vmem:[%s2 + $0x330] sm:$0xff]
  %v6209 = vld [vmem:[%s2 + $0x338] sm:$0xff]
  %v6210 = vld [vmem:[%s2 + $0x340] sm:$0xff]
  %v6211 = vld [vmem:[%s2 + $0x348] sm:$0xff]
  %v6212 = vld [vmem:[%s2 + $0x350] sm:$0xff]
  %v6213 = vld [vmem:[%s2 + $0x358] sm:$0xff]
  %v6214 = vld [vmem:[%s2 + $0x360] sm:$0xff]
  %v6215 = vld [vmem:[%s2 + $0x368] sm:$0xff]
  %v6216 = vld [vmem:[%s2 + $0x370] sm:$0xff]
  %v6217 = vld [vmem:[%s2 + $0x378] sm:$0xff]
  %v6218 = vld [vmem:[#allocation2 + $0x40] sm:$0xff]
  %v6219 = vld [vmem:[#allocation2 + $0x48] sm:$0xff]
  %v6220 = vld [vmem:[#allocation2 + $0x50] sm:$0xff]
  %v6221 = vld [vmem:[#allocation2 + $0x58] sm:$0xff]
  %v6222 = vld [vmem:[#allocation2 + $0x60] sm:$0xff]
  %v6223 = vld [vmem:[#allocation2 + $0x68] sm:$0xff]
  %v6224 = vld [vmem:[#allocation2 + $0x70] sm:$0xff]
  %v6225 = vld [vmem:[#allocation2 + $0x78] sm:$0xff]
  %v6226 = vld [vmem:[#allocation2 + $0x80] sm:$0xff]
  %v6227 = vld [vmem:[#allocation2 + $0x88] sm:$0xff]
  %v6228 = vld [vmem:[#allocation2 + $0x90] sm:$0xff]
  %v6229 = vld [vmem:[#allocation2 + $0x98] sm:$0xff]
  %v6230 = vld [vmem:[#allocation2 + $0xa0] sm:$0xff]
  %v6231 = vld [vmem:[#allocation2 + $0xa8] sm:$0xff]
  %v6232 = vld [vmem:[#allocation2 + $0xb0] sm:$0xff]
  %v6233 = vld [vmem:[#allocation2 + $0xb8] sm:$0xff]
  %v6234 = vld [vmem:[#allocation2 + $0xc0] sm:$0xff]
  %v6235 = vld [vmem:[#allocation2 + $0xc8] sm:$0xff]
  %v6236 = vld [vmem:[#allocation2 + $0xd0] sm:$0xff]
  %v6237 = vld [vmem:[#allocation2 + $0xd8] sm:$0xff]
  %v6238 = vld [vmem:[#allocation2 + $0xe0] sm:$0xff]
  %v6239 = vld [vmem:[#allocation2 + $0xe8] sm:$0xff]
  %v6240 = vld [vmem:[#allocation2 + $0xf0] sm:$0xff]
  %v6241 = vld [vmem:[#allocation2 + $0xf8] sm:$0xff]
  %v6242 = vld [vmem:[#allocation2 + $0x100] sm:$0xff]
  %v6243 = vld [vmem:[#allocation2 + $0x108] sm:$0xff]
  %v6244 = vld [vmem:[#allocation2 + $0x110] sm:$0xff]
  %v6245 = vld [vmem:[#allocation2 + $0x118] sm:$0xff]
  %v6246 = vld [vmem:[#allocation2 + $0x120] sm:$0xff]
  %v6247 = vld [vmem:[#allocation2 + $0x128] sm:$0xff]
  %v6248 = vld [vmem:[#allocation2 + $0x130] sm:$0xff]
  %v6249 = vld [vmem:[#allocation2 + $0x138] sm:$0xff]
  %v6250 = vld [vmem:[#allocation2 + $0x140] sm:$0xff]
  %v6251 = vld [vmem:[#allocation2 + $0x148] sm:$0xff]
  %v6252 = vld [vmem:[#allocation2 + $0x150] sm:$0xff]
  %v6253 = vld [vmem:[#allocation2 + $0x158] sm:$0xff]
  %v6254 = vld [vmem:[#allocation2 + $0x160] sm:$0xff]
  %v6255 = vld [vmem:[#allocation2 + $0x168] sm:$0xff]
  %v6256 = vld [vmem:[#allocation2 + $0x170] sm:$0xff]
  %v6257 = vld [vmem:[#allocation2 + $0x178] sm:$0xff]
  %v6258 = vld [vmem:[#allocation2 + $0x180] sm:$0xff]
  %v6259 = vld [vmem:[#allocation2 + $0x188] sm:$0xff]
  %v6260 = vld [vmem:[#allocation2 + $0x190] sm:$0xff]
  %v6261 = vld [vmem:[#allocation2 + $0x198] sm:$0xff]
  %v6262 = vld [vmem:[#allocation2 + $0x1a0] sm:$0xff]
  %v6263 = vld [vmem:[#allocation2 + $0x1a8] sm:$0xff]
  %v6264 = vld [vmem:[#allocation2 + $0x1b0] sm:$0xff]
  %v6265 = vld [vmem:[#allocation2 + $0x1b8] sm:$0xff]
  %v6266 = vld [vmem:[#allocation2 + $0x1c0] sm:$0xff]
  %v6267 = vld [vmem:[#allocation2 + $0x1c8] sm:$0xff]
  %v6268 = vld [vmem:[#allocation2 + $0x1d0] sm:$0xff]
  %v6269 = vld [vmem:[#allocation2 + $0x1d8] sm:$0xff]
  %v6270 = vld [vmem:[#allocation2 + $0x1e0] sm:$0xff]
  %v6271 = vld [vmem:[#allocation2 + $0x1e8] sm:$0xff]
  %v6272 = vld [vmem:[#allocation2 + $0x1f0] sm:$0xff]
  %v6273 = vld [vmem:[#allocation2 + $0x1f8] sm:$0xff]
  %v6274 = vld [vmem:[#allocation2 + $0x200] sm:$0xff]
  %v6275 = vld [vmem:[#allocation2 + $0x208] sm:$0xff]
  %v6276 = vld [vmem:[#allocation2 + $0x210] sm:$0xff]
  %v6277 = vld [vmem:[#allocation2 + $0x218] sm:$0xff]
  %v6278 = vld [vmem:[#allocation2 + $0x220] sm:$0xff]
  %v6279 = vld [vmem:[#allocation2 + $0x228] sm:$0xff]
  %v6280 = vld [vmem:[#allocation2 + $0x230] sm:$0xff]
  %v6281 = vld [vmem:[#allocation2 + $0x238] sm:$0xff]
  %v6282 = vld [vmem:[#allocation2 + $0x240] sm:$0xff]
  %v6283 = vld [vmem:[#allocation2 + $0x248] sm:$0xff]
  %v6284 = vld [vmem:[#allocation2 + $0x250] sm:$0xff]
  %v6285 = vld [vmem:[#allocation2 + $0x258] sm:$0xff]
  %v6286 = vld [vmem:[#allocation2 + $0x260] sm:$0xff]
  %v6287 = vld [vmem:[#allocation2 + $0x268] sm:$0xff]
  %v6288 = vld [vmem:[#allocation2 + $0x270] sm:$0xff]
  %v6289 = vld [vmem:[#allocation2 + $0x278] sm:$0xff]
  %v6290 = vld [vmem:[#allocation2 + $0x280] sm:$0xff]
  %v6291 = vld [vmem:[#allocation2 + $0x288] sm:$0xff]
  %v6292 = vld [vmem:[#allocation2 + $0x290] sm:$0xff]
  %v6293 = vld [vmem:[#allocation2 + $0x298] sm:$0xff]
  %v6294 = vld [vmem:[#allocation2 + $0x2a0] sm:$0xff]
  %v6295 = vld [vmem:[#allocation2 + $0x2a8] sm:$0xff]
  %v6296 = vld [vmem:[#allocation2 + $0x2b0] sm:$0xff]
  %v6297 = vld [vmem:[#allocation2 + $0x2b8] sm:$0xff]
  %v6298 = vld [vmem:[#allocation2 + $0x2c0] sm:$0xff]
  %v6299 = vld [vmem:[#allocation2 + $0x2c8] sm:$0xff]
  %v6300 = vld [vmem:[#allocation2 + $0x2d0] sm:$0xff]
  %v6301 = vld [vmem:[#allocation2 + $0x2d8] sm:$0xff]
  %v6302 = vld [vmem:[#allocation2 + $0x2e0] sm:$0xff]
  %v6303 = vld [vmem:[#allocation2 + $0x2e8] sm:$0xff]
  %v6304 = vld [vmem:[#allocation2 + $0x2f0] sm:$0xff]
  %v6305 = vld [vmem:[#allocation2 + $0x2f8] sm:$0xff]
  %v6306 = vld [vmem:[#allocation2 + $0x300] sm:$0xff]
  %v6307 = vld [vmem:[#allocation2 + $0x308] sm:$0xff]
  %v6308 = vld [vmem:[#allocation2 + $0x310] sm:$0xff]
  %v6309 = vld [vmem:[#allocation2 + $0x318] sm:$0xff]
  %v6310 = vld [vmem:[#allocation2 + $0x320] sm:$0xff]
  %v6311 = vld [vmem:[#allocation2 + $0x328] sm:$0xff]
  %v6312 = vld [vmem:[#allocation2 + $0x330] sm:$0xff]
  %v6313 = vld [vmem:[#allocation2 + $0x338] sm:$0xff]
  %v6314 = vld [vmem:[#allocation2 + $0x340] sm:$0xff]
  %v6315 = vld [vmem:[#allocation2 + $0x348] sm:$0xff]
  %v6316 = vld [vmem:[#allocation2 + $0x350] sm:$0xff]
  %v6317 = vld [vmem:[#allocation2 + $0x358] sm:$0xff]
  %v6318 = vld [vmem:[#allocation2 + $0x360] sm:$0xff]
  %v6319 = vld [vmem:[#allocation2 + $0x368] sm:$0xff]
  %v6320 = vld [vmem:[#allocation2 + $0x370] sm:$0xff]
  %v6321 = vld [vmem:[#allocation2 + $0x378] sm:$0xff]
  %v6322 = vld [vmem:[#allocation2 + $0x380] sm:$0xff]
  %v6323 = vld [vmem:[#allocation2 + $0x388] sm:$0xff]
  %v6324 = vld [vmem:[#allocation2 + $0x390] sm:$0xff]
  %v6325 = vld [vmem:[#allocation2 + $0x398] sm:$0xff]
  %v6326 = vld [vmem:[#allocation2 + $0x3a0] sm:$0xff]
  %v6327 = vld [vmem:[#allocation2 + $0x3a8] sm:$0xff]
  %v6328 = vld [vmem:[#allocation2 + $0x3b0] sm:$0xff]
  %v6329 = vld [vmem:[#allocation2 + $0x3b8] sm:$0xff]
  %s6330 = scalar_lea.vmem %s1, 192
  %v6331 = vld [vmem:[%s6330] sm:$0xf]
  %v6332 = vld [vmem:[%s6330 + $0x4] sm:$0xf]
  %v6333 = vld [vmem:[%s6330 + $0x8] sm:$0xf]
  %v6334 = vld [vmem:[%s6330 + $0xc] sm:$0xf]
  %v6335 = vld [vmem:[%s6330 + $0x10] sm:$0xf]
  %v6336 = vld [vmem:[%s6330 + $0x14] sm:$0xf]
  %v6337 = vld [vmem:[%s6330 + $0x18] sm:$0xf]
  %v6338 = vld [vmem:[%s6330 + $0x1c] sm:$0xf]
  %v6339 = vld [vmem:[%s6330 + $0x20] sm:$0xf]
  %v6340 = vld [vmem:[%s6330 + $0x24] sm:$0xf]
  %v6341 = vld [vmem:[%s6330 + $0x28] sm:$0xf]
  %v6342 = vld [vmem:[%s6330 + $0x2c] sm:$0xf]
  %v6343 = vld [vmem:[%s6330 + $0x30] sm:$0xf]
  %v6344 = vld [vmem:[%s6330 + $0x34] sm:$0xf]
  %v6345 = vld [vmem:[%s6330 + $0x38] sm:$0xf]
  %v6346 = vld [vmem:[%s6330 + $0x3c] sm:$0xf]
  %v6347 = vld [vmem:[%s6330 + $0x40] sm:$0xf]
  %v6348 = vld [vmem:[%s6330 + $0x44] sm:$0xf]
  %v6349 = vld [vmem:[%s6330 + $0x48] sm:$0xf]
  %v6350 = vld [vmem:[%s6330 + $0x4c] sm:$0xf]
  %v6351 = vld [vmem:[%s6330 + $0x50] sm:$0xf]
  %v6352 = vld [vmem:[%s6330 + $0x54] sm:$0xf]
  %v6353 = vld [vmem:[%s6330 + $0x58] sm:$0xf]
  %v6354 = vld [vmem:[%s6330 + $0x5c] sm:$0xf]
  %v6379 = vunpack.c.l.b16 %v6331
  %v6380 = vunpack.c.l.b16 %v6332
  %v6381 = vunpack.c.l.b16 %v6333
  %v6382 = vunpack.c.l.b16 %v6334
  %v6383 = vunpack.c.l.b16 %v6335
  %v6384 = vunpack.c.l.b16 %v6336
  %v6385 = vunpack.c.l.b16 %v6337
  %v6386 = vunpack.c.l.b16 %v6338
  %v6387 = vunpack.c.l.b16 %v6339
  %v6388 = vunpack.c.l.b16 %v6340
  %v6389 = vunpack.c.l.b16 %v6341
  %v6390 = vunpack.c.l.b16 %v6342
  %v6391 = vunpack.c.l.b16 %v6343
  %v6392 = vunpack.c.l.b16 %v6344
  %v6393 = vunpack.c.l.b16 %v6345
  %v6394 = vunpack.c.l.b16 %v6346
  %v6395 = vunpack.c.l.b16 %v6347
  %v6396 = vunpack.c.l.b16 %v6348
  %v6397 = vunpack.c.l.b16 %v6349
  %v6398 = vunpack.c.l.b16 %v6350
  %v6399 = vunpack.c.l.b16 %v6351
  %v6400 = vunpack.c.l.b16 %v6352
  %v6401 = vunpack.c.l.b16 %v6353
  %v6402 = vunpack.c.l.b16 %v6354
  %v6403 = vpack.c.b16 %v6380, %v6379
  %v6404 = vpack.c.b16 %v6382, %v6381
  %v6405 = vpack.c.b16 %v6384, %v6383
  %v6406 = vpack.c.b16 %v6386, %v6385
  %v6407 = vpack.c.b16 %v6388, %v6387
  %v6408 = vpack.c.b16 %v6390, %v6389
  %v6409 = vpack.c.b16 %v6392, %v6391
  %v6410 = vpack.c.b16 %v6394, %v6393
  %v6411 = vpack.c.b16 %v6396, %v6395
  %v6412 = vpack.c.b16 %v6398, %v6397
  %v6413 = vpack.c.b16 %v6400, %v6399
  %v6414 = vpack.c.b16 %v6402, %v6401
  %v6428 = vsel %vm13, %v6219, 0
  %v6431 = vsel %vm13, %v6221, 0
  %v6434 = vsel %vm13, %v6223, 0
  %v6437 = vsel %vm13, %v6225, 0
  %v6440 = vsel %vm13, %v6227, 0
  %v6443 = vsel %vm13, %v6229, 0
  %v6446 = vsel %vm13, %v6231, 0
  %v6449 = vsel %vm13, %v6233, 0
  %v6452 = vsel %vm13, %v6235, 0
  %v6455 = vsel %vm13, %v6237, 0
  %v6458 = vsel %vm13, %v6239, 0
  %v6461 = vsel %vm13, %v6241, 0
  %v6464 = vsel %vm13, %v6243, 0
  %v6467 = vsel %vm13, %v6245, 0
  %v6470 = vsel %vm13, %v6247, 0
  %v6473 = vsel %vm13, %v6249, 0
  %v6476 = vsel %vm13, %v6251, 0
  %v6479 = vsel %vm13, %v6253, 0
  %v6482 = vsel %vm13, %v6255, 0
  %v6485 = vsel %vm13, %v6257, 0
  %v6488 = vsel %vm13, %v6259, 0
  %v6491 = vsel %vm13, %v6261, 0
  %v6494 = vsel %vm13, %v6263, 0
  %v6497 = vsel %vm13, %v6265, 0
  %v6500 = vsel %vm13, %v6267, 0
  %v6503 = vsel %vm13, %v6269, 0
  %v6506 = vsel %vm13, %v6271, 0
  %v6509 = vsel %vm13, %v6273, 0
  %v6512 = vsel %vm13, %v6275, 0
  %v6515 = vsel %vm13, %v6277, 0
  %v6518 = vsel %vm13, %v6279, 0
  %v6521 = vsel %vm13, %v6281, 0
  %v6524 = vsel %vm13, %v6283, 0
  %v6527 = vsel %vm13, %v6285, 0
  %v6530 = vsel %vm13, %v6287, 0
  %v6533 = vsel %vm13, %v6289, 0
  %v6536 = vsel %vm13, %v6291, 0
  %v6539 = vsel %vm13, %v6293, 0
  %v6542 = vsel %vm13, %v6295, 0
  %v6545 = vsel %vm13, %v6297, 0
  %v6548 = vsel %vm13, %v6299, 0
  %v6551 = vsel %vm13, %v6301, 0
  %v6554 = vsel %vm13, %v6303, 0
  %v6557 = vsel %vm13, %v6305, 0
  %v6560 = vsel %vm13, %v6307, 0
  %v6563 = vsel %vm13, %v6309, 0
  %v6566 = vsel %vm13, %v6311, 0
  %v6569 = vsel %vm13, %v6313, 0
  %v6572 = vsel %vm13, %v6315, 0
  %v6575 = vsel %vm13, %v6317, 0
  %v6578 = vsel %vm13, %v6319, 0
  %v6581 = vsel %vm13, %v6321, 0
  %v6584 = vsel %vm13, %v6323, 0
  %v6587 = vsel %vm13, %v6325, 0
  %v6590 = vsel %vm13, %v6327, 0
  %v6593 = vsel %vm13, %v6329, 0
  %6595 = vmatprep.subr.bf16.mxu0 0
  %6596 = vmatpush1.bf16.msra.mxu0 %v6403
  %6597 = vmatprep.subr.bf16.mxu0 0
  %6598 = vmatpush1.bf16.msra.mxu0 %v6404
  %6599 = vmatprep.subr.bf16.mxu0 0
  %6600 = vmatpush1.bf16.msra.mxu0 %v6405
  %6601 = vmatprep.subr.bf16.mxu0 0
  %6602 = vmatpush1.bf16.msra.mxu0 %v6406
  %6603 = vmatprep.subr.bf16.mxu0 0
  %6604 = vmatpush1.bf16.msra.mxu0 %v6407
  %6605 = vmatprep.subr.bf16.mxu0 0
  %6606 = vmatpush1.bf16.msra.mxu0 %v6408
  %6607 = vmatprep.subr.bf16.mxu0 0
  %6608 = vmatpush1.bf16.msra.mxu0 %v6409
  %6609 = vmatprep.subr.bf16.mxu0 0
  %6610 = vmatpush1.bf16.msra.mxu0 %v6410
  %6611 = vmatprep.subr.bf16.mxu0 0
  %6612 = vmatpush1.bf16.msra.mxu0 %v6411
  %6613 = vmatprep.subr.bf16.mxu0 0
  %6614 = vmatpush1.bf16.msra.mxu0 %v6412
  %6615 = vmatprep.subr.bf16.mxu0 0
  %6616 = vmatpush1.bf16.msra.mxu0 %v6413
  %6617 = vmatprep.subr.bf16.mxu0 0
  %6618 = vmatpush1.bf16.msra.mxu0 %v6414
  %6619 = vmatprep.subr.bf16.mxu0 0
  %6620 = vmatpush1.bf16.msra.mxu0 0
  %6621 = vmatprep.subr.bf16.mxu0 0
  %6622 = vmatpush1.bf16.msra.mxu0 0
  %6623 = vmatprep.subr.bf16.mxu0 0
  %6624 = vmatpush1.bf16.msra.mxu0 0
  %6625 = vmatprep.subr.bf16.mxu0 0
  %6626 = vmatpush1.bf16.msra.mxu0 0
  %6627 = vmatprep.mubr.bf16.mxu0 %v6428
  %6628 = vmatmul.mubr.bf16.gmra.mrb[0].mxu0 %v6218
  %v6629 = vpop.f32.mrb[0].mxu0
  %v6630 = vadd.f32 0.0, %v6629
  %v6631 = vpop.f32.mrb[0].mxu0
  %v6632 = vpop.f32.mrb[0].mxu0
  %v6633 = vadd.f32 0.0, %v6632
  %v6634 = vpop.f32.mrb[0].mxu0
  %6635 = vmatprep.mubr.bf16.mxu0 %v6431
  %6636 = vmatmul.mubr.bf16.gmra.mrb[0].mxu0 %v6220
  %v6637 = vpop.f32.mrb[0].mxu0
  %v6638 = vadd.f32 0.0, %v6637
  %v6639 = vpop.f32.mrb[0].mxu0
  %v6640 = vpop.f32.mrb[0].mxu0
  %v6641 = vadd.f32 0.0, %v6640
  %v6642 = vpop.f32.mrb[0].mxu0
  %6643 = vmatprep.mubr.bf16.mxu0 %v6434
  %6644 = vmatmul.mubr.bf16.gmra.mrb[0].mxu0 %v6222
  %v6645 = vpop.f32.mrb[0].mxu0
  %v6646 = vadd.f32 0.0, %v6645
  %v6647 = vpop.f32.mrb[0].mxu0
  %v6648 = vpop.f32.mrb[0].mxu0
  %v6649 = vadd.f32 0.0, %v6648
  %v6650 = vpop.f32.mrb[0].mxu0
  %6651 = vmatprep.mubr.bf16.mxu0 %v6437
  %6652 = vmatmul.mubr.bf16.gmra.mrb[0].mxu0 %v6224
  %v6653 = vpop.f32.mrb[0].mxu0
  %v6654 = vadd.f32 0.0, %v6653
  %v6655 = vpop.f32.mrb[0].mxu0
  %v6656 = vpop.f32.mrb[0].mxu0
  %v6657 = vadd.f32 0.0, %v6656
  %v6658 = vpop.f32.mrb[0].mxu0
  %6659 = vmatprep.mubr.bf16.mxu0 %v6440
  %6660 = vmatmul.mubr.bf16.gmra.mrb[0].mxu0 %v6226
  %v6661 = vpop.f32.mrb[0].mxu0
  %v6662 = vadd.f32 0.0, %v6661
  %v6663 = vpop.f32.mrb[0].mxu0
  %v6664 = vpop.f32.mrb[0].mxu0
  %v6665 = vadd.f32 0.0, %v6664
  %v6666 = vpop.f32.mrb[0].mxu0
  %6667 = vmatprep.mubr.bf16.mxu0 %v6443
  %6668 = vmatmul.mubr.bf16.gmra.mrb[0].mxu0 %v6228
  %v6669 = vpop.f32.mrb[0].mxu0
  %v6670 = vadd.f32 0.0, %v6669
  %v6671 = vpop.f32.mrb[0].mxu0
  %v6672 = vpop.f32.mrb[0].mxu0
  %v6673 = vadd.f32 0.0, %v6672
  %v6674 = vpop.f32.mrb[0].mxu0
  %6675 = vmatprep.mubr.bf16.mxu0 %v6446
  %6676 = vmatmul.mubr.bf16.gmra.mrb[0].mxu0 %v6230
  %v6677 = vpop.f32.mrb[0].mxu0
  %v6678 = vadd.f32 0.0, %v6677
  %v6679 = vpop.f32.mrb[0].mxu0
  %v6680 = vpop.f32.mrb[0].mxu0
  %v6681 = vadd.f32 0.0, %v6680
  %v6682 = vpop.f32.mrb[0].mxu0
  %6683 = vmatprep.mubr.bf16.mxu0 %v6449
  %6684 = vmatmul.mubr.bf16.gmra.mrb[0].mxu0 %v6232
  %v6685 = vpop.f32.mrb[0].mxu0
  %v6686 = vadd.f32 0.0, %v6685
  %v6687 = vpop.f32.mrb[0].mxu0
  %v6688 = vpop.f32.mrb[0].mxu0
  %v6689 = vadd.f32 0.0, %v6688
  %v6690 = vpop.f32.mrb[0].mxu0
  %6691 = vmatprep.mubr.bf16.mxu0 %v6452
  %6692 = vmatmul.mubr.bf16.gmra.mrb[0].mxu0 %v6234
  %v6693 = vpop.f32.mrb[0].mxu0
  %v6694 = vadd.f32 0.0, %v6693
  %v6695 = vpop.f32.mrb[0].mxu0
  %v6696 = vpop.f32.mrb[0].mxu0
  %v6697 = vadd.f32 0.0, %v6696
  %v6698 = vpop.f32.mrb[0].mxu0
  %6699 = vmatprep.mubr.bf16.mxu0 %v6455
  %6700 = vmatmul.mubr.bf16.gmra.mrb[0].mxu0 %v6236
  %v6701 = vpop.f32.mrb[0].mxu0
  %v6702 = vadd.f32 0.0, %v6701
  %v6703 = vpop.f32.mrb[0].mxu0
  %v6704 = vpop.f32.mrb[0].mxu0
  %v6705 = vadd.f32 0.0, %v6704
  %v6706 = vpop.f32.mrb[0].mxu0
  %6707 = vmatprep.mubr.bf16.mxu0 %v6458
  %6708 = vmatmul.mubr.bf16.gmra.mrb[0].mxu0 %v6238
  %v6709 = vpop.f32.mrb[0].mxu0
  %v6710 = vadd.f32 0.0, %v6709
  %v6711 = vpop.f32.mrb[0].mxu0
  %v6712 = vpop.f32.mrb[0].mxu0
  %v6713 = vadd.f32 0.0, %v6712
  %v6714 = vpop.f32.mrb[0].mxu0
  %6715 = vmatprep.mubr.bf16.mxu0 %v6461
  %6716 = vmatmul.mubr.bf16.gmra.mrb[0].mxu0 %v6240
  %v6717 = vpop.f32.mrb[0].mxu0
  %v6718 = vadd.f32 0.0, %v6717
  %v6719 = vpop.f32.mrb[0].mxu0
  %v6720 = vpop.f32.mrb[0].mxu0
  %v6721 = vadd.f32 0.0, %v6720
  %v6722 = vpop.f32.mrb[0].mxu0
  %6723 = vmatprep.mubr.bf16.mxu0 %v6464
  %6724 = vmatmul.mubr.bf16.gmra.mrb[0].mxu0 %v6242
  %v6725 = vpop.f32.mrb[0].mxu0
  %v6726 = vadd.f32 0.0, %v6725
  %v6727 = vpop.f32.mrb[0].mxu0
  %v6728 = vpop.f32.mrb[0].mxu0
  %v6729 = vadd.f32 0.0, %v6728
  %v6730 = vpop.f32.mrb[0].mxu0
  %6731 = vmatprep.mubr.bf16.mxu0 %v6467
  %6732 = vmatmul.mubr.bf16.gmra.mrb[0].mxu0 %v6244
  %v6733 = vpop.f32.mrb[0].mxu0
  %v6734 = vadd.f32 0.0, %v6733
  %v6735 = vpop.f32.mrb[0].mxu0
  %v6736 = vpop.f32.mrb[0].mxu0
  %v6737 = vadd.f32 0.0, %v6736
  %v6738 = vpop.f32.mrb[0].mxu0
  %6739 = vmatprep.mubr.bf16.mxu0 %v6470
  %6740 = vmatmul.mubr.bf16.gmra.mrb[0].mxu0 %v6246
  %v6741 = vpop.f32.mrb[0].mxu0
  %v6742 = vadd.f32 0.0, %v6741
  %v6743 = vpop.f32.mrb[0].mxu0
  %v6744 = vpop.f32.mrb[0].mxu0
  %v6745 = vadd.f32 0.0, %v6744
  %v6746 = vpop.f32.mrb[0].mxu0
  %6747 = vmatprep.mubr.bf16.mxu0 %v6473
  %6748 = vmatmul.mubr.bf16.gmra.mrb[0].mxu0 %v6248
  %v6749 = vpop.f32.mrb[0].mxu0
  %v6750 = vadd.f32 0.0, %v6749
  %v6751 = vpop.f32.mrb[0].mxu0
  %v6752 = vpop.f32.mrb[0].mxu0
  %v6753 = vadd.f32 0.0, %v6752
  %v6754 = vpop.f32.mrb[0].mxu0
  %6755 = vmatprep.mubr.bf16.mxu0 %v6476
  %6756 = vmatmul.mubr.bf16.gmra.mrb[0].mxu0 %v6250
  %v6757 = vpop.f32.mrb[0].mxu0
  %v6758 = vadd.f32 0.0, %v6757
  %v6759 = vpop.f32.mrb[0].mxu0
  %v6760 = vpop.f32.mrb[0].mxu0
  %v6761 = vadd.f32 0.0, %v6760
  %v6762 = vpop.f32.mrb[0].mxu0
  %6763 = vmatprep.mubr.bf16.mxu0 %v6479
  %6764 = vmatmul.mubr.bf16.gmra.mrb[0].mxu0 %v6252
  %v6765 = vpop.f32.mrb[0].mxu0
  %v6766 = vadd.f32 0.0, %v6765
  %v6767 = vpop.f32.mrb[0].mxu0
  %v6768 = vpop.f32.mrb[0].mxu0
  %v6769 = vadd.f32 0.0, %v6768
  %v6770 = vpop.f32.mrb[0].mxu0
  %6771 = vmatprep.mubr.bf16.mxu0 %v6482
  %6772 = vmatmul.mubr.bf16.gmra.mrb[0].mxu0 %v6254
  %v6773 = vpop.f32.mrb[0].mxu0
  %v6774 = vadd.f32 0.0, %v6773
  %v6775 = vpop.f32.mrb[0].mxu0
  %v6776 = vpop.f32.mrb[0].mxu0
  %v6777 = vadd.f32 0.0, %v6776
  %v6778 = vpop.f32.mrb[0].mxu0
  %6779 = vmatprep.mubr.bf16.mxu0 %v6485
  %6780 = vmatmul.mubr.bf16.gmra.mrb[0].mxu0 %v6256
  %v6781 = vpop.f32.mrb[0].mxu0
  %v6782 = vadd.f32 0.0, %v6781
  %v6783 = vpop.f32.mrb[0].mxu0
  %v6784 = vpop.f32.mrb[0].mxu0
  %v6785 = vadd.f32 0.0, %v6784
  %v6786 = vpop.f32.mrb[0].mxu0
  %6787 = vmatprep.mubr.bf16.mxu0 %v6488
  %6788 = vmatmul.mubr.bf16.gmra.mrb[0].mxu0 %v6258
  %v6789 = vpop.f32.mrb[0].mxu0
  %v6790 = vadd.f32 0.0, %v6789
  %v6791 = vpop.f32.mrb[0].mxu0
  %v6792 = vpop.f32.mrb[0].mxu0
  %v6793 = vadd.f32 0.0, %v6792
  %v6794 = vpop.f32.mrb[0].mxu0
  %6795 = vmatprep.mubr.bf16.mxu0 %v6491
  %6796 = vmatmul.mubr.bf16.gmra.mrb[0].mxu0 %v6260
  %v6797 = vpop.f32.mrb[0].mxu0
  %v6798 = vadd.f32 0.0, %v6797
  %v6799 = vpop.f32.mrb[0].mxu0
  %v6800 = vpop.f32.mrb[0].mxu0
  %v6801 = vadd.f32 0.0, %v6800
  %v6802 = vpop.f32.mrb[0].mxu0
  %6803 = vmatprep.mubr.bf16.mxu0 %v6494
  %6804 = vmatmul.mubr.bf16.gmra.mrb[0].mxu0 %v6262
  %v6805 = vpop.f32.mrb[0].mxu0
  %v6806 = vadd.f32 0.0, %v6805
  %v6807 = vpop.f32.mrb[0].mxu0
  %v6808 = vpop.f32.mrb[0].mxu0
  %v6809 = vadd.f32 0.0, %v6808
  %v6810 = vpop.f32.mrb[0].mxu0
  %6811 = vmatprep.mubr.bf16.mxu0 %v6497
  %6812 = vmatmul.mubr.bf16.gmra.mrb[0].mxu0 %v6264
  %v6813 = vpop.f32.mrb[0].mxu0
  %v6814 = vadd.f32 0.0, %v6813
  %v6815 = vpop.f32.mrb[0].mxu0
  %v6816 = vpop.f32.mrb[0].mxu0
  %v6817 = vadd.f32 0.0, %v6816
  %v6818 = vpop.f32.mrb[0].mxu0
  %6819 = vmatprep.mubr.bf16.mxu0 %v6500
  %6820 = vmatmul.mubr.bf16.gmra.mrb[0].mxu0 %v6266
  %v6821 = vpop.f32.mrb[0].mxu0
  %v6822 = vadd.f32 0.0, %v6821
  %v6823 = vpop.f32.mrb[0].mxu0
  %v6824 = vpop.f32.mrb[0].mxu0
  %v6825 = vadd.f32 0.0, %v6824
  %v6826 = vpop.f32.mrb[0].mxu0
  %6827 = vmatprep.mubr.bf16.mxu0 %v6503
  %6828 = vmatmul.mubr.bf16.gmra.mrb[0].mxu0 %v6268
  %v6829 = vpop.f32.mrb[0].mxu0
  %v6830 = vadd.f32 0.0, %v6829
  %v6831 = vpop.f32.mrb[0].mxu0
  %v6832 = vpop.f32.mrb[0].mxu0
  %v6833 = vadd.f32 0.0, %v6832
  %v6834 = vpop.f32.mrb[0].mxu0
  %6835 = vmatprep.mubr.bf16.mxu0 %v6506
  %6836 = vmatmul.mubr.bf16.gmra.mrb[0].mxu0 %v6270
  %v6837 = vpop.f32.mrb[0].mxu0
  %v6838 = vadd.f32 0.0, %v6837
  %v6839 = vpop.f32.mrb[0].mxu0
  %v6840 = vpop.f32.mrb[0].mxu0
  %v6841 = vadd.f32 0.0, %v6840
  %v6842 = vpop.f32.mrb[0].mxu0
  %6843 = vmatprep.mubr.bf16.mxu0 %v6509
  %6844 = vmatmul.mubr.bf16.gmra.mrb[0].mxu0 %v6272
  %v6845 = vpop.f32.mrb[0].mxu0
  %v6846 = vadd.f32 0.0, %v6845
  %v6847 = vpop.f32.mrb[0].mxu0
  %v6848 = vpop.f32.mrb[0].mxu0
  %v6849 = vadd.f32 0.0, %v6848
  %v6850 = vpop.f32.mrb[0].mxu0
  %6851 = vmatprep.mubr.bf16.mxu0 %v6512
  %6852 = vmatmul.mubr.bf16.gmra.mrb[0].mxu0 %v6274
  %v6853 = vpop.f32.mrb[0].mxu0
  %v6854 = vadd.f32 0.0, %v6853
  %v6855 = vpop.f32.mrb[0].mxu0
  %v6856 = vpop.f32.mrb[0].mxu0
  %v6857 = vadd.f32 0.0, %v6856
  %v6858 = vpop.f32.mrb[0].mxu0
  %6859 = vmatprep.mubr.bf16.mxu0 %v6515
  %6860 = vmatmul.mubr.bf16.gmra.mrb[0].mxu0 %v6276
  %v6861 = vpop.f32.mrb[0].mxu0
  %v6862 = vadd.f32 0.0, %v6861
  %v6863 = vpop.f32.mrb[0].mxu0
  %v6864 = vpop.f32.mrb[0].mxu0
  %v6865 = vadd.f32 0.0, %v6864
  %v6866 = vpop.f32.mrb[0].mxu0
  %6867 = vmatprep.mubr.bf16.mxu0 %v6518
  %6868 = vmatmul.mubr.bf16.gmra.mrb[0].mxu0 %v6278
  %v6869 = vpop.f32.mrb[0].mxu0
  %v6870 = vadd.f32 0.0, %v6869
  %v6871 = vpop.f32.mrb[0].mxu0
  %v6872 = vpop.f32.mrb[0].mxu0
  %v6873 = vadd.f32 0.0, %v6872
  %v6874 = vpop.f32.mrb[0].mxu0
  %6875 = vmatprep.mubr.bf16.mxu0 %v6521
  %6876 = vmatmul.mubr.bf16.gmra.mrb[0].mxu0 %v6280
  %v6877 = vpop.f32.mrb[0].mxu0
  %v6878 = vadd.f32 0.0, %v6877
  %v6879 = vpop.f32.mrb[0].mxu0
  %v6880 = vpop.f32.mrb[0].mxu0
  %v6881 = vadd.f32 0.0, %v6880
  %v6882 = vpop.f32.mrb[0].mxu0
  %6883 = vmatprep.mubr.bf16.mxu0 %v6524
  %6884 = vmatmul.mubr.bf16.gmra.mrb[0].mxu0 %v6282
  %v6885 = vpop.f32.mrb[0].mxu0
  %v6886 = vadd.f32 0.0, %v6885
  %v6887 = vpop.f32.mrb[0].mxu0
  %v6888 = vpop.f32.mrb[0].mxu0
  %v6889 = vadd.f32 0.0, %v6888
  %v6890 = vpop.f32.mrb[0].mxu0
  %6891 = vmatprep.mubr.bf16.mxu0 %v6527
  %6892 = vmatmul.mubr.bf16.gmra.mrb[0].mxu0 %v6284
  %v6893 = vpop.f32.mrb[0].mxu0
  %v6894 = vadd.f32 0.0, %v6893
  %v6895 = vpop.f32.mrb[0].mxu0
  %v6896 = vpop.f32.mrb[0].mxu0
  %v6897 = vadd.f32 0.0, %v6896
  %v6898 = vpop.f32.mrb[0].mxu0
  %6899 = vmatprep.mubr.bf16.mxu0 %v6530
  %6900 = vmatmul.mubr.bf16.gmra.mrb[0].mxu0 %v6286
  %v6901 = vpop.f32.mrb[0].mxu0
  %v6902 = vadd.f32 0.0, %v6901
  %v6903 = vpop.f32.mrb[0].mxu0
  %v6904 = vpop.f32.mrb[0].mxu0
  %v6905 = vadd.f32 0.0, %v6904
  %v6906 = vpop.f32.mrb[0].mxu0
  %6907 = vmatprep.mubr.bf16.mxu0 %v6533
  %6908 = vmatmul.mubr.bf16.gmra.mrb[0].mxu0 %v6288
  %v6909 = vpop.f32.mrb[0].mxu0
  %v6910 = vadd.f32 0.0, %v6909
  %v6911 = vpop.f32.mrb[0].mxu0
  %v6912 = vpop.f32.mrb[0].mxu0
  %v6913 = vadd.f32 0.0, %v6912
  %v6914 = vpop.f32.mrb[0].mxu0
  %6915 = vmatprep.mubr.bf16.mxu0 %v6536
  %6916 = vmatmul.mubr.bf16.gmra.mrb[0].mxu0 %v6290
  %v6917 = vpop.f32.mrb[0].mxu0
  %v6918 = vadd.f32 0.0, %v6917
  %v6919 = vpop.f32.mrb[0].mxu0
  %v6920 = vpop.f32.mrb[0].mxu0
  %v6921 = vadd.f32 0.0, %v6920
  %v6922 = vpop.f32.mrb[0].mxu0
  %6923 = vmatprep.mubr.bf16.mxu0 %v6539
  %6924 = vmatmul.mubr.bf16.gmra.mrb[0].mxu0 %v6292
  %v6925 = vpop.f32.mrb[0].mxu0
  %v6926 = vadd.f32 0.0, %v6925
  %v6927 = vpop.f32.mrb[0].mxu0
  %v6928 = vpop.f32.mrb[0].mxu0
  %v6929 = vadd.f32 0.0, %v6928
  %v6930 = vpop.f32.mrb[0].mxu0
  %6931 = vmatprep.mubr.bf16.mxu0 %v6542
  %6932 = vmatmul.mubr.bf16.gmra.mrb[0].mxu0 %v6294
  %v6933 = vpop.f32.mrb[0].mxu0
  %v6934 = vadd.f32 0.0, %v6933
  %v6935 = vpop.f32.mrb[0].mxu0
  %v6936 = vpop.f32.mrb[0].mxu0
  %v6937 = vadd.f32 0.0, %v6936
  %v6938 = vpop.f32.mrb[0].mxu0
  %6939 = vmatprep.mubr.bf16.mxu0 %v6545
  %6940 = vmatmul.mubr.bf16.gmra.mrb[0].mxu0 %v6296
  %v6941 = vpop.f32.mrb[0].mxu0
  %v6942 = vadd.f32 0.0, %v6941
  %v6943 = vpop.f32.mrb[0].mxu0
  %v6944 = vpop.f32.mrb[0].mxu0
  %v6945 = vadd.f32 0.0, %v6944
  %v6946 = vpop.f32.mrb[0].mxu0
  %6947 = vmatprep.mubr.bf16.mxu0 %v6548
  %6948 = vmatmul.mubr.bf16.gmra.mrb[0].mxu0 %v6298
  %v6949 = vpop.f32.mrb[0].mxu0
  %v6950 = vadd.f32 0.0, %v6949
  %v6951 = vpop.f32.mrb[0].mxu0
  %v6952 = vpop.f32.mrb[0].mxu0
  %v6953 = vadd.f32 0.0, %v6952
  %v6954 = vpop.f32.mrb[0].mxu0
  %6955 = vmatprep.mubr.bf16.mxu0 %v6551
  %6956 = vmatmul.mubr.bf16.gmra.mrb[0].mxu0 %v6300
  %v6957 = vpop.f32.mrb[0].mxu0
  %v6958 = vadd.f32 0.0, %v6957
  %v6959 = vpop.f32.mrb[0].mxu0
  %v6960 = vpop.f32.mrb[0].mxu0
  %v6961 = vadd.f32 0.0, %v6960
  %v6962 = vpop.f32.mrb[0].mxu0
  %6963 = vmatprep.mubr.bf16.mxu0 %v6554
  %6964 = vmatmul.mubr.bf16.gmra.mrb[0].mxu0 %v6302
  %v6965 = vpop.f32.mrb[0].mxu0
  %v6966 = vadd.f32 0.0, %v6965
  %v6967 = vpop.f32.mrb[0].mxu0
  %v6968 = vpop.f32.mrb[0].mxu0
  %v6969 = vadd.f32 0.0, %v6968
  %v6970 = vpop.f32.mrb[0].mxu0
  %6971 = vmatprep.mubr.bf16.mxu0 %v6557
  %6972 = vmatmul.mubr.bf16.gmra.mrb[0].mxu0 %v6304
  %v6973 = vpop.f32.mrb[0].mxu0
  %v6974 = vadd.f32 0.0, %v6973
  %v6975 = vpop.f32.mrb[0].mxu0
  %v6976 = vpop.f32.mrb[0].mxu0
  %v6977 = vadd.f32 0.0, %v6976
  %v6978 = vpop.f32.mrb[0].mxu0
  %6979 = vmatprep.mubr.bf16.mxu0 %v6560
  %6980 = vmatmul.mubr.bf16.gmra.mrb[0].mxu0 %v6306
  %v6981 = vpop.f32.mrb[0].mxu0
  %v6982 = vadd.f32 0.0, %v6981
  %v6983 = vpop.f32.mrb[0].mxu0
  %v6984 = vpop.f32.mrb[0].mxu0
  %v6985 = vadd.f32 0.0, %v6984
  %v6986 = vpop.f32.mrb[0].mxu0
  %6987 = vmatprep.mubr.bf16.mxu0 %v6563
  %6988 = vmatmul.mubr.bf16.gmra.mrb[0].mxu0 %v6308
  %v6989 = vpop.f32.mrb[0].mxu0
  %v6990 = vadd.f32 0.0, %v6989
  %v6991 = vpop.f32.mrb[0].mxu0
  %v6992 = vpop.f32.mrb[0].mxu0
  %v6993 = vadd.f32 0.0, %v6992
  %v6994 = vpop.f32.mrb[0].mxu0
  %6995 = vmatprep.mubr.bf16.mxu0 %v6566
  %6996 = vmatmul.mubr.bf16.gmra.mrb[0].mxu0 %v6310
  %v6997 = vpop.f32.mrb[0].mxu0
  %v6998 = vadd.f32 0.0, %v6997
  %v6999 = vpop.f32.mrb[0].mxu0
  %v7000 = vpop.f32.mrb[0].mxu0
  %v7001 = vadd.f32 0.0, %v7000
  %v7002 = vpop.f32.mrb[0].mxu0
  %7003 = vmatprep.mubr.bf16.mxu0 %v6569
  %7004 = vmatmul.mubr.bf16.gmra.mrb[0].mxu0 %v6312
  %v7005 = vpop.f32.mrb[0].mxu0
  %v7006 = vadd.f32 0.0, %v7005
  %v7007 = vpop.f32.mrb[0].mxu0
  %v7008 = vpop.f32.mrb[0].mxu0
  %v7009 = vadd.f32 0.0, %v7008
  %v7010 = vpop.f32.mrb[0].mxu0
  %7011 = vmatprep.mubr.bf16.mxu0 %v6572
  %7012 = vmatmul.mubr.bf16.gmra.mrb[0].mxu0 %v6314
  %v7013 = vpop.f32.mrb[0].mxu0
  %v7014 = vadd.f32 0.0, %v7013
  %v7015 = vpop.f32.mrb[0].mxu0
  %v7016 = vpop.f32.mrb[0].mxu0
  %v7017 = vadd.f32 0.0, %v7016
  %v7018 = vpop.f32.mrb[0].mxu0
  %7019 = vmatprep.mubr.bf16.mxu0 %v6575
  %7020 = vmatmul.mubr.bf16.gmra.mrb[0].mxu0 %v6316
  %v7021 = vpop.f32.mrb[0].mxu0
  %v7022 = vadd.f32 0.0, %v7021
  %v7023 = vpop.f32.mrb[0].mxu0
  %v7024 = vpop.f32.mrb[0].mxu0
  %v7025 = vadd.f32 0.0, %v7024
  %v7026 = vpop.f32.mrb[0].mxu0
  %7027 = vmatprep.mubr.bf16.mxu0 %v6578
  %7028 = vmatmul.mubr.bf16.gmra.mrb[0].mxu0 %v6318
  %v7029 = vpop.f32.mrb[0].mxu0
  %v7030 = vadd.f32 0.0, %v7029
  %v7031 = vpop.f32.mrb[0].mxu0
  %v7032 = vpop.f32.mrb[0].mxu0
  %v7033 = vadd.f32 0.0, %v7032
  %v7034 = vpop.f32.mrb[0].mxu0
  %7035 = vmatprep.mubr.bf16.mxu0 %v6581
  %7036 = vmatmul.mubr.bf16.gmra.mrb[0].mxu0 %v6320
  %v7037 = vpop.f32.mrb[0].mxu0
  %v7038 = vadd.f32 0.0, %v7037
  %v7039 = vpop.f32.mrb[0].mxu0
  %v7040 = vpop.f32.mrb[0].mxu0
  %v7041 = vadd.f32 0.0, %v7040
  %v7042 = vpop.f32.mrb[0].mxu0
  %7043 = vmatprep.mubr.bf16.mxu0 %v6584
  %7044 = vmatmul.mubr.bf16.gmra.mrb[0].mxu0 %v6322
  %v7045 = vpop.f32.mrb[0].mxu0
  %v7046 = vadd.f32 0.0, %v7045
  %v7047 = vpop.f32.mrb[0].mxu0
  %v7048 = vpop.f32.mrb[0].mxu0
  %v7049 = vadd.f32 0.0, %v7048
  %v7050 = vpop.f32.mrb[0].mxu0
  %7051 = vmatprep.mubr.bf16.mxu0 %v6587
  %7052 = vmatmul.mubr.bf16.gmra.mrb[0].mxu0 %v6324
  %v7053 = vpop.f32.mrb[0].mxu0
  %v7054 = vadd.f32 0.0, %v7053
  %v7055 = vpop.f32.mrb[0].mxu0
  %v7056 = vpop.f32.mrb[0].mxu0
  %v7057 = vadd.f32 0.0, %v7056
  %v7058 = vpop.f32.mrb[0].mxu0
  %7059 = vmatprep.mubr.bf16.mxu0 %v6590
  %7060 = vmatmul.mubr.bf16.gmra.mrb[0].mxu0 %v6326
  %v7061 = vpop.f32.mrb[0].mxu0
  %v7062 = vadd.f32 0.0, %v7061
  %v7063 = vpop.f32.mrb[0].mxu0
  %v7064 = vpop.f32.mrb[0].mxu0
  %v7065 = vadd.f32 0.0, %v7064
  %v7066 = vpop.f32.mrb[0].mxu0
  %7067 = vmatprep.mubr.bf16.mxu0 %v6593
  %7068 = vmatmul.mubr.bf16.gmra.mrb[0].mxu0 %v6328
  %v7069 = vpop.f32.mrb[0].mxu0
  %v7070 = vadd.f32 0.0, %v7069
  %v7071 = vpop.f32.mrb[0].mxu0
  %v7072 = vpop.f32.mrb[0].mxu0
  %v7073 = vadd.f32 0.0, %v7072
  %v7074 = vpop.f32.mrb[0].mxu0
  %7075 = vdwg.mxu0
  %v7076 = vadd.f32 %v6106, %v6630
  %v7077 = vadd.f32 %v6107, %v6633
  %v7078 = vadd.f32 %v6108, %v6638
  %v7079 = vadd.f32 %v6109, %v6641
  %v7080 = vadd.f32 %v6110, %v6646
  %v7081 = vadd.f32 %v6111, %v6649
  %v7082 = vadd.f32 %v6112, %v6654
  %v7083 = vadd.f32 %v6113, %v6657
  %v7084 = vadd.f32 %v6114, %v6662
  %v7085 = vadd.f32 %v6115, %v6665
  %v7086 = vadd.f32 %v6116, %v6670
  %v7087 = vadd.f32 %v6117, %v6673
  %v7088 = vadd.f32 %v6118, %v6678
  %v7089 = vadd.f32 %v6119, %v6681
  %v7090 = vadd.f32 %v6120, %v6686
  %v7091 = vadd.f32 %v6121, %v6689
  %v7092 = vadd.f32 %v6122, %v6694
  %v7093 = vadd.f32 %v6123, %v6697
  %v7094 = vadd.f32 %v6124, %v6702
  %v7095 = vadd.f32 %v6125, %v6705
  %v7096 = vadd.f32 %v6126, %v6710
  %v7097 = vadd.f32 %v6127, %v6713
  %v7098 = vadd.f32 %v6128, %v6718
  %v7099 = vadd.f32 %v6129, %v6721
  %v7100 = vadd.f32 %v6130, %v6726
  %v7101 = vadd.f32 %v6131, %v6729
  %v7102 = vadd.f32 %v6132, %v6734
  %v7103 = vadd.f32 %v6133, %v6737
  %v7104 = vadd.f32 %v6134, %v6742
  %v7105 = vadd.f32 %v6135, %v6745
  %v7106 = vadd.f32 %v6136, %v6750
  %v7107 = vadd.f32 %v6137, %v6753
  %v7108 = vadd.f32 %v6138, %v6758
  %v7109 = vadd.f32 %v6139, %v6761
  %v7110 = vadd.f32 %v6140, %v6766
  %v7111 = vadd.f32 %v6141, %v6769
  %v7112 = vadd.f32 %v6142, %v6774
  %v7113 = vadd.f32 %v6143, %v6777
  %v7114 = vadd.f32 %v6144, %v6782
  %v7115 = vadd.f32 %v6145, %v6785
  %v7116 = vadd.f32 %v6146, %v6790
  %v7117 = vadd.f32 %v6147, %v6793
  %v7118 = vadd.f32 %v6148, %v6798
  %v7119 = vadd.f32 %v6149, %v6801
  %v7120 = vadd.f32 %v6150, %v6806
  %v7121 = vadd.f32 %v6151, %v6809
  %v7122 = vadd.f32 %v6152, %v6814
  %v7123 = vadd.f32 %v6153, %v6817
  %v7124 = vadd.f32 %v6154, %v6822
  %v7125 = vadd.f32 %v6155, %v6825
  %v7126 = vadd.f32 %v6156, %v6830
  %v7127 = vadd.f32 %v6157, %v6833
  %v7128 = vadd.f32 %v6158, %v6838
  %v7129 = vadd.f32 %v6159, %v6841
  %v7130 = vadd.f32 %v6160, %v6846
  %v7131 = vadd.f32 %v6161, %v6849
  %v7132 = vadd.f32 %v6162, %v6854
  %v7133 = vadd.f32 %v6163, %v6857
  %v7134 = vadd.f32 %v6164, %v6862
  %v7135 = vadd.f32 %v6165, %v6865
  %v7136 = vadd.f32 %v6166, %v6870
  %v7137 = vadd.f32 %v6167, %v6873
  %v7138 = vadd.f32 %v6168, %v6878
  %v7139 = vadd.f32 %v6169, %v6881
  %v7140 = vadd.f32 %v6170, %v6886
  %v7141 = vadd.f32 %v6171, %v6889
  %v7142 = vadd.f32 %v6172, %v6894
  %v7143 = vadd.f32 %v6173, %v6897
  %v7144 = vadd.f32 %v6174, %v6902
  %v7145 = vadd.f32 %v6175, %v6905
  %v7146 = vadd.f32 %v6176, %v6910
  %v7147 = vadd.f32 %v6177, %v6913
  %v7148 = vadd.f32 %v6178, %v6918
  %v7149 = vadd.f32 %v6179, %v6921
  %v7150 = vadd.f32 %v6180, %v6926
  %v7151 = vadd.f32 %v6181, %v6929
  %v7152 = vadd.f32 %v6182, %v6934
  %v7153 = vadd.f32 %v6183, %v6937
  %v7154 = vadd.f32 %v6184, %v6942
  %v7155 = vadd.f32 %v6185, %v6945
  %v7156 = vadd.f32 %v6186, %v6950
  %v7157 = vadd.f32 %v6187, %v6953
  %v7158 = vadd.f32 %v6188, %v6958
  %v7159 = vadd.f32 %v6189, %v6961
  %v7160 = vadd.f32 %v6190, %v6966
  %v7161 = vadd.f32 %v6191, %v6969
  %v7162 = vadd.f32 %v6192, %v6974
  %v7163 = vadd.f32 %v6193, %v6977
  %v7164 = vadd.f32 %v6194, %v6982
  %v7165 = vadd.f32 %v6195, %v6985
  %v7166 = vadd.f32 %v6196, %v6990
  %v7167 = vadd.f32 %v6197, %v6993
  %v7168 = vadd.f32 %v6198, %v6998
  %v7169 = vadd.f32 %v6199, %v7001
  %v7170 = vadd.f32 %v6200, %v7006
  %v7171 = vadd.f32 %v6201, %v7009
  %v7172 = vadd.f32 %v6202, %v7014
  %v7173 = vadd.f32 %v6203, %v7017
  %v7174 = vadd.f32 %v6204, %v7022
  %v7175 = vadd.f32 %v6205, %v7025
  %v7176 = vadd.f32 %v6206, %v7030
  %v7177 = vadd.f32 %v6207, %v7033
  %v7178 = vadd.f32 %v6208, %v7038
  %v7179 = vadd.f32 %v6209, %v7041
  %v7180 = vadd.f32 %v6210, %v7046
  %v7181 = vadd.f32 %v6211, %v7049
  %v7182 = vadd.f32 %v6212, %v7054
  %v7183 = vadd.f32 %v6213, %v7057
  %v7184 = vadd.f32 %v6214, %v7062
  %v7185 = vadd.f32 %v6215, %v7065
  %v7186 = vadd.f32 %v6216, %v7070
  %v7187 = vadd.f32 %v6217, %v7073
  %7188 = vst [vmem:[%s2] sm:$0xff] %v7076
  %7189 = vst [vmem:[%s2 + $0x8] sm:$0xff] %v7077
  %7190 = vst [vmem:[%s2 + $0x10] sm:$0xff] %v7078
  %7191 = vst [vmem:[%s2 + $0x18] sm:$0xff] %v7079
  %7192 = vst [vmem:[%s2 + $0x20] sm:$0xff] %v7080
  %7193 = vst [vmem:[%s2 + $0x28] sm:$0xff] %v7081
  %7194 = vst [vmem:[%s2 + $0x30] sm:$0xff] %v7082
  %7195 = vst [vmem:[%s2 + $0x38] sm:$0xff] %v7083
  %7196 = vst [vmem:[%s2 + $0x40] sm:$0xff] %v7084
  %7197 = vst [vmem:[%s2 + $0x48] sm:$0xff] %v7085
  %7198 = vst [vmem:[%s2 + $0x50] sm:$0xff] %v7086
  %7199 = vst [vmem:[%s2 + $0x58] sm:$0xff] %v7087
  %7200 = vst [vmem:[%s2 + $0x60] sm:$0xff] %v7088
  %7201 = vst [vmem:[%s2 + $0x68] sm:$0xff] %v7089
  %7202 = vst [vmem:[%s2 + $0x70] sm:$0xff] %v7090
  %7203 = vst [vmem:[%s2 + $0x78] sm:$0xff] %v7091
  %7204 = vst [vmem:[%s2 + $0x80] sm:$0xff] %v7092
  %7205 = vst [vmem:[%s2 + $0x88] sm:$0xff] %v7093
  %7206 = vst [vmem:[%s2 + $0x90] sm:$0xff] %v7094
  %7207 = vst [vmem:[%s2 + $0x98] sm:$0xff] %v7095
  %7208 = vst [vmem:[%s2 + $0xa0] sm:$0xff] %v7096
  %7209 = vst [vmem:[%s2 + $0xa8] sm:$0xff] %v7097
  %7210 = vst [vmem:[%s2 + $0xb0] sm:$0xff] %v7098
  %7211 = vst [vmem:[%s2 + $0xb8] sm:$0xff] %v7099
  %7212 = vst [vmem:[%s2 + $0xc0] sm:$0xff] %v7100
  %7213 = vst [vmem:[%s2 + $0xc8] sm:$0xff] %v7101
  %7214 = vst [vmem:[%s2 + $0xd0] sm:$0xff] %v7102
  %7215 = vst [vmem:[%s2 + $0xd8] sm:$0xff] %v7103
  %7216 = vst [vmem:[%s2 + $0xe0] sm:$0xff] %v7104
  %7217 = vst [vmem:[%s2 + $0xe8] sm:$0xff] %v7105
  %7218 = vst [vmem:[%s2 + $0xf0] sm:$0xff] %v7106
  %7219 = vst [vmem:[%s2 + $0xf8] sm:$0xff] %v7107
  %7220 = vst [vmem:[%s2 + $0x100] sm:$0xff] %v7108
  %7221 = vst [vmem:[%s2 + $0x108] sm:$0xff] %v7109
  %7222 = vst [vmem:[%s2 + $0x110] sm:$0xff] %v7110
  %7223 = vst [vmem:[%s2 + $0x118] sm:$0xff] %v7111
  %7224 = vst [vmem:[%s2 + $0x120] sm:$0xff] %v7112
  %7225 = vst [vmem:[%s2 + $0x128] sm:$0xff] %v7113
  %7226 = vst [vmem:[%s2 + $0x130] sm:$0xff] %v7114
  %7227 = vst [vmem:[%s2 + $0x138] sm:$0xff] %v7115
  %7228 = vst [vmem:[%s2 + $0x140] sm:$0xff] %v7116
  %7229 = vst [vmem:[%s2 + $0x148] sm:$0xff] %v7117
  %7230 = vst [vmem:[%s2 + $0x150] sm:$0xff] %v7118
  %7231 = vst [vmem:[%s2 + $0x158] sm:$0xff] %v7119
  %7232 = vst [vmem:[%s2 + $0x160] sm:$0xff] %v7120
  %7233 = vst [vmem:[%s2 + $0x168] sm:$0xff] %v7121
  %7234 = vst [vmem:[%s2 + $0x170] sm:$0xff] %v7122
  %7235 = vst [vmem:[%s2 + $0x178] sm:$0xff] %v7123
  %7236 = vst [vmem:[%s2 + $0x180] sm:$0xff] %v7124
  %7237 = vst [vmem:[%s2 + $0x188] sm:$0xff] %v7125
  %7238 = vst [vmem:[%s2 + $0x190] sm:$0xff] %v7126
  %7239 = vst [vmem:[%s2 + $0x198] sm:$0xff] %v7127
  %7240 = vst [vmem:[%s2 + $0x1a0] sm:$0xff] %v7128
  %7241 = vst [vmem:[%s2 + $0x1a8] sm:$0xff] %v7129
  %7242 = vst [vmem:[%s2 + $0x1b0] sm:$0xff] %v7130
  %7243 = vst [vmem:[%s2 + $0x1b8] sm:$0xff] %v7131
  %7244 = vst [vmem:[%s2 + $0x1c0] sm:$0xff] %v7132
  %7245 = vst [vmem:[%s2 + $0x1c8] sm:$0xff] %v7133
  %7246 = vst [vmem:[%s2 + $0x1d0] sm:$0xff] %v7134
  %7247 = vst [vmem:[%s2 + $0x1d8] sm:$0xff] %v7135
  %7248 = vst [vmem:[%s2 + $0x1e0] sm:$0xff] %v7136
  %7249 = vst [vmem:[%s2 + $0x1e8] sm:$0xff] %v7137
  %7250 = vst [vmem:[%s2 + $0x1f0] sm:$0xff] %v7138
  %7251 = vst [vmem:[%s2 + $0x1f8] sm:$0xff] %v7139
  %7252 = vst [vmem:[%s2 + $0x200] sm:$0xff] %v7140
  %7253 = vst [vmem:[%s2 + $0x208] sm:$0xff] %v7141
  %7254 = vst [vmem:[%s2 + $0x210] sm:$0xff] %v7142
  %7255 = vst [vmem:[%s2 + $0x218] sm:$0xff] %v7143
  %7256 = vst [vmem:[%s2 + $0x220] sm:$0xff] %v7144
  %7257 = vst [vmem:[%s2 + $0x228] sm:$0xff] %v7145
  %7258 = vst [vmem:[%s2 + $0x230] sm:$0xff] %v7146
  %7259 = vst [vmem:[%s2 + $0x238] sm:$0xff] %v7147
  %7260 = vst [vmem:[%s2 + $0x240] sm:$0xff] %v7148
  %7261 = vst [vmem:[%s2 + $0x248] sm:$0xff] %v7149
  %7262 = vst [vmem:[%s2 + $0x250] sm:$0xff] %v7150
  %7263 = vst [vmem:[%s2 + $0x258] sm:$0xff] %v7151
  %7264 = vst [vmem:[%s2 + $0x260] sm:$0xff] %v7152
  %7265 = vst [vmem:[%s2 + $0x268] sm:$0xff] %v7153
  %7266 = vst [vmem:[%s2 + $0x270] sm:$0xff] %v7154
  %7267 = vst [vmem:[%s2 + $0x278] sm:$0xff] %v7155
  %7268 = vst [vmem:[%s2 + $0x280] sm:$0xff] %v7156
  %7269 = vst [vmem:[%s2 + $0x288] sm:$0xff] %v7157
  %7270 = vst [vmem:[%s2 + $0x290] sm:$0xff] %v7158
  %7271 = vst [vmem:[%s2 + $0x298] sm:$0xff] %v7159
  %7272 = vst [vmem:[%s2 + $0x2a0] sm:$0xff] %v7160
  %7273 = vst [vmem:[%s2 + $0x2a8] sm:$0xff] %v7161
  %7274 = vst [vmem:[%s2 + $0x2b0] sm:$0xff] %v7162
  %7275 = vst [vmem:[%s2 + $0x2b8] sm:$0xff] %v7163
  %7276 = vst [vmem:[%s2 + $0x2c0] sm:$0xff] %v7164
  %7277 = vst [vmem:[%s2 + $0x2c8] sm:$0xff] %v7165
  %7278 = vst [vmem:[%s2 + $0x2d0] sm:$0xff] %v7166
  %7279 = vst [vmem:[%s2 + $0x2d8] sm:$0xff] %v7167
  %7280 = vst [vmem:[%s2 + $0x2e0] sm:$0xff] %v7168
  %7281 = vst [vmem:[%s2 + $0x2e8] sm:$0xff] %v7169
  %7282 = vst [vmem:[%s2 + $0x2f0] sm:$0xff] %v7170
  %7283 = vst [vmem:[%s2 + $0x2f8] sm:$0xff] %v7171
  %7284 = vst [vmem:[%s2 + $0x300] sm:$0xff] %v7172
  %7285 = vst [vmem:[%s2 + $0x308] sm:$0xff] %v7173
  %7286 = vst [vmem:[%s2 + $0x310] sm:$0xff] %v7174
  %7287 = vst [vmem:[%s2 + $0x318] sm:$0xff] %v7175
  %7288 = vst [vmem:[%s2 + $0x320] sm:$0xff] %v7176
  %7289 = vst [vmem:[%s2 + $0x328] sm:$0xff] %v7177
  %7290 = vst [vmem:[%s2 + $0x330] sm:$0xff] %v7178
  %7291 = vst [vmem:[%s2 + $0x338] sm:$0xff] %v7179
  %7292 = vst [vmem:[%s2 + $0x340] sm:$0xff] %v7180
  %7293 = vst [vmem:[%s2 + $0x348] sm:$0xff] %v7181
  %7294 = vst [vmem:[%s2 + $0x350] sm:$0xff] %v7182
  %7295 = vst [vmem:[%s2 + $0x358] sm:$0xff] %v7183
  %7296 = vst [vmem:[%s2 + $0x360] sm:$0xff] %v7184
  %7297 = vst [vmem:[%s2 + $0x368] sm:$0xff] %v7185
  %7298 = vst [vmem:[%s2 + $0x370] sm:$0xff] %v7186
  %7299 = vst [vmem:[%s2 + $0x378] sm:$0xff] %v7187
  // Predicated region
  $region10: #{kernel_generated_2_forward.1} parent=0 // pred_check
    _
  $region11: #{kernel_generated_2_forward.1} parent=0 // pred_check_branch
    %7301 = sbr.rel (0) target = $region13
  $region12: #{kernel_generated_2_forward.1} parent=0 // pred_region
    _
  $region13: #{kernel_generated_2_forward.1} parent=0 // pred_fallthru
    _
  // Predicated region
  $region14: #{kernel_generated_2_forward.1} parent=0 // pred_check
    _
  $region15: #{kernel_generated_2_forward.1} parent=0 // pred_check_branch
    %7303 = sbr.rel (0) target = $region17
  $region16: #{kernel_generated_2_forward.1} parent=0 // pred_region
    _
  $region17: #{kernel_generated_2_forward.1} parent=0 // pred_fallthru
    _

</llo_original>
